<compile_context>
chip_gen: v5e
topology: v5e:2x2
jax: 0.10.0
libtpu: 0.0.40
codegen_flags: <defaults>
</compile_context>

<pallas_src>
import math

import numpy as np
import jax
import jax.numpy as jnp
from jax import lax
from jax.experimental import pallas as pl
from jax.experimental.pallas import tpu as pltpu

# ----------------------------------------------------------------------------
# Synthetic "json" superparams (deterministic stand-in for trumpetNetSuperparams)
# ----------------------------------------------------------------------------
LAYERS_KERNELS = {"layer1": 8, "layer2": 8}   # layer name -> out channels
KERNEL_SIZE = 3
CH_IN = 3
CH_OUT = 3
BN_EPS = 1e-5
LEAKY_SLOPE = 0.2
C_PAD = 8   # channel axis padded to 8 in the BN stat maps (zero pad -> no effect)


# ----------------------------------------------------------------------------
# Host-side constant builders (numpy, run once outside the kernel)
# ----------------------------------------------------------------------------
def _conv_band_matrix(w, width, planar_out=False):
    """w: (3,3,Cin,Cout) -> M: (3*width*Cin, width*Cout) such that the 3x3
    'same' conv on the zero-row-padded, channel-interleaved slab is a single
    K-contraction:  out[r, :] = [cur[r] | cur[r+1] | cur[r+2]] @ M."""
    _, _, cin, cout = w.shape
    lin = width * cin
    M = np.zeros((3 * lin, width * cout), np.float32)
    for dy in range(3):
        for x in range(width):
            for dx in range(3):
                xi = x - 1 + dx
                if 0 <= xi < width:
                    for co in range(cout):
                        lane = (co * width + x) if planar_out else (x * cout + co)
                        M[dy * lin + xi * cin: dy * lin + (xi + 1) * cin, lane] += w[dy, dx, :, co]
    return M


def _row_scatter_matrix(n, h):
    """(n*(h+2), n*(h+2)-2): drops the conv slab's boundary-garbage rows and
    re-inserts the zero padding rows:  padded_slab = R @ conv_out."""
    hp = h + 2
    R = np.zeros((n * hp, n * hp - 2), np.float32)
    for i in range(n):
        for y in range(h):
            R[i * hp + 1 + y, i * hp + y] = 1.0
    return R


def _upsample_row_matrix(n, h):
    """(n*(2h+2), n*(h+2)-2): vertical 2x bilinear (align_corners=False) that
    also re-inserts zero padding rows for the next conv."""
    hp_in, hp_out = h + 2, 2 * h + 2
    U = np.zeros((n * hp_out, n * hp_in - 2), np.float32)
    for i in range(n):
        for yo in range(2 * h):
            src = (yo + 0.5) / 2.0 - 0.5
            i0 = int(math.floor(src))
            f = src - i0
            for idx, wt in ((i0, 1.0 - f), (i0 + 1, f)):
                ii = min(max(idx, 0), h - 1)
                U[i * hp_out + 1 + yo, i * hp_in + ii] += wt
    return U


def _upsample_col_matrix(width, c):
    """(width*c, 2*width*c): horizontal 2x bilinear on channel-interleaved lanes."""
    U = np.zeros((width * c, 2 * width * c), np.float32)
    for xo in range(2 * width):
        src = (xo + 0.5) / 2.0 - 0.5
        i0 = int(math.floor(src))
        f = src - i0
        for idx, wt in ((i0, 1.0 - f), (i0 + 1, f)):
            xi = min(max(idx, 0), width - 1)
            for ch in range(c):
                U[xi * c + ch, xo * c + ch] += wt
    return U


def _channel_map_matrix(width, c, planar=False):
    """(C_PAD, width*c) 0/1 map: row ch marks all lanes belonging to channel ch.
    Rows c..C_PAD-1 stay zero (padded channels contribute nothing)."""
    G = np.zeros((C_PAD, width * c), np.float32)
    for x in range(width):
        for ch in range(c):
            lane = (ch * width + x) if planar else (x * c + ch)
            G[ch, lane] = 1.0
    return G


def _full_spec(shape):
    zeros = (0,) * len(shape)
    return pl.BlockSpec(shape, lambda i: zeros)


# ----------------------------------------------------------------------------
# Parameter init (deterministic, matches PyTorch module shapes)
# ----------------------------------------------------------------------------
def _init_conv_block(key, cin, cout, k):
    k1, k2 = jax.random.split(key, 2)
    return {
        # NOTE: Conv2d bias omitted on purpose - with training-mode BatchNorm
        # right after each conv, a per-channel bias is exactly cancelled by the
        # batch-mean subtraction, so this is mathematically identical.
        "w1": jax.random.normal(k1, (k, k, cin, cout), jnp.float32) * 0.1,
        "g1": jnp.ones((cout,), jnp.float32),
        "be1": jnp.zeros((cout,), jnp.float32),
        "w2": jax.random.normal(k2, (k, k, cout, cout), jnp.float32) * 0.1,
        "g2": jnp.ones((cout,), jnp.float32),
        "be2": jnp.zeros((cout,), jnp.float32),
    }


def init_trumpet_params(seed=42):
    key = jax.random.PRNGKey(seed)
    params = {}
    ch_pre = CH_IN
    for name, cout in LAYERS_KERNELS.items():
        key, sub = jax.random.split(key)
        params[name] = _init_conv_block(sub, ch_pre, cout, KERNEL_SIZE)
        ch_pre = cout
    key, sub = jax.random.split(key)
    params["out"] = _init_conv_block(sub, ch_pre, CH_OUT, KERNEL_SIZE)
    return params


# ----------------------------------------------------------------------------
# Fully-fused forward (single pallas_call)
# ----------------------------------------------------------------------------
def build_trumpet_forward(params, n_batch, h0, w0,
                          layers_kernels=LAYERS_KERNELS,
                          ch_in=CH_IN, ch_out=CH_OUT):
    f32 = jnp.float32
    bf16 = jnp.bfloat16

    # Forward-ordered conv list: (w, gamma, beta, cin, cout, H, W, act, after)
    conv_list = []
    ch_pre = ch_in
    h, w = h0, w0
    for name in layers_kernels:
        cout = layers_kernels[name]
        p = params[name]
        conv_list.append((p["w1"], p["g1"], p["be1"], ch_pre, cout, h, w, "leaky", "store"))
        conv_list.append((p["w2"], p["g2"], p["be2"], cout, cout, h, w, "leaky", "up"))
        ch_pre = cout
        h, w = 2 * h, 2 * w
    p = params["out"]
    conv_list.append((p["w1"], p["g1"], p["be1"], ch_pre, ch_out, h, w, "leaky", "store"))
    conv_list.append((p["w2"], p["g2"], p["be2"], ch_out, ch_out, h, w, "sigmoid", "out"))
    hf, wf = h, w                      # final spatial resolution
    rr_f = n_batch * (hf + 2) - 2      # rows of the final (unpadded) conv slab

    consts = []

    def add(arr):
        consts.append(arr)
        return len(consts) - 1

    # Packed constants.
    gmat_list, gmat_key = [], {}

    def gmat_idx(width, c, planar):
        key = (width, c, planar)
        if key not in gmat_key:
            gmat_key[key] = len(gmat_list)
            gmat_list.append(_channel_map_matrix(width, c, planar))
        return gmat_key[key]

    r_cache, uh_cache, uw_cache = {}, {}, {}

    def r_idx(hh):
        if hh not in r_cache:
            r_cache[hh] = add(jnp.asarray(_row_scatter_matrix(n_batch, hh), bf16))
        return r_cache[hh]

    bn_np = np.zeros((len(conv_list), 2, C_PAD), np.float32)
    specs = []
    for ci, (wgt, gam, bet, cin, cout, hh, ww, act, after) in enumerate(conv_list):
        planar = (after == "out")
        band = _conv_band_matrix(np.asarray(wgt, np.float32), ww, planar_out=planar)
        bn_np[ci, 0, :cout] = np.asarray(gam, np.float32)
        bn_np[ci, 1, :cout] = np.asarray(bet, np.float32)
        spec = {
            "H": hh, "W": ww, "cin": cin, "cout": cout, "act": act, "after": after,
            "band": add(jnp.asarray(band, bf16)),        # bf16 MXU operand
            "g": gmat_idx(ww, cout, planar),
            "ci": ci,
        }
        if after == "store":
            spec["r"] = r_idx(hh)
        if after == "up":
            if hh not in uh_cache:
                uh_cache[hh] = add(jnp.asarray(_upsample_row_matrix(n_batch, hh), bf16))
            if (ww, cout) not in uw_cache:
                uw_cache[(ww, cout)] = add(jnp.asarray(_upsample_col_matrix(ww, cout), bf16))
            spec["uh"] = uh_cache[hh]
            spec["uw"] = uw_cache[(ww, cout)]
        specs.append(spec)

    lmax = max(g.shape[1] for g in gmat_list)
    lmax = ((lmax + 127) // 128) * 128
    gmat_np = np.zeros((len(gmat_list), C_PAD, lmax), np.float32)
    for i, g in enumerate(gmat_list):
        gmat_np[i, :, :g.shape[1]] = g
    gmat_all_idx = add(jnp.asarray(gmat_np))            # (n_gmat, 8, lmax)  f32
    bn_all_idx = add(jnp.asarray(bn_np))                # (n_conv, 2, 8)     f32

    out_struct = jax.ShapeDtypeStruct((rr_f, ch_out * wf), jnp.float32)
    dn = (((1,), (1,)), ((), ()))    # contract last dims: (1,8)x(L,8)^T style

    # Advisory cost estimate (conv MACs + ~40% for the plumbing matmuls).
    flops = 0
    for s in specs:
        rr_s = n_batch * (s["H"] + 2) - 2
        flops += 2 * rr_s * (3 * s["W"] * s["cin"]) * (s["W"] * s["cout"])
    flops = int(flops * 1.4)
    bytes_accessed = int(sum(int(np.prod(a.shape)) * a.dtype.itemsize for a in consts)
                         + n_batch * (h0 + 2) * w0 * ch_in * 2
                         + rr_f * ch_out * wf * 4)
    cost = pl.CostEstimate(flops=flops,
                           transcendentals=int(rr_f * ch_out * wf + 64),
                           bytes_accessed=bytes_accessed)

    def kernel(*refs):
        x_ref = refs[0]
        o_ref = refs[-1]
        cref = lambda j: refs[1 + j]
        gref = cref(gmat_all_idx)
        bnref = cref(bn_all_idx)

        cur = x_ref[...]                      # (N*(H0+2), W0*Cin), bf16, in VMEM
        for s in specs:
            hp = s["H"] + 2
            rr = n_batch * hp - 2
            lin = s["W"] * s["cin"]
            lout = s["W"] * s["cout"]
            band = cref(s["band"])            # (3*lin, lout) bf16

            # 3x3 "same" conv. dy folded into a single K-contraction when the
            # lane offsets of the stacked LHS are 128-aligned; otherwise the
            # (proven) 3 row-shifted banded matmuls.
            if lin % 128 == 0:
                lhs = jnp.concatenate(
                    [cur[0:rr, :], cur[1:1 + rr, :], cur[2:2 + rr, :]], axis=1)
                acc = jnp.dot(lhs, band[...], preferred_element_type=f32)
            else:
                acc = jnp.dot(cur[0:rr, :], band[0:lin, :],
                              preferred_element_type=f32)
                acc = acc + jnp.dot(cur[1:1 + rr, :], band[lin:2 * lin, :],
                                    preferred_element_type=f32)
                acc = acc + jnp.dot(cur[2:2 + rr, :], band[2 * lin:3 * lin, :],
                                    preferred_element_type=f32)

            # Valid-row mask (zero for the 2 boundary-garbage rows per batch
            # seam), built in-register: iota + compares (VPU, no DMA, no MXU).
            rows = lax.broadcasted_iota(jnp.int32, (rr, 1), 0)
            m = None
            for i in range(n_batch):
                v = (rows >= i * hp) & (rows < i * hp + s["H"])
                m = v if m is None else (m | v)
            mf = m.astype(f32)

            # BatchNorm2d (training-mode batch stats): masked sums + tiny
            # per-channel gathers (C padded to 8; pad channels are inert).
            am = acc * mf
            s1 = jnp.sum(am, axis=0, keepdims=True)            # (1, lout)
            s2 = jnp.sum(am * acc, axis=0, keepdims=True)      # (1, lout)
            g = gref[s["g"]][:, 0:lout]                        # (8, lout) f32
            inv_cnt = 1.0 / float(n_batch * s["H"] * s["W"])
            mean = lax.dot_general(s1, g, dn, preferred_element_type=f32) * inv_cnt
            ex2 = lax.dot_general(s2, g, dn, preferred_element_type=f32) * inv_cnt
            var = jnp.maximum(ex2 - mean * mean, 0.0)
            bn_c = bnref[s["ci"]]                              # (2, 8) f32
            gam = bn_c[0:1, :]
            bet = bn_c[1:2, :]
            scale = gam * lax.rsqrt(var + BN_EPS)              # (1, 8)
            shift = bet - mean * scale
            scale_l = jnp.dot(scale, g, preferred_element_type=f32)   # (1, lout)
            shift_l = jnp.dot(shift, g, preferred_element_type=f32)
            y = acc * scale_l + shift_l                        # f32 (VPU)

            if s["act"] == "leaky":
                y = jnp.maximum(y, LEAKY_SLOPE * y)
            else:
                # Sigmoid via tanh (EUP slot, range-safe).
                y = 0.5 * (jnp.tanh(0.5 * y) + 1.0)

            if s["after"] == "store":
                # Re-insert zero padding rows (0/1 permutation matrix, bf16).
                rmat = cref(s["r"])[...]
                cur = jnp.dot(rmat, y.astype(bf16),
                              preferred_element_type=f32).astype(bf16)
            elif s["after"] == "up":
                # Fused bilinear 2x upsample (align_corners=False) + re-pad,
                # bf16 operands (weights 0.25/0.75 exact in bf16).
                uh = cref(s["uh"])[...]
                uw = cref(s["uw"])[...]
                t = jnp.dot(uh, y.astype(bf16), preferred_element_type=f32)
                cur = jnp.dot(t.astype(bf16), uw,
                              preferred_element_type=f32).astype(bf16)
            else:
                # Final conv: channel-planar lanes -> ONE lane-dense store;
                # NCHW split happens in the jit wrapper.
                o_ref[...] = y

    @jax.jit
    def forward(x_nchw):
        nb, cc, hh, ww = x_nchw.shape
        x = jnp.transpose(x_nchw, (0, 2, 3, 1))             # NHWC
        x = jnp.pad(x, ((0, 0), (1, 1), (0, 0), (0, 0)))    # zero rows top/bottom
        x = x.reshape(nb * (hh + 2), ww * cc).astype(bf16)  # channel-interleaved lanes
        slab = pl.pallas_call(
            kernel,
            out_shape=out_struct,
            grid=(1,),
            in_specs=[_full_spec(x.shape)] + [_full_spec(a.shape) for a in consts],
            out_specs=_full_spec(out_struct.shape),
            compiler_params=pltpu.CompilerParams(
                vmem_limit_bytes=32 * 1024 * 1024),
            cost_estimate=cost,
        )(x, *consts)
        # Host-side (free) un-plumbing: drop boundary rows, split planar lanes.
        hp_f = hf + 2
        parts = [slab[i * hp_f:i * hp_f + hf, :] for i in range(nb)]
        y = jnp.stack(parts, axis=0).reshape(nb, hf, ch_out, wf)
        return jnp.transpose(y, (0, 2, 1, 3))               # NCHW

    return forward


if __name__ == "__main__":
    params = init_trumpet_params(seed=42)
    fwd = build_trumpet_forward(params, n_batch=2, h0=16, w0=16)

    x = jax.random.normal(jax.random.PRNGKey(0), (2, CH_IN, 16, 16), jnp.float32)
    out = jax.block_until_ready(fwd(x))

    # two basic_layers -> two 2x upsamples: 16 -> 64 spatial, CH_OUT channels
    assert out.shape == (2, CH_OUT, 64, 64), out.shape
    assert bool(jnp.all(jnp.isfinite(out)))
    assert bool(jnp.all((out >= 0.0) & (out <= 1.0)))  # final Sigmoid range
    print("KERNEL_OK")
</pallas_src>

<mosaic_0001>
module attributes {stable_mosaic.version = 11 : i64} {
  func.func @kernel(%arg0: i32, %arg1: memref<36x48xbf16, #tpu.memory_space<vmem>>, %arg2: memref<144x128xbf16, #tpu.memory_space<vmem>>, %arg3: memref<36x34xbf16, #tpu.memory_space<vmem>>, %arg4: memref<384x128xbf16, #tpu.memory_space<vmem>>, %arg5: memref<68x34xbf16, #tpu.memory_space<vmem>>, %arg6: memref<128x256xbf16, #tpu.memory_space<vmem>>, %arg7: memref<768x256xbf16, #tpu.memory_space<vmem>>, %arg8: memref<68x66xbf16, #tpu.memory_space<vmem>>, %arg9: memref<768x256xbf16, #tpu.memory_space<vmem>>, %arg10: memref<132x66xbf16, #tpu.memory_space<vmem>>, %arg11: memref<256x512xbf16, #tpu.memory_space<vmem>>, %arg12: memref<1536x192xbf16, #tpu.memory_space<vmem>>, %arg13: memref<132x130xbf16, #tpu.memory_space<vmem>>, %arg14: memref<576x192xbf16, #tpu.memory_space<vmem>>, %arg15: memref<4x8x256xf32, #tpu.memory_space<vmem>>, %arg16: memref<6x2x8xf32, #tpu.memory_space<vmem>>, %arg17: memref<130x192xf32, #tpu.memory_space<vmem>>) attributes {dimension_semantics = [#tpu.dimension_semantics<arbitrary>], iteration_bounds = array<i64: 1>, scalar_prefetch = 0 : i64, scratch_operands = 0 : i64, tpu.core_type = #tpu.core_type<tc>, window_params = [{pipeline_mode = #tpu.pipeline_mode<synchronous>, transform_indices = @transform_0, window_bounds = array<i64: 36, 48>}, {pipeline_mode = #tpu.pipeline_mode<synchronous>, transform_indices = @transform_1, window_bounds = array<i64: 144, 128>}, {pipeline_mode = #tpu.pipeline_mode<synchronous>, transform_indices = @transform_2, window_bounds = array<i64: 36, 34>}, {pipeline_mode = #tpu.pipeline_mode<synchronous>, transform_indices = @transform_3, window_bounds = array<i64: 384, 128>}, {pipeline_mode = #tpu.pipeline_mode<synchronous>, transform_indices = @transform_4, window_bounds = array<i64: 68, 34>}, {pipeline_mode = #tpu.pipeline_mode<synchronous>, transform_indices = @transform_5, window_bounds = array<i64: 128, 256>}, {pipeline_mode = #tpu.pipeline_mode<synchronous>, transform_indices = @transform_6, window_bounds = array<i64: 768, 256>}, {pipeline_mode = #tpu.pipeline_mode<synchronous>, transform_indices = @transform_7, window_bounds = array<i64: 68, 66>}, {pipeline_mode = #tpu.pipeline_mode<synchronous>, transform_indices = @transform_8, window_bounds = array<i64: 768, 256>}, {pipeline_mode = #tpu.pipeline_mode<synchronous>, transform_indices = @transform_9, window_bounds = array<i64: 132, 66>}, {pipeline_mode = #tpu.pipeline_mode<synchronous>, transform_indices = @transform_10, window_bounds = array<i64: 256, 512>}, {pipeline_mode = #tpu.pipeline_mode<synchronous>, transform_indices = @transform_11, window_bounds = array<i64: 1536, 192>}, {pipeline_mode = #tpu.pipeline_mode<synchronous>, transform_indices = @transform_12, window_bounds = array<i64: 132, 130>}, {pipeline_mode = #tpu.pipeline_mode<synchronous>, transform_indices = @transform_13, window_bounds = array<i64: 576, 192>}, {pipeline_mode = #tpu.pipeline_mode<synchronous>, transform_indices = @transform_14, window_bounds = array<i64: 4, 8, 256>}, {pipeline_mode = #tpu.pipeline_mode<synchronous>, transform_indices = @transform_15, window_bounds = array<i64: 6, 2, 8>}, {pipeline_mode = #tpu.pipeline_mode<synchronous>, transform_indices = @transform_16, window_bounds = array<i64: 130, 192>}]} {
    %c0 = arith.constant 0 : index
    %c0_0 = arith.constant 0 : index
    %0 = vector.load %arg1[%c0, %c0_0] : memref<36x48xbf16, #tpu.memory_space<vmem>>, vector<36x48xbf16>
    %1 = vector.extract_strided_slice %0 {offsets = [0, 0], sizes = [34, 48], strides = [1, 1]} : vector<36x48xbf16> to vector<34x48xbf16>
    %c0_1 = arith.constant 0 : index
    %c0_2 = arith.constant 0 : index
    %2 = vector.load %arg2[%c0_1, %c0_2] : memref<144x128xbf16, #tpu.memory_space<vmem>>, vector<48x128xbf16>
    %cst = arith.constant dense<0.000000e+00> : vector<34x128xf32>
    %3 = tpu.matmul %1, %2, %cst {dimension_numbers = #tpu.dot_dimension_numbers<[1], [0], [0], [1], [0, 0, 1, 1], [], []>} : vector<34x48xbf16>, vector<48x128xbf16>, vector<34x128xf32> -> vector<34x128xf32>
    %4 = vector.extract_strided_slice %0 {offsets = [1, 0], sizes = [34, 48], strides = [1, 1]} : vector<36x48xbf16> to vector<34x48xbf16>
    %c48 = arith.constant 48 : index
    %c0_3 = arith.constant 0 : index
    %5 = vector.load %arg2[%c48, %c0_3] : memref<144x128xbf16, #tpu.memory_space<vmem>>, vector<48x128xbf16>
    %cst_4 = arith.constant dense<0.000000e+00> : vector<34x128xf32>
    %6 = tpu.matmul %4, %5, %cst_4 {dimension_numbers = #tpu.dot_dimension_numbers<[1], [0], [0], [1], [0, 0, 1, 1], [], []>} : vector<34x48xbf16>, vector<48x128xbf16>, vector<34x128xf32> -> vector<34x128xf32>
    %7 = arith.addf %3, %6 : vector<34x128xf32>
    %8 = vector.extract_strided_slice %0 {offsets = [2, 0], sizes = [34, 48], strides = [1, 1]} : vector<36x48xbf16> to vector<34x48xbf16>
    %c96 = arith.constant 96 : index
    %c0_5 = arith.constant 0 : index
    %9 = vector.load %arg2[%c96, %c0_5] : memref<144x128xbf16, #tpu.memory_space<vmem>>, vector<48x128xbf16>
    %cst_6 = arith.constant dense<0.000000e+00> : vector<34x128xf32>
    %10 = tpu.matmul %8, %9, %cst_6 {dimension_numbers = #tpu.dot_dimension_numbers<[1], [0], [0], [1], [0, 0, 1, 1], [], []>} : vector<34x48xbf16>, vector<48x128xbf16>, vector<34x128xf32> -> vector<34x128xf32>
    %11 = arith.addf %7, %10 : vector<34x128xf32>
    %12 = tpu.iota {dimensions = array<i32: 0>} : vector<34x1xi32>
    %c0_i32 = arith.constant 0 : i32
    %13 = vector.broadcast %c0_i32 : i32 to vector<34x1xi32>
    %14 = arith.cmpi sge, %12, %13 : vector<34x1xi32>
    %c16_i32 = arith.constant 16 : i32
    %15 = vector.broadcast %c16_i32 : i32 to vector<34x1xi32>
    %16 = arith.cmpi slt, %12, %15 : vector<34x1xi32>
    %17 = arith.andi %14, %16 : vector<34x1xi1>
    %c18_i32 = arith.constant 18 : i32
    %18 = vector.broadcast %c18_i32 : i32 to vector<34x1xi32>
    %19 = arith.cmpi sge, %12, %18 : vector<34x1xi32>
    %c34_i32 = arith.constant 34 : i32
    %20 = vector.broadcast %c34_i32 : i32 to vector<34x1xi32>
    %21 = arith.cmpi slt, %12, %20 : vector<34x1xi32>
    %22 = arith.andi %19, %21 : vector<34x1xi1>
    %23 = arith.ori %17, %22 : vector<34x1xi1>
    %24 = arith.extui %23 : vector<34x1xi1> to vector<34x1xi32>
    %25 = arith.sitofp %24 : vector<34x1xi32> to vector<34x1xf32>
    %26 = vector.broadcast %25 : vector<34x1xf32> to vector<34x128xf32>
    %27 = arith.mulf %11, %26 : vector<34x128xf32>
    %cst_7 = arith.constant dense<0.000000e+00> : vector<128xf32>
    %28 = vector.multi_reduction <add>, %27, %cst_7 [0] : vector<34x128xf32> to vector<128xf32>
    %29 = vector.shape_cast %28 : vector<128xf32> to vector<1x128xf32>
    %30 = arith.mulf %27, %11 : vector<34x128xf32>
    %cst_8 = arith.constant dense<0.000000e+00> : vector<128xf32>
    %31 = vector.multi_reduction <add>, %30, %cst_8 [0] : vector<34x128xf32> to vector<128xf32>
    %32 = vector.shape_cast %31 : vector<128xf32> to vector<1x128xf32>
    %c0_9 = arith.constant 0 : index
    %c0_10 = arith.constant 0 : index
    %c0_11 = arith.constant 0 : index
    %33 = vector.load %arg15[%c0_9, %c0_10, %c0_11] : memref<4x8x256xf32, #tpu.memory_space<vmem>>, vector<1x8x256xf32>
    %34 = vector.shape_cast %33 : vector<1x8x256xf32> to vector<8x256xf32>
    %35 = vector.extract_strided_slice %34 {offsets = [0, 0], sizes = [8, 128], strides = [1, 1]} : vector<8x256xf32> to vector<8x128xf32>
    %cst_12 = arith.constant dense<0.000000e+00> : vector<1x8xf32>
    %36 = tpu.matmul %29, %35, %cst_12 {dimension_numbers = #tpu.dot_dimension_numbers<[1], [1], [0], [0], [0, 0, 1, 0], [], []>} : vector<1x128xf32>, vector<8x128xf32>, vector<1x8xf32> -> vector<1x8xf32>
    %cst_13 = arith.constant 0.001953125 : f32
    %37 = vector.broadcast %cst_13 : f32 to vector<1x8xf32>
    %38 = arith.mulf %36, %37 : vector<1x8xf32>
    %cst_14 = arith.constant dense<0.000000e+00> : vector<1x8xf32>
    %39 = tpu.matmul %32, %35, %cst_14 {dimension_numbers = #tpu.dot_dimension_numbers<[1], [1], [0], [0], [0, 0, 1, 0], [], []>} : vector<1x128xf32>, vector<8x128xf32>, vector<1x8xf32> -> vector<1x8xf32>
    %cst_15 = arith.constant 0.001953125 : f32
    %40 = vector.broadcast %cst_15 : f32 to vector<1x8xf32>
    %41 = arith.mulf %39, %40 : vector<1x8xf32>
    %42 = arith.mulf %38, %38 : vector<1x8xf32>
    %43 = arith.subf %41, %42 : vector<1x8xf32>
    %cst_16 = arith.constant 0.000000e+00 : f32
    %44 = vector.broadcast %cst_16 : f32 to vector<1x8xf32>
    %45 = arith.maximumf %43, %44 : vector<1x8xf32>
    %c0_17 = arith.constant 0 : index
    %c0_18 = arith.constant 0 : index
    %c0_19 = arith.constant 0 : index
    %46 = vector.load %arg16[%c0_17, %c0_18, %c0_19] : memref<6x2x8xf32, #tpu.memory_space<vmem>>, vector<1x2x8xf32>
    %47 = vector.shape_cast %46 : vector<1x2x8xf32> to vector<2x8xf32>
    %48 = vector.extract_strided_slice %47 {offsets = [0, 0], sizes = [1, 8], strides = [1, 1]} : vector<2x8xf32> to vector<1x8xf32>
    %49 = vector.extract_strided_slice %47 {offsets = [1, 0], sizes = [1, 8], strides = [1, 1]} : vector<2x8xf32> to vector<1x8xf32>
    %cst_20 = arith.constant 9.99999974E-6 : f32
    %50 = vector.broadcast %cst_20 : f32 to vector<1x8xf32>
    %51 = arith.addf %45, %50 : vector<1x8xf32>
    %52 = math.rsqrt %51 : vector<1x8xf32>
    %53 = arith.mulf %48, %52 : vector<1x8xf32>
    %54 = arith.mulf %38, %53 : vector<1x8xf32>
    %55 = arith.subf %49, %54 : vector<1x8xf32>
    %cst_21 = arith.constant dense<0.000000e+00> : vector<1x128xf32>
    %56 = tpu.matmul %53, %35, %cst_21 {dimension_numbers = #tpu.dot_dimension_numbers<[1], [0], [0], [1], [0, 0, 1, 1], [], []>} : vector<1x8xf32>, vector<8x128xf32>, vector<1x128xf32> -> vector<1x128xf32>
    %cst_22 = arith.constant dense<0.000000e+00> : vector<1x128xf32>
    %57 = tpu.matmul %55, %35, %cst_22 {dimension_numbers = #tpu.dot_dimension_numbers<[1], [0], [0], [1], [0, 0, 1, 1], [], []>} : vector<1x8xf32>, vector<8x128xf32>, vector<1x128xf32> -> vector<1x128xf32>
    %58 = vector.broadcast %56 : vector<1x128xf32> to vector<34x128xf32>
    %59 = arith.mulf %11, %58 : vector<34x128xf32>
    %60 = vector.broadcast %57 : vector<1x128xf32> to vector<34x128xf32>
    %61 = arith.addf %59, %60 : vector<34x128xf32>
    %cst_23 = arith.constant 2.000000e-01 : f32
    %62 = vector.broadcast %cst_23 : f32 to vector<34x128xf32>
    %63 = arith.mulf %62, %61 : vector<34x128xf32>
    %64 = arith.maximumf %61, %63 : vector<34x128xf32>
    %c0_24 = arith.constant 0 : index
    %c0_25 = arith.constant 0 : index
    %65 = vector.load %arg3[%c0_24, %c0_25] : memref<36x34xbf16, #tpu.memory_space<vmem>>, vector<36x34xbf16>
    %66 = arith.truncf %64 : vector<34x128xf32> to vector<34x128xbf16>
    %cst_26 = arith.constant dense<0.000000e+00> : vector<36x128xf32>
    %67 = tpu.matmul %65, %66, %cst_26 {dimension_numbers = #tpu.dot_dimension_numbers<[1], [0], [0], [1], [0, 0, 1, 1], [], []>} : vector<36x34xbf16>, vector<34x128xbf16>, vector<36x128xf32> -> vector<36x128xf32>
    %68 = arith.truncf %67 : vector<36x128xf32> to vector<36x128xbf16>
    %69 = vector.extract_strided_slice %68 {offsets = [0, 0], sizes = [34, 128], strides = [1, 1]} : vector<36x128xbf16> to vector<34x128xbf16>
    %70 = vector.extract_strided_slice %68 {offsets = [1, 0], sizes = [34, 128], strides = [1, 1]} : vector<36x128xbf16> to vector<34x128xbf16>
    %71 = vector.extract_strided_slice %68 {offsets = [2, 0], sizes = [34, 128], strides = [1, 1]} : vector<36x128xbf16> to vector<34x128xbf16>
    %72 = tpu.concatenate %69, %70, %71 in 1 : vector<34x128xbf16>, vector<34x128xbf16>, vector<34x128xbf16> -> vector<34x384xbf16>
    %c0_27 = arith.constant 0 : index
    %c0_28 = arith.constant 0 : index
    %73 = vector.load %arg4[%c0_27, %c0_28] : memref<384x128xbf16, #tpu.memory_space<vmem>>, vector<384x128xbf16>
    %cst_29 = arith.constant dense<0.000000e+00> : vector<34x128xf32>
    %74 = tpu.matmul %72, %73, %cst_29 {dimension_numbers = #tpu.dot_dimension_numbers<[1], [0], [0], [1], [0, 0, 1, 1], [], []>} : vector<34x384xbf16>, vector<384x128xbf16>, vector<34x128xf32> -> vector<34x128xf32>
    %75 = tpu.iota {dimensions = array<i32: 0>} : vector<34x1xi32>
    %c0_i32_30 = arith.constant 0 : i32
    %76 = vector.broadcast %c0_i32_30 : i32 to vector<34x1xi32>
    %77 = arith.cmpi sge, %75, %76 : vector<34x1xi32>
    %c16_i32_31 = arith.constant 16 : i32
    %78 = vector.broadcast %c16_i32_31 : i32 to vector<34x1xi32>
    %79 = arith.cmpi slt, %75, %78 : vector<34x1xi32>
    %80 = arith.andi %77, %79 : vector<34x1xi1>
    %c18_i32_32 = arith.constant 18 : i32
    %81 = vector.broadcast %c18_i32_32 : i32 to vector<34x1xi32>
    %82 = arith.cmpi sge, %75, %81 : vector<34x1xi32>
    %c34_i32_33 = arith.constant 34 : i32
    %83 = vector.broadcast %c34_i32_33 : i32 to vector<34x1xi32>
    %84 = arith.cmpi slt, %75, %83 : vector<34x1xi32>
    %85 = arith.andi %82, %84 : vector<34x1xi1>
    %86 = arith.ori %80, %85 : vector<34x1xi1>
    %87 = arith.extui %86 : vector<34x1xi1> to vector<34x1xi32>
    %88 = arith.sitofp %87 : vector<34x1xi32> to vector<34x1xf32>
    %89 = vector.broadcast %88 : vector<34x1xf32> to vector<34x128xf32>
    %90 = arith.mulf %74, %89 : vector<34x128xf32>
    %cst_34 = arith.constant dense<0.000000e+00> : vector<128xf32>
    %91 = vector.multi_reduction <add>, %90, %cst_34 [0] : vector<34x128xf32> to vector<128xf32>
    %92 = vector.shape_cast %91 : vector<128xf32> to vector<1x128xf32>
    %93 = arith.mulf %90, %74 : vector<34x128xf32>
    %cst_35 = arith.constant dense<0.000000e+00> : vector<128xf32>
    %94 = vector.multi_reduction <add>, %93, %cst_35 [0] : vector<34x128xf32> to vector<128xf32>
    %95 = vector.shape_cast %94 : vector<128xf32> to vector<1x128xf32>
    %c0_36 = arith.constant 0 : index
    %c0_37 = arith.constant 0 : index
    %c0_38 = arith.constant 0 : index
    %96 = vector.load %arg15[%c0_36, %c0_37, %c0_38] : memref<4x8x256xf32, #tpu.memory_space<vmem>>, vector<1x8x256xf32>
    %97 = vector.shape_cast %96 : vector<1x8x256xf32> to vector<8x256xf32>
    %98 = vector.extract_strided_slice %97 {offsets = [0, 0], sizes = [8, 128], strides = [1, 1]} : vector<8x256xf32> to vector<8x128xf32>
    %cst_39 = arith.constant dense<0.000000e+00> : vector<1x8xf32>
    %99 = tpu.matmul %92, %98, %cst_39 {dimension_numbers = #tpu.dot_dimension_numbers<[1], [1], [0], [0], [0, 0, 1, 0], [], []>} : vector<1x128xf32>, vector<8x128xf32>, vector<1x8xf32> -> vector<1x8xf32>
    %cst_40 = arith.constant 0.001953125 : f32
    %100 = vector.broadcast %cst_40 : f32 to vector<1x8xf32>
    %101 = arith.mulf %99, %100 : vector<1x8xf32>
    %cst_41 = arith.constant dense<0.000000e+00> : vector<1x8xf32>
    %102 = tpu.matmul %95, %98, %cst_41 {dimension_numbers = #tpu.dot_dimension_numbers<[1], [1], [0], [0], [0, 0, 1, 0], [], []>} : vector<1x128xf32>, vector<8x128xf32>, vector<1x8xf32> -> vector<1x8xf32>
    %cst_42 = arith.constant 0.001953125 : f32
    %103 = vector.broadcast %cst_42 : f32 to vector<1x8xf32>
    %104 = arith.mulf %102, %103 : vector<1x8xf32>
    %105 = arith.mulf %101, %101 : vector<1x8xf32>
    %106 = arith.subf %104, %105 : vector<1x8xf32>
    %cst_43 = arith.constant 0.000000e+00 : f32
    %107 = vector.broadcast %cst_43 : f32 to vector<1x8xf32>
    %108 = arith.maximumf %106, %107 : vector<1x8xf32>
    %c1 = arith.constant 1 : index
    %c0_44 = arith.constant 0 : index
    %c0_45 = arith.constant 0 : index
    %109 = vector.load %arg16[%c1, %c0_44, %c0_45] : memref<6x2x8xf32, #tpu.memory_space<vmem>>, vector<1x2x8xf32>
    %110 = vector.shape_cast %109 : vector<1x2x8xf32> to vector<2x8xf32>
    %111 = vector.extract_strided_slice %110 {offsets = [0, 0], sizes = [1, 8], strides = [1, 1]} : vector<2x8xf32> to vector<1x8xf32>
    %112 = vector.extract_strided_slice %110 {offsets = [1, 0], sizes = [1, 8], strides = [1, 1]} : vector<2x8xf32> to vector<1x8xf32>
    %cst_46 = arith.constant 9.99999974E-6 : f32
    %113 = vector.broadcast %cst_46 : f32 to vector<1x8xf32>
    %114 = arith.addf %108, %113 : vector<1x8xf32>
    %115 = math.rsqrt %114 : vector<1x8xf32>
    %116 = arith.mulf %111, %115 : vector<1x8xf32>
    %117 = arith.mulf %101, %116 : vector<1x8xf32>
    %118 = arith.subf %112, %117 : vector<1x8xf32>
    %cst_47 = arith.constant dense<0.000000e+00> : vector<1x128xf32>
    %119 = tpu.matmul %116, %98, %cst_47 {dimension_numbers = #tpu.dot_dimension_numbers<[1], [0], [0], [1], [0, 0, 1, 1], [], []>} : vector<1x8xf32>, vector<8x128xf32>, vector<1x128xf32> -> vector<1x128xf32>
    %cst_48 = arith.constant dense<0.000000e+00> : vector<1x128xf32>
    %120 = tpu.matmul %118, %98, %cst_48 {dimension_numbers = #tpu.dot_dimension_numbers<[1], [0], [0], [1], [0, 0, 1, 1], [], []>} : vector<1x8xf32>, vector<8x128xf32>, vector<1x128xf32> -> vector<1x128xf32>
    %121 = vector.broadcast %119 : vector<1x128xf32> to vector<34x128xf32>
    %122 = arith.mulf %74, %121 : vector<34x128xf32>
    %123 = vector.broadcast %120 : vector<1x128xf32> to vector<34x128xf32>
    %124 = arith.addf %122, %123 : vector<34x128xf32>
    %cst_49 = arith.constant 2.000000e-01 : f32
    %125 = vector.broadcast %cst_49 : f32 to vector<34x128xf32>
    %126 = arith.mulf %125, %124 : vector<34x128xf32>
    %127 = arith.maximumf %124, %126 : vector<34x128xf32>
    %c0_50 = arith.constant 0 : index
    %c0_51 = arith.constant 0 : index
    %128 = vector.load %arg5[%c0_50, %c0_51] : memref<68x34xbf16, #tpu.memory_space<vmem>>, vector<68x34xbf16>
    %c0_52 = arith.constant 0 : index
    %c0_53 = arith.constant 0 : index
    %129 = vector.load %arg6[%c0_52, %c0_53] : memref<128x256xbf16, #tpu.memory_space<vmem>>, vector<128x256xbf16>
    %130 = arith.truncf %127 : vector<34x128xf32> to vector<34x128xbf16>
    %cst_54 = arith.constant dense<0.000000e+00> : vector<68x128xf32>
    %131 = tpu.matmul %128, %130, %cst_54 {dimension_numbers = #tpu.dot_dimension_numbers<[1], [0], [0], [1], [0, 0, 1, 1], [], []>} : vector<68x34xbf16>, vector<34x128xbf16>, vector<68x128xf32> -> vector<68x128xf32>
    %132 = arith.truncf %131 : vector<68x128xf32> to vector<68x128xbf16>
    %cst_55 = arith.constant dense<0.000000e+00> : vector<68x256xf32>
    %133 = tpu.matmul %132, %129, %cst_55 {dimension_numbers = #tpu.dot_dimension_numbers<[1], [0], [0], [1], [0, 0, 1, 1], [], []>} : vector<68x128xbf16>, vector<128x256xbf16>, vector<68x256xf32> -> vector<68x256xf32>
    %134 = arith.truncf %133 : vector<68x256xf32> to vector<68x256xbf16>
    %135 = vector.extract_strided_slice %134 {offsets = [0, 0], sizes = [66, 256], strides = [1, 1]} : vector<68x256xbf16> to vector<66x256xbf16>
    %136 = vector.extract_strided_slice %134 {offsets = [1, 0], sizes = [66, 256], strides = [1, 1]} : vector<68x256xbf16> to vector<66x256xbf16>
    %137 = vector.extract_strided_slice %134 {offsets = [2, 0], sizes = [66, 256], strides = [1, 1]} : vector<68x256xbf16> to vector<66x256xbf16>
    %138 = tpu.concatenate %135, %136, %137 in 1 : vector<66x256xbf16>, vector<66x256xbf16>, vector<66x256xbf16> -> vector<66x768xbf16>
    %c0_56 = arith.constant 0 : index
    %c0_57 = arith.constant 0 : index
    %139 = vector.load %arg7[%c0_56, %c0_57] : memref<768x256xbf16, #tpu.memory_space<vmem>>, vector<768x256xbf16>
    %cst_58 = arith.constant dense<0.000000e+00> : vector<66x256xf32>
    %140 = tpu.matmul %138, %139, %cst_58 {dimension_numbers = #tpu.dot_dimension_numbers<[1], [0], [0], [1], [0, 0, 1, 1], [], []>} : vector<66x768xbf16>, vector<768x256xbf16>, vector<66x256xf32> -> vector<66x256xf32>
    %141 = tpu.iota {dimensions = array<i32: 0>} : vector<66x1xi32>
    %c0_i32_59 = arith.constant 0 : i32
    %142 = vector.broadcast %c0_i32_59 : i32 to vector<66x1xi32>
    %143 = arith.cmpi sge, %141, %142 : vector<66x1xi32>
    %c32_i32 = arith.constant 32 : i32
    %144 = vector.broadcast %c32_i32 : i32 to vector<66x1xi32>
    %145 = arith.cmpi slt, %141, %144 : vector<66x1xi32>
    %146 = arith.andi %143, %145 : vector<66x1xi1>
    %c34_i32_60 = arith.constant 34 : i32
    %147 = vector.broadcast %c34_i32_60 : i32 to vector<66x1xi32>
    %148 = arith.cmpi sge, %141, %147 : vector<66x1xi32>
    %c66_i32 = arith.constant 66 : i32
    %149 = vector.broadcast %c66_i32 : i32 to vector<66x1xi32>
    %150 = arith.cmpi slt, %141, %149 : vector<66x1xi32>
    %151 = arith.andi %148, %150 : vector<66x1xi1>
    %152 = arith.ori %146, %151 : vector<66x1xi1>
    %153 = arith.extui %152 : vector<66x1xi1> to vector<66x1xi32>
    %154 = arith.sitofp %153 : vector<66x1xi32> to vector<66x1xf32>
    %155 = vector.broadcast %154 : vector<66x1xf32> to vector<66x256xf32>
    %156 = arith.mulf %140, %155 : vector<66x256xf32>
    %cst_61 = arith.constant dense<0.000000e+00> : vector<256xf32>
    %157 = vector.multi_reduction <add>, %156, %cst_61 [0] : vector<66x256xf32> to vector<256xf32>
    %158 = vector.shape_cast %157 : vector<256xf32> to vector<1x256xf32>
    %159 = arith.mulf %156, %140 : vector<66x256xf32>
    %cst_62 = arith.constant dense<0.000000e+00> : vector<256xf32>
    %160 = vector.multi_reduction <add>, %159, %cst_62 [0] : vector<66x256xf32> to vector<256xf32>
    %161 = vector.shape_cast %160 : vector<256xf32> to vector<1x256xf32>
    %c1_63 = arith.constant 1 : index
    %c0_64 = arith.constant 0 : index
    %c0_65 = arith.constant 0 : index
    %162 = vector.load %arg15[%c1_63, %c0_64, %c0_65] : memref<4x8x256xf32, #tpu.memory_space<vmem>>, vector<1x8x256xf32>
    %163 = vector.shape_cast %162 : vector<1x8x256xf32> to vector<8x256xf32>
    %cst_66 = arith.constant dense<0.000000e+00> : vector<1x8xf32>
    %164 = tpu.matmul %158, %163, %cst_66 {dimension_numbers = #tpu.dot_dimension_numbers<[1], [1], [0], [0], [0, 0, 1, 0], [], []>} : vector<1x256xf32>, vector<8x256xf32>, vector<1x8xf32> -> vector<1x8xf32>
    %cst_67 = arith.constant 4.8828125E-4 : f32
    %165 = vector.broadcast %cst_67 : f32 to vector<1x8xf32>
    %166 = arith.mulf %164, %165 : vector<1x8xf32>
    %cst_68 = arith.constant dense<0.000000e+00> : vector<1x8xf32>
    %167 = tpu.matmul %161, %163, %cst_68 {dimension_numbers = #tpu.dot_dimension_numbers<[1], [1], [0], [0], [0, 0, 1, 0], [], []>} : vector<1x256xf32>, vector<8x256xf32>, vector<1x8xf32> -> vector<1x8xf32>
    %cst_69 = arith.constant 4.8828125E-4 : f32
    %168 = vector.broadcast %cst_69 : f32 to vector<1x8xf32>
    %169 = arith.mulf %167, %168 : vector<1x8xf32>
    %170 = arith.mulf %166, %166 : vector<1x8xf32>
    %171 = arith.subf %169, %170 : vector<1x8xf32>
    %cst_70 = arith.constant 0.000000e+00 : f32
    %172 = vector.broadcast %cst_70 : f32 to vector<1x8xf32>
    %173 = arith.maximumf %171, %172 : vector<1x8xf32>
    %c2 = arith.constant 2 : index
    %c0_71 = arith.constant 0 : index
    %c0_72 = arith.constant 0 : index
    %174 = vector.load %arg16[%c2, %c0_71, %c0_72] : memref<6x2x8xf32, #tpu.memory_space<vmem>>, vector<1x2x8xf32>
    %175 = vector.shape_cast %174 : vector<1x2x8xf32> to vector<2x8xf32>
    %176 = vector.extract_strided_slice %175 {offsets = [0, 0], sizes = [1, 8], strides = [1, 1]} : vector<2x8xf32> to vector<1x8xf32>
    %177 = vector.extract_strided_slice %175 {offsets = [1, 0], sizes = [1, 8], strides = [1, 1]} : vector<2x8xf32> to vector<1x8xf32>
    %cst_73 = arith.constant 9.99999974E-6 : f32
    %178 = vector.broadcast %cst_73 : f32 to vector<1x8xf32>
    %179 = arith.addf %173, %178 : vector<1x8xf32>
    %180 = math.rsqrt %179 : vector<1x8xf32>
    %181 = arith.mulf %176, %180 : vector<1x8xf32>
    %182 = arith.mulf %166, %181 : vector<1x8xf32>
    %183 = arith.subf %177, %182 : vector<1x8xf32>
    %cst_74 = arith.constant dense<0.000000e+00> : vector<1x256xf32>
    %184 = tpu.matmul %181, %163, %cst_74 {dimension_numbers = #tpu.dot_dimension_numbers<[1], [0], [0], [1], [0, 0, 1, 1], [], []>} : vector<1x8xf32>, vector<8x256xf32>, vector<1x256xf32> -> vector<1x256xf32>
    %cst_75 = arith.constant dense<0.000000e+00> : vector<1x256xf32>
    %185 = tpu.matmul %183, %163, %cst_75 {dimension_numbers = #tpu.dot_dimension_numbers<[1], [0], [0], [1], [0, 0, 1, 1], [], []>} : vector<1x8xf32>, vector<8x256xf32>, vector<1x256xf32> -> vector<1x256xf32>
    %186 = vector.broadcast %184 : vector<1x256xf32> to vector<66x256xf32>
    %187 = arith.mulf %140, %186 : vector<66x256xf32>
    %188 = vector.broadcast %185 : vector<1x256xf32> to vector<66x256xf32>
    %189 = arith.addf %187, %188 : vector<66x256xf32>
    %cst_76 = arith.constant 2.000000e-01 : f32
    %190 = vector.broadcast %cst_76 : f32 to vector<66x256xf32>
    %191 = arith.mulf %190, %189 : vector<66x256xf32>
    %192 = arith.maximumf %189, %191 : vector<66x256xf32>
    %c0_77 = arith.constant 0 : index
    %c0_78 = arith.constant 0 : index
    %193 = vector.load %arg8[%c0_77, %c0_78] : memref<68x66xbf16, #tpu.memory_space<vmem>>, vector<68x66xbf16>
    %194 = arith.truncf %192 : vector<66x256xf32> to vector<66x256xbf16>
    %cst_79 = arith.constant dense<0.000000e+00> : vector<68x256xf32>
    %195 = tpu.matmul %193, %194, %cst_79 {dimension_numbers = #tpu.dot_dimension_numbers<[1], [0], [0], [1], [0, 0, 1, 1], [], []>} : vector<68x66xbf16>, vector<66x256xbf16>, vector<68x256xf32> -> vector<68x256xf32>
    %196 = arith.truncf %195 : vector<68x256xf32> to vector<68x256xbf16>
    %197 = vector.extract_strided_slice %196 {offsets = [0, 0], sizes = [66, 256], strides = [1, 1]} : vector<68x256xbf16> to vector<66x256xbf16>
    %198 = vector.extract_strided_slice %196 {offsets = [1, 0], sizes = [66, 256], strides = [1, 1]} : vector<68x256xbf16> to vector<66x256xbf16>
    %199 = vector.extract_strided_slice %196 {offsets = [2, 0], sizes = [66, 256], strides = [1, 1]} : vector<68x256xbf16> to vector<66x256xbf16>
    %200 = tpu.concatenate %197, %198, %199 in 1 : vector<66x256xbf16>, vector<66x256xbf16>, vector<66x256xbf16> -> vector<66x768xbf16>
    %c0_80 = arith.constant 0 : index
    %c0_81 = arith.constant 0 : index
    %201 = vector.load %arg9[%c0_80, %c0_81] : memref<768x256xbf16, #tpu.memory_space<vmem>>, vector<768x256xbf16>
    %cst_82 = arith.constant dense<0.000000e+00> : vector<66x256xf32>
    %202 = tpu.matmul %200, %201, %cst_82 {dimension_numbers = #tpu.dot_dimension_numbers<[1], [0], [0], [1], [0, 0, 1, 1], [], []>} : vector<66x768xbf16>, vector<768x256xbf16>, vector<66x256xf32> -> vector<66x256xf32>
    %203 = tpu.iota {dimensions = array<i32: 0>} : vector<66x1xi32>
    %c0_i32_83 = arith.constant 0 : i32
    %204 = vector.broadcast %c0_i32_83 : i32 to vector<66x1xi32>
    %205 = arith.cmpi sge, %203, %204 : vector<66x1xi32>
    %c32_i32_84 = arith.constant 32 : i32
    %206 = vector.broadcast %c32_i32_84 : i32 to vector<66x1xi32>
    %207 = arith.cmpi slt, %203, %206 : vector<66x1xi32>
    %208 = arith.andi %205, %207 : vector<66x1xi1>
    %c34_i32_85 = arith.constant 34 : i32
    %209 = vector.broadcast %c34_i32_85 : i32 to vector<66x1xi32>
    %210 = arith.cmpi sge, %203, %209 : vector<66x1xi32>
    %c66_i32_86 = arith.constant 66 : i32
    %211 = vector.broadcast %c66_i32_86 : i32 to vector<66x1xi32>
    %212 = arith.cmpi slt, %203, %211 : vector<66x1xi32>
    %213 = arith.andi %210, %212 : vector<66x1xi1>
    %214 = arith.ori %208, %213 : vector<66x1xi1>
    %215 = arith.extui %214 : vector<66x1xi1> to vector<66x1xi32>
    %216 = arith.sitofp %215 : vector<66x1xi32> to vector<66x1xf32>
    %217 = vector.broadcast %216 : vector<66x1xf32> to vector<66x256xf32>
    %218 = arith.mulf %202, %217 : vector<66x256xf32>
    %cst_87 = arith.constant dense<0.000000e+00> : vector<256xf32>
    %219 = vector.multi_reduction <add>, %218, %cst_87 [0] : vector<66x256xf32> to vector<256xf32>
    %220 = vector.shape_cast %219 : vector<256xf32> to vector<1x256xf32>
    %221 = arith.mulf %218, %202 : vector<66x256xf32>
    %cst_88 = arith.constant dense<0.000000e+00> : vector<256xf32>
    %222 = vector.multi_reduction <add>, %221, %cst_88 [0] : vector<66x256xf32> to vector<256xf32>
    %223 = vector.shape_cast %222 : vector<256xf32> to vector<1x256xf32>
    %c1_89 = arith.constant 1 : index
    %c0_90 = arith.constant 0 : index
    %c0_91 = arith.constant 0 : index
    %224 = vector.load %arg15[%c1_89, %c0_90, %c0_91] : memref<4x8x256xf32, #tpu.memory_space<vmem>>, vector<1x8x256xf32>
    %225 = vector.shape_cast %224 : vector<1x8x256xf32> to vector<8x256xf32>
    %cst_92 = arith.constant dense<0.000000e+00> : vector<1x8xf32>
    %226 = tpu.matmul %220, %225, %cst_92 {dimension_numbers = #tpu.dot_dimension_numbers<[1], [1], [0], [0], [0, 0, 1, 0], [], []>} : vector<1x256xf32>, vector<8x256xf32>, vector<1x8xf32> -> vector<1x8xf32>
    %cst_93 = arith.constant 4.8828125E-4 : f32
    %227 = vector.broadcast %cst_93 : f32 to vector<1x8xf32>
    %228 = arith.mulf %226, %227 : vector<1x8xf32>
    %cst_94 = arith.constant dense<0.000000e+00> : vector<1x8xf32>
    %229 = tpu.matmul %223, %225, %cst_94 {dimension_numbers = #tpu.dot_dimension_numbers<[1], [1], [0], [0], [0, 0, 1, 0], [], []>} : vector<1x256xf32>, vector<8x256xf32>, vector<1x8xf32> -> vector<1x8xf32>
    %cst_95 = arith.constant 4.8828125E-4 : f32
    %230 = vector.broadcast %cst_95 : f32 to vector<1x8xf32>
    %231 = arith.mulf %229, %230 : vector<1x8xf32>
    %232 = arith.mulf %228, %228 : vector<1x8xf32>
    %233 = arith.subf %231, %232 : vector<1x8xf32>
    %cst_96 = arith.constant 0.000000e+00 : f32
    %234 = vector.broadcast %cst_96 : f32 to vector<1x8xf32>
    %235 = arith.maximumf %233, %234 : vector<1x8xf32>
    %c3 = arith.constant 3 : index
    %c0_97 = arith.constant 0 : index
    %c0_98 = arith.constant 0 : index
    %236 = vector.load %arg16[%c3, %c0_97, %c0_98] : memref<6x2x8xf32, #tpu.memory_space<vmem>>, vector<1x2x8xf32>
    %237 = vector.shape_cast %236 : vector<1x2x8xf32> to vector<2x8xf32>
    %238 = vector.extract_strided_slice %237 {offsets = [0, 0], sizes = [1, 8], strides = [1, 1]} : vector<2x8xf32> to vector<1x8xf32>
    %239 = vector.extract_strided_slice %237 {offsets = [1, 0], sizes = [1, 8], strides = [1, 1]} : vector<2x8xf32> to vector<1x8xf32>
    %cst_99 = arith.constant 9.99999974E-6 : f32
    %240 = vector.broadcast %cst_99 : f32 to vector<1x8xf32>
    %241 = arith.addf %235, %240 : vector<1x8xf32>
    %242 = math.rsqrt %241 : vector<1x8xf32>
    %243 = arith.mulf %238, %242 : vector<1x8xf32>
    %244 = arith.mulf %228, %243 : vector<1x8xf32>
    %245 = arith.subf %239, %244 : vector<1x8xf32>
    %cst_100 = arith.constant dense<0.000000e+00> : vector<1x256xf32>
    %246 = tpu.matmul %243, %225, %cst_100 {dimension_numbers = #tpu.dot_dimension_numbers<[1], [0], [0], [1], [0, 0, 1, 1], [], []>} : vector<1x8xf32>, vector<8x256xf32>, vector<1x256xf32> -> vector<1x256xf32>
    %cst_101 = arith.constant dense<0.000000e+00> : vector<1x256xf32>
    %247 = tpu.matmul %245, %225, %cst_101 {dimension_numbers = #tpu.dot_dimension_numbers<[1], [0], [0], [1], [0, 0, 1, 1], [], []>} : vector<1x8xf32>, vector<8x256xf32>, vector<1x256xf32> -> vector<1x256xf32>
    %248 = vector.broadcast %246 : vector<1x256xf32> to vector<66x256xf32>
    %249 = arith.mulf %202, %248 : vector<66x256xf32>
    %250 = vector.broadcast %247 : vector<1x256xf32> to vector<66x256xf32>
    %251 = arith.addf %249, %250 : vector<66x256xf32>
    %cst_102 = arith.constant 2.000000e-01 : f32
    %252 = vector.broadcast %cst_102 : f32 to vector<66x256xf32>
    %253 = arith.mulf %252, %251 : vector<66x256xf32>
    %254 = arith.maximumf %251, %253 : vector<66x256xf32>
    %c0_103 = arith.constant 0 : index
    %c0_104 = arith.constant 0 : index
    %255 = vector.load %arg10[%c0_103, %c0_104] : memref<132x66xbf16, #tpu.memory_space<vmem>>, vector<132x66xbf16>
    %c0_105 = arith.constant 0 : index
    %c0_106 = arith.constant 0 : index
    %256 = vector.load %arg11[%c0_105, %c0_106] : memref<256x512xbf16, #tpu.memory_space<vmem>>, vector<256x512xbf16>
    %257 = arith.truncf %254 : vector<66x256xf32> to vector<66x256xbf16>
    %cst_107 = arith.constant dense<0.000000e+00> : vector<132x256xf32>
    %258 = tpu.matmul %255, %257, %cst_107 {dimension_numbers = #tpu.dot_dimension_numbers<[1], [0], [0], [1], [0, 0, 1, 1], [], []>} : vector<132x66xbf16>, vector<66x256xbf16>, vector<132x256xf32> -> vector<132x256xf32>
    %259 = arith.truncf %258 : vector<132x256xf32> to vector<132x256xbf16>
    %cst_108 = arith.constant dense<0.000000e+00> : vector<132x512xf32>
    %260 = tpu.matmul %259, %256, %cst_108 {dimension_numbers = #tpu.dot_dimension_numbers<[1], [0], [0], [1], [0, 0, 1, 1], [], []>} : vector<132x256xbf16>, vector<256x512xbf16>, vector<132x512xf32> -> vector<132x512xf32>
    %261 = arith.truncf %260 : vector<132x512xf32> to vector<132x512xbf16>
    %262 = vector.extract_strided_slice %261 {offsets = [0, 0], sizes = [130, 512], strides = [1, 1]} : vector<132x512xbf16> to vector<130x512xbf16>
    %263 = vector.extract_strided_slice %261 {offsets = [1, 0], sizes = [130, 512], strides = [1, 1]} : vector<132x512xbf16> to vector<130x512xbf16>
    %264 = vector.extract_strided_slice %261 {offsets = [2, 0], sizes = [130, 512], strides = [1, 1]} : vector<132x512xbf16> to vector<130x512xbf16>
    %265 = tpu.concatenate %262, %263, %264 in 1 : vector<130x512xbf16>, vector<130x512xbf16>, vector<130x512xbf16> -> vector<130x1536xbf16>
    %c0_109 = arith.constant 0 : index
    %c0_110 = arith.constant 0 : index
    %266 = vector.load %arg12[%c0_109, %c0_110] : memref<1536x192xbf16, #tpu.memory_space<vmem>>, vector<1536x192xbf16>
    %cst_111 = arith.constant dense<0.000000e+00> : vector<130x192xf32>
    %267 = tpu.matmul %265, %266, %cst_111 {dimension_numbers = #tpu.dot_dimension_numbers<[1], [0], [0], [1], [0, 0, 1, 1], [], []>} : vector<130x1536xbf16>, vector<1536x192xbf16>, vector<130x192xf32> -> vector<130x192xf32>
    %268 = tpu.iota {dimensions = array<i32: 0>} : vector<130x1xi32>
    %c0_i32_112 = arith.constant 0 : i32
    %269 = vector.broadcast %c0_i32_112 : i32 to vector<130x1xi32>
    %270 = arith.cmpi sge, %268, %269 : vector<130x1xi32>
    %c64_i32 = arith.constant 64 : i32
    %271 = vector.broadcast %c64_i32 : i32 to vector<130x1xi32>
    %272 = arith.cmpi slt, %268, %271 : vector<130x1xi32>
    %273 = arith.andi %270, %272 : vector<130x1xi1>
    %c66_i32_113 = arith.constant 66 : i32
    %274 = vector.broadcast %c66_i32_113 : i32 to vector<130x1xi32>
    %275 = arith.cmpi sge, %268, %274 : vector<130x1xi32>
    %c130_i32 = arith.constant 130 : i32
    %276 = vector.broadcast %c130_i32 : i32 to vector<130x1xi32>
    %277 = arith.cmpi slt, %268, %276 : vector<130x1xi32>
    %278 = arith.andi %275, %277 : vector<130x1xi1>
    %279 = arith.ori %273, %278 : vector<130x1xi1>
    %280 = arith.extui %279 : vector<130x1xi1> to vector<130x1xi32>
    %281 = arith.sitofp %280 : vector<130x1xi32> to vector<130x1xf32>
    %282 = vector.broadcast %281 : vector<130x1xf32> to vector<130x192xf32>
    %283 = arith.mulf %267, %282 : vector<130x192xf32>
    %cst_114 = arith.constant dense<0.000000e+00> : vector<192xf32>
    %284 = vector.multi_reduction <add>, %283, %cst_114 [0] : vector<130x192xf32> to vector<192xf32>
    %285 = vector.shape_cast %284 : vector<192xf32> to vector<1x192xf32>
    %286 = arith.mulf %283, %267 : vector<130x192xf32>
    %cst_115 = arith.constant dense<0.000000e+00> : vector<192xf32>
    %287 = vector.multi_reduction <add>, %286, %cst_115 [0] : vector<130x192xf32> to vector<192xf32>
    %288 = vector.shape_cast %287 : vector<192xf32> to vector<1x192xf32>
    %c2_116 = arith.constant 2 : index
    %c0_117 = arith.constant 0 : index
    %c0_118 = arith.constant 0 : index
    %289 = vector.load %arg15[%c2_116, %c0_117, %c0_118] : memref<4x8x256xf32, #tpu.memory_space<vmem>>, vector<1x8x256xf32>
    %290 = vector.shape_cast %289 : vector<1x8x256xf32> to vector<8x256xf32>
    %291 = vector.extract_strided_slice %290 {offsets = [0, 0], sizes = [8, 192], strides = [1, 1]} : vector<8x256xf32> to vector<8x192xf32>
    %cst_119 = arith.constant dense<0.000000e+00> : vector<1x8xf32>
    %292 = tpu.matmul %285, %291, %cst_119 {dimension_numbers = #tpu.dot_dimension_numbers<[1], [1], [0], [0], [0, 0, 1, 0], [], []>} : vector<1x192xf32>, vector<8x192xf32>, vector<1x8xf32> -> vector<1x8xf32>
    %cst_120 = arith.constant 1.22070313E-4 : f32
    %293 = vector.broadcast %cst_120 : f32 to vector<1x8xf32>
    %294 = arith.mulf %292, %293 : vector<1x8xf32>
    %cst_121 = arith.constant dense<0.000000e+00> : vector<1x8xf32>
    %295 = tpu.matmul %288, %291, %cst_121 {dimension_numbers = #tpu.dot_dimension_numbers<[1], [1], [0], [0], [0, 0, 1, 0], [], []>} : vector<1x192xf32>, vector<8x192xf32>, vector<1x8xf32> -> vector<1x8xf32>
    %cst_122 = arith.constant 1.22070313E-4 : f32
    %296 = vector.broadcast %cst_122 : f32 to vector<1x8xf32>
    %297 = arith.mulf %295, %296 : vector<1x8xf32>
    %298 = arith.mulf %294, %294 : vector<1x8xf32>
    %299 = arith.subf %297, %298 : vector<1x8xf32>
    %cst_123 = arith.constant 0.000000e+00 : f32
    %300 = vector.broadcast %cst_123 : f32 to vector<1x8xf32>
    %301 = arith.maximumf %299, %300 : vector<1x8xf32>
    %c4 = arith.constant 4 : index
    %c0_124 = arith.constant 0 : index
    %c0_125 = arith.constant 0 : index
    %302 = vector.load %arg16[%c4, %c0_124, %c0_125] : memref<6x2x8xf32, #tpu.memory_space<vmem>>, vector<1x2x8xf32>
    %303 = vector.shape_cast %302 : vector<1x2x8xf32> to vector<2x8xf32>
    %304 = vector.extract_strided_slice %303 {offsets = [0, 0], sizes = [1, 8], strides = [1, 1]} : vector<2x8xf32> to vector<1x8xf32>
    %305 = vector.extract_strided_slice %303 {offsets = [1, 0], sizes = [1, 8], strides = [1, 1]} : vector<2x8xf32> to vector<1x8xf32>
    %cst_126 = arith.constant 9.99999974E-6 : f32
    %306 = vector.broadcast %cst_126 : f32 to vector<1x8xf32>
    %307 = arith.addf %301, %306 : vector<1x8xf32>
    %308 = math.rsqrt %307 : vector<1x8xf32>
    %309 = arith.mulf %304, %308 : vector<1x8xf32>
    %310 = arith.mulf %294, %309 : vector<1x8xf32>
    %311 = arith.subf %305, %310 : vector<1x8xf32>
    %cst_127 = arith.constant dense<0.000000e+00> : vector<1x192xf32>
    %312 = tpu.matmul %309, %291, %cst_127 {dimension_numbers = #tpu.dot_dimension_numbers<[1], [0], [0], [1], [0, 0, 1, 1], [], []>} : vector<1x8xf32>, vector<8x192xf32>, vector<1x192xf32> -> vector<1x192xf32>
    %cst_128 = arith.constant dense<0.000000e+00> : vector<1x192xf32>
    %313 = tpu.matmul %311, %291, %cst_128 {dimension_numbers = #tpu.dot_dimension_numbers<[1], [0], [0], [1], [0, 0, 1, 1], [], []>} : vector<1x8xf32>, vector<8x192xf32>, vector<1x192xf32> -> vector<1x192xf32>
    %314 = vector.broadcast %312 : vector<1x192xf32> to vector<130x192xf32>
    %315 = arith.mulf %267, %314 : vector<130x192xf32>
    %316 = vector.broadcast %313 : vector<1x192xf32> to vector<130x192xf32>
    %317 = arith.addf %315, %316 : vector<130x192xf32>
    %cst_129 = arith.constant 2.000000e-01 : f32
    %318 = vector.broadcast %cst_129 : f32 to vector<130x192xf32>
    %319 = arith.mulf %318, %317 : vector<130x192xf32>
    %320 = arith.maximumf %317, %319 : vector<130x192xf32>
    %c0_130 = arith.constant 0 : index
    %c0_131 = arith.constant 0 : index
    %321 = vector.load %arg13[%c0_130, %c0_131] : memref<132x130xbf16, #tpu.memory_space<vmem>>, vector<132x130xbf16>
    %322 = arith.truncf %320 : vector<130x192xf32> to vector<130x192xbf16>
    %cst_132 = arith.constant dense<0.000000e+00> : vector<132x192xf32>
    %323 = tpu.matmul %321, %322, %cst_132 {dimension_numbers = #tpu.dot_dimension_numbers<[1], [0], [0], [1], [0, 0, 1, 1], [], []>} : vector<132x130xbf16>, vector<130x192xbf16>, vector<132x192xf32> -> vector<132x192xf32>
    %324 = arith.truncf %323 : vector<132x192xf32> to vector<132x192xbf16>
    %325 = vector.extract_strided_slice %324 {offsets = [0, 0], sizes = [130, 192], strides = [1, 1]} : vector<132x192xbf16> to vector<130x192xbf16>
    %c0_133 = arith.constant 0 : index
    %c0_134 = arith.constant 0 : index
    %326 = vector.load %arg14[%c0_133, %c0_134] : memref<576x192xbf16, #tpu.memory_space<vmem>>, vector<192x192xbf16>
    %cst_135 = arith.constant dense<0.000000e+00> : vector<130x192xf32>
    %327 = tpu.matmul %325, %326, %cst_135 {dimension_numbers = #tpu.dot_dimension_numbers<[1], [0], [0], [1], [0, 0, 1, 1], [], []>} : vector<130x192xbf16>, vector<192x192xbf16>, vector<130x192xf32> -> vector<130x192xf32>
    %328 = vector.extract_strided_slice %324 {offsets = [1, 0], sizes = [130, 192], strides = [1, 1]} : vector<132x192xbf16> to vector<130x192xbf16>
    %c192 = arith.constant 192 : index
    %c0_136 = arith.constant 0 : index
    %329 = vector.load %arg14[%c192, %c0_136] : memref<576x192xbf16, #tpu.memory_space<vmem>>, vector<192x192xbf16>
    %cst_137 = arith.constant dense<0.000000e+00> : vector<130x192xf32>
    %330 = tpu.matmul %328, %329, %cst_137 {dimension_numbers = #tpu.dot_dimension_numbers<[1], [0], [0], [1], [0, 0, 1, 1], [], []>} : vector<130x192xbf16>, vector<192x192xbf16>, vector<130x192xf32> -> vector<130x192xf32>
    %331 = arith.addf %327, %330 : vector<130x192xf32>
    %332 = vector.extract_strided_slice %324 {offsets = [2, 0], sizes = [130, 192], strides = [1, 1]} : vector<132x192xbf16> to vector<130x192xbf16>
    %c384 = arith.constant 384 : index
    %c0_138 = arith.constant 0 : index
    %333 = vector.load %arg14[%c384, %c0_138] : memref<576x192xbf16, #tpu.memory_space<vmem>>, vector<192x192xbf16>
    %cst_139 = arith.constant dense<0.000000e+00> : vector<130x192xf32>
    %334 = tpu.matmul %332, %333, %cst_139 {dimension_numbers = #tpu.dot_dimension_numbers<[1], [0], [0], [1], [0, 0, 1, 1], [], []>} : vector<130x192xbf16>, vector<192x192xbf16>, vector<130x192xf32> -> vector<130x192xf32>
    %335 = arith.addf %331, %334 : vector<130x192xf32>
    %336 = tpu.iota {dimensions = array<i32: 0>} : vector<130x1xi32>
    %c0_i32_140 = arith.constant 0 : i32
    %337 = vector.broadcast %c0_i32_140 : i32 to vector<130x1xi32>
    %338 = arith.cmpi sge, %336, %337 : vector<130x1xi32>
    %c64_i32_141 = arith.constant 64 : i32
    %339 = vector.broadcast %c64_i32_141 : i32 to vector<130x1xi32>
    %340 = arith.cmpi slt, %336, %339 : vector<130x1xi32>
    %341 = arith.andi %338, %340 : vector<130x1xi1>
    %c66_i32_142 = arith.constant 66 : i32
    %342 = vector.broadcast %c66_i32_142 : i32 to vector<130x1xi32>
    %343 = arith.cmpi sge, %336, %342 : vector<130x1xi32>
    %c130_i32_143 = arith.constant 130 : i32
    %344 = vector.broadcast %c130_i32_143 : i32 to vector<130x1xi32>
    %345 = arith.cmpi slt, %336, %344 : vector<130x1xi32>
    %346 = arith.andi %343, %345 : vector<130x1xi1>
    %347 = arith.ori %341, %346 : vector<130x1xi1>
    %348 = arith.extui %347 : vector<130x1xi1> to vector<130x1xi32>
    %349 = arith.sitofp %348 : vector<130x1xi32> to vector<130x1xf32>
    %350 = vector.broadcast %349 : vector<130x1xf32> to vector<130x192xf32>
    %351 = arith.mulf %335, %350 : vector<130x192xf32>
    %cst_144 = arith.constant dense<0.000000e+00> : vector<192xf32>
    %352 = vector.multi_reduction <add>, %351, %cst_144 [0] : vector<130x192xf32> to vector<192xf32>
    %353 = vector.shape_cast %352 : vector<192xf32> to vector<1x192xf32>
    %354 = arith.mulf %351, %335 : vector<130x192xf32>
    %cst_145 = arith.constant dense<0.000000e+00> : vector<192xf32>
    %355 = vector.multi_reduction <add>, %354, %cst_145 [0] : vector<130x192xf32> to vector<192xf32>
    %356 = vector.shape_cast %355 : vector<192xf32> to vector<1x192xf32>
    %c3_146 = arith.constant 3 : index
    %c0_147 = arith.constant 0 : index
    %c0_148 = arith.constant 0 : index
    %357 = vector.load %arg15[%c3_146, %c0_147, %c0_148] : memref<4x8x256xf32, #tpu.memory_space<vmem>>, vector<1x8x256xf32>
    %358 = vector.shape_cast %357 : vector<1x8x256xf32> to vector<8x256xf32>
    %359 = vector.extract_strided_slice %358 {offsets = [0, 0], sizes = [8, 192], strides = [1, 1]} : vector<8x256xf32> to vector<8x192xf32>
    %cst_149 = arith.constant dense<0.000000e+00> : vector<1x8xf32>
    %360 = tpu.matmul %353, %359, %cst_149 {dimension_numbers = #tpu.dot_dimension_numbers<[1], [1], [0], [0], [0, 0, 1, 0], [], []>} : vector<1x192xf32>, vector<8x192xf32>, vector<1x8xf32> -> vector<1x8xf32>
    %cst_150 = arith.constant 1.22070313E-4 : f32
    %361 = vector.broadcast %cst_150 : f32 to vector<1x8xf32>
    %362 = arith.mulf %360, %361 : vector<1x8xf32>
    %cst_151 = arith.constant dense<0.000000e+00> : vector<1x8xf32>
    %363 = tpu.matmul %356, %359, %cst_151 {dimension_numbers = #tpu.dot_dimension_numbers<[1], [1], [0], [0], [0, 0, 1, 0], [], []>} : vector<1x192xf32>, vector<8x192xf32>, vector<1x8xf32> -> vector<1x8xf32>
    %cst_152 = arith.constant 1.22070313E-4 : f32
    %364 = vector.broadcast %cst_152 : f32 to vector<1x8xf32>
    %365 = arith.mulf %363, %364 : vector<1x8xf32>
    %366 = arith.mulf %362, %362 : vector<1x8xf32>
    %367 = arith.subf %365, %366 : vector<1x8xf32>
    %cst_153 = arith.constant 0.000000e+00 : f32
    %368 = vector.broadcast %cst_153 : f32 to vector<1x8xf32>
    %369 = arith.maximumf %367, %368 : vector<1x8xf32>
    %c5 = arith.constant 5 : index
    %c0_154 = arith.constant 0 : index
    %c0_155 = arith.constant 0 : index
    %370 = vector.load %arg16[%c5, %c0_154, %c0_155] : memref<6x2x8xf32, #tpu.memory_space<vmem>>, vector<1x2x8xf32>
    %371 = vector.shape_cast %370 : vector<1x2x8xf32> to vector<2x8xf32>
    %372 = vector.extract_strided_slice %371 {offsets = [0, 0], sizes = [1, 8], strides = [1, 1]} : vector<2x8xf32> to vector<1x8xf32>
    %373 = vector.extract_strided_slice %371 {offsets = [1, 0], sizes = [1, 8], strides = [1, 1]} : vector<2x8xf32> to vector<1x8xf32>
    %cst_156 = arith.constant 9.99999974E-6 : f32
    %374 = vector.broadcast %cst_156 : f32 to vector<1x8xf32>
    %375 = arith.addf %369, %374 : vector<1x8xf32>
    %376 = math.rsqrt %375 : vector<1x8xf32>
    %377 = arith.mulf %372, %376 : vector<1x8xf32>
    %378 = arith.mulf %362, %377 : vector<1x8xf32>
    %379 = arith.subf %373, %378 : vector<1x8xf32>
    %cst_157 = arith.constant dense<0.000000e+00> : vector<1x192xf32>
    %380 = tpu.matmul %377, %359, %cst_157 {dimension_numbers = #tpu.dot_dimension_numbers<[1], [0], [0], [1], [0, 0, 1, 1], [], []>} : vector<1x8xf32>, vector<8x192xf32>, vector<1x192xf32> -> vector<1x192xf32>
    %cst_158 = arith.constant dense<0.000000e+00> : vector<1x192xf32>
    %381 = tpu.matmul %379, %359, %cst_158 {dimension_numbers = #tpu.dot_dimension_numbers<[1], [0], [0], [1], [0, 0, 1, 1], [], []>} : vector<1x8xf32>, vector<8x192xf32>, vector<1x192xf32> -> vector<1x192xf32>
    %382 = vector.broadcast %380 : vector<1x192xf32> to vector<130x192xf32>
    %383 = arith.mulf %335, %382 : vector<130x192xf32>
    %384 = vector.broadcast %381 : vector<1x192xf32> to vector<130x192xf32>
    %385 = arith.addf %383, %384 : vector<130x192xf32>
    %cst_159 = arith.constant 5.000000e-01 : f32
    %386 = vector.broadcast %cst_159 : f32 to vector<130x192xf32>
    %387 = arith.mulf %386, %385 : vector<130x192xf32>
    %388 = math.tanh %387 : vector<130x192xf32>
    %cst_160 = arith.constant 1.000000e+00 : f32
    %389 = vector.broadcast %cst_160 : f32 to vector<130x192xf32>
    %390 = arith.addf %388, %389 : vector<130x192xf32>
    %cst_161 = arith.constant 5.000000e-01 : f32
    %391 = vector.broadcast %cst_161 : f32 to vector<130x192xf32>
    %392 = arith.mulf %391, %390 : vector<130x192xf32>
    %c0_162 = arith.constant 0 : index
    %c0_163 = arith.constant 0 : index
    %393 = vector.load %arg17[%c0_162, %c0_163] : memref<130x192xf32, #tpu.memory_space<vmem>>, vector<130x192xf32>
    tpu.vector_store %arg17[%c0_162, %c0_163], %392 {strides = array<i32>} : memref<130x192xf32, #tpu.memory_space<vmem>>, vector<130x192xf32>,
    return
  }
  func.func @transform_0(%arg0: i32) -> (i32, i32) {
    %c0_i32 = arith.constant 0 : i32
    %c0_i32_0 = arith.constant 0 : i32
    %c0_i32_1 = arith.constant 0 : i32
    return %c0_i32, %c0_i32_0 : i32, i32
  }
  func.func @transform_1(%arg0: i32) -> (i32, i32) {
    %c0_i32 = arith.constant 0 : i32
    %c0_i32_0 = arith.constant 0 : i32
    %c0_i32_1 = arith.constant 0 : i32
    return %c0_i32, %c0_i32_0 : i32, i32
  }
  func.func @transform_2(%arg0: i32) -> (i32, i32) {
    %c0_i32 = arith.constant 0 : i32
    %c0_i32_0 = arith.constant 0 : i32
    %c0_i32_1 = arith.constant 0 : i32
    return %c0_i32, %c0_i32_0 : i32, i32
  }
  func.func @transform_3(%arg0: i32) -> (i32, i32) {
    %c0_i32 = arith.constant 0 : i32
    %c0_i32_0 = arith.constant 0 : i32
    %c0_i32_1 = arith.constant 0 : i32
    return %c0_i32, %c0_i32_0 : i32, i32
  }
  func.func @transform_4(%arg0: i32) -> (i32, i32) {
    %c0_i32 = arith.constant 0 : i32
    %c0_i32_0 = arith.constant 0 : i32
    %c0_i32_1 = arith.constant 0 : i32
    return %c0_i32, %c0_i32_0 : i32, i32
  }
  func.func @transform_5(%arg0: i32) -> (i32, i32) {
    %c0_i32 = arith.constant 0 : i32
    %c0_i32_0 = arith.constant 0 : i32
    %c0_i32_1 = arith.constant 0 : i32
    return %c0_i32, %c0_i32_0 : i32, i32
  }
  func.func @transform_6(%arg0: i32) -> (i32, i32) {
    %c0_i32 = arith.constant 0 : i32
    %c0_i32_0 = arith.constant 0 : i32
    %c0_i32_1 = arith.constant 0 : i32
    return %c0_i32, %c0_i32_0 : i32, i32
  }
  func.func @transform_7(%arg0: i32) -> (i32, i32) {
    %c0_i32 = arith.constant 0 : i32
    %c0_i32_0 = arith.constant 0 : i32
    %c0_i32_1 = arith.constant 0 : i32
    return %c0_i32, %c0_i32_0 : i32, i32
  }
  func.func @transform_8(%arg0: i32) -> (i32, i32) {
    %c0_i32 = arith.constant 0 : i32
    %c0_i32_0 = arith.constant 0 : i32
    %c0_i32_1 = arith.constant 0 : i32
    return %c0_i32, %c0_i32_0 : i32, i32
  }
  func.func @transform_9(%arg0: i32) -> (i32, i32) {
    %c0_i32 = arith.constant 0 : i32
    %c0_i32_0 = arith.constant 0 : i32
    %c0_i32_1 = arith.constant 0 : i32
    return %c0_i32, %c0_i32_0 : i32, i32
  }
  func.func @transform_10(%arg0: i32) -> (i32, i32) {
    %c0_i32 = arith.constant 0 : i32
    %c0_i32_0 = arith.constant 0 : i32
    %c0_i32_1 = arith.constant 0 : i32
    return %c0_i32, %c0_i32_0 : i32, i32
  }
  func.func @transform_11(%arg0: i32) -> (i32, i32) {
    %c0_i32 = arith.constant 0 : i32
    %c0_i32_0 = arith.constant 0 : i32
    %c0_i32_1 = arith.constant 0 : i32
    return %c0_i32, %c0_i32_0 : i32, i32
  }
  func.func @transform_12(%arg0: i32) -> (i32, i32) {
    %c0_i32 = arith.constant 0 : i32
    %c0_i32_0 = arith.constant 0 : i32
    %c0_i32_1 = arith.constant 0 : i32
    return %c0_i32, %c0_i32_0 : i32, i32
  }
  func.func @transform_13(%arg0: i32) -> (i32, i32) {
    %c0_i32 = arith.constant 0 : i32
    %c0_i32_0 = arith.constant 0 : i32
    %c0_i32_1 = arith.constant 0 : i32
    return %c0_i32, %c0_i32_0 : i32, i32
  }
  func.func @transform_14(%arg0: i32) -> (i32, i32, i32) {
    %c0_i32 = arith.constant 0 : i32
    %c0_i32_0 = arith.constant 0 : i32
    %c0_i32_1 = arith.constant 0 : i32
    %c0_i32_2 = arith.constant 0 : i32
    return %c0_i32, %c0_i32_0, %c0_i32_1 : i32, i32, i32
  }
  func.func @transform_15(%arg0: i32) -> (i32, i32, i32) {
    %c0_i32 = arith.constant 0 : i32
    %c0_i32_0 = arith.constant 0 : i32
    %c0_i32_1 = arith.constant 0 : i32
    %c0_i32_2 = arith.constant 0 : i32
    return %c0_i32, %c0_i32_0, %c0_i32_1 : i32, i32, i32
  }
  func.func @transform_16(%arg0: i32) -> (i32, i32) {
    %c0_i32 = arith.constant 0 : i32
    %c0_i32_0 = arith.constant 0 : i32
    %c0_i32_1 = arith.constant 0 : i32
    return %c0_i32, %c0_i32_0 : i32, i32
  }
}

</mosaic_0001>

<llo_original>
// kernel: forward.1
$region0: #{forward.1}
  #allocation0 [shape = 'u32[]', space=smem, size = 0x4, offset = 0x4, fixed_abs, tag = 'smem constant byte address 0x4 - core index']
  #allocation1 [shape = 'u32[72,128]{1,0:T(1,128)}', space=vmem, size = 0x9000, scoped, tag = 'internal scratch']
  %s0 = inlined_call_operand.vmem [shape: bf16[36,48], index: 0, kind: input, shape index: {}]
  %s1 = inlined_call_operand.hbm [shape: bf16[144,128], index: 1, kind: input, shape index: {}]
  %s2 = inlined_call_operand.hbm [shape: bf16[36,34], index: 2, kind: input, shape index: {}]
  %s3 = inlined_call_operand.vmem [shape: bf16[384,128], index: 3, kind: input, shape index: {}]
  %s4 = inlined_call_operand.hbm [shape: bf16[68,34], index: 4, kind: input, shape index: {}]
  %s5 = inlined_call_operand.vmem [shape: bf16[128,256], index: 5, kind: input, shape index: {}]
  %s6 = inlined_call_operand.hbm [shape: bf16[768,256], index: 6, kind: input, shape index: {}]
  %s7 = inlined_call_operand.hbm [shape: bf16[68,66], index: 7, kind: input, shape index: {}]
  %s8 = inlined_call_operand.hbm [shape: bf16[768,256], index: 8, kind: input, shape index: {}]
  %s9 = inlined_call_operand.hbm [shape: bf16[132,66], index: 9, kind: input, shape index: {}]
  %s10 = inlined_call_operand.hbm [shape: bf16[256,512], index: 10, kind: input, shape index: {}]
  %s11 = inlined_call_operand.hbm [shape: bf16[1536,192], index: 11, kind: input, shape index: {}]
  %s12 = inlined_call_operand.vmem [shape: bf16[132,130], index: 12, kind: input, shape index: {}]
  %s13 = inlined_call_operand.hbm [shape: bf16[576,192], index: 13, kind: input, shape index: {}]
  %s14 = inlined_call_operand.hbm [shape: f32[4,8,256], index: 14, kind: input, shape index: {}]
  %s15 = inlined_call_operand.hbm [shape: f32[6,2,8], index: 15, kind: input, shape index: {}]
  %s16 = inlined_call_operand.vmem [shape: f32[130,192], index: 16, kind: output, shape index: {}]
  %s17 = sld [smem:[#allocation0]]
  $region122: #{forward.1} parent=0
    _
  %s19 = ssub.s32 1, %s17
  %s20 = scalar_select 0, %s19, %s17
  $region1: #{forward.1} parent=0
    #allocation2 [shape = 'u8[36864]{0}', space=vmem, size = 0x9000, scoped, tag = 'input window, operand 1, single buffered']
    #allocation3 [shape = 's32[1]{0}', space=sflag, size = 0x4, scoped, tag = 'scoped memory for forward.1']
    #allocation4 [shape = 'u8[10240]{0}', space=vmem, size = 0x2800, scoped, tag = 'input window, operand 2, single buffered']
    #allocation5 [shape = 's32[1]{0}', space=sflag, size = 0x4, scoped, tag = 'scoped memory for forward.1']
    #allocation6 [shape = 'u8[18432]{0}', space=vmem, size = 0x4800, scoped, tag = 'input window, operand 4, single buffered']
    #allocation7 [shape = 'u8[393216]{0}', space=vmem, size = 0x60000, scoped, tag = 'input window, operand 6, single buffered']
    #allocation8 [shape = 's32[1]{0}', space=sflag, size = 0x4, scoped, tag = 'scoped memory for forward.1']
    #allocation9 [shape = 'u8[18432]{0}', space=vmem, size = 0x4800, scoped, tag = 'input window, operand 7, single buffered']
    #allocation10 [shape = 'u8[393216]{0}', space=vmem, size = 0x60000, scoped, tag = 'input window, operand 8, single buffered']
    #allocation11 [shape = 's32[1]{0}', space=sflag, size = 0x4, scoped, tag = 'scoped memory for forward.1']
    #allocation12 [shape = 'u8[34816]{0}', space=vmem, size = 0x8800, scoped, tag = 'input window, operand 9, single buffered']
    #allocation13 [shape = 'u8[262144]{0}', space=vmem, size = 0x40000, scoped, tag = 'input window, operand 10, single buffered']
    #allocation14 [shape = 's32[1]{0}', space=sflag, size = 0x4, scoped, tag = 'scoped memory for forward.1']
    #allocation15 [shape = 'u8[786432]{0}', space=vmem, size = 0xc0000, scoped, tag = 'input window, operand 11, single buffered']
    #allocation16 [shape = 'u8[294912]{0}', space=vmem, size = 0x48000, scoped, tag = 'input window, operand 13, single buffered']
    #allocation17 [shape = 's32[1]{0}', space=sflag, size = 0x4, scoped, tag = 'scoped memory for forward.1']
    #allocation18 [shape = 'u8[32768]{0}', space=vmem, size = 0x8000, scoped, tag = 'input window, operand 14, single buffered']
    #allocation19 [shape = 'u8[6144]{0}', space=vmem, size = 0x1800, scoped, tag = 'input window, operand 15, single buffered']
    #allocation20 [shape = 's32[1]{0}', space=sflag, size = 0x4, scoped, tag = 'scoped memory for forward.1']
    %21 = vsyncpa [#allocation3], 0
    %22 = vsyncpa [#allocation5], 0
    %23 = vsyncpa [#allocation8], 0
    %24 = vsyncpa [#allocation11], 0
    %25 = vsyncpa [#allocation14], 0
    %26 = vsyncpa [#allocation17], 0
    %27 = vsyncpa [#allocation20], 0
    // Predicated region
    $region2: #{forward.1} parent=1 // pred_check
      _
    $region3: #{forward.1} parent=1 // pred_check_branch
      %29 = sbr.rel (0) target = $region5
    $region4: #{forward.1} parent=1 // pred_region
      _
    $region5: #{forward.1} parent=1 // pred_fallthru
      _
    // Predicated region
    $region6: #{forward.1} parent=1 // pred_check
      _
    $region7: #{forward.1} parent=1 // pred_check_branch
      %31 = sbr.rel (0) target = $region9
    $region8: #{forward.1} parent=1 // pred_region
      %33 = vsyncadd [#allocation3], 0
      %s34 = sshll.u32 %s1, 4
      %s35 = int_to_ptr.hbm [resolvable:$true] %s34
      %s36 = sshll.u32 [#allocation2], 4
      %s37 = int_to_ptr.vmem [resolvable:$true] %s36
      %42 = dma.hbm_to_vmem [thread:$0]  %s35, 1152, %s37, [#allocation3], 64, 64, 4
    $region9: #{forward.1} parent=1 // pred_fallthru
      _
    // Predicated region
    $region10: #{forward.1} parent=1 // pred_check
      _
    $region11: #{forward.1} parent=1 // pred_check_branch
      %44 = sbr.rel (0) target = $region13
    $region12: #{forward.1} parent=1 // pred_region
      %46 = vsyncadd [#allocation5], 0
      %s47 = sshll.u32 %s2, 4
      %s48 = int_to_ptr.hbm [resolvable:$true] %s47
      %s49 = sshll.u32 [#allocation4], 4
      %s50 = int_to_ptr.vmem [resolvable:$true] %s49
      %55 = dma.hbm_to_vmem [thread:$0]  %s48, 320, %s50, [#allocation5], 64, 64, 4
    $region13: #{forward.1} parent=1 // pred_fallthru
      _
    // Predicated region
    $region14: #{forward.1} parent=1 // pred_check
      _
    $region15: #{forward.1} parent=1 // pred_check_branch
      %57 = sbr.rel (0) target = $region17
    $region16: #{forward.1} parent=1 // pred_region
      _
    $region17: #{forward.1} parent=1 // pred_fallthru
      _
    // Predicated region
    $region18: #{forward.1} parent=1 // pred_check
      _
    $region19: #{forward.1} parent=1 // pred_check_branch
      %59 = sbr.rel (0) target = $region21
    $region20: #{forward.1} parent=1 // pred_region
      %61 = vsyncadd [#allocation5], 0
      %s62 = sshll.u32 %s4, 4
      %s63 = int_to_ptr.hbm [resolvable:$true] %s62
      %s64 = sshll.u32 [#allocation6], 4
      %s65 = int_to_ptr.vmem [resolvable:$true] %s64
      %70 = dma.hbm_to_vmem [thread:$0]  %s63, 576, %s65, [#allocation5], 64, 64, 4
    $region21: #{forward.1} parent=1 // pred_fallthru
      _
    // Predicated region
    $region22: #{forward.1} parent=1 // pred_check
      _
    $region23: #{forward.1} parent=1 // pred_check_branch
      %72 = sbr.rel (0) target = $region25
    $region24: #{forward.1} parent=1 // pred_region
      _
    $region25: #{forward.1} parent=1 // pred_fallthru
      _
    // Predicated region
    $region26: #{forward.1} parent=1 // pred_check
      _
    $region27: #{forward.1} parent=1 // pred_check_branch
      %74 = sbr.rel (0) target = $region29
    $region28: #{forward.1} parent=1 // pred_region
      %76 = vsyncadd [#allocation8], 0
      %s77 = sshll.u32 %s6, 4
      %s78 = int_to_ptr.hbm [resolvable:$true] %s77
      %s79 = sshll.u32 [#allocation7], 4
      %s80 = int_to_ptr.vmem [resolvable:$true] %s79
      %85 = dma.hbm_to_vmem [thread:$0]  %s78, 12288, %s80, [#allocation8], 128, 128, 8
    $region29: #{forward.1} parent=1 // pred_fallthru
      _
    // Predicated region
    $region30: #{forward.1} parent=1 // pred_check
      _
    $region31: #{forward.1} parent=1 // pred_check_branch
      %87 = sbr.rel (0) target = $region33
    $region32: #{forward.1} parent=1 // pred_region
      %89 = vsyncadd [#allocation8], 0
      %s90 = sshll.u32 %s7, 4
      %s91 = int_to_ptr.hbm [resolvable:$true] %s90
      %s92 = sshll.u32 [#allocation9], 4
      %s93 = int_to_ptr.vmem [resolvable:$true] %s92
      %98 = dma.hbm_to_vmem [thread:$0]  %s91, 576, %s93, [#allocation8], 64, 64, 4
    $region33: #{forward.1} parent=1 // pred_fallthru
      _
    // Predicated region
    $region34: #{forward.1} parent=1 // pred_check
      _
    $region35: #{forward.1} parent=1 // pred_check_branch
      %100 = sbr.rel (0) target = $region37
    $region36: #{forward.1} parent=1 // pred_region
      %102 = vsyncadd [#allocation11], 0
      %s103 = sshll.u32 %s8, 4
      %s104 = int_to_ptr.hbm [resolvable:$true] %s103
      %s105 = sshll.u32 [#allocation10], 4
      %s106 = int_to_ptr.vmem [resolvable:$true] %s105
      %111 = dma.hbm_to_vmem [thread:$0]  %s104, 12288, %s106, [#allocation11], 128, 128, 8
    $region37: #{forward.1} parent=1 // pred_fallthru
      _
    // Predicated region
    $region38: #{forward.1} parent=1 // pred_check
      _
    $region39: #{forward.1} parent=1 // pred_check_branch
      %113 = sbr.rel (0) target = $region41
    $region40: #{forward.1} parent=1 // pred_region
      %115 = vsyncadd [#allocation11], 0
      %s116 = sshll.u32 %s9, 4
      %s117 = int_to_ptr.hbm [resolvable:$true] %s116
      %s118 = sshll.u32 [#allocation12], 4
      %s119 = int_to_ptr.vmem [resolvable:$true] %s118
      %124 = dma.hbm_to_vmem [thread:$0]  %s117, 1088, %s119, [#allocation11], 64, 64, 4
    $region41: #{forward.1} parent=1 // pred_fallthru
      _
    // Predicated region
    $region42: #{forward.1} parent=1 // pred_check
      _
    $region43: #{forward.1} parent=1 // pred_check_branch
      %126 = sbr.rel (0) target = $region45
    $region44: #{forward.1} parent=1 // pred_region
      %128 = vsyncadd [#allocation14], 0
      %s129 = sshll.u32 %s10, 4
      %s130 = int_to_ptr.hbm [resolvable:$true] %s129
      %s131 = sshll.u32 [#allocation13], 4
      %s132 = int_to_ptr.vmem [resolvable:$true] %s131
      %137 = dma.hbm_to_vmem [thread:$0]  %s130, 8192, %s132, [#allocation14], 256, 256, 16
    $region45: #{forward.1} parent=1 // pred_fallthru
      _
    // Predicated region
    $region46: #{forward.1} parent=1 // pred_check
      _
    $region47: #{forward.1} parent=1 // pred_check_branch
      %139 = sbr.rel (0) target = $region49
    $region48: #{forward.1} parent=1 // pred_region
      %141 = vsyncadd [#allocation14], 0
      %s142 = sshll.u32 %s11, 4
      %s143 = int_to_ptr.hbm [resolvable:$true] %s142
      %s144 = sshll.u32 [#allocation15], 4
      %s145 = int_to_ptr.vmem [resolvable:$true] %s144
      %150 = dma.hbm_to_vmem [thread:$0]  %s143, 24576, %s145, [#allocation14], 128, 128, 8
    $region49: #{forward.1} parent=1 // pred_fallthru
      _
    // Predicated region
    $region50: #{forward.1} parent=1 // pred_check
      _
    $region51: #{forward.1} parent=1 // pred_check_branch
      %152 = sbr.rel (0) target = $region53
    $region52: #{forward.1} parent=1 // pred_region
      _
    $region53: #{forward.1} parent=1 // pred_fallthru
      _
    // Predicated region
    $region54: #{forward.1} parent=1 // pred_check
      _
    $region55: #{forward.1} parent=1 // pred_check_branch
      %154 = sbr.rel (0) target = $region57
    $region56: #{forward.1} parent=1 // pred_region
      %156 = vsyncadd [#allocation17], 0
      %s157 = sshll.u32 %s13, 4
      %s158 = int_to_ptr.hbm [resolvable:$true] %s157
      %s159 = sshll.u32 [#allocation16], 4
      %s160 = int_to_ptr.vmem [resolvable:$true] %s159
      %165 = dma.hbm_to_vmem [thread:$0]  %s158, 9216, %s160, [#allocation17], 128, 128, 8
    $region57: #{forward.1} parent=1 // pred_fallthru
      _
    // Predicated region
    $region58: #{forward.1} parent=1 // pred_check
      _
    $region59: #{forward.1} parent=1 // pred_check_branch
      %167 = sbr.rel (0) target = $region61
    $region60: #{forward.1} parent=1 // pred_region
      %169 = vsyncadd [#allocation17], 0
      %s170 = sshll.u32 %s14, 4
      %s171 = int_to_ptr.hbm [resolvable:$true] %s170
      %s172 = sshll.u32 [#allocation18], 4
      %s173 = int_to_ptr.vmem [resolvable:$true] %s172
      %178 = dma.hbm_to_vmem [thread:$0]  %s171, 1024, %s173, [#allocation17], 256, 256, 16
    $region61: #{forward.1} parent=1 // pred_fallthru
      _
    // Predicated region
    $region62: #{forward.1} parent=1 // pred_check
      _
    $region63: #{forward.1} parent=1 // pred_check_branch
      %180 = sbr.rel (0) target = $region65
    $region64: #{forward.1} parent=1 // pred_region
      %182 = vsyncadd [#allocation20], 0
      %s183 = sshll.u32 %s15, 4
      %s184 = int_to_ptr.hbm [resolvable:$true] %s183
      %s185 = sshll.u32 [#allocation19], 4
      %s186 = int_to_ptr.vmem [resolvable:$true] %s185
      %191 = dma.hbm_to_vmem [thread:$0]  %s184, 192, %s186, [#allocation20], 32, 32, 2
    $region65: #{forward.1} parent=1 // pred_fallthru
      _
    // Predicated region
    $region66: #{forward.1} parent=1 // pred_check
      _
    $region67: #{forward.1} parent=1 // pred_check_branch
      %193 = sbr.rel (0) target = $region69
    $region68: #{forward.1} parent=1 // pred_region
      %195 = dma.done [#allocation3], 1152
    $region69: #{forward.1} parent=1 // pred_fallthru
      _
    // Predicated region
    $region70: #{forward.1} parent=1 // pred_check
      _
    $region71: #{forward.1} parent=1 // pred_check_branch
      %197 = sbr.rel (0) target = $region73
    $region72: #{forward.1} parent=1 // pred_region
      %199 = dma.done [#allocation5], 320
    $region73: #{forward.1} parent=1 // pred_fallthru
      _
    // Predicated region
    $region74: #{forward.1} parent=1 // pred_check
      _
    $region75: #{forward.1} parent=1 // pred_check_branch
      %201 = sbr.rel (0) target = $region77
    $region76: #{forward.1} parent=1 // pred_region
      %203 = dma.done [#allocation5], 576
    $region77: #{forward.1} parent=1 // pred_fallthru
      _
    // Predicated region
    $region78: #{forward.1} parent=1 // pred_check
      _
    $region79: #{forward.1} parent=1 // pred_check_branch
      %205 = sbr.rel (0) target = $region81
    $region80: #{forward.1} parent=1 // pred_region
      %207 = dma.done [#allocation8], 12288
    $region81: #{forward.1} parent=1 // pred_fallthru
      _
    // Predicated region
    $region82: #{forward.1} parent=1 // pred_check
      _
    $region83: #{forward.1} parent=1 // pred_check_branch
      %209 = sbr.rel (0) target = $region85
    $region84: #{forward.1} parent=1 // pred_region
      %211 = dma.done [#allocation8], 576
    $region85: #{forward.1} parent=1 // pred_fallthru
      _
    // Predicated region
    $region86: #{forward.1} parent=1 // pred_check
      _
    $region87: #{forward.1} parent=1 // pred_check_branch
      %213 = sbr.rel (0) target = $region89
    $region88: #{forward.1} parent=1 // pred_region
      %215 = dma.done [#allocation11], 12288
    $region89: #{forward.1} parent=1 // pred_fallthru
      _
    // Predicated region
    $region90: #{forward.1} parent=1 // pred_check
      _
    $region91: #{forward.1} parent=1 // pred_check_branch
      %217 = sbr.rel (0) target = $region93
    $region92: #{forward.1} parent=1 // pred_region
      %219 = dma.done [#allocation11], 1088
    $region93: #{forward.1} parent=1 // pred_fallthru
      _
    // Predicated region
    $region94: #{forward.1} parent=1 // pred_check
      _
    $region95: #{forward.1} parent=1 // pred_check_branch
      %221 = sbr.rel (0) target = $region97
    $region96: #{forward.1} parent=1 // pred_region
      %223 = dma.done [#allocation14], 8192
    $region97: #{forward.1} parent=1 // pred_fallthru
      _
    // Predicated region
    $region98: #{forward.1} parent=1 // pred_check
      _
    $region99: #{forward.1} parent=1 // pred_check_branch
      %225 = sbr.rel (0) target = $region101
    $region100: #{forward.1} parent=1 // pred_region
      %227 = dma.done [#allocation14], 24576
    $region101: #{forward.1} parent=1 // pred_fallthru
      _
    // Predicated region
    $region102: #{forward.1} parent=1 // pred_check
      _
    $region103: #{forward.1} parent=1 // pred_check_branch
      %229 = sbr.rel (0) target = $region105
    $region104: #{forward.1} parent=1 // pred_region
      %231 = dma.done [#allocation17], 9216
    $region105: #{forward.1} parent=1 // pred_fallthru
      _
    // Predicated region
    $region106: #{forward.1} parent=1 // pred_check
      _
    $region107: #{forward.1} parent=1 // pred_check_branch
      %233 = sbr.rel (0) target = $region109
    $region108: #{forward.1} parent=1 // pred_region
      %235 = dma.done [#allocation17], 1024
    $region109: #{forward.1} parent=1 // pred_fallthru
      _
    // Predicated region
    $region110: #{forward.1} parent=1 // pred_check
      _
    $region111: #{forward.1} parent=1 // pred_check_branch
      %237 = sbr.rel (0) target = $region113
    $region112: #{forward.1} parent=1 // pred_region
      %239 = dma.done [#allocation20], 192
    $region113: #{forward.1} parent=1 // pred_fallthru
      _
    %v241 = vld [vmem:[%s0] sm:$0xf]
    %v242 = vld [vmem:[%s0 + $0x4] sm:$0xf]
    %v243 = vld [vmem:[%s0 + $0x8] sm:$0xf]
    %v244 = vld [vmem:[%s0 + $0xc] sm:$0xf]
    %v245 = vld [vmem:[%s0 + $0x10] sm:$0x3]
    %v246 = vld [vmem:[#allocation2] sm:$0xf]
    %v247 = vld [vmem:[#allocation2 + $0x4] sm:$0xf]
    %v248 = vld [vmem:[#allocation2 + $0x8] sm:$0xf]
    %v249 = vld [vmem:[#allocation2 + $0xc] sm:$0xf]
    %v250 = vld [vmem:[#allocation2 + $0x10] sm:$0xf]
    %v251 = vld [vmem:[#allocation2 + $0x14] sm:$0xf]
    %v252 = vld [vmem:[#allocation2 + $0x18] sm:$0xf]
    %v253 = vld [vmem:[#allocation2 + $0x1c] sm:$0xf]
    %v254 = vld [vmem:[#allocation2 + $0x20] sm:$0xf]
    %v255 = vld [vmem:[#allocation2 + $0x24] sm:$0xf]
    %v256 = vld [vmem:[#allocation2 + $0x28] sm:$0xf]
    %v257 = vld [vmem:[#allocation2 + $0x2c] sm:$0xf]
    %v263 = vunpack.c.l.b16 %v241
    %v264 = vunpack.c.l.b16 %v242
    %v265 = vunpack.c.l.b16 %v243
    %v266 = vunpack.c.l.b16 %v244
    %v267 = vunpack.c.l.b16 %v245
    %v268 = vpack.c.b16 %v264, %v263
    %v269 = vpack.c.b16 %v266, %v265
    %v270 = vpack.c.b16 %v267, %v267
    %vm271 = vsmask.f32 7424
    %v273 = vshrl.u32 %v268, 16
    %v275 = vshll.u32 %v268, 16
    %v277 = vrot.slane %v275, 1
    %v278 = vor.u32 %v273, %v277
    %v280 = vshll.u32 %v269, 16
    %v282 = vrot.slane %v280, 1
    %v283 = vsel %vm271, %v278, %v282
    %v284 = vshrl.u32 %v269, 16
    %v286 = vor.u32 %v284, %v282
    %v288 = vshll.u32 %v270, 16
    %v290 = vrot.slane %v288, 1
    %v291 = vsel %vm271, %v286, %v290
    %v292 = vshrl.u32 %v270, 16
    %v294 = vor.u32 %v292, %v290
    %v301 = vunpack.c.l.b16 %v252
    %v302 = vunpack.c.l.b16 %v253
    %v303 = vunpack.c.l.b16 %v254
    %v304 = vunpack.c.l.b16 %v255
    %v305 = vunpack.c.l.b16 %v256
    %v306 = vunpack.c.l.b16 %v257
    %v307 = vpack.c.b16 %v302, %v301
    %v308 = vpack.c.b16 %v304, %v303
    %v309 = vpack.c.b16 %v306, %v305
    %vm313 = vcmask 392192
    %v315 = vsel %vm313, %v283, 0
    %v318 = vsel %vm313, %v291, 0
    %v321 = vsel %vm313, %v294, 0
    %323 = vmatpush.bf16.msra.mxu0 0
    %324 = vmatpush.bf16.msra.mxu0 0
    %325 = vmatpush.bf16.msra.mxu0 0
    %326 = vmatpush.bf16.msra.mxu0 0
    %327 = vmatpush.bf16.msra.mxu0 0
    %328 = vmatpush.bf16.msra.mxu0 %v309
    %329 = vmatpush.bf16.msra.mxu0 %v308
    %330 = vmatpush.bf16.msra.mxu0 %v307
    %331 = vmatmul.bf16.gmra.mxu0 %v315
    %v332 = vpop.f32.mrf.mxu0
    %v333 = vadd.f32 0.0, %v332
    %v334 = vpop.f32.mrf.mxu0
    %v335 = vadd.f32 0.0, %v334
    %336 = vmatmul.bf16.gmra.mxu0 %v318
    %v337 = vpop.f32.mrf.mxu0
    %v338 = vadd.f32 0.0, %v337
    %v339 = vpop.f32.mrf.mxu0
    %v340 = vadd.f32 0.0, %v339
    %341 = vmatmul.bf16.gmra.mxu0 %v321
    %v342 = vpop.f32.mrf.mxu0
    %v343 = vadd.f32 0.0, %v342
    %v344 = vpop.f32.mrf.mxu0
    %345 = vdwg.mxu0
    %v352 = vunpack.c.l.b16 %v246
    %v353 = vunpack.c.l.b16 %v247
    %v354 = vunpack.c.l.b16 %v248
    %v355 = vunpack.c.l.b16 %v249
    %v356 = vunpack.c.l.b16 %v250
    %v357 = vunpack.c.l.b16 %v251
    %v358 = vpack.c.b16 %v353, %v352
    %v359 = vpack.c.b16 %v355, %v354
    %v360 = vpack.c.b16 %v357, %v356
    %v364 = vsel %vm313, %v268, 0
    %v366 = vsel %vm313, %v269, 0
    %v368 = vsel %vm313, %v270, 0
    %370 = vmatpush.bf16.msra.mxu0 0
    %371 = vmatpush.bf16.msra.mxu0 0
    %372 = vmatpush.bf16.msra.mxu0 0
    %373 = vmatpush.bf16.msra.mxu0 0
    %374 = vmatpush.bf16.msra.mxu0 0
    %375 = vmatpush.bf16.msra.mxu0 %v360
    %376 = vmatpush.bf16.msra.mxu0 %v359
    %377 = vmatpush.bf16.msra.mxu0 %v358
    %378 = vmatmul.bf16.gmra.mxu0 %v364
    %v379 = vpop.f32.mrf.mxu0
    %v380 = vadd.f32 %v333, %v379
    %v381 = vpop.f32.mrf.mxu0
    %v382 = vadd.f32 %v335, %v381
    %383 = vmatmul.bf16.gmra.mxu0 %v366
    %v384 = vpop.f32.mrf.mxu0
    %v385 = vadd.f32 %v338, %v384
    %v386 = vpop.f32.mrf.mxu0
    %v387 = vadd.f32 %v340, %v386
    %388 = vmatmul.bf16.gmra.mxu0 %v368
    %v389 = vpop.f32.mrf.mxu0
    %v390 = vadd.f32 %v343, %v389
    %v391 = vpop.f32.mrf.mxu0
    %392 = vdwg.mxu0
    %v393 = vld [vmem:[#allocation2 + $0x30] sm:$0xf]
    %v394 = vld [vmem:[#allocation2 + $0x34] sm:$0xf]
    %v395 = vld [vmem:[#allocation2 + $0x38] sm:$0xf]
    %v396 = vld [vmem:[#allocation2 + $0x3c] sm:$0xf]
    %v397 = vld [vmem:[#allocation2 + $0x40] sm:$0xf]
    %v398 = vld [vmem:[#allocation2 + $0x44] sm:$0xf]
    %vm399 = vcmask 1046528
    %v400 = vrot.slane %v268, 1
    %v401 = vrot.slane %v269, 1
    %v402 = vsel %vm399, %v400, %v401
    %v403 = vrot.slane %v270, 1
    %v404 = vsel %vm399, %v401, %v403
    %v411 = vunpack.c.l.b16 %v393
    %v412 = vunpack.c.l.b16 %v394
    %v413 = vunpack.c.l.b16 %v395
    %v414 = vunpack.c.l.b16 %v396
    %v415 = vunpack.c.l.b16 %v397
    %v416 = vunpack.c.l.b16 %v398
    %v417 = vpack.c.b16 %v412, %v411
    %v418 = vpack.c.b16 %v414, %v413
    %v419 = vpack.c.b16 %v416, %v415
    %v424 = vsel %vm313, %v402, 0
    %v427 = vsel %vm313, %v404, 0
    %v430 = vsel %vm313, %v403, 0
    %432 = vmatpush.bf16.msra.mxu0 0
    %433 = vmatpush.bf16.msra.mxu0 0
    %434 = vmatpush.bf16.msra.mxu0 0
    %435 = vmatpush.bf16.msra.mxu0 0
    %436 = vmatpush.bf16.msra.mxu0 0
    %437 = vmatpush.bf16.msra.mxu0 %v419
    %438 = vmatpush.bf16.msra.mxu0 %v418
    %439 = vmatpush.bf16.msra.mxu0 %v417
    %440 = vmatmul.bf16.gmra.mxu0 %v424
    %v441 = vpop.f32.mrf.mxu0
    %v442 = vadd.f32 0.0, %v441
    %v443 = vpop.f32.mrf.mxu0
    %v444 = vadd.f32 0.0, %v443
    %445 = vmatmul.bf16.gmra.mxu0 %v427
    %v446 = vpop.f32.mrf.mxu0
    %v447 = vadd.f32 0.0, %v446
    %v448 = vpop.f32.mrf.mxu0
    %v449 = vadd.f32 0.0, %v448
    %450 = vmatmul.bf16.gmra.mxu0 %v430
    %v451 = vpop.f32.mrf.mxu0
    %v452 = vadd.f32 0.0, %v451
    %v453 = vpop.f32.mrf.mxu0
    %454 = vdwg.mxu0
    %v455 = vadd.f32 %v380, %v442
    %v456 = vadd.f32 %v382, %v444
    %v457 = vadd.f32 %v385, %v447
    %v458 = vadd.f32 %v387, %v449
    %v459 = vadd.f32 %v390, %v452
    %v460 = vlaneseq
    %v461 = vshrl.u32 %v460, 7
    %v462 = vadd.s32 %v461, 8
    %v463 = vadd.s32 %v461, 16
    %v464 = vadd.s32 %v461, 24
    %v465 = vadd.s32 %v461, 32
    %vm466 = vcmp.ge.s32.totalorder %v461, 0
    %vm467 = vcmp.ge.s32.totalorder %v462, 0
    %vm468 = vcmp.ge.s32.totalorder %v463, 0
    %vm469 = vcmp.ge.s32.totalorder %v464, 0
    %vm470 = vcmp.ge.s32.totalorder %v465, 0
    %vm471 = vcmp.lt.s32.totalorder %v461, 16
    %vm472 = vcmp.lt.s32.totalorder %v462, 16
    %vm473 = vcmp.lt.s32.totalorder %v463, 16
    %vm474 = vcmp.lt.s32.totalorder %v464, 16
    %vm475 = vcmp.lt.s32.totalorder %v465, 16
    %vm476 = vmand %vm466, %vm471
    %vm477 = vmand %vm467, %vm472
    %vm478 = vmand %vm468, %vm473
    %vm479 = vmand %vm469, %vm474
    %vm480 = vmand %vm470, %vm475
    %vm481 = vcmp.ge.s32.totalorder %v461, 18
    %vm482 = vcmp.ge.s32.totalorder %v462, 18
    %vm483 = vcmp.ge.s32.totalorder %v463, 18
    %vm484 = vcmp.ge.s32.totalorder %v464, 18
    %vm485 = vcmp.ge.s32.totalorder %v465, 18
    %vm486 = vcmp.lt.s32.totalorder %v461, 34
    %vm487 = vcmp.lt.s32.totalorder %v462, 34
    %vm488 = vcmp.lt.s32.totalorder %v463, 34
    %vm489 = vcmp.lt.s32.totalorder %v464, 34
    %vm490 = vcmp.lt.s32.totalorder %v465, 34
    %vm491 = vmand %vm481, %vm486
    %vm492 = vmand %vm482, %vm487
    %vm493 = vmand %vm483, %vm488
    %vm494 = vmand %vm484, %vm489
    %vm495 = vmand %vm485, %vm490
    %vm496 = vmor %vm476, %vm491
    %vm497 = vmor %vm477, %vm492
    %vm498 = vmor %vm478, %vm493
    %vm499 = vmor %vm479, %vm494
    %vm500 = vmor %vm480, %vm495
    %v501 = vsel %vm496, 1, 0
    %v502 = vsel %vm497, 1, 0
    %v503 = vsel %vm498, 1, 0
    %v504 = vsel %vm499, 1, 0
    %v505 = vsel %vm500, 1, 0
    %v506 = vcvt.s32.f32 %v501
    %v507 = vcvt.s32.f32 %v502
    %v508 = vcvt.s32.f32 %v503
    %v509 = vcvt.s32.f32 %v504
    %v510 = vcvt.s32.f32 %v505
    %v511 = vmul.f32 %v455, %v506
    %v512 = vmul.f32 %v456, %v507
    %v513 = vmul.f32 %v457, %v508
    %v514 = vmul.f32 %v458, %v509
    %v515 = vmul.f32 %v459, %v510
    %v516 = vadd.f32 %v511, %v512
    %v517 = vadd.f32 %v516, %v513
    %v518 = vadd.f32 %v517, %v514
    %vm519 = vcmask 1041408
    %v520 = vsel %vm519, %v515, 0.0
    %v521 = vadd.f32 %v518, %v520
    %v522 = vrot.slane %v521, 4
    %v523 = vadd.f32 %v521, %v522
    %v524 = vrot.slane %v523, 2
    %v525 = vadd.f32 %v523, %v524
    %v526 = vrot.slane %v525, 1
    %v527 = vadd.f32 %v525, %v526
    %v528 = vmul.f32 %v511, %v455
    %v529 = vmul.f32 %v512, %v456
    %v530 = vmul.f32 %v513, %v457
    %v531 = vmul.f32 %v514, %v458
    %v532 = vmul.f32 %v515, %v459
    %v533 = vadd.f32 %v528, %v529
    %v534 = vadd.f32 %v533, %v530
    %v535 = vadd.f32 %v534, %v531
    %v536 = vsel %vm519, %v532, 0.0
    %v537 = vadd.f32 %v535, %v536
    %v538 = vrot.slane %v537, 4
    %v539 = vadd.f32 %v537, %v538
    %v540 = vrot.slane %v539, 2
    %v541 = vadd.f32 %v539, %v540
    %v542 = vrot.slane %v541, 1
    %v543 = vadd.f32 %v541, %v542
    %v544 = vld [vmem:[#allocation18] sm:$0xff]
    %545 = vmatpush.xpose.msra.mxu0 0.0
    %546 = vmatpush.xpose.msra.mxu0 0.0
    %547 = vmatpush.xpose.msra.mxu0 0.0
    %548 = vmatpush.xpose.msra.mxu0 0.0
    %549 = vmatpush.xpose.msra.mxu0 0.0
    %550 = vmatpush.xpose.msra.mxu0 0.0
    %551 = vmatpush.xpose.msra.mxu0 0.0
    %552 = vmatpush.xpose.msra.mxu0 0.0
    %553 = vmatpush.xpose.msra.mxu0 0.0
    %554 = vmatpush.xpose.msra.mxu0 0.0
    %555 = vmatpush.xpose.msra.mxu0 0.0
    %556 = vmatpush.xpose.msra.mxu0 0.0
    %557 = vmatpush.xpose.msra.mxu0 0.0
    %558 = vmatpush.xpose.msra.mxu0 0.0
    %559 = vmatpush.xpose.msra.mxu0 0.0
    %560 = vmatpush.xpose.msra.mxu0 %v544
    %561 = vmatmul.f32.gmra.mxu0 %v527
    %v562 = vpop.f32.mrf.mxu0
    %v563 = vadd.f32 0.0, %v562
    %564 = vdwg.mxu0
    %v565 = vmul.f32 %v563, 0.001953125
    %566 = vmatpush.xpose.msra.mxu0 0.0
    %567 = vmatpush.xpose.msra.mxu0 0.0
    %568 = vmatpush.xpose.msra.mxu0 0.0
    %569 = vmatpush.xpose.msra.mxu0 0.0
    %570 = vmatpush.xpose.msra.mxu0 0.0
    %571 = vmatpush.xpose.msra.mxu0 0.0
    %572 = vmatpush.xpose.msra.mxu0 0.0
    %573 = vmatpush.xpose.msra.mxu0 0.0
    %574 = vmatpush.xpose.msra.mxu0 0.0
    %575 = vmatpush.xpose.msra.mxu0 0.0
    %576 = vmatpush.xpose.msra.mxu0 0.0
    %577 = vmatpush.xpose.msra.mxu0 0.0
    %578 = vmatpush.xpose.msra.mxu0 0.0
    %579 = vmatpush.xpose.msra.mxu0 0.0
    %580 = vmatpush.xpose.msra.mxu0 0.0
    %581 = vmatpush.xpose.msra.mxu0 %v544
    %582 = vmatmul.f32.gmra.mxu0 %v543
    %v583 = vpop.f32.mrf.mxu0
    %v584 = vadd.f32 0.0, %v583
    %585 = vdwg.mxu0
    %v586 = vmul.f32 %v584, 0.001953125
    %v587 = vmul.f32 %v565, %v565
    %v588 = vsub.f32 %v586, %v587
    %v589 = vmax.f32 %v588, 0.0
    %v590 = vld [vmem:[#allocation19] sm:$0x3]
    %v591 = vadd.f32 %v589, 1e-05
    %v592 = vrsqrt.pop %v591
    %v593 = vmul.f32 %v592, %v591
    %v594 = vmul.f32 %v593, %v592
    %v595 = vmul.f32 0.5, %v594
    %v596 = vsub.f32 1.5, %v595
    %v597 = vmul.f32 %v592, %v596
    %vm598 = vweird.f32 %v591
    %vm599 = vweird.f32 %v592
    %vm600 = vmor %vm598, %vm599
    %v601 = vsel %vm600, %v592, %v597
    %v602 = vmul.f32 %v590, %v601
    %v603 = vmul.f32 %v565, %v602
    %v605 = vrot.slane %v603, 7
    %v607 = vsub.f32 %v590, %v605
    %vm608 = vcmask 64512
    %v610 = vsel %vm608, %v602, 0
    %612 = vmatpush.msra.mxu0 0.0
    %613 = vmatpush.msra.mxu0 0.0
    %614 = vmatpush.msra.mxu0 0.0
    %615 = vmatpush.msra.mxu0 0.0
    %616 = vmatpush.msra.mxu0 0.0
    %617 = vmatpush.msra.mxu0 0.0
    %618 = vmatpush.msra.mxu0 0.0
    %619 = vmatpush.msra.mxu0 0.0
    %620 = vmatpush.msra.mxu0 0.0
    %621 = vmatpush.msra.mxu0 0.0
    %622 = vmatpush.msra.mxu0 0.0
    %623 = vmatpush.msra.mxu0 0.0
    %624 = vmatpush.msra.mxu0 0.0
    %625 = vmatpush.msra.mxu0 0.0
    %626 = vmatpush.msra.mxu0 0.0
    %627 = vmatpush.msra.mxu0 %v544
    %628 = vmatmul.f32.gmra.mxu0 %v610
    %v629 = vpop.f32.mrf.mxu0
    %v630 = vadd.f32 0.0, %v629
    %631 = vdwg.mxu0
    %v633 = vrot.slane %v607, 1
    %v634 = vsel %vm608, %v633, 0
    %636 = vmatpush.msra.mxu0 0.0
    %637 = vmatpush.msra.mxu0 0.0
    %638 = vmatpush.msra.mxu0 0.0
    %639 = vmatpush.msra.mxu0 0.0
    %640 = vmatpush.msra.mxu0 0.0
    %641 = vmatpush.msra.mxu0 0.0
    %642 = vmatpush.msra.mxu0 0.0
    %643 = vmatpush.msra.mxu0 0.0
    %644 = vmatpush.msra.mxu0 0.0
    %645 = vmatpush.msra.mxu0 0.0
    %646 = vmatpush.msra.mxu0 0.0
    %647 = vmatpush.msra.mxu0 0.0
    %648 = vmatpush.msra.mxu0 0.0
    %649 = vmatpush.msra.mxu0 0.0
    %650 = vmatpush.msra.mxu0 0.0
    %651 = vmatpush.msra.mxu0 %v544
    %652 = vmatmul.f32.gmra.mxu0 %v634
    %v653 = vpop.f32.mrf.mxu0
    %v654 = vadd.f32 0.0, %v653
    %655 = vdwg.mxu0
    %v656 = vperm.slane %v630, 0
    %v657 = vmul.f32 %v455, %v656
    %v658 = vmul.f32 %v456, %v656
    %v659 = vmul.f32 %v457, %v656
    %v660 = vmul.f32 %v458, %v656
    %v661 = vmul.f32 %v459, %v656
    %v662 = vperm.slane %v654, 0
    %v663 = vadd.f32 %v657, %v662
    %v664 = vadd.f32 %v658, %v662
    %v665 = vadd.f32 %v659, %v662
    %v666 = vadd.f32 %v660, %v662
    %v667 = vadd.f32 %v661, %v662
    %v668 = vmul.f32 %v663, 0.2
    %v669 = vmul.f32 %v664, 0.2
    %v670 = vmul.f32 %v665, 0.2
    %v671 = vmul.f32 %v666, 0.2
    %v672 = vmul.f32 %v667, 0.2
    %v673 = vmax.f32 %v663, %v668
    %v674 = vmax.f32 %v664, %v669
    %v675 = vmax.f32 %v665, %v670
    %v676 = vmax.f32 %v666, %v671
    %v677 = vmax.f32 %v667, %v672
    %v678 = vld [vmem:[#allocation4] sm:$0xf]
    %v679 = vld [vmem:[#allocation4 + $0x4] sm:$0xf]
    %v680 = vld [vmem:[#allocation4 + $0x8] sm:$0xf]
    %v681 = vld [vmem:[#allocation4 + $0xc] sm:$0xf]
    %v682 = vld [vmem:[#allocation4 + $0x10] sm:$0x3]
    %v683 = vpack.c.bf16 %v674, %v673
    %v684 = vpack.c.bf16 %v676, %v675
    %v685 = vpack.c.bf16 %v677, %v677
    %v691 = vunpack.c.l.b16 %v678
    %v692 = vunpack.c.l.b16 %v679
    %v693 = vunpack.c.l.b16 %v680
    %v694 = vunpack.c.l.b16 %v681
    %v695 = vunpack.c.l.b16 %v682
    %v696 = vpack.c.b16 %v692, %v691
    %v697 = vpack.c.b16 %v694, %v693
    %v698 = vpack.c.b16 %v695, %v695
    %vm699 = vcmask 277504
    %v701 = vsel %vm699, %v696, 0
    %v704 = vsel %vm699, %v697, 0
    %v707 = vsel %vm699, %v698, 0
    %vm709 = vcmask 1040384
    %v711 = vsel %vm709, %v685, 0
    %713 = vmatpush.bf16.msra.mxu0 0
    %714 = vmatpush.bf16.msra.mxu0 0
    %715 = vmatpush.bf16.msra.mxu0 0
    %716 = vmatpush.bf16.msra.mxu0 0
    %717 = vmatpush.bf16.msra.mxu0 0
    %718 = vmatpush.bf16.msra.mxu0 %v711
    %719 = vmatpush.bf16.msra.mxu0 %v684
    %720 = vmatpush.bf16.msra.mxu0 %v683
    %721 = vmatmul.bf16.gmra.mxu0 %v701
    %v722 = vpop.f32.mrf.mxu0
    %v723 = vadd.f32 0.0, %v722
    %v724 = vpop.f32.mrf.mxu0
    %v725 = vadd.f32 0.0, %v724
    %726 = vmatmul.bf16.gmra.mxu0 %v704
    %v727 = vpop.f32.mrf.mxu0
    %v728 = vadd.f32 0.0, %v727
    %v729 = vpop.f32.mrf.mxu0
    %v730 = vadd.f32 0.0, %v729
    %731 = vmatmul.bf16.gmra.mxu0 %v707
    %v732 = vpop.f32.mrf.mxu0
    %v733 = vadd.f32 0.0, %v732
    %v734 = vpop.f32.mrf.mxu0
    %735 = vdwg.mxu0
    %v736 = vpack.c.bf16 %v723, %v723
    %v737 = vpack.c.bf16 %v725, %v725
    %v738 = vpack.c.bf16 %v728, %v728
    %v739 = vpack.c.bf16 %v730, %v730
    %v740 = vpack.c.bf16 %v733, %v733
    %v746 = vunpack.c.l.b16 %v736
    %v747 = vunpack.c.l.b16 %v737
    %v748 = vunpack.c.l.b16 %v738
    %v749 = vunpack.c.l.b16 %v739
    %v750 = vunpack.c.l.b16 %v740
    %v751 = vpack.c.b16 %v747, %v746
    %v752 = vpack.c.b16 %v749, %v748
    %v753 = vpack.c.b16 %v750, %v750
    %v758 = vshrl.u32 %v751, 16
    %v760 = vshll.u32 %v751, 16
    %v762 = vrot.slane %v760, 1
    %v763 = vor.u32 %v758, %v762
    %v765 = vshll.u32 %v752, 16
    %v767 = vrot.slane %v765, 1
    %v768 = vsel %vm271, %v763, %v767
    %v769 = vshrl.u32 %v752, 16
    %v771 = vor.u32 %v769, %v767
    %v773 = vshll.u32 %v753, 16
    %v775 = vrot.slane %v773, 1
    %v776 = vsel %vm271, %v771, %v775
    %v777 = vshrl.u32 %v753, 16
    %v779 = vor.u32 %v777, %v775
    %v783 = vrot.slane %v751, 1
    %v784 = vrot.slane %v752, 1
    %v785 = vsel %vm399, %v783, %v784
    %v786 = vrot.slane %v753, 1
    %v787 = vsel %vm399, %v784, %v786
    %v791 = vld [vmem:[%s3] sm:$0xf]
    %v792 = vld [vmem:[%s3 + $0x4] sm:$0xf]
    %v793 = vld [vmem:[%s3 + $0x8] sm:$0xf]
    %v794 = vld [vmem:[%s3 + $0xc] sm:$0xf]
    %v795 = vld [vmem:[%s3 + $0x10] sm:$0xf]
    %v796 = vld [vmem:[%s3 + $0x14] sm:$0xf]
    %v797 = vld [vmem:[%s3 + $0x18] sm:$0xf]
    %v798 = vld [vmem:[%s3 + $0x1c] sm:$0xf]
    %v799 = vld [vmem:[%s3 + $0x20] sm:$0xf]
    %v800 = vld [vmem:[%s3 + $0x24] sm:$0xf]
    %v801 = vld [vmem:[%s3 + $0x28] sm:$0xf]
    %v802 = vld [vmem:[%s3 + $0x2c] sm:$0xf]
    %v803 = vld [vmem:[%s3 + $0x30] sm:$0xf]
    %v804 = vld [vmem:[%s3 + $0x34] sm:$0xf]
    %v805 = vld [vmem:[%s3 + $0x38] sm:$0xf]
    %v806 = vld [vmem:[%s3 + $0x3c] sm:$0xf]
    %v807 = vld [vmem:[%s3 + $0x40] sm:$0xf]
    %v808 = vld [vmem:[%s3 + $0x44] sm:$0xf]
    %v809 = vld [vmem:[%s3 + $0x48] sm:$0xf]
    %v810 = vld [vmem:[%s3 + $0x4c] sm:$0xf]
    %v811 = vld [vmem:[%s3 + $0x50] sm:$0xf]
    %v812 = vld [vmem:[%s3 + $0x54] sm:$0xf]
    %v813 = vld [vmem:[%s3 + $0x58] sm:$0xf]
    %v814 = vld [vmem:[%s3 + $0x5c] sm:$0xf]
    %v815 = vld [vmem:[%s3 + $0x60] sm:$0xf]
    %v816 = vld [vmem:[%s3 + $0x64] sm:$0xf]
    %v817 = vld [vmem:[%s3 + $0x68] sm:$0xf]
    %v818 = vld [vmem:[%s3 + $0x6c] sm:$0xf]
    %v819 = vld [vmem:[%s3 + $0x70] sm:$0xf]
    %v820 = vld [vmem:[%s3 + $0x74] sm:$0xf]
    %v821 = vld [vmem:[%s3 + $0x78] sm:$0xf]
    %v822 = vld [vmem:[%s3 + $0x7c] sm:$0xf]
    %v823 = vld [vmem:[%s3 + $0x80] sm:$0xf]
    %v824 = vld [vmem:[%s3 + $0x84] sm:$0xf]
    %v825 = vld [vmem:[%s3 + $0x88] sm:$0xf]
    %v826 = vld [vmem:[%s3 + $0x8c] sm:$0xf]
    %v827 = vld [vmem:[%s3 + $0x90] sm:$0xf]
    %v828 = vld [vmem:[%s3 + $0x94] sm:$0xf]
    %v829 = vld [vmem:[%s3 + $0x98] sm:$0xf]
    %v830 = vld [vmem:[%s3 + $0x9c] sm:$0xf]
    %v831 = vld [vmem:[%s3 + $0xa0] sm:$0xf]
    %v832 = vld [vmem:[%s3 + $0xa4] sm:$0xf]
    %v833 = vld [vmem:[%s3 + $0xa8] sm:$0xf]
    %v834 = vld [vmem:[%s3 + $0xac] sm:$0xf]
    %v835 = vld [vmem:[%s3 + $0xb0] sm:$0xf]
    %v836 = vld [vmem:[%s3 + $0xb4] sm:$0xf]
    %v837 = vld [vmem:[%s3 + $0xb8] sm:$0xf]
    %v838 = vld [vmem:[%s3 + $0xbc] sm:$0xf]
    %v887 = vunpack.c.l.b16 %v791
    %v888 = vunpack.c.l.b16 %v792
    %v889 = vunpack.c.l.b16 %v793
    %v890 = vunpack.c.l.b16 %v794
    %v891 = vunpack.c.l.b16 %v795
    %v892 = vunpack.c.l.b16 %v796
    %v893 = vunpack.c.l.b16 %v797
    %v894 = vunpack.c.l.b16 %v798
    %v895 = vunpack.c.l.b16 %v799
    %v896 = vunpack.c.l.b16 %v800
    %v897 = vunpack.c.l.b16 %v801
    %v898 = vunpack.c.l.b16 %v802
    %v899 = vunpack.c.l.b16 %v803
    %v900 = vunpack.c.l.b16 %v804
    %v901 = vunpack.c.l.b16 %v805
    %v902 = vunpack.c.l.b16 %v806
    %v903 = vunpack.c.l.b16 %v807
    %v904 = vunpack.c.l.b16 %v808
    %v905 = vunpack.c.l.b16 %v809
    %v906 = vunpack.c.l.b16 %v810
    %v907 = vunpack.c.l.b16 %v811
    %v908 = vunpack.c.l.b16 %v812
    %v909 = vunpack.c.l.b16 %v813
    %v910 = vunpack.c.l.b16 %v814
    %v911 = vunpack.c.l.b16 %v815
    %v912 = vunpack.c.l.b16 %v816
    %v913 = vunpack.c.l.b16 %v817
    %v914 = vunpack.c.l.b16 %v818
    %v915 = vunpack.c.l.b16 %v819
    %v916 = vunpack.c.l.b16 %v820
    %v917 = vunpack.c.l.b16 %v821
    %v918 = vunpack.c.l.b16 %v822
    %v919 = vunpack.c.l.b16 %v823
    %v920 = vunpack.c.l.b16 %v824
    %v921 = vunpack.c.l.b16 %v825
    %v922 = vunpack.c.l.b16 %v826
    %v923 = vunpack.c.l.b16 %v827
    %v924 = vunpack.c.l.b16 %v828
    %v925 = vunpack.c.l.b16 %v829
    %v926 = vunpack.c.l.b16 %v830
    %v927 = vunpack.c.l.b16 %v831
    %v928 = vunpack.c.l.b16 %v832
    %v929 = vunpack.c.l.b16 %v833
    %v930 = vunpack.c.l.b16 %v834
    %v931 = vunpack.c.l.b16 %v835
    %v932 = vunpack.c.l.b16 %v836
    %v933 = vunpack.c.l.b16 %v837
    %v934 = vunpack.c.l.b16 %v838
    %v935 = vpack.c.b16 %v888, %v887
    %v936 = vpack.c.b16 %v890, %v889
    %v937 = vpack.c.b16 %v892, %v891
    %v938 = vpack.c.b16 %v894, %v893
    %v939 = vpack.c.b16 %v896, %v895
    %v940 = vpack.c.b16 %v898, %v897
    %v941 = vpack.c.b16 %v900, %v899
    %v942 = vpack.c.b16 %v902, %v901
    %v943 = vpack.c.b16 %v904, %v903
    %v944 = vpack.c.b16 %v906, %v905
    %v945 = vpack.c.b16 %v908, %v907
    %v946 = vpack.c.b16 %v910, %v909
    %v947 = vpack.c.b16 %v912, %v911
    %v948 = vpack.c.b16 %v914, %v913
    %v949 = vpack.c.b16 %v916, %v915
    %v950 = vpack.c.b16 %v918, %v917
    %v951 = vpack.c.b16 %v920, %v919
    %v952 = vpack.c.b16 %v922, %v921
    %v953 = vpack.c.b16 %v924, %v923
    %v954 = vpack.c.b16 %v926, %v925
    %v955 = vpack.c.b16 %v928, %v927
    %v956 = vpack.c.b16 %v930, %v929
    %v957 = vpack.c.b16 %v932, %v931
    %v958 = vpack.c.b16 %v934, %v933
    %983 = vmatpush.bf16.msra.mxu0 %v942
    %984 = vmatpush.bf16.msra.mxu0 %v941
    %985 = vmatpush.bf16.msra.mxu0 %v940
    %986 = vmatpush.bf16.msra.mxu0 %v939
    %987 = vmatpush.bf16.msra.mxu0 %v938
    %988 = vmatpush.bf16.msra.mxu0 %v937
    %989 = vmatpush.bf16.msra.mxu0 %v936
    %990 = vmatpush.bf16.msra.mxu0 %v935
    %991 = vmatmul.bf16.gmra.mxu0 %v751
    %v992 = vpop.f32.mrf.mxu0
    %v993 = vadd.f32 0.0, %v992
    %v994 = vpop.f32.mrf.mxu0
    %v995 = vadd.f32 0.0, %v994
    %996 = vmatmul.bf16.gmra.mxu0 %v752
    %v997 = vpop.f32.mrf.mxu0
    %v998 = vadd.f32 0.0, %v997
    %v999 = vpop.f32.mrf.mxu0
    %v1000 = vadd.f32 0.0, %v999
    %1001 = vmatmul.bf16.gmra.mxu0 %v753
    %v1002 = vpop.f32.mrf.mxu0
    %v1003 = vadd.f32 0.0, %v1002
    %v1004 = vpop.f32.mrf.mxu0
    %1005 = vdwg.mxu0
    %1006 = vmatpush.bf16.msra.mxu0 %v950
    %1007 = vmatpush.bf16.msra.mxu0 %v949
    %1008 = vmatpush.bf16.msra.mxu0 %v948
    %1009 = vmatpush.bf16.msra.mxu0 %v947
    %1010 = vmatpush.bf16.msra.mxu0 %v946
    %1011 = vmatpush.bf16.msra.mxu0 %v945
    %1012 = vmatpush.bf16.msra.mxu0 %v944
    %1013 = vmatpush.bf16.msra.mxu0 %v943
    %1014 = vmatmul.bf16.gmra.mxu0 %v768
    %v1015 = vpop.f32.mrf.mxu0
    %v1016 = vadd.f32 %v993, %v1015
    %v1017 = vpop.f32.mrf.mxu0
    %v1018 = vadd.f32 %v995, %v1017
    %1019 = vmatmul.bf16.gmra.mxu0 %v776
    %v1020 = vpop.f32.mrf.mxu0
    %v1021 = vadd.f32 %v998, %v1020
    %v1022 = vpop.f32.mrf.mxu0
    %v1023 = vadd.f32 %v1000, %v1022
    %1024 = vmatmul.bf16.gmra.mxu0 %v779
    %v1025 = vpop.f32.mrf.mxu0
    %v1026 = vadd.f32 %v1003, %v1025
    %v1027 = vpop.f32.mrf.mxu0
    %1028 = vdwg.mxu0
    %1029 = vmatpush.bf16.msra.mxu0 %v958
    %1030 = vmatpush.bf16.msra.mxu0 %v957
    %1031 = vmatpush.bf16.msra.mxu0 %v956
    %1032 = vmatpush.bf16.msra.mxu0 %v955
    %1033 = vmatpush.bf16.msra.mxu0 %v954
    %1034 = vmatpush.bf16.msra.mxu0 %v953
    %1035 = vmatpush.bf16.msra.mxu0 %v952
    %1036 = vmatpush.bf16.msra.mxu0 %v951
    %1037 = vmatmul.bf16.gmra.mxu0 %v785
    %v1038 = vpop.f32.mrf.mxu0
    %v1039 = vadd.f32 %v1016, %v1038
    %v1040 = vpop.f32.mrf.mxu0
    %v1041 = vadd.f32 %v1018, %v1040
    %1042 = vmatmul.bf16.gmra.mxu0 %v787
    %v1043 = vpop.f32.mrf.mxu0
    %v1044 = vadd.f32 %v1021, %v1043
    %v1045 = vpop.f32.mrf.mxu0
    %v1046 = vadd.f32 %v1023, %v1045
    %1047 = vmatmul.bf16.gmra.mxu0 %v786
    %v1048 = vpop.f32.mrf.mxu0
    %v1049 = vadd.f32 %v1026, %v1048
    %v1050 = vpop.f32.mrf.mxu0
    %1051 = vdwg.mxu0
    %v1052 = vmul.f32 %v1039, %v506
    %v1053 = vmul.f32 %v1041, %v507
    %v1054 = vmul.f32 %v1044, %v508
    %v1055 = vmul.f32 %v1046, %v509
    %v1056 = vmul.f32 %v1049, %v510
    %v1057 = vadd.f32 %v1052, %v1053
    %v1058 = vadd.f32 %v1057, %v1054
    %v1059 = vadd.f32 %v1058, %v1055
    %v1060 = vsel %vm519, %v1056, 0.0
    %v1061 = vadd.f32 %v1059, %v1060
    %v1062 = vrot.slane %v1061, 4
    %v1063 = vadd.f32 %v1061, %v1062
    %v1064 = vrot.slane %v1063, 2
    %v1065 = vadd.f32 %v1063, %v1064
    %v1066 = vrot.slane %v1065, 1
    %v1067 = vadd.f32 %v1065, %v1066
    %v1068 = vmul.f32 %v1052, %v1039
    %v1069 = vmul.f32 %v1053, %v1041
    %v1070 = vmul.f32 %v1054, %v1044
    %v1071 = vmul.f32 %v1055, %v1046
    %v1072 = vmul.f32 %v1056, %v1049
    %v1073 = vadd.f32 %v1068, %v1069
    %v1074 = vadd.f32 %v1073, %v1070
    %v1075 = vadd.f32 %v1074, %v1071
    %v1076 = vsel %vm519, %v1072, 0.0
    %v1077 = vadd.f32 %v1075, %v1076
    %v1078 = vrot.slane %v1077, 4
    %v1079 = vadd.f32 %v1077, %v1078
    %v1080 = vrot.slane %v1079, 2
    %v1081 = vadd.f32 %v1079, %v1080
    %v1082 = vrot.slane %v1081, 1
    %v1083 = vadd.f32 %v1081, %v1082
    %1084 = vmatpush.xpose.msra.mxu0 0.0
    %1085 = vmatpush.xpose.msra.mxu0 0.0
    %1086 = vmatpush.xpose.msra.mxu0 0.0
    %1087 = vmatpush.xpose.msra.mxu0 0.0
    %1088 = vmatpush.xpose.msra.mxu0 0.0
    %1089 = vmatpush.xpose.msra.mxu0 0.0
    %1090 = vmatpush.xpose.msra.mxu0 0.0
    %1091 = vmatpush.xpose.msra.mxu0 0.0
    %1092 = vmatpush.xpose.msra.mxu0 0.0
    %1093 = vmatpush.xpose.msra.mxu0 0.0
    %1094 = vmatpush.xpose.msra.mxu0 0.0
    %1095 = vmatpush.xpose.msra.mxu0 0.0
    %1096 = vmatpush.xpose.msra.mxu0 0.0
    %1097 = vmatpush.xpose.msra.mxu0 0.0
    %1098 = vmatpush.xpose.msra.mxu0 0.0
    %1099 = vmatpush.xpose.msra.mxu0 %v544
    %1100 = vmatmul.f32.gmra.mxu0 %v1067
    %v1101 = vpop.f32.mrf.mxu0
    %v1102 = vadd.f32 0.0, %v1101
    %1103 = vdwg.mxu0
    %v1104 = vmul.f32 %v1102, 0.001953125
    %1105 = vmatpush.xpose.msra.mxu0 0.0
    %1106 = vmatpush.xpose.msra.mxu0 0.0
    %1107 = vmatpush.xpose.msra.mxu0 0.0
    %1108 = vmatpush.xpose.msra.mxu0 0.0
    %1109 = vmatpush.xpose.msra.mxu0 0.0
    %1110 = vmatpush.xpose.msra.mxu0 0.0
    %1111 = vmatpush.xpose.msra.mxu0 0.0
    %1112 = vmatpush.xpose.msra.mxu0 0.0
    %1113 = vmatpush.xpose.msra.mxu0 0.0
    %1114 = vmatpush.xpose.msra.mxu0 0.0
    %1115 = vmatpush.xpose.msra.mxu0 0.0
    %1116 = vmatpush.xpose.msra.mxu0 0.0
    %1117 = vmatpush.xpose.msra.mxu0 0.0
    %1118 = vmatpush.xpose.msra.mxu0 0.0
    %1119 = vmatpush.xpose.msra.mxu0 0.0
    %1120 = vmatpush.xpose.msra.mxu0 %v544
    %1121 = vmatmul.f32.gmra.mxu0 %v1083
    %v1122 = vpop.f32.mrf.mxu0
    %v1123 = vadd.f32 0.0, %v1122
    %1124 = vdwg.mxu0
    %v1125 = vmul.f32 %v1123, 0.001953125
    %v1126 = vmul.f32 %v1104, %v1104
    %v1127 = vsub.f32 %v1125, %v1126
    %v1128 = vmax.f32 %v1127, 0.0
    %s1129 = scalar_lea.vmem [#allocation19], 2
    %v1130 = vld [vmem:[%s1129] sm:$0x3]
    %v1131 = vadd.f32 %v1128, 1e-05
    %v1132 = vrsqrt.pop %v1131
    %v1133 = vmul.f32 %v1132, %v1131
    %v1134 = vmul.f32 %v1133, %v1132
    %v1135 = vmul.f32 0.5, %v1134
    %v1136 = vsub.f32 1.5, %v1135
    %v1137 = vmul.f32 %v1132, %v1136
    %vm1138 = vweird.f32 %v1131
    %vm1139 = vweird.f32 %v1132
    %vm1140 = vmor %vm1138, %vm1139
    %v1141 = vsel %vm1140, %v1132, %v1137
    %v1142 = vmul.f32 %v1130, %v1141
    %v1143 = vmul.f32 %v1104, %v1142
    %v1145 = vrot.slane %v1143, 7
    %v1147 = vsub.f32 %v1130, %v1145
    %v1149 = vsel %vm608, %v1142, 0
    %1151 = vmatpush.msra.mxu0 0.0
    %1152 = vmatpush.msra.mxu0 0.0
    %1153 = vmatpush.msra.mxu0 0.0
    %1154 = vmatpush.msra.mxu0 0.0
    %1155 = vmatpush.msra.mxu0 0.0
    %1156 = vmatpush.msra.mxu0 0.0
    %1157 = vmatpush.msra.mxu0 0.0
    %1158 = vmatpush.msra.mxu0 0.0
    %1159 = vmatpush.msra.mxu0 0.0
    %1160 = vmatpush.msra.mxu0 0.0
    %1161 = vmatpush.msra.mxu0 0.0
    %1162 = vmatpush.msra.mxu0 0.0
    %1163 = vmatpush.msra.mxu0 0.0
    %1164 = vmatpush.msra.mxu0 0.0
    %1165 = vmatpush.msra.mxu0 0.0
    %1166 = vmatpush.msra.mxu0 %v544
    %1167 = vmatmul.f32.gmra.mxu0 %v1149
    %v1168 = vpop.f32.mrf.mxu0
    %v1169 = vadd.f32 0.0, %v1168
    %1170 = vdwg.mxu0
    %v1172 = vrot.slane %v1147, 1
    %v1173 = vsel %vm608, %v1172, 0
    %1175 = vmatpush.msra.mxu0 0.0
    %1176 = vmatpush.msra.mxu0 0.0
    %1177 = vmatpush.msra.mxu0 0.0
    %1178 = vmatpush.msra.mxu0 0.0
    %1179 = vmatpush.msra.mxu0 0.0
    %1180 = vmatpush.msra.mxu0 0.0
    %1181 = vmatpush.msra.mxu0 0.0
    %1182 = vmatpush.msra.mxu0 0.0
    %1183 = vmatpush.msra.mxu0 0.0
    %1184 = vmatpush.msra.mxu0 0.0
    %1185 = vmatpush.msra.mxu0 0.0
    %1186 = vmatpush.msra.mxu0 0.0
    %1187 = vmatpush.msra.mxu0 0.0
    %1188 = vmatpush.msra.mxu0 0.0
    %1189 = vmatpush.msra.mxu0 0.0
    %1190 = vmatpush.msra.mxu0 %v544
    %1191 = vmatmul.f32.gmra.mxu0 %v1173
    %v1192 = vpop.f32.mrf.mxu0
    %v1193 = vadd.f32 0.0, %v1192
    %1194 = vdwg.mxu0
    %v1195 = vperm.slane %v1169, 0
    %v1196 = vmul.f32 %v1039, %v1195
    %v1197 = vmul.f32 %v1041, %v1195
    %v1198 = vmul.f32 %v1044, %v1195
    %v1199 = vmul.f32 %v1046, %v1195
    %v1200 = vmul.f32 %v1049, %v1195
    %v1201 = vperm.slane %v1193, 0
    %v1202 = vadd.f32 %v1196, %v1201
    %v1203 = vadd.f32 %v1197, %v1201
    %v1204 = vadd.f32 %v1198, %v1201
    %v1205 = vadd.f32 %v1199, %v1201
    %v1206 = vadd.f32 %v1200, %v1201
    %v1207 = vmul.f32 %v1202, 0.2
    %v1208 = vmul.f32 %v1203, 0.2
    %v1209 = vmul.f32 %v1204, 0.2
    %v1210 = vmul.f32 %v1205, 0.2
    %v1211 = vmul.f32 %v1206, 0.2
    %v1212 = vmax.f32 %v1202, %v1207
    %v1213 = vmax.f32 %v1203, %v1208
    %v1214 = vmax.f32 %v1204, %v1209
    %v1215 = vmax.f32 %v1205, %v1210
    %v1216 = vmax.f32 %v1206, %v1211
    %v1217 = vld [vmem:[#allocation6] sm:$0xf]
    %v1218 = vld [vmem:[#allocation6 + $0x4] sm:$0xf]
    %v1219 = vld [vmem:[#allocation6 + $0x8] sm:$0xf]
    %v1220 = vld [vmem:[#allocation6 + $0xc] sm:$0xf]
    %v1221 = vld [vmem:[#allocation6 + $0x10] sm:$0xf]
    %v1222 = vld [vmem:[#allocation6 + $0x14] sm:$0xf]
    %v1223 = vld [vmem:[#allocation6 + $0x18] sm:$0xf]
    %v1224 = vld [vmem:[#allocation6 + $0x1c] sm:$0xf]
    %v1225 = vld [vmem:[#allocation6 + $0x20] sm:$0x3]
    %v1226 = vld [vmem:[%s5] sm:$0xff]
    %v1227 = vld [vmem:[%s5 + $0x8] sm:$0xff]
    %v1228 = vld [vmem:[%s5 + $0x10] sm:$0xff]
    %v1229 = vld [vmem:[%s5 + $0x18] sm:$0xff]
    %v1230 = vld [vmem:[%s5 + $0x20] sm:$0xff]
    %v1231 = vld [vmem:[%s5 + $0x28] sm:$0xff]
    %v1232 = vld [vmem:[%s5 + $0x30] sm:$0xff]
    %v1233 = vld [vmem:[%s5 + $0x38] sm:$0xff]
    %v1234 = vld [vmem:[%s5 + $0x40] sm:$0xff]
    %v1235 = vld [vmem:[%s5 + $0x48] sm:$0xff]
    %v1236 = vld [vmem:[%s5 + $0x50] sm:$0xff]
    %v1237 = vld [vmem:[%s5 + $0x58] sm:$0xff]
    %v1238 = vld [vmem:[%s5 + $0x60] sm:$0xff]
    %v1239 = vld [vmem:[%s5 + $0x68] sm:$0xff]
    %v1240 = vld [vmem:[%s5 + $0x70] sm:$0xff]
    %v1241 = vld [vmem:[%s5 + $0x78] sm:$0xff]
    %v1242 = vpack.c.bf16 %v1213, %v1212
    %v1243 = vpack.c.bf16 %v1215, %v1214
    %v1244 = vpack.c.bf16 %v1216, %v1216
    %v1254 = vunpack.c.l.b16 %v1217
    %v1255 = vunpack.c.l.b16 %v1218
    %v1256 = vunpack.c.l.b16 %v1219
    %v1257 = vunpack.c.l.b16 %v1220
    %v1258 = vunpack.c.l.b16 %v1221
    %v1259 = vunpack.c.l.b16 %v1222
    %v1260 = vunpack.c.l.b16 %v1223
    %v1261 = vunpack.c.l.b16 %v1224
    %v1262 = vunpack.c.l.b16 %v1225
    %v1263 = vpack.c.b16 %v1255, %v1254
    %v1264 = vpack.c.b16 %v1257, %v1256
    %v1265 = vpack.c.b16 %v1259, %v1258
    %v1266 = vpack.c.b16 %v1261, %v1260
    %v1267 = vpack.c.b16 %v1262, %v1262
    %v1269 = vsel %vm699, %v1263, 0
    %v1272 = vsel %vm699, %v1264, 0
    %v1275 = vsel %vm699, %v1265, 0
    %v1278 = vsel %vm699, %v1266, 0
    %v1281 = vsel %vm699, %v1267, 0
    %v1284 = vsel %vm709, %v1244, 0
    %1286 = vmatpush.bf16.msra.mxu0 0
    %1287 = vmatpush.bf16.msra.mxu0 0
    %1288 = vmatpush.bf16.msra.mxu0 0
    %1289 = vmatpush.bf16.msra.mxu0 0
    %1290 = vmatpush.bf16.msra.mxu0 0
    %1291 = vmatpush.bf16.msra.mxu0 %v1284
    %1292 = vmatpush.bf16.msra.mxu0 %v1243
    %1293 = vmatpush.bf16.msra.mxu0 %v1242
    %1294 = vmatmul.bf16.gmra.mxu0 %v1269
    %v1295 = vpop.f32.mrf.mxu0
    %v1296 = vadd.f32 0.0, %v1295
    %v1297 = vpop.f32.mrf.mxu0
    %v1298 = vadd.f32 0.0, %v1297
    %1299 = vmatmul.bf16.gmra.mxu0 %v1272
    %v1300 = vpop.f32.mrf.mxu0
    %v1301 = vadd.f32 0.0, %v1300
    %v1302 = vpop.f32.mrf.mxu0
    %v1303 = vadd.f32 0.0, %v1302
    %1304 = vmatmul.bf16.gmra.mxu0 %v1275
    %v1305 = vpop.f32.mrf.mxu0
    %v1306 = vadd.f32 0.0, %v1305
    %v1307 = vpop.f32.mrf.mxu0
    %v1308 = vadd.f32 0.0, %v1307
    %1309 = vmatmul.bf16.gmra.mxu0 %v1278
    %v1310 = vpop.f32.mrf.mxu0
    %v1311 = vadd.f32 0.0, %v1310
    %v1312 = vpop.f32.mrf.mxu0
    %v1313 = vadd.f32 0.0, %v1312
    %1314 = vmatmul.bf16.gmra.mxu0 %v1281
    %v1315 = vpop.f32.mrf.mxu0
    %v1316 = vadd.f32 0.0, %v1315
    %v1317 = vpop.f32.mrf.mxu0
    %1318 = vdwg.mxu0
    %v1319 = vpack.c.bf16 %v1298, %v1296
    %v1320 = vpack.c.bf16 %v1303, %v1301
    %v1321 = vpack.c.bf16 %v1308, %v1306
    %v1322 = vpack.c.bf16 %v1313, %v1311
    %v1323 = vpack.c.bf16 %v1316, %v1316
    %v1340 = vunpack.c.l.b16 %v1226
    %v1341 = vunpack.c.h.b16 %v1226
    %v1342 = vunpack.c.l.b16 %v1227
    %v1343 = vunpack.c.h.b16 %v1227
    %v1344 = vunpack.c.l.b16 %v1228
    %v1345 = vunpack.c.h.b16 %v1228
    %v1346 = vunpack.c.l.b16 %v1229
    %v1347 = vunpack.c.h.b16 %v1229
    %v1348 = vunpack.c.l.b16 %v1230
    %v1349 = vunpack.c.h.b16 %v1230
    %v1350 = vunpack.c.l.b16 %v1231
    %v1351 = vunpack.c.h.b16 %v1231
    %v1352 = vunpack.c.l.b16 %v1232
    %v1353 = vunpack.c.h.b16 %v1232
    %v1354 = vunpack.c.l.b16 %v1233
    %v1355 = vunpack.c.h.b16 %v1233
    %v1356 = vunpack.c.l.b16 %v1234
    %v1357 = vunpack.c.h.b16 %v1234
    %v1358 = vunpack.c.l.b16 %v1235
    %v1359 = vunpack.c.h.b16 %v1235
    %v1360 = vunpack.c.l.b16 %v1236
    %v1361 = vunpack.c.h.b16 %v1236
    %v1362 = vunpack.c.l.b16 %v1237
    %v1363 = vunpack.c.h.b16 %v1237
    %v1364 = vunpack.c.l.b16 %v1238
    %v1365 = vunpack.c.h.b16 %v1238
    %v1366 = vunpack.c.l.b16 %v1239
    %v1367 = vunpack.c.h.b16 %v1239
    %v1368 = vunpack.c.l.b16 %v1240
    %v1369 = vunpack.c.h.b16 %v1240
    %v1370 = vunpack.c.l.b16 %v1241
    %v1371 = vunpack.c.h.b16 %v1241
    %v1372 = vpack.c.b16 %v1342, %v1340
    %v1373 = vpack.c.b16 %v1343, %v1341
    %v1374 = vpack.c.b16 %v1346, %v1344
    %v1375 = vpack.c.b16 %v1347, %v1345
    %v1376 = vpack.c.b16 %v1350, %v1348
    %v1377 = vpack.c.b16 %v1351, %v1349
    %v1378 = vpack.c.b16 %v1354, %v1352
    %v1379 = vpack.c.b16 %v1355, %v1353
    %v1380 = vpack.c.b16 %v1358, %v1356
    %v1381 = vpack.c.b16 %v1359, %v1357
    %v1382 = vpack.c.b16 %v1362, %v1360
    %v1383 = vpack.c.b16 %v1363, %v1361
    %v1384 = vpack.c.b16 %v1366, %v1364
    %v1385 = vpack.c.b16 %v1367, %v1365
    %v1386 = vpack.c.b16 %v1370, %v1368
    %v1387 = vpack.c.b16 %v1371, %v1369
    %1404 = vmatpush.bf16.msra.mxu0 %v1386
    %1405 = vmatpush.bf16.msra.mxu0 %v1384
    %1406 = vmatpush.bf16.msra.mxu0 %v1382
    %1407 = vmatpush.bf16.msra.mxu0 %v1380
    %1408 = vmatpush.bf16.msra.mxu0 %v1378
    %1409 = vmatpush.bf16.msra.mxu0 %v1376
    %1410 = vmatpush.bf16.msra.mxu0 %v1374
    %1411 = vmatpush.bf16.msra.mxu0 %v1372
    %1412 = vmatmul.bf16.gmra.mxu0 %v1319
    %v1413 = vpop.f32.mrf.mxu0
    %v1414 = vadd.f32 0.0, %v1413
    %v1415 = vpop.f32.mrf.mxu0
    %v1416 = vadd.f32 0.0, %v1415
    %1417 = vmatmul.bf16.gmra.mxu0 %v1320
    %v1418 = vpop.f32.mrf.mxu0
    %v1419 = vadd.f32 0.0, %v1418
    %v1420 = vpop.f32.mrf.mxu0
    %v1421 = vadd.f32 0.0, %v1420
    %1422 = vmatmul.bf16.gmra.mxu0 %v1321
    %v1423 = vpop.f32.mrf.mxu0
    %v1424 = vadd.f32 0.0, %v1423
    %v1425 = vpop.f32.mrf.mxu0
    %v1426 = vadd.f32 0.0, %v1425
    %1427 = vmatmul.bf16.gmra.mxu0 %v1322
    %v1428 = vpop.f32.mrf.mxu0
    %v1429 = vadd.f32 0.0, %v1428
    %v1430 = vpop.f32.mrf.mxu0
    %v1431 = vadd.f32 0.0, %v1430
    %1432 = vmatmul.bf16.gmra.mxu0 %v1323
    %v1433 = vpop.f32.mrf.mxu0
    %v1434 = vadd.f32 0.0, %v1433
    %v1435 = vpop.f32.mrf.mxu0
    %1436 = vdwg.mxu0
    %1437 = vmatpush.bf16.msra.mxu0 %v1387
    %1438 = vmatpush.bf16.msra.mxu0 %v1385
    %1439 = vmatpush.bf16.msra.mxu0 %v1383
    %1440 = vmatpush.bf16.msra.mxu0 %v1381
    %1441 = vmatpush.bf16.msra.mxu0 %v1379
    %1442 = vmatpush.bf16.msra.mxu0 %v1377
    %1443 = vmatpush.bf16.msra.mxu0 %v1375
    %1444 = vmatpush.bf16.msra.mxu0 %v1373
    %1445 = vmatmul.bf16.gmra.mxu0 %v1319
    %v1446 = vpop.f32.mrf.mxu0
    %v1447 = vadd.f32 0.0, %v1446
    %v1448 = vpop.f32.mrf.mxu0
    %v1449 = vadd.f32 0.0, %v1448
    %1450 = vmatmul.bf16.gmra.mxu0 %v1320
    %v1451 = vpop.f32.mrf.mxu0
    %v1452 = vadd.f32 0.0, %v1451
    %v1453 = vpop.f32.mrf.mxu0
    %v1454 = vadd.f32 0.0, %v1453
    %1455 = vmatmul.bf16.gmra.mxu0 %v1321
    %v1456 = vpop.f32.mrf.mxu0
    %v1457 = vadd.f32 0.0, %v1456
    %v1458 = vpop.f32.mrf.mxu0
    %v1459 = vadd.f32 0.0, %v1458
    %1460 = vmatmul.bf16.gmra.mxu0 %v1322
    %v1461 = vpop.f32.mrf.mxu0
    %v1462 = vadd.f32 0.0, %v1461
    %v1463 = vpop.f32.mrf.mxu0
    %v1464 = vadd.f32 0.0, %v1463
    %1465 = vmatmul.bf16.gmra.mxu0 %v1323
    %v1466 = vpop.f32.mrf.mxu0
    %v1467 = vadd.f32 0.0, %v1466
    %v1468 = vpop.f32.mrf.mxu0
    %1469 = vdwg.mxu0
    %v1470 = vpack.c.bf16 %v1447, %v1414
    %v1471 = vpack.c.bf16 %v1449, %v1416
    %v1472 = vpack.c.bf16 %v1452, %v1419
    %v1473 = vpack.c.bf16 %v1454, %v1421
    %v1474 = vpack.c.bf16 %v1457, %v1424
    %v1475 = vpack.c.bf16 %v1459, %v1426
    %v1476 = vpack.c.bf16 %v1462, %v1429
    %v1477 = vpack.c.bf16 %v1464, %v1431
    %v1478 = vpack.c.bf16 %v1467, %v1434
    %v1488 = vunpack.c.l.b16 %v1470
    %v1489 = vunpack.c.h.b16 %v1470
    %v1490 = vunpack.c.l.b16 %v1471
    %v1491 = vunpack.c.h.b16 %v1471
    %v1492 = vunpack.c.l.b16 %v1472
    %v1493 = vunpack.c.h.b16 %v1472
    %v1494 = vunpack.c.l.b16 %v1473
    %v1495 = vunpack.c.h.b16 %v1473
    %v1496 = vunpack.c.l.b16 %v1474
    %v1497 = vunpack.c.h.b16 %v1474
    %v1498 = vunpack.c.l.b16 %v1475
    %v1499 = vunpack.c.h.b16 %v1475
    %v1500 = vunpack.c.l.b16 %v1476
    %v1501 = vunpack.c.h.b16 %v1476
    %v1502 = vunpack.c.l.b16 %v1477
    %v1503 = vunpack.c.h.b16 %v1477
    %v1504 = vunpack.c.l.b16 %v1478
    %v1505 = vunpack.c.h.b16 %v1478
    %v1506 = vpack.c.b16 %v1490, %v1488
    %v1507 = vpack.c.b16 %v1491, %v1489
    %v1508 = vpack.c.b16 %v1494, %v1492
    %v1509 = vpack.c.b16 %v1495, %v1493
    %v1510 = vpack.c.b16 %v1498, %v1496
    %v1511 = vpack.c.b16 %v1499, %v1497
    %v1512 = vpack.c.b16 %v1502, %v1500
    %v1513 = vpack.c.b16 %v1503, %v1501
    %v1514 = vpack.c.b16 %v1504, %v1504
    %v1515 = vpack.c.b16 %v1505, %v1505
    %v1527 = vshrl.u32 %v1506, 16
    %v1529 = vshll.u32 %v1506, 16
    %v1531 = vrot.slane %v1529, 1
    %v1532 = vor.u32 %v1527, %v1531
    %v1534 = vshll.u32 %v1508, 16
    %v1536 = vrot.slane %v1534, 1
    %v1537 = vsel %vm271, %v1532, %v1536
    %v1539 = vshrl.u32 %v1507, 16
    %v1541 = vshll.u32 %v1507, 16
    %v1543 = vrot.slane %v1541, 1
    %v1544 = vor.u32 %v1539, %v1543
    %v1546 = vshll.u32 %v1509, 16
    %v1548 = vrot.slane %v1546, 1
    %v1549 = vsel %vm271, %v1544, %v1548
    %v1550 = vshrl.u32 %v1508, 16
    %v1552 = vor.u32 %v1550, %v1536
    %v1554 = vshll.u32 %v1510, 16
    %v1556 = vrot.slane %v1554, 1
    %v1557 = vsel %vm271, %v1552, %v1556
    %v1558 = vshrl.u32 %v1509, 16
    %v1560 = vor.u32 %v1558, %v1548
    %v1562 = vshll.u32 %v1511, 16
    %v1564 = vrot.slane %v1562, 1
    %v1565 = vsel %vm271, %v1560, %v1564
    %v1566 = vshrl.u32 %v1510, 16
    %v1568 = vor.u32 %v1566, %v1556
    %v1570 = vshll.u32 %v1512, 16
    %v1572 = vrot.slane %v1570, 1
    %v1573 = vsel %vm271, %v1568, %v1572
    %v1574 = vshrl.u32 %v1511, 16
    %v1576 = vor.u32 %v1574, %v1564
    %v1578 = vshll.u32 %v1513, 16
    %v1580 = vrot.slane %v1578, 1
    %v1581 = vsel %vm271, %v1576, %v1580
    %v1582 = vshrl.u32 %v1512, 16
    %v1584 = vor.u32 %v1582, %v1572
    %v1586 = vshll.u32 %v1514, 16
    %v1588 = vrot.slane %v1586, 1
    %v1589 = vsel %vm271, %v1584, %v1588
    %v1590 = vshrl.u32 %v1513, 16
    %v1592 = vor.u32 %v1590, %v1580
    %v1594 = vshll.u32 %v1515, 16
    %v1596 = vrot.slane %v1594, 1
    %v1597 = vsel %vm271, %v1592, %v1596
    %v1598 = vshrl.u32 %v1514, 16
    %v1600 = vor.u32 %v1598, %v1588
    %v1601 = vshrl.u32 %v1515, 16
    %v1603 = vor.u32 %v1601, %v1596
    %v1614 = vrot.slane %v1506, 1
    %v1615 = vrot.slane %v1508, 1
    %v1616 = vsel %vm399, %v1614, %v1615
    %v1617 = vrot.slane %v1507, 1
    %v1618 = vrot.slane %v1509, 1
    %v1619 = vsel %vm399, %v1617, %v1618
    %v1620 = vrot.slane %v1510, 1
    %v1621 = vsel %vm399, %v1615, %v1620
    %v1622 = vrot.slane %v1511, 1
    %v1623 = vsel %vm399, %v1618, %v1622
    %v1624 = vrot.slane %v1512, 1
    %v1625 = vsel %vm399, %v1620, %v1624
    %v1626 = vrot.slane %v1513, 1
    %v1627 = vsel %vm399, %v1622, %v1626
    %v1628 = vrot.slane %v1514, 1
    %v1629 = vsel %vm399, %v1624, %v1628
    %v1630 = vrot.slane %v1515, 1
    %v1631 = vsel %vm399, %v1626, %v1630
    %v1642 = vld [vmem:[#allocation7] sm:$0xff]
    %v1643 = vld [vmem:[#allocation7 + $0x8] sm:$0xff]
    %v1644 = vld [vmem:[#allocation7 + $0x10] sm:$0xff]
    %v1645 = vld [vmem:[#allocation7 + $0x18] sm:$0xff]
    %v1646 = vld [vmem:[#allocation7 + $0x20] sm:$0xff]
    %v1647 = vld [vmem:[#allocation7 + $0x28] sm:$0xff]
    %v1648 = vld [vmem:[#allocation7 + $0x30] sm:$0xff]
    %v1649 = vld [vmem:[#allocation7 + $0x38] sm:$0xff]
    %v1650 = vld [vmem:[#allocation7 + $0x40] sm:$0xff]
    %v1651 = vld [vmem:[#allocation7 + $0x48] sm:$0xff]
    %v1652 = vld [vmem:[#allocation7 + $0x50] sm:$0xff]
    %v1653 = vld [vmem:[#allocation7 + $0x58] sm:$0xff]
    %v1654 = vld [vmem:[#allocation7 + $0x60] sm:$0xff]
    %v1655 = vld [vmem:[#allocation7 + $0x68] sm:$0xff]
    %v1656 = vld [vmem:[#allocation7 + $0x70] sm:$0xff]
    %v1657 = vld [vmem:[#allocation7 + $0x78] sm:$0xff]
    %v1658 = vld [vmem:[#allocation7 + $0x80] sm:$0xff]
    %v1659 = vld [vmem:[#allocation7 + $0x88] sm:$0xff]
    %v1660 = vld [vmem:[#allocation7 + $0x90] sm:$0xff]
    %v1661 = vld [vmem:[#allocation7 + $0x98] sm:$0xff]
    %v1662 = vld [vmem:[#allocation7 + $0xa0] sm:$0xff]
    %v1663 = vld [vmem:[#allocation7 + $0xa8] sm:$0xff]
    %v1664 = vld [vmem:[#allocation7 + $0xb0] sm:$0xff]
    %v1665 = vld [vmem:[#allocation7 + $0xb8] sm:$0xff]
    %v1666 = vld [vmem:[#allocation7 + $0xc0] sm:$0xff]
    %v1667 = vld [vmem:[#allocation7 + $0xc8] sm:$0xff]
    %v1668 = vld [vmem:[#allocation7 + $0xd0] sm:$0xff]
    %v1669 = vld [vmem:[#allocation7 + $0xd8] sm:$0xff]
    %v1670 = vld [vmem:[#allocation7 + $0xe0] sm:$0xff]
    %v1671 = vld [vmem:[#allocation7 + $0xe8] sm:$0xff]
    %v1672 = vld [vmem:[#allocation7 + $0xf0] sm:$0xff]
    %v1673 = vld [vmem:[#allocation7 + $0xf8] sm:$0xff]
    %v1674 = vld [vmem:[#allocation7 + $0x100] sm:$0xff]
    %v1675 = vld [vmem:[#allocation7 + $0x108] sm:$0xff]
    %v1676 = vld [vmem:[#allocation7 + $0x110] sm:$0xff]
    %v1677 = vld [vmem:[#allocation7 + $0x118] sm:$0xff]
    %v1678 = vld [vmem:[#allocation7 + $0x120] sm:$0xff]
    %v1679 = vld [vmem:[#allocation7 + $0x128] sm:$0xff]
    %v1680 = vld [vmem:[#allocation7 + $0x130] sm:$0xff]
    %v1681 = vld [vmem:[#allocation7 + $0x138] sm:$0xff]
    %v1682 = vld [vmem:[#allocation7 + $0x140] sm:$0xff]
    %v1683 = vld [vmem:[#allocation7 + $0x148] sm:$0xff]
    %v1684 = vld [vmem:[#allocation7 + $0x150] sm:$0xff]
    %v1685 = vld [vmem:[#allocation7 + $0x158] sm:$0xff]
    %v1686 = vld [vmem:[#allocation7 + $0x160] sm:$0xff]
    %v1687 = vld [vmem:[#allocation7 + $0x168] sm:$0xff]
    %v1688 = vld [vmem:[#allocation7 + $0x170] sm:$0xff]
    %v1689 = vld [vmem:[#allocation7 + $0x178] sm:$0xff]
    %v1690 = vld [vmem:[#allocation7 + $0x180] sm:$0xff]
    %v1691 = vld [vmem:[#allocation7 + $0x188] sm:$0xff]
    %v1692 = vld [vmem:[#allocation7 + $0x190] sm:$0xff]
    %v1693 = vld [vmem:[#allocation7 + $0x198] sm:$0xff]
    %v1694 = vld [vmem:[#allocation7 + $0x1a0] sm:$0xff]
    %v1695 = vld [vmem:[#allocation7 + $0x1a8] sm:$0xff]
    %v1696 = vld [vmem:[#allocation7 + $0x1b0] sm:$0xff]
    %v1697 = vld [vmem:[#allocation7 + $0x1b8] sm:$0xff]
    %v1698 = vld [vmem:[#allocation7 + $0x1c0] sm:$0xff]
    %v1699 = vld [vmem:[#allocation7 + $0x1c8] sm:$0xff]
    %v1700 = vld [vmem:[#allocation7 + $0x1d0] sm:$0xff]
    %v1701 = vld [vmem:[#allocation7 + $0x1d8] sm:$0xff]
    %v1702 = vld [vmem:[#allocation7 + $0x1e0] sm:$0xff]
    %v1703 = vld [vmem:[#allocation7 + $0x1e8] sm:$0xff]
    %v1704 = vld [vmem:[#allocation7 + $0x1f0] sm:$0xff]
    %v1705 = vld [vmem:[#allocation7 + $0x1f8] sm:$0xff]
    %v1706 = vld [vmem:[#allocation7 + $0x200] sm:$0xff]
    %v1707 = vld [vmem:[#allocation7 + $0x208] sm:$0xff]
    %v1708 = vld [vmem:[#allocation7 + $0x210] sm:$0xff]
    %v1709 = vld [vmem:[#allocation7 + $0x218] sm:$0xff]
    %v1710 = vld [vmem:[#allocation7 + $0x220] sm:$0xff]
    %v1711 = vld [vmem:[#allocation7 + $0x228] sm:$0xff]
    %v1712 = vld [vmem:[#allocation7 + $0x230] sm:$0xff]
    %v1713 = vld [vmem:[#allocation7 + $0x238] sm:$0xff]
    %v1714 = vld [vmem:[#allocation7 + $0x240] sm:$0xff]
    %v1715 = vld [vmem:[#allocation7 + $0x248] sm:$0xff]
    %v1716 = vld [vmem:[#allocation7 + $0x250] sm:$0xff]
    %v1717 = vld [vmem:[#allocation7 + $0x258] sm:$0xff]
    %v1718 = vld [vmem:[#allocation7 + $0x260] sm:$0xff]
    %v1719 = vld [vmem:[#allocation7 + $0x268] sm:$0xff]
    %v1720 = vld [vmem:[#allocation7 + $0x270] sm:$0xff]
    %v1721 = vld [vmem:[#allocation7 + $0x278] sm:$0xff]
    %v1722 = vld [vmem:[#allocation7 + $0x280] sm:$0xff]
    %v1723 = vld [vmem:[#allocation7 + $0x288] sm:$0xff]
    %v1724 = vld [vmem:[#allocation7 + $0x290] sm:$0xff]
    %v1725 = vld [vmem:[#allocation7 + $0x298] sm:$0xff]
    %v1726 = vld [vmem:[#allocation7 + $0x2a0] sm:$0xff]
    %v1727 = vld [vmem:[#allocation7 + $0x2a8] sm:$0xff]
    %v1728 = vld [vmem:[#allocation7 + $0x2b0] sm:$0xff]
    %v1729 = vld [vmem:[#allocation7 + $0x2b8] sm:$0xff]
    %v1730 = vld [vmem:[#allocation7 + $0x2c0] sm:$0xff]
    %v1731 = vld [vmem:[#allocation7 + $0x2c8] sm:$0xff]
    %v1732 = vld [vmem:[#allocation7 + $0x2d0] sm:$0xff]
    %v1733 = vld [vmem:[#allocation7 + $0x2d8] sm:$0xff]
    %v1734 = vld [vmem:[#allocation7 + $0x2e0] sm:$0xff]
    %v1735 = vld [vmem:[#allocation7 + $0x2e8] sm:$0xff]
    %v1736 = vld [vmem:[#allocation7 + $0x2f0] sm:$0xff]
    %v1737 = vld [vmem:[#allocation7 + $0x2f8] sm:$0xff]
    %v1834 = vunpack.c.l.b16 %v1642
    %v1835 = vunpack.c.h.b16 %v1642
    %v1836 = vunpack.c.l.b16 %v1643
    %v1837 = vunpack.c.h.b16 %v1643
    %v1838 = vunpack.c.l.b16 %v1644
    %v1839 = vunpack.c.h.b16 %v1644
    %v1840 = vunpack.c.l.b16 %v1645
    %v1841 = vunpack.c.h.b16 %v1645
    %v1842 = vunpack.c.l.b16 %v1646
    %v1843 = vunpack.c.h.b16 %v1646
    %v1844 = vunpack.c.l.b16 %v1647
    %v1845 = vunpack.c.h.b16 %v1647
    %v1846 = vunpack.c.l.b16 %v1648
    %v1847 = vunpack.c.h.b16 %v1648
    %v1848 = vunpack.c.l.b16 %v1649
    %v1849 = vunpack.c.h.b16 %v1649
    %v1850 = vunpack.c.l.b16 %v1650
    %v1851 = vunpack.c.h.b16 %v1650
    %v1852 = vunpack.c.l.b16 %v1651
    %v1853 = vunpack.c.h.b16 %v1651
    %v1854 = vunpack.c.l.b16 %v1652
    %v1855 = vunpack.c.h.b16 %v1652
    %v1856 = vunpack.c.l.b16 %v1653
    %v1857 = vunpack.c.h.b16 %v1653
    %v1858 = vunpack.c.l.b16 %v1654
    %v1859 = vunpack.c.h.b16 %v1654
    %v1860 = vunpack.c.l.b16 %v1655
    %v1861 = vunpack.c.h.b16 %v1655
    %v1862 = vunpack.c.l.b16 %v1656
    %v1863 = vunpack.c.h.b16 %v1656
    %v1864 = vunpack.c.l.b16 %v1657
    %v1865 = vunpack.c.h.b16 %v1657
    %v1866 = vunpack.c.l.b16 %v1658
    %v1867 = vunpack.c.h.b16 %v1658
    %v1868 = vunpack.c.l.b16 %v1659
    %v1869 = vunpack.c.h.b16 %v1659
    %v1870 = vunpack.c.l.b16 %v1660
    %v1871 = vunpack.c.h.b16 %v1660
    %v1872 = vunpack.c.l.b16 %v1661
    %v1873 = vunpack.c.h.b16 %v1661
    %v1874 = vunpack.c.l.b16 %v1662
    %v1875 = vunpack.c.h.b16 %v1662
    %v1876 = vunpack.c.l.b16 %v1663
    %v1877 = vunpack.c.h.b16 %v1663
    %v1878 = vunpack.c.l.b16 %v1664
    %v1879 = vunpack.c.h.b16 %v1664
    %v1880 = vunpack.c.l.b16 %v1665
    %v1881 = vunpack.c.h.b16 %v1665
    %v1882 = vunpack.c.l.b16 %v1666
    %v1883 = vunpack.c.h.b16 %v1666
    %v1884 = vunpack.c.l.b16 %v1667
    %v1885 = vunpack.c.h.b16 %v1667
    %v1886 = vunpack.c.l.b16 %v1668
    %v1887 = vunpack.c.h.b16 %v1668
    %v1888 = vunpack.c.l.b16 %v1669
    %v1889 = vunpack.c.h.b16 %v1669
    %v1890 = vunpack.c.l.b16 %v1670
    %v1891 = vunpack.c.h.b16 %v1670
    %v1892 = vunpack.c.l.b16 %v1671
    %v1893 = vunpack.c.h.b16 %v1671
    %v1894 = vunpack.c.l.b16 %v1672
    %v1895 = vunpack.c.h.b16 %v1672
    %v1896 = vunpack.c.l.b16 %v1673
    %v1897 = vunpack.c.h.b16 %v1673
    %v1898 = vunpack.c.l.b16 %v1674
    %v1899 = vunpack.c.h.b16 %v1674
    %v1900 = vunpack.c.l.b16 %v1675
    %v1901 = vunpack.c.h.b16 %v1675
    %v1902 = vunpack.c.l.b16 %v1676
    %v1903 = vunpack.c.h.b16 %v1676
    %v1904 = vunpack.c.l.b16 %v1677
    %v1905 = vunpack.c.h.b16 %v1677
    %v1906 = vunpack.c.l.b16 %v1678
    %v1907 = vunpack.c.h.b16 %v1678
    %v1908 = vunpack.c.l.b16 %v1679
    %v1909 = vunpack.c.h.b16 %v1679
    %v1910 = vunpack.c.l.b16 %v1680
    %v1911 = vunpack.c.h.b16 %v1680
    %v1912 = vunpack.c.l.b16 %v1681
    %v1913 = vunpack.c.h.b16 %v1681
    %v1914 = vunpack.c.l.b16 %v1682
    %v1915 = vunpack.c.h.b16 %v1682
    %v1916 = vunpack.c.l.b16 %v1683
    %v1917 = vunpack.c.h.b16 %v1683
    %v1918 = vunpack.c.l.b16 %v1684
    %v1919 = vunpack.c.h.b16 %v1684
    %v1920 = vunpack.c.l.b16 %v1685
    %v1921 = vunpack.c.h.b16 %v1685
    %v1922 = vunpack.c.l.b16 %v1686
    %v1923 = vunpack.c.h.b16 %v1686
    %v1924 = vunpack.c.l.b16 %v1687
    %v1925 = vunpack.c.h.b16 %v1687
    %v1926 = vunpack.c.l.b16 %v1688
    %v1927 = vunpack.c.h.b16 %v1688
    %v1928 = vunpack.c.l.b16 %v1689
    %v1929 = vunpack.c.h.b16 %v1689
    %v1930 = vunpack.c.l.b16 %v1690
    %v1931 = vunpack.c.h.b16 %v1690
    %v1932 = vunpack.c.l.b16 %v1691
    %v1933 = vunpack.c.h.b16 %v1691
    %v1934 = vunpack.c.l.b16 %v1692
    %v1935 = vunpack.c.h.b16 %v1692
    %v1936 = vunpack.c.l.b16 %v1693
    %v1937 = vunpack.c.h.b16 %v1693
    %v1938 = vunpack.c.l.b16 %v1694
    %v1939 = vunpack.c.h.b16 %v1694
    %v1940 = vunpack.c.l.b16 %v1695
    %v1941 = vunpack.c.h.b16 %v1695
    %v1942 = vunpack.c.l.b16 %v1696
    %v1943 = vunpack.c.h.b16 %v1696
    %v1944 = vunpack.c.l.b16 %v1697
    %v1945 = vunpack.c.h.b16 %v1697
    %v1946 = vunpack.c.l.b16 %v1698
    %v1947 = vunpack.c.h.b16 %v1698
    %v1948 = vunpack.c.l.b16 %v1699
    %v1949 = vunpack.c.h.b16 %v1699
    %v1950 = vunpack.c.l.b16 %v1700
    %v1951 = vunpack.c.h.b16 %v1700
    %v1952 = vunpack.c.l.b16 %v1701
    %v1953 = vunpack.c.h.b16 %v1701
    %v1954 = vunpack.c.l.b16 %v1702
    %v1955 = vunpack.c.h.b16 %v1702
    %v1956 = vunpack.c.l.b16 %v1703
    %v1957 = vunpack.c.h.b16 %v1703
    %v1958 = vunpack.c.l.b16 %v1704
    %v1959 = vunpack.c.h.b16 %v1704
    %v1960 = vunpack.c.l.b16 %v1705
    %v1961 = vunpack.c.h.b16 %v1705
    %v1962 = vunpack.c.l.b16 %v1706
    %v1963 = vunpack.c.h.b16 %v1706
    %v1964 = vunpack.c.l.b16 %v1707
    %v1965 = vunpack.c.h.b16 %v1707
    %v1966 = vunpack.c.l.b16 %v1708
    %v1967 = vunpack.c.h.b16 %v1708
    %v1968 = vunpack.c.l.b16 %v1709
    %v1969 = vunpack.c.h.b16 %v1709
    %v1970 = vunpack.c.l.b16 %v1710
    %v1971 = vunpack.c.h.b16 %v1710
    %v1972 = vunpack.c.l.b16 %v1711
    %v1973 = vunpack.c.h.b16 %v1711
    %v1974 = vunpack.c.l.b16 %v1712
    %v1975 = vunpack.c.h.b16 %v1712
    %v1976 = vunpack.c.l.b16 %v1713
    %v1977 = vunpack.c.h.b16 %v1713
    %v1978 = vunpack.c.l.b16 %v1714
    %v1979 = vunpack.c.h.b16 %v1714
    %v1980 = vunpack.c.l.b16 %v1715
    %v1981 = vunpack.c.h.b16 %v1715
    %v1982 = vunpack.c.l.b16 %v1716
    %v1983 = vunpack.c.h.b16 %v1716
    %v1984 = vunpack.c.l.b16 %v1717
    %v1985 = vunpack.c.h.b16 %v1717
    %v1986 = vunpack.c.l.b16 %v1718
    %v1987 = vunpack.c.h.b16 %v1718
    %v1988 = vunpack.c.l.b16 %v1719
    %v1989 = vunpack.c.h.b16 %v1719
    %v1990 = vunpack.c.l.b16 %v1720
    %v1991 = vunpack.c.h.b16 %v1720
    %v1992 = vunpack.c.l.b16 %v1721
    %v1993 = vunpack.c.h.b16 %v1721
    %v1994 = vunpack.c.l.b16 %v1722
    %v1995 = vunpack.c.h.b16 %v1722
    %v1996 = vunpack.c.l.b16 %v1723
    %v1997 = vunpack.c.h.b16 %v1723
    %v1998 = vunpack.c.l.b16 %v1724
    %v1999 = vunpack.c.h.b16 %v1724
    %v2000 = vunpack.c.l.b16 %v1725
    %v2001 = vunpack.c.h.b16 %v1725
    %v2002 = vunpack.c.l.b16 %v1726
    %v2003 = vunpack.c.h.b16 %v1726
    %v2004 = vunpack.c.l.b16 %v1727
    %v2005 = vunpack.c.h.b16 %v1727
    %v2006 = vunpack.c.l.b16 %v1728
    %v2007 = vunpack.c.h.b16 %v1728
    %v2008 = vunpack.c.l.b16 %v1729
    %v2009 = vunpack.c.h.b16 %v1729
    %v2010 = vunpack.c.l.b16 %v1730
    %v2011 = vunpack.c.h.b16 %v1730
    %v2012 = vunpack.c.l.b16 %v1731
    %v2013 = vunpack.c.h.b16 %v1731
    %v2014 = vunpack.c.l.b16 %v1732
    %v2015 = vunpack.c.h.b16 %v1732
    %v2016 = vunpack.c.l.b16 %v1733
    %v2017 = vunpack.c.h.b16 %v1733
    %v2018 = vunpack.c.l.b16 %v1734
    %v2019 = vunpack.c.h.b16 %v1734
    %v2020 = vunpack.c.l.b16 %v1735
    %v2021 = vunpack.c.h.b16 %v1735
    %v2022 = vunpack.c.l.b16 %v1736
    %v2023 = vunpack.c.h.b16 %v1736
    %v2024 = vunpack.c.l.b16 %v1737
    %v2025 = vunpack.c.h.b16 %v1737
    %v2026 = vpack.c.b16 %v1836, %v1834
    %v2027 = vpack.c.b16 %v1837, %v1835
    %v2028 = vpack.c.b16 %v1840, %v1838
    %v2029 = vpack.c.b16 %v1841, %v1839
    %v2030 = vpack.c.b16 %v1844, %v1842
    %v2031 = vpack.c.b16 %v1845, %v1843
    %v2032 = vpack.c.b16 %v1848, %v1846
    %v2033 = vpack.c.b16 %v1849, %v1847
    %v2034 = vpack.c.b16 %v1852, %v1850
    %v2035 = vpack.c.b16 %v1853, %v1851
    %v2036 = vpack.c.b16 %v1856, %v1854
    %v2037 = vpack.c.b16 %v1857, %v1855
    %v2038 = vpack.c.b16 %v1860, %v1858
    %v2039 = vpack.c.b16 %v1861, %v1859
    %v2040 = vpack.c.b16 %v1864, %v1862
    %v2041 = vpack.c.b16 %v1865, %v1863
    %v2042 = vpack.c.b16 %v1868, %v1866
    %v2043 = vpack.c.b16 %v1869, %v1867
    %v2044 = vpack.c.b16 %v1872, %v1870
    %v2045 = vpack.c.b16 %v1873, %v1871
    %v2046 = vpack.c.b16 %v1876, %v1874
    %v2047 = vpack.c.b16 %v1877, %v1875
    %v2048 = vpack.c.b16 %v1880, %v1878
    %v2049 = vpack.c.b16 %v1881, %v1879
    %v2050 = vpack.c.b16 %v1884, %v1882
    %v2051 = vpack.c.b16 %v1885, %v1883
    %v2052 = vpack.c.b16 %v1888, %v1886
    %v2053 = vpack.c.b16 %v1889, %v1887
    %v2054 = vpack.c.b16 %v1892, %v1890
    %v2055 = vpack.c.b16 %v1893, %v1891
    %v2056 = vpack.c.b16 %v1896, %v1894
    %v2057 = vpack.c.b16 %v1897, %v1895
    %v2058 = vpack.c.b16 %v1900, %v1898
    %v2059 = vpack.c.b16 %v1901, %v1899
    %v2060 = vpack.c.b16 %v1904, %v1902
    %v2061 = vpack.c.b16 %v1905, %v1903
    %v2062 = vpack.c.b16 %v1908, %v1906
    %v2063 = vpack.c.b16 %v1909, %v1907
    %v2064 = vpack.c.b16 %v1912, %v1910
    %v2065 = vpack.c.b16 %v1913, %v1911
    %v2066 = vpack.c.b16 %v1916, %v1914
    %v2067 = vpack.c.b16 %v1917, %v1915
    %v2068 = vpack.c.b16 %v1920, %v1918
    %v2069 = vpack.c.b16 %v1921, %v1919
    %v2070 = vpack.c.b16 %v1924, %v1922
    %v2071 = vpack.c.b16 %v1925, %v1923
    %v2072 = vpack.c.b16 %v1928, %v1926
    %v2073 = vpack.c.b16 %v1929, %v1927
    %v2074 = vpack.c.b16 %v1932, %v1930
    %v2075 = vpack.c.b16 %v1933, %v1931
    %v2076 = vpack.c.b16 %v1936, %v1934
    %v2077 = vpack.c.b16 %v1937, %v1935
    %v2078 = vpack.c.b16 %v1940, %v1938
    %v2079 = vpack.c.b16 %v1941, %v1939
    %v2080 = vpack.c.b16 %v1944, %v1942
    %v2081 = vpack.c.b16 %v1945, %v1943
    %v2082 = vpack.c.b16 %v1948, %v1946
    %v2083 = vpack.c.b16 %v1949, %v1947
    %v2084 = vpack.c.b16 %v1952, %v1950
    %v2085 = vpack.c.b16 %v1953, %v1951
    %v2086 = vpack.c.b16 %v1956, %v1954
    %v2087 = vpack.c.b16 %v1957, %v1955
    %v2088 = vpack.c.b16 %v1960, %v1958
    %v2089 = vpack.c.b16 %v1961, %v1959
    %v2090 = vpack.c.b16 %v1964, %v1962
    %v2091 = vpack.c.b16 %v1965, %v1963
    %v2092 = vpack.c.b16 %v1968, %v1966
    %v2093 = vpack.c.b16 %v1969, %v1967
    %v2094 = vpack.c.b16 %v1972, %v1970
    %v2095 = vpack.c.b16 %v1973, %v1971
    %v2096 = vpack.c.b16 %v1976, %v1974
    %v2097 = vpack.c.b16 %v1977, %v1975
    %v2098 = vpack.c.b16 %v1980, %v1978
    %v2099 = vpack.c.b16 %v1981, %v1979
    %v2100 = vpack.c.b16 %v1984, %v1982
    %v2101 = vpack.c.b16 %v1985, %v1983
    %v2102 = vpack.c.b16 %v1988, %v1986
    %v2103 = vpack.c.b16 %v1989, %v1987
    %v2104 = vpack.c.b16 %v1992, %v1990
    %v2105 = vpack.c.b16 %v1993, %v1991
    %v2106 = vpack.c.b16 %v1996, %v1994
    %v2107 = vpack.c.b16 %v1997, %v1995
    %v2108 = vpack.c.b16 %v2000, %v1998
    %v2109 = vpack.c.b16 %v2001, %v1999
    %v2110 = vpack.c.b16 %v2004, %v2002
    %v2111 = vpack.c.b16 %v2005, %v2003
    %v2112 = vpack.c.b16 %v2008, %v2006
    %v2113 = vpack.c.b16 %v2009, %v2007
    %v2114 = vpack.c.b16 %v2012, %v2010
    %v2115 = vpack.c.b16 %v2013, %v2011
    %v2116 = vpack.c.b16 %v2016, %v2014
    %v2117 = vpack.c.b16 %v2017, %v2015
    %v2118 = vpack.c.b16 %v2020, %v2018
    %v2119 = vpack.c.b16 %v2021, %v2019
    %v2120 = vpack.c.b16 %v2024, %v2022
    %v2121 = vpack.c.b16 %v2025, %v2023
    %2218 = vmatpush.bf16.msra.mxu0 %v2040
    %2219 = vmatpush.bf16.msra.mxu0 %v2038
    %2220 = vmatpush.bf16.msra.mxu0 %v2036
    %2221 = vmatpush.bf16.msra.mxu0 %v2034
    %2222 = vmatpush.bf16.msra.mxu0 %v2032
    %2223 = vmatpush.bf16.msra.mxu0 %v2030
    %2224 = vmatpush.bf16.msra.mxu0 %v2028
    %2225 = vmatpush.bf16.msra.mxu0 %v2026
    %2226 = vmatmul.bf16.gmra.mxu0 %v1506
    %v2227 = vpop.f32.mrf.mxu0
    %v2228 = vadd.f32 0.0, %v2227
    %v2229 = vpop.f32.mrf.mxu0
    %v2230 = vadd.f32 0.0, %v2229
    %2231 = vmatmul.bf16.gmra.mxu0 %v1508
    %v2232 = vpop.f32.mrf.mxu0
    %v2233 = vadd.f32 0.0, %v2232
    %v2234 = vpop.f32.mrf.mxu0
    %v2235 = vadd.f32 0.0, %v2234
    %2236 = vmatmul.bf16.gmra.mxu0 %v1510
    %v2237 = vpop.f32.mrf.mxu0
    %v2238 = vadd.f32 0.0, %v2237
    %v2239 = vpop.f32.mrf.mxu0
    %v2240 = vadd.f32 0.0, %v2239
    %2241 = vmatmul.bf16.gmra.mxu0 %v1512
    %v2242 = vpop.f32.mrf.mxu0
    %v2243 = vadd.f32 0.0, %v2242
    %v2244 = vpop.f32.mrf.mxu0
    %v2245 = vadd.f32 0.0, %v2244
    %2246 = vmatmul.bf16.gmra.mxu0 %v1514
    %v2247 = vpop.f32.mrf.mxu0
    %v2248 = vadd.f32 0.0, %v2247
    %v2249 = vpop.f32.mrf.mxu0
    %2250 = vdwg.mxu0
    %2251 = vmatpush.bf16.msra.mxu0 %v2056
    %2252 = vmatpush.bf16.msra.mxu0 %v2054
    %2253 = vmatpush.bf16.msra.mxu0 %v2052
    %2254 = vmatpush.bf16.msra.mxu0 %v2050
    %2255 = vmatpush.bf16.msra.mxu0 %v2048
    %2256 = vmatpush.bf16.msra.mxu0 %v2046
    %2257 = vmatpush.bf16.msra.mxu0 %v2044
    %2258 = vmatpush.bf16.msra.mxu0 %v2042
    %2259 = vmatmul.bf16.gmra.mxu0 %v1507
    %v2260 = vpop.f32.mrf.mxu0
    %v2261 = vadd.f32 %v2228, %v2260
    %v2262 = vpop.f32.mrf.mxu0
    %v2263 = vadd.f32 %v2230, %v2262
    %2264 = vmatmul.bf16.gmra.mxu0 %v1509
    %v2265 = vpop.f32.mrf.mxu0
    %v2266 = vadd.f32 %v2233, %v2265
    %v2267 = vpop.f32.mrf.mxu0
    %v2268 = vadd.f32 %v2235, %v2267
    %2269 = vmatmul.bf16.gmra.mxu0 %v1511
    %v2270 = vpop.f32.mrf.mxu0
    %v2271 = vadd.f32 %v2238, %v2270
    %v2272 = vpop.f32.mrf.mxu0
    %v2273 = vadd.f32 %v2240, %v2272
    %2274 = vmatmul.bf16.gmra.mxu0 %v1513
    %v2275 = vpop.f32.mrf.mxu0
    %v2276 = vadd.f32 %v2243, %v2275
    %v2277 = vpop.f32.mrf.mxu0
    %v2278 = vadd.f32 %v2245, %v2277
    %2279 = vmatmul.bf16.gmra.mxu0 %v1515
    %v2280 = vpop.f32.mrf.mxu0
    %v2281 = vadd.f32 %v2248, %v2280
    %v2282 = vpop.f32.mrf.mxu0
    %2283 = vdwg.mxu0
    %2284 = vmatpush.bf16.msra.mxu0 %v2072
    %2285 = vmatpush.bf16.msra.mxu0 %v2070
    %2286 = vmatpush.bf16.msra.mxu0 %v2068
    %2287 = vmatpush.bf16.msra.mxu0 %v2066
    %2288 = vmatpush.bf16.msra.mxu0 %v2064
    %2289 = vmatpush.bf16.msra.mxu0 %v2062
    %2290 = vmatpush.bf16.msra.mxu0 %v2060
    %2291 = vmatpush.bf16.msra.mxu0 %v2058
    %2292 = vmatmul.bf16.gmra.mxu0 %v1537
    %v2293 = vpop.f32.mrf.mxu0
    %v2294 = vadd.f32 %v2261, %v2293
    %v2295 = vpop.f32.mrf.mxu0
    %v2296 = vadd.f32 %v2263, %v2295
    %2297 = vmatmul.bf16.gmra.mxu0 %v1557
    %v2298 = vpop.f32.mrf.mxu0
    %v2299 = vadd.f32 %v2266, %v2298
    %v2300 = vpop.f32.mrf.mxu0
    %v2301 = vadd.f32 %v2268, %v2300
    %2302 = vmatmul.bf16.gmra.mxu0 %v1573
    %v2303 = vpop.f32.mrf.mxu0
    %v2304 = vadd.f32 %v2271, %v2303
    %v2305 = vpop.f32.mrf.mxu0
    %v2306 = vadd.f32 %v2273, %v2305
    %2307 = vmatmul.bf16.gmra.mxu0 %v1589
    %v2308 = vpop.f32.mrf.mxu0
    %v2309 = vadd.f32 %v2276, %v2308
    %v2310 = vpop.f32.mrf.mxu0
    %v2311 = vadd.f32 %v2278, %v2310
    %2312 = vmatmul.bf16.gmra.mxu0 %v1600
    %v2313 = vpop.f32.mrf.mxu0
    %v2314 = vadd.f32 %v2281, %v2313
    %v2315 = vpop.f32.mrf.mxu0
    %2316 = vdwg.mxu0
    %2317 = vmatpush.bf16.msra.mxu0 %v2088
    %2318 = vmatpush.bf16.msra.mxu0 %v2086
    %2319 = vmatpush.bf16.msra.mxu0 %v2084
    %2320 = vmatpush.bf16.msra.mxu0 %v2082
    %2321 = vmatpush.bf16.msra.mxu0 %v2080
    %2322 = vmatpush.bf16.msra.mxu0 %v2078
    %2323 = vmatpush.bf16.msra.mxu0 %v2076
    %2324 = vmatpush.bf16.msra.mxu0 %v2074
    %2325 = vmatmul.bf16.gmra.mxu0 %v1549
    %v2326 = vpop.f32.mrf.mxu0
    %v2327 = vadd.f32 %v2294, %v2326
    %v2328 = vpop.f32.mrf.mxu0
    %v2329 = vadd.f32 %v2296, %v2328
    %2330 = vmatmul.bf16.gmra.mxu0 %v1565
    %v2331 = vpop.f32.mrf.mxu0
    %v2332 = vadd.f32 %v2299, %v2331
    %v2333 = vpop.f32.mrf.mxu0
    %v2334 = vadd.f32 %v2301, %v2333
    %2335 = vmatmul.bf16.gmra.mxu0 %v1581
    %v2336 = vpop.f32.mrf.mxu0
    %v2337 = vadd.f32 %v2304, %v2336
    %v2338 = vpop.f32.mrf.mxu0
    %v2339 = vadd.f32 %v2306, %v2338
    %2340 = vmatmul.bf16.gmra.mxu0 %v1597
    %v2341 = vpop.f32.mrf.mxu0
    %v2342 = vadd.f32 %v2309, %v2341
    %v2343 = vpop.f32.mrf.mxu0
    %v2344 = vadd.f32 %v2311, %v2343
    %2345 = vmatmul.bf16.gmra.mxu0 %v1603
    %v2346 = vpop.f32.mrf.mxu0
    %v2347 = vadd.f32 %v2314, %v2346
    %v2348 = vpop.f32.mrf.mxu0
    %2349 = vdwg.mxu0
    %2350 = vmatpush.bf16.msra.mxu0 %v2104
    %2351 = vmatpush.bf16.msra.mxu0 %v2102
    %2352 = vmatpush.bf16.msra.mxu0 %v2100
    %2353 = vmatpush.bf16.msra.mxu0 %v2098
    %2354 = vmatpush.bf16.msra.mxu0 %v2096
    %2355 = vmatpush.bf16.msra.mxu0 %v2094
    %2356 = vmatpush.bf16.msra.mxu0 %v2092
    %2357 = vmatpush.bf16.msra.mxu0 %v2090
    %2358 = vmatmul.bf16.gmra.mxu0 %v1616
    %v2359 = vpop.f32.mrf.mxu0
    %v2360 = vadd.f32 %v2327, %v2359
    %v2361 = vpop.f32.mrf.mxu0
    %v2362 = vadd.f32 %v2329, %v2361
    %2363 = vmatmul.bf16.gmra.mxu0 %v1621
    %v2364 = vpop.f32.mrf.mxu0
    %v2365 = vadd.f32 %v2332, %v2364
    %v2366 = vpop.f32.mrf.mxu0
    %v2367 = vadd.f32 %v2334, %v2366
    %2368 = vmatmul.bf16.gmra.mxu0 %v1625
    %v2369 = vpop.f32.mrf.mxu0
    %v2370 = vadd.f32 %v2337, %v2369
    %v2371 = vpop.f32.mrf.mxu0
    %v2372 = vadd.f32 %v2339, %v2371
    %2373 = vmatmul.bf16.gmra.mxu0 %v1629
    %v2374 = vpop.f32.mrf.mxu0
    %v2375 = vadd.f32 %v2342, %v2374
    %v2376 = vpop.f32.mrf.mxu0
    %v2377 = vadd.f32 %v2344, %v2376
    %2378 = vmatmul.bf16.gmra.mxu0 %v1628
    %v2379 = vpop.f32.mrf.mxu0
    %v2380 = vadd.f32 %v2347, %v2379
    %v2381 = vpop.f32.mrf.mxu0
    %2382 = vdwg.mxu0
    %2383 = vmatpush.bf16.msra.mxu0 %v2120
    %2384 = vmatpush.bf16.msra.mxu0 %v2118
    %2385 = vmatpush.bf16.msra.mxu0 %v2116
    %2386 = vmatpush.bf16.msra.mxu0 %v2114
    %2387 = vmatpush.bf16.msra.mxu0 %v2112
    %2388 = vmatpush.bf16.msra.mxu0 %v2110
    %2389 = vmatpush.bf16.msra.mxu0 %v2108
    %2390 = vmatpush.bf16.msra.mxu0 %v2106
    %2391 = vmatmul.bf16.gmra.mxu0 %v1619
    %v2392 = vpop.f32.mrf.mxu0
    %v2393 = vadd.f32 %v2360, %v2392
    %v2394 = vpop.f32.mrf.mxu0
    %v2395 = vadd.f32 %v2362, %v2394
    %2396 = vmatmul.bf16.gmra.mxu0 %v1623
    %v2397 = vpop.f32.mrf.mxu0
    %v2398 = vadd.f32 %v2365, %v2397
    %v2399 = vpop.f32.mrf.mxu0
    %v2400 = vadd.f32 %v2367, %v2399
    %2401 = vmatmul.bf16.gmra.mxu0 %v1627
    %v2402 = vpop.f32.mrf.mxu0
    %v2403 = vadd.f32 %v2370, %v2402
    %v2404 = vpop.f32.mrf.mxu0
    %v2405 = vadd.f32 %v2372, %v2404
    %2406 = vmatmul.bf16.gmra.mxu0 %v1631
    %v2407 = vpop.f32.mrf.mxu0
    %v2408 = vadd.f32 %v2375, %v2407
    %v2409 = vpop.f32.mrf.mxu0
    %v2410 = vadd.f32 %v2377, %v2409
    %2411 = vmatmul.bf16.gmra.mxu0 %v1630
    %v2412 = vpop.f32.mrf.mxu0
    %v2413 = vadd.f32 %v2380, %v2412
    %v2414 = vpop.f32.mrf.mxu0
    %2415 = vdwg.mxu0
    %2416 = vmatpush.bf16.msra.mxu0 %v2041
    %2417 = vmatpush.bf16.msra.mxu0 %v2039
    %2418 = vmatpush.bf16.msra.mxu0 %v2037
    %2419 = vmatpush.bf16.msra.mxu0 %v2035
    %2420 = vmatpush.bf16.msra.mxu0 %v2033
    %2421 = vmatpush.bf16.msra.mxu0 %v2031
    %2422 = vmatpush.bf16.msra.mxu0 %v2029
    %2423 = vmatpush.bf16.msra.mxu0 %v2027
    %2424 = vmatmul.bf16.gmra.mxu0 %v1506
    %v2425 = vpop.f32.mrf.mxu0
    %v2426 = vadd.f32 0.0, %v2425
    %v2427 = vpop.f32.mrf.mxu0
    %v2428 = vadd.f32 0.0, %v2427
    %2429 = vmatmul.bf16.gmra.mxu0 %v1508
    %v2430 = vpop.f32.mrf.mxu0
    %v2431 = vadd.f32 0.0, %v2430
    %v2432 = vpop.f32.mrf.mxu0
    %v2433 = vadd.f32 0.0, %v2432
    %2434 = vmatmul.bf16.gmra.mxu0 %v1510
    %v2435 = vpop.f32.mrf.mxu0
    %v2436 = vadd.f32 0.0, %v2435
    %v2437 = vpop.f32.mrf.mxu0
    %v2438 = vadd.f32 0.0, %v2437
    %2439 = vmatmul.bf16.gmra.mxu0 %v1512
    %v2440 = vpop.f32.mrf.mxu0
    %v2441 = vadd.f32 0.0, %v2440
    %v2442 = vpop.f32.mrf.mxu0
    %v2443 = vadd.f32 0.0, %v2442
    %2444 = vmatmul.bf16.gmra.mxu0 %v1514
    %v2445 = vpop.f32.mrf.mxu0
    %v2446 = vadd.f32 0.0, %v2445
    %v2447 = vpop.f32.mrf.mxu0
    %2448 = vdwg.mxu0
    %2449 = vmatpush.bf16.msra.mxu0 %v2057
    %2450 = vmatpush.bf16.msra.mxu0 %v2055
    %2451 = vmatpush.bf16.msra.mxu0 %v2053
    %2452 = vmatpush.bf16.msra.mxu0 %v2051
    %2453 = vmatpush.bf16.msra.mxu0 %v2049
    %2454 = vmatpush.bf16.msra.mxu0 %v2047
    %2455 = vmatpush.bf16.msra.mxu0 %v2045
    %2456 = vmatpush.bf16.msra.mxu0 %v2043
    %2457 = vmatmul.bf16.gmra.mxu0 %v1507
    %v2458 = vpop.f32.mrf.mxu0
    %v2459 = vadd.f32 %v2426, %v2458
    %v2460 = vpop.f32.mrf.mxu0
    %v2461 = vadd.f32 %v2428, %v2460
    %2462 = vmatmul.bf16.gmra.mxu0 %v1509
    %v2463 = vpop.f32.mrf.mxu0
    %v2464 = vadd.f32 %v2431, %v2463
    %v2465 = vpop.f32.mrf.mxu0
    %v2466 = vadd.f32 %v2433, %v2465
    %2467 = vmatmul.bf16.gmra.mxu0 %v1511
    %v2468 = vpop.f32.mrf.mxu0
    %v2469 = vadd.f32 %v2436, %v2468
    %v2470 = vpop.f32.mrf.mxu0
    %v2471 = vadd.f32 %v2438, %v2470
    %2472 = vmatmul.bf16.gmra.mxu0 %v1513
    %v2473 = vpop.f32.mrf.mxu0
    %v2474 = vadd.f32 %v2441, %v2473
    %v2475 = vpop.f32.mrf.mxu0
    %v2476 = vadd.f32 %v2443, %v2475
    %2477 = vmatmul.bf16.gmra.mxu0 %v1515
    %v2478 = vpop.f32.mrf.mxu0
    %v2479 = vadd.f32 %v2446, %v2478
    %v2480 = vpop.f32.mrf.mxu0
    %2481 = vdwg.mxu0
    %2482 = vmatpush.bf16.msra.mxu0 %v2073
    %2483 = vmatpush.bf16.msra.mxu0 %v2071
    %2484 = vmatpush.bf16.msra.mxu0 %v2069
    %2485 = vmatpush.bf16.msra.mxu0 %v2067
    %2486 = vmatpush.bf16.msra.mxu0 %v2065
    %2487 = vmatpush.bf16.msra.mxu0 %v2063
    %2488 = vmatpush.bf16.msra.mxu0 %v2061
    %2489 = vmatpush.bf16.msra.mxu0 %v2059
    %2490 = vmatmul.bf16.gmra.mxu0 %v1537
    %v2491 = vpop.f32.mrf.mxu0
    %v2492 = vadd.f32 %v2459, %v2491
    %v2493 = vpop.f32.mrf.mxu0
    %v2494 = vadd.f32 %v2461, %v2493
    %2495 = vmatmul.bf16.gmra.mxu0 %v1557
    %v2496 = vpop.f32.mrf.mxu0
    %v2497 = vadd.f32 %v2464, %v2496
    %v2498 = vpop.f32.mrf.mxu0
    %v2499 = vadd.f32 %v2466, %v2498
    %2500 = vmatmul.bf16.gmra.mxu0 %v1573
    %v2501 = vpop.f32.mrf.mxu0
    %v2502 = vadd.f32 %v2469, %v2501
    %v2503 = vpop.f32.mrf.mxu0
    %v2504 = vadd.f32 %v2471, %v2503
    %2505 = vmatmul.bf16.gmra.mxu0 %v1589
    %v2506 = vpop.f32.mrf.mxu0
    %v2507 = vadd.f32 %v2474, %v2506
    %v2508 = vpop.f32.mrf.mxu0
    %v2509 = vadd.f32 %v2476, %v2508
    %2510 = vmatmul.bf16.gmra.mxu0 %v1600
    %v2511 = vpop.f32.mrf.mxu0
    %v2512 = vadd.f32 %v2479, %v2511
    %v2513 = vpop.f32.mrf.mxu0
    %2514 = vdwg.mxu0
    %2515 = vmatpush.bf16.msra.mxu0 %v2089
    %2516 = vmatpush.bf16.msra.mxu0 %v2087
    %2517 = vmatpush.bf16.msra.mxu0 %v2085
    %2518 = vmatpush.bf16.msra.mxu0 %v2083
    %2519 = vmatpush.bf16.msra.mxu0 %v2081
    %2520 = vmatpush.bf16.msra.mxu0 %v2079
    %2521 = vmatpush.bf16.msra.mxu0 %v2077
    %2522 = vmatpush.bf16.msra.mxu0 %v2075
    %2523 = vmatmul.bf16.gmra.mxu0 %v1549
    %v2524 = vpop.f32.mrf.mxu0
    %v2525 = vadd.f32 %v2492, %v2524
    %v2526 = vpop.f32.mrf.mxu0
    %v2527 = vadd.f32 %v2494, %v2526
    %2528 = vmatmul.bf16.gmra.mxu0 %v1565
    %v2529 = vpop.f32.mrf.mxu0
    %v2530 = vadd.f32 %v2497, %v2529
    %v2531 = vpop.f32.mrf.mxu0
    %v2532 = vadd.f32 %v2499, %v2531
    %2533 = vmatmul.bf16.gmra.mxu0 %v1581
    %v2534 = vpop.f32.mrf.mxu0
    %v2535 = vadd.f32 %v2502, %v2534
    %v2536 = vpop.f32.mrf.mxu0
    %v2537 = vadd.f32 %v2504, %v2536
    %2538 = vmatmul.bf16.gmra.mxu0 %v1597
    %v2539 = vpop.f32.mrf.mxu0
    %v2540 = vadd.f32 %v2507, %v2539
    %v2541 = vpop.f32.mrf.mxu0
    %v2542 = vadd.f32 %v2509, %v2541
    %2543 = vmatmul.bf16.gmra.mxu0 %v1603
    %v2544 = vpop.f32.mrf.mxu0
    %v2545 = vadd.f32 %v2512, %v2544
    %v2546 = vpop.f32.mrf.mxu0
    %2547 = vdwg.mxu0
    %2548 = vmatpush.bf16.msra.mxu0 %v2105
    %2549 = vmatpush.bf16.msra.mxu0 %v2103
    %2550 = vmatpush.bf16.msra.mxu0 %v2101
    %2551 = vmatpush.bf16.msra.mxu0 %v2099
    %2552 = vmatpush.bf16.msra.mxu0 %v2097
    %2553 = vmatpush.bf16.msra.mxu0 %v2095
    %2554 = vmatpush.bf16.msra.mxu0 %v2093
    %2555 = vmatpush.bf16.msra.mxu0 %v2091
    %2556 = vmatmul.bf16.gmra.mxu0 %v1616
    %v2557 = vpop.f32.mrf.mxu0
    %v2558 = vadd.f32 %v2525, %v2557
    %v2559 = vpop.f32.mrf.mxu0
    %v2560 = vadd.f32 %v2527, %v2559
    %2561 = vmatmul.bf16.gmra.mxu0 %v1621
    %v2562 = vpop.f32.mrf.mxu0
    %v2563 = vadd.f32 %v2530, %v2562
    %v2564 = vpop.f32.mrf.mxu0
    %v2565 = vadd.f32 %v2532, %v2564
    %2566 = vmatmul.bf16.gmra.mxu0 %v1625
    %v2567 = vpop.f32.mrf.mxu0
    %v2568 = vadd.f32 %v2535, %v2567
    %v2569 = vpop.f32.mrf.mxu0
    %v2570 = vadd.f32 %v2537, %v2569
    %2571 = vmatmul.bf16.gmra.mxu0 %v1629
    %v2572 = vpop.f32.mrf.mxu0
    %v2573 = vadd.f32 %v2540, %v2572
    %v2574 = vpop.f32.mrf.mxu0
    %v2575 = vadd.f32 %v2542, %v2574
    %2576 = vmatmul.bf16.gmra.mxu0 %v1628
    %v2577 = vpop.f32.mrf.mxu0
    %v2578 = vadd.f32 %v2545, %v2577
    %v2579 = vpop.f32.mrf.mxu0
    %2580 = vdwg.mxu0
    %2581 = vmatpush.bf16.msra.mxu0 %v2121
    %2582 = vmatpush.bf16.msra.mxu0 %v2119
    %2583 = vmatpush.bf16.msra.mxu0 %v2117
    %2584 = vmatpush.bf16.msra.mxu0 %v2115
    %2585 = vmatpush.bf16.msra.mxu0 %v2113
    %2586 = vmatpush.bf16.msra.mxu0 %v2111
    %2587 = vmatpush.bf16.msra.mxu0 %v2109
    %2588 = vmatpush.bf16.msra.mxu0 %v2107
    %2589 = vmatmul.bf16.gmra.mxu0 %v1619
    %v2590 = vpop.f32.mrf.mxu0
    %v2591 = vadd.f32 %v2558, %v2590
    %v2592 = vpop.f32.mrf.mxu0
    %v2593 = vadd.f32 %v2560, %v2592
    %2594 = vmatmul.bf16.gmra.mxu0 %v1623
    %v2595 = vpop.f32.mrf.mxu0
    %v2596 = vadd.f32 %v2563, %v2595
    %v2597 = vpop.f32.mrf.mxu0
    %v2598 = vadd.f32 %v2565, %v2597
    %2599 = vmatmul.bf16.gmra.mxu0 %v1627
    %v2600 = vpop.f32.mrf.mxu0
    %v2601 = vadd.f32 %v2568, %v2600
    %v2602 = vpop.f32.mrf.mxu0
    %v2603 = vadd.f32 %v2570, %v2602
    %2604 = vmatmul.bf16.gmra.mxu0 %v1631
    %v2605 = vpop.f32.mrf.mxu0
    %v2606 = vadd.f32 %v2573, %v2605
    %v2607 = vpop.f32.mrf.mxu0
    %v2608 = vadd.f32 %v2575, %v2607
    %2609 = vmatmul.bf16.gmra.mxu0 %v1630
    %v2610 = vpop.f32.mrf.mxu0
    %v2611 = vadd.f32 %v2578, %v2610
    %v2612 = vpop.f32.mrf.mxu0
    %2613 = vdwg.mxu0
    %v2614 = vadd.s32 %v461, 40
    %v2615 = vadd.s32 %v461, 48
    %v2616 = vadd.s32 %v461, 56
    %v2617 = vadd.s32 %v461, 64
    %vm2618 = vcmp.ge.s32.totalorder %v2614, 0
    %vm2619 = vcmp.ge.s32.totalorder %v2615, 0
    %vm2620 = vcmp.ge.s32.totalorder %v2616, 0
    %vm2621 = vcmp.ge.s32.totalorder %v2617, 0
    %vm2622 = vcmp.lt.s32.totalorder %v461, 32
    %vm2623 = vcmp.lt.s32.totalorder %v462, 32
    %vm2624 = vcmp.lt.s32.totalorder %v463, 32
    %vm2625 = vcmp.lt.s32.totalorder %v464, 32
    %vm2626 = vcmp.lt.s32.totalorder %v465, 32
    %vm2627 = vcmp.lt.s32.totalorder %v2614, 32
    %vm2628 = vcmp.lt.s32.totalorder %v2615, 32
    %vm2629 = vcmp.lt.s32.totalorder %v2616, 32
    %vm2630 = vcmp.lt.s32.totalorder %v2617, 32
    %vm2631 = vmand %vm466, %vm2622
    %vm2632 = vmand %vm467, %vm2623
    %vm2633 = vmand %vm468, %vm2624
    %vm2634 = vmand %vm469, %vm2625
    %vm2635 = vmand %vm470, %vm2626
    %vm2636 = vmand %vm2618, %vm2627
    %vm2637 = vmand %vm2619, %vm2628
    %vm2638 = vmand %vm2620, %vm2629
    %vm2639 = vmand %vm2621, %vm2630
    %vm2640 = vcmp.ge.s32.totalorder %v461, 34
    %vm2641 = vcmp.ge.s32.totalorder %v462, 34
    %vm2642 = vcmp.ge.s32.totalorder %v463, 34
    %vm2643 = vcmp.ge.s32.totalorder %v464, 34
    %vm2644 = vcmp.ge.s32.totalorder %v465, 34
    %vm2645 = vcmp.ge.s32.totalorder %v2614, 34
    %vm2646 = vcmp.ge.s32.totalorder %v2615, 34
    %vm2647 = vcmp.ge.s32.totalorder %v2616, 34
    %vm2648 = vcmp.ge.s32.totalorder %v2617, 34
    %vm2649 = vcmp.lt.s32.totalorder %v461, 66
    %vm2650 = vcmp.lt.s32.totalorder %v462, 66
    %vm2651 = vcmp.lt.s32.totalorder %v463, 66
    %vm2652 = vcmp.lt.s32.totalorder %v464, 66
    %vm2653 = vcmp.lt.s32.totalorder %v465, 66
    %vm2654 = vcmp.lt.s32.totalorder %v2614, 66
    %vm2655 = vcmp.lt.s32.totalorder %v2615, 66
    %vm2656 = vcmp.lt.s32.totalorder %v2616, 66
    %vm2657 = vcmp.lt.s32.totalorder %v2617, 66
    %vm2658 = vmand %vm2640, %vm2649
    %vm2659 = vmand %vm2641, %vm2650
    %vm2660 = vmand %vm2642, %vm2651
    %vm2661 = vmand %vm2643, %vm2652
    %vm2662 = vmand %vm2644, %vm2653
    %vm2663 = vmand %vm2645, %vm2654
    %vm2664 = vmand %vm2646, %vm2655
    %vm2665 = vmand %vm2647, %vm2656
    %vm2666 = vmand %vm2648, %vm2657
    %vm2667 = vmor %vm2631, %vm2658
    %vm2668 = vmor %vm2632, %vm2659
    %vm2669 = vmor %vm2633, %vm2660
    %vm2670 = vmor %vm2634, %vm2661
    %vm2671 = vmor %vm2635, %vm2662
    %vm2672 = vmor %vm2636, %vm2663
    %vm2673 = vmor %vm2637, %vm2664
    %vm2674 = vmor %vm2638, %vm2665
    %vm2675 = vmor %vm2639, %vm2666
    %v2676 = vsel %vm2667, 1, 0
    %v2677 = vsel %vm2668, 1, 0
    %v2678 = vsel %vm2669, 1, 0
    %v2679 = vsel %vm2670, 1, 0
    %v2680 = vsel %vm2671, 1, 0
    %v2681 = vsel %vm2672, 1, 0
    %v2682 = vsel %vm2673, 1, 0
    %v2683 = vsel %vm2674, 1, 0
    %v2684 = vsel %vm2675, 1, 0
    %v2685 = vcvt.s32.f32 %v2676
    %v2686 = vcvt.s32.f32 %v2677
    %v2687 = vcvt.s32.f32 %v2678
    %v2688 = vcvt.s32.f32 %v2679
    %v2689 = vcvt.s32.f32 %v2680
    %v2690 = vcvt.s32.f32 %v2681
    %v2691 = vcvt.s32.f32 %v2682
    %v2692 = vcvt.s32.f32 %v2683
    %v2693 = vcvt.s32.f32 %v2684
    %v2694 = vmul.f32 %v2393, %v2685
    %v2695 = vmul.f32 %v2591, %v2685
    %v2696 = vmul.f32 %v2395, %v2686
    %v2697 = vmul.f32 %v2593, %v2686
    %v2698 = vmul.f32 %v2398, %v2687
    %v2699 = vmul.f32 %v2596, %v2687
    %v2700 = vmul.f32 %v2400, %v2688
    %v2701 = vmul.f32 %v2598, %v2688
    %v2702 = vmul.f32 %v2403, %v2689
    %v2703 = vmul.f32 %v2601, %v2689
    %v2704 = vmul.f32 %v2405, %v2690
    %v2705 = vmul.f32 %v2603, %v2690
    %v2706 = vmul.f32 %v2408, %v2691
    %v2707 = vmul.f32 %v2606, %v2691
    %v2708 = vmul.f32 %v2410, %v2692
    %v2709 = vmul.f32 %v2608, %v2692
    %v2710 = vmul.f32 %v2413, %v2693
    %v2711 = vmul.f32 %v2611, %v2693
    %v2712 = vadd.f32 %v2694, %v2696
    %v2713 = vadd.f32 %v2712, %v2698
    %v2714 = vadd.f32 %v2713, %v2700
    %v2715 = vadd.f32 %v2714, %v2702
    %v2716 = vadd.f32 %v2715, %v2704
    %v2717 = vadd.f32 %v2716, %v2706
    %v2718 = vadd.f32 %v2717, %v2708
    %v2719 = vsel %vm519, %v2710, 0.0
    %v2720 = vadd.f32 %v2718, %v2719
    %v2721 = vrot.slane %v2720, 4
    %v2722 = vadd.f32 %v2720, %v2721
    %v2723 = vrot.slane %v2722, 2
    %v2724 = vadd.f32 %v2722, %v2723
    %v2725 = vrot.slane %v2724, 1
    %v2726 = vadd.f32 %v2724, %v2725
    %v2727 = vadd.f32 %v2695, %v2697
    %v2728 = vadd.f32 %v2727, %v2699
    %v2729 = vadd.f32 %v2728, %v2701
    %v2730 = vadd.f32 %v2729, %v2703
    %v2731 = vadd.f32 %v2730, %v2705
    %v2732 = vadd.f32 %v2731, %v2707
    %v2733 = vadd.f32 %v2732, %v2709
    %v2734 = vsel %vm519, %v2711, 0.0
    %v2735 = vadd.f32 %v2733, %v2734
    %v2736 = vrot.slane %v2735, 4
    %v2737 = vadd.f32 %v2735, %v2736
    %v2738 = vrot.slane %v2737, 2
    %v2739 = vadd.f32 %v2737, %v2738
    %v2740 = vrot.slane %v2739, 1
    %v2741 = vadd.f32 %v2739, %v2740
    %v2742 = vmul.f32 %v2694, %v2393
    %v2743 = vmul.f32 %v2695, %v2591
    %v2744 = vmul.f32 %v2696, %v2395
    %v2745 = vmul.f32 %v2697, %v2593
    %v2746 = vmul.f32 %v2698, %v2398
    %v2747 = vmul.f32 %v2699, %v2596
    %v2748 = vmul.f32 %v2700, %v2400
    %v2749 = vmul.f32 %v2701, %v2598
    %v2750 = vmul.f32 %v2702, %v2403
    %v2751 = vmul.f32 %v2703, %v2601
    %v2752 = vmul.f32 %v2704, %v2405
    %v2753 = vmul.f32 %v2705, %v2603
    %v2754 = vmul.f32 %v2706, %v2408
    %v2755 = vmul.f32 %v2707, %v2606
    %v2756 = vmul.f32 %v2708, %v2410
    %v2757 = vmul.f32 %v2709, %v2608
    %v2758 = vmul.f32 %v2710, %v2413
    %v2759 = vmul.f32 %v2711, %v2611
    %v2760 = vadd.f32 %v2742, %v2744
    %v2761 = vadd.f32 %v2760, %v2746
    %v2762 = vadd.f32 %v2761, %v2748
    %v2763 = vadd.f32 %v2762, %v2750
    %v2764 = vadd.f32 %v2763, %v2752
    %v2765 = vadd.f32 %v2764, %v2754
    %v2766 = vadd.f32 %v2765, %v2756
    %v2767 = vsel %vm519, %v2758, 0.0
    %v2768 = vadd.f32 %v2766, %v2767
    %v2769 = vrot.slane %v2768, 4
    %v2770 = vadd.f32 %v2768, %v2769
    %v2771 = vrot.slane %v2770, 2
    %v2772 = vadd.f32 %v2770, %v2771
    %v2773 = vrot.slane %v2772, 1
    %v2774 = vadd.f32 %v2772, %v2773
    %v2775 = vadd.f32 %v2743, %v2745
    %v2776 = vadd.f32 %v2775, %v2747
    %v2777 = vadd.f32 %v2776, %v2749
    %v2778 = vadd.f32 %v2777, %v2751
    %v2779 = vadd.f32 %v2778, %v2753
    %v2780 = vadd.f32 %v2779, %v2755
    %v2781 = vadd.f32 %v2780, %v2757
    %v2782 = vsel %vm519, %v2759, 0.0
    %v2783 = vadd.f32 %v2781, %v2782
    %v2784 = vrot.slane %v2783, 4
    %v2785 = vadd.f32 %v2783, %v2784
    %v2786 = vrot.slane %v2785, 2
    %v2787 = vadd.f32 %v2785, %v2786
    %v2788 = vrot.slane %v2787, 1
    %v2789 = vadd.f32 %v2787, %v2788
    %s2790 = scalar_lea.vmem [#allocation18], 16
    %v2791 = vld [vmem:[%s2790] sm:$0xff]
    %v2792 = vld [vmem:[%s2790 + $0x8] sm:$0xff]
    %2793 = vmatpush.xpose.msra.mxu0 0.0
    %2794 = vmatpush.xpose.msra.mxu0 0.0
    %2795 = vmatpush.xpose.msra.mxu0 0.0
    %2796 = vmatpush.xpose.msra.mxu0 0.0
    %2797 = vmatpush.xpose.msra.mxu0 0.0
    %2798 = vmatpush.xpose.msra.mxu0 0.0
    %2799 = vmatpush.xpose.msra.mxu0 0.0
    %2800 = vmatpush.xpose.msra.mxu0 0.0
    %2801 = vmatpush.xpose.msra.mxu0 0.0
    %2802 = vmatpush.xpose.msra.mxu0 0.0
    %2803 = vmatpush.xpose.msra.mxu0 0.0
    %2804 = vmatpush.xpose.msra.mxu0 0.0
    %2805 = vmatpush.xpose.msra.mxu0 0.0
    %2806 = vmatpush.xpose.msra.mxu0 0.0
    %2807 = vmatpush.xpose.msra.mxu0 0.0
    %2808 = vmatpush.xpose.msra.mxu0 %v2791
    %2809 = vmatmul.f32.gmra.mxu0 %v2726
    %v2810 = vpop.f32.mrf.mxu0
    %v2811 = vadd.f32 0.0, %v2810
    %2812 = vdwg.mxu0
    %2813 = vmatpush.xpose.msra.mxu0 0.0
    %2814 = vmatpush.xpose.msra.mxu0 0.0
    %2815 = vmatpush.xpose.msra.mxu0 0.0
    %2816 = vmatpush.xpose.msra.mxu0 0.0
    %2817 = vmatpush.xpose.msra.mxu0 0.0
    %2818 = vmatpush.xpose.msra.mxu0 0.0
    %2819 = vmatpush.xpose.msra.mxu0 0.0
    %2820 = vmatpush.xpose.msra.mxu0 0.0
    %2821 = vmatpush.xpose.msra.mxu0 0.0
    %2822 = vmatpush.xpose.msra.mxu0 0.0
    %2823 = vmatpush.xpose.msra.mxu0 0.0
    %2824 = vmatpush.xpose.msra.mxu0 0.0
    %2825 = vmatpush.xpose.msra.mxu0 0.0
    %2826 = vmatpush.xpose.msra.mxu0 0.0
    %2827 = vmatpush.xpose.msra.mxu0 0.0
    %2828 = vmatpush.xpose.msra.mxu0 %v2792
    %2829 = vmatmul.f32.gmra.mxu0 %v2741
    %v2830 = vpop.f32.mrf.mxu0
    %v2831 = vadd.f32 %v2811, %v2830
    %2832 = vdwg.mxu0
    %v2833 = vmul.f32 %v2831, 0.00048828125
    %2834 = vmatpush.xpose.msra.mxu0 0.0
    %2835 = vmatpush.xpose.msra.mxu0 0.0
    %2836 = vmatpush.xpose.msra.mxu0 0.0
    %2837 = vmatpush.xpose.msra.mxu0 0.0
    %2838 = vmatpush.xpose.msra.mxu0 0.0
    %2839 = vmatpush.xpose.msra.mxu0 0.0
    %2840 = vmatpush.xpose.msra.mxu0 0.0
    %2841 = vmatpush.xpose.msra.mxu0 0.0
    %2842 = vmatpush.xpose.msra.mxu0 0.0
    %2843 = vmatpush.xpose.msra.mxu0 0.0
    %2844 = vmatpush.xpose.msra.mxu0 0.0
    %2845 = vmatpush.xpose.msra.mxu0 0.0
    %2846 = vmatpush.xpose.msra.mxu0 0.0
    %2847 = vmatpush.xpose.msra.mxu0 0.0
    %2848 = vmatpush.xpose.msra.mxu0 0.0
    %2849 = vmatpush.xpose.msra.mxu0 %v2791
    %2850 = vmatmul.f32.gmra.mxu0 %v2774
    %v2851 = vpop.f32.mrf.mxu0
    %v2852 = vadd.f32 0.0, %v2851
    %2853 = vdwg.mxu0
    %2854 = vmatpush.xpose.msra.mxu0 0.0
    %2855 = vmatpush.xpose.msra.mxu0 0.0
    %2856 = vmatpush.xpose.msra.mxu0 0.0
    %2857 = vmatpush.xpose.msra.mxu0 0.0
    %2858 = vmatpush.xpose.msra.mxu0 0.0
    %2859 = vmatpush.xpose.msra.mxu0 0.0
    %2860 = vmatpush.xpose.msra.mxu0 0.0
    %2861 = vmatpush.xpose.msra.mxu0 0.0
    %2862 = vmatpush.xpose.msra.mxu0 0.0
    %2863 = vmatpush.xpose.msra.mxu0 0.0
    %2864 = vmatpush.xpose.msra.mxu0 0.0
    %2865 = vmatpush.xpose.msra.mxu0 0.0
    %2866 = vmatpush.xpose.msra.mxu0 0.0
    %2867 = vmatpush.xpose.msra.mxu0 0.0
    %2868 = vmatpush.xpose.msra.mxu0 0.0
    %2869 = vmatpush.xpose.msra.mxu0 %v2792
    %2870 = vmatmul.f32.gmra.mxu0 %v2789
    %v2871 = vpop.f32.mrf.mxu0
    %v2872 = vadd.f32 %v2852, %v2871
    %2873 = vdwg.mxu0
    %v2874 = vmul.f32 %v2872, 0.00048828125
    %v2875 = vmul.f32 %v2833, %v2833
    %v2876 = vsub.f32 %v2874, %v2875
    %v2877 = vmax.f32 %v2876, 0.0
    %s2878 = scalar_lea.vmem [#allocation19], 4
    %v2879 = vld [vmem:[%s2878] sm:$0x3]
    %v2880 = vadd.f32 %v2877, 1e-05
    %v2881 = vrsqrt.pop %v2880
    %v2882 = vmul.f32 %v2881, %v2880
    %v2883 = vmul.f32 %v2882, %v2881
    %v2884 = vmul.f32 0.5, %v2883
    %v2885 = vsub.f32 1.5, %v2884
    %v2886 = vmul.f32 %v2881, %v2885
    %vm2887 = vweird.f32 %v2880
    %vm2888 = vweird.f32 %v2881
    %vm2889 = vmor %vm2887, %vm2888
    %v2890 = vsel %vm2889, %v2881, %v2886
    %v2891 = vmul.f32 %v2879, %v2890
    %v2892 = vmul.f32 %v2833, %v2891
    %v2894 = vrot.slane %v2892, 7
    %v2896 = vsub.f32 %v2879, %v2894
    %v2898 = vsel %vm608, %v2891, 0
    %2900 = vmatpush.msra.mxu0 0.0
    %2901 = vmatpush.msra.mxu0 0.0
    %2902 = vmatpush.msra.mxu0 0.0
    %2903 = vmatpush.msra.mxu0 0.0
    %2904 = vmatpush.msra.mxu0 0.0
    %2905 = vmatpush.msra.mxu0 0.0
    %2906 = vmatpush.msra.mxu0 0.0
    %2907 = vmatpush.msra.mxu0 0.0
    %2908 = vmatpush.msra.mxu0 0.0
    %2909 = vmatpush.msra.mxu0 0.0
    %2910 = vmatpush.msra.mxu0 0.0
    %2911 = vmatpush.msra.mxu0 0.0
    %2912 = vmatpush.msra.mxu0 0.0
    %2913 = vmatpush.msra.mxu0 0.0
    %2914 = vmatpush.msra.mxu0 0.0
    %2915 = vmatpush.msra.mxu0 %v2791
    %2916 = vmatmul.f32.gmra.mxu0 %v2898
    %v2917 = vpop.f32.mrf.mxu0
    %v2918 = vadd.f32 0.0, %v2917
    %2919 = vdwg.mxu0
    %2920 = vmatpush.msra.mxu0 0.0
    %2921 = vmatpush.msra.mxu0 0.0
    %2922 = vmatpush.msra.mxu0 0.0
    %2923 = vmatpush.msra.mxu0 0.0
    %2924 = vmatpush.msra.mxu0 0.0
    %2925 = vmatpush.msra.mxu0 0.0
    %2926 = vmatpush.msra.mxu0 0.0
    %2927 = vmatpush.msra.mxu0 0.0
    %2928 = vmatpush.msra.mxu0 0.0
    %2929 = vmatpush.msra.mxu0 0.0
    %2930 = vmatpush.msra.mxu0 0.0
    %2931 = vmatpush.msra.mxu0 0.0
    %2932 = vmatpush.msra.mxu0 0.0
    %2933 = vmatpush.msra.mxu0 0.0
    %2934 = vmatpush.msra.mxu0 0.0
    %2935 = vmatpush.msra.mxu0 %v2792
    %2936 = vmatmul.f32.gmra.mxu0 %v2898
    %v2937 = vpop.f32.mrf.mxu0
    %v2938 = vadd.f32 0.0, %v2937
    %2939 = vdwg.mxu0
    %v2941 = vrot.slane %v2896, 1
    %v2942 = vsel %vm608, %v2941, 0
    %2944 = vmatpush.msra.mxu0 0.0
    %2945 = vmatpush.msra.mxu0 0.0
    %2946 = vmatpush.msra.mxu0 0.0
    %2947 = vmatpush.msra.mxu0 0.0
    %2948 = vmatpush.msra.mxu0 0.0
    %2949 = vmatpush.msra.mxu0 0.0
    %2950 = vmatpush.msra.mxu0 0.0
    %2951 = vmatpush.msra.mxu0 0.0
    %2952 = vmatpush.msra.mxu0 0.0
    %2953 = vmatpush.msra.mxu0 0.0
    %2954 = vmatpush.msra.mxu0 0.0
    %2955 = vmatpush.msra.mxu0 0.0
    %2956 = vmatpush.msra.mxu0 0.0
    %2957 = vmatpush.msra.mxu0 0.0
    %2958 = vmatpush.msra.mxu0 0.0
    %2959 = vmatpush.msra.mxu0 %v2791
    %2960 = vmatmul.f32.gmra.mxu0 %v2942
    %v2961 = vpop.f32.mrf.mxu0
    %v2962 = vadd.f32 0.0, %v2961
    %2963 = vdwg.mxu0
    %2964 = vmatpush.msra.mxu0 0.0
    %2965 = vmatpush.msra.mxu0 0.0
    %2966 = vmatpush.msra.mxu0 0.0
    %2967 = vmatpush.msra.mxu0 0.0
    %2968 = vmatpush.msra.mxu0 0.0
    %2969 = vmatpush.msra.mxu0 0.0
    %2970 = vmatpush.msra.mxu0 0.0
    %2971 = vmatpush.msra.mxu0 0.0
    %2972 = vmatpush.msra.mxu0 0.0
    %2973 = vmatpush.msra.mxu0 0.0
    %2974 = vmatpush.msra.mxu0 0.0
    %2975 = vmatpush.msra.mxu0 0.0
    %2976 = vmatpush.msra.mxu0 0.0
    %2977 = vmatpush.msra.mxu0 0.0
    %2978 = vmatpush.msra.mxu0 0.0
    %2979 = vmatpush.msra.mxu0 %v2792
    %2980 = vmatmul.f32.gmra.mxu0 %v2942
    %v2981 = vpop.f32.mrf.mxu0
    %v2982 = vadd.f32 0.0, %v2981
    %2983 = vdwg.mxu0
    %v2984 = vperm.slane %v2918, 0
    %v2985 = vperm.slane %v2938, 0
    %v2986 = vmul.f32 %v2393, %v2984
    %v2987 = vmul.f32 %v2591, %v2985
    %v2988 = vmul.f32 %v2395, %v2984
    %v2989 = vmul.f32 %v2593, %v2985
    %v2990 = vmul.f32 %v2398, %v2984
    %v2991 = vmul.f32 %v2596, %v2985
    %v2992 = vmul.f32 %v2400, %v2984
    %v2993 = vmul.f32 %v2598, %v2985
    %v2994 = vmul.f32 %v2403, %v2984
    %v2995 = vmul.f32 %v2601, %v2985
    %v2996 = vmul.f32 %v2405, %v2984
    %v2997 = vmul.f32 %v2603, %v2985
    %v2998 = vmul.f32 %v2408, %v2984
    %v2999 = vmul.f32 %v2606, %v2985
    %v3000 = vmul.f32 %v2410, %v2984
    %v3001 = vmul.f32 %v2608, %v2985
    %v3002 = vmul.f32 %v2413, %v2984
    %v3003 = vmul.f32 %v2611, %v2985
    %v3004 = vperm.slane %v2962, 0
    %v3005 = vperm.slane %v2982, 0
    %v3006 = vadd.f32 %v2986, %v3004
    %v3007 = vadd.f32 %v2987, %v3005
    %v3008 = vadd.f32 %v2988, %v3004
    %v3009 = vadd.f32 %v2989, %v3005
    %v3010 = vadd.f32 %v2990, %v3004
    %v3011 = vadd.f32 %v2991, %v3005
    %v3012 = vadd.f32 %v2992, %v3004
    %v3013 = vadd.f32 %v2993, %v3005
    %v3014 = vadd.f32 %v2994, %v3004
    %v3015 = vadd.f32 %v2995, %v3005
    %v3016 = vadd.f32 %v2996, %v3004
    %v3017 = vadd.f32 %v2997, %v3005
    %v3018 = vadd.f32 %v2998, %v3004
    %v3019 = vadd.f32 %v2999, %v3005
    %v3020 = vadd.f32 %v3000, %v3004
    %v3021 = vadd.f32 %v3001, %v3005
    %v3022 = vadd.f32 %v3002, %v3004
    %v3023 = vadd.f32 %v3003, %v3005
    %v3024 = vmul.f32 %v3006, 0.2
    %v3025 = vmul.f32 %v3007, 0.2
    %v3026 = vmul.f32 %v3008, 0.2
    %v3027 = vmul.f32 %v3009, 0.2
    %v3028 = vmul.f32 %v3010, 0.2
    %v3029 = vmul.f32 %v3011, 0.2
    %v3030 = vmul.f32 %v3012, 0.2
    %v3031 = vmul.f32 %v3013, 0.2
    %v3032 = vmul.f32 %v3014, 0.2
    %v3033 = vmul.f32 %v3015, 0.2
    %v3034 = vmul.f32 %v3016, 0.2
    %v3035 = vmul.f32 %v3017, 0.2
    %v3036 = vmul.f32 %v3018, 0.2
    %v3037 = vmul.f32 %v3019, 0.2
    %v3038 = vmul.f32 %v3020, 0.2
    %v3039 = vmul.f32 %v3021, 0.2
    %v3040 = vmul.f32 %v3022, 0.2
    %v3041 = vmul.f32 %v3023, 0.2
    %v3042 = vmax.f32 %v3006, %v3024
    %v3043 = vmax.f32 %v3007, %v3025
    %v3044 = vmax.f32 %v3008, %v3026
    %v3045 = vmax.f32 %v3009, %v3027
    %v3046 = vmax.f32 %v3010, %v3028
    %v3047 = vmax.f32 %v3011, %v3029
    %v3048 = vmax.f32 %v3012, %v3030
    %v3049 = vmax.f32 %v3013, %v3031
    %v3050 = vmax.f32 %v3014, %v3032
    %v3051 = vmax.f32 %v3015, %v3033
    %v3052 = vmax.f32 %v3016, %v3034
    %v3053 = vmax.f32 %v3017, %v3035
    %v3054 = vmax.f32 %v3018, %v3036
    %v3055 = vmax.f32 %v3019, %v3037
    %v3056 = vmax.f32 %v3020, %v3038
    %v3057 = vmax.f32 %v3021, %v3039
    %v3058 = vmax.f32 %v3022, %v3040
    %v3059 = vmax.f32 %v3023, %v3041
    %v3060 = vld [vmem:[#allocation9] sm:$0xf]
    %v3061 = vld [vmem:[#allocation9 + $0x4] sm:$0xf]
    %v3062 = vld [vmem:[#allocation9 + $0x8] sm:$0xf]
    %v3063 = vld [vmem:[#allocation9 + $0xc] sm:$0xf]
    %v3064 = vld [vmem:[#allocation9 + $0x10] sm:$0xf]
    %v3065 = vld [vmem:[#allocation9 + $0x14] sm:$0xf]
    %v3066 = vld [vmem:[#allocation9 + $0x18] sm:$0xf]
    %v3067 = vld [vmem:[#allocation9 + $0x1c] sm:$0xf]
    %v3068 = vld [vmem:[#allocation9 + $0x20] sm:$0x3]
    %v3069 = vpack.c.bf16 %v3044, %v3042
    %v3070 = vpack.c.bf16 %v3045, %v3043
    %v3071 = vpack.c.bf16 %v3048, %v3046
    %v3072 = vpack.c.bf16 %v3049, %v3047
    %v3073 = vpack.c.bf16 %v3052, %v3050
    %v3074 = vpack.c.bf16 %v3053, %v3051
    %v3075 = vpack.c.bf16 %v3056, %v3054
    %v3076 = vpack.c.bf16 %v3057, %v3055
    %v3077 = vpack.c.bf16 %v3058, %v3058
    %v3078 = vpack.c.bf16 %v3059, %v3059
    %v3088 = vunpack.c.l.b16 %v3060
    %v3089 = vunpack.c.l.b16 %v3061
    %v3090 = vunpack.c.l.b16 %v3062
    %v3091 = vunpack.c.l.b16 %v3063
    %v3092 = vunpack.c.l.b16 %v3064
    %v3093 = vunpack.c.l.b16 %v3065
    %v3094 = vunpack.c.l.b16 %v3066
    %v3095 = vunpack.c.l.b16 %v3067
    %v3096 = vunpack.c.l.b16 %v3068
    %v3097 = vpack.c.b16 %v3089, %v3088
    %v3098 = vpack.c.b16 %v3091, %v3090
    %v3099 = vpack.c.b16 %v3093, %v3092
    %v3100 = vpack.c.b16 %v3095, %v3094
    %v3101 = vpack.c.b16 %v3096, %v3096
    %vm3102 = vcmask 539648
    %v3104 = vsel %vm3102, %v3097, 0
    %v3107 = vsel %vm3102, %v3098, 0
    %v3110 = vsel %vm3102, %v3099, 0
    %v3113 = vsel %vm3102, %v3100, 0
    %v3116 = vsel %vm3102, %v3101, 0
    %v3119 = vsel %vm709, %v3077, 0
    %v3122 = vsel %vm709, %v3078, 0
    %3124 = vmatpush.bf16.msra.mxu0 0
    %3125 = vmatpush.bf16.msra.mxu0 0
    %3126 = vmatpush.bf16.msra.mxu0 0
    %3127 = vmatpush.bf16.msra.mxu0 %v3119
    %3128 = vmatpush.bf16.msra.mxu0 %v3075
    %3129 = vmatpush.bf16.msra.mxu0 %v3073
    %3130 = vmatpush.bf16.msra.mxu0 %v3071
    %3131 = vmatpush.bf16.msra.mxu0 %v3069
    %3132 = vmatmul.bf16.gmra.mxu0 %v3104
    %v3133 = vpop.f32.mrf.mxu0
    %v3134 = vadd.f32 0.0, %v3133
    %v3135 = vpop.f32.mrf.mxu0
    %v3136 = vadd.f32 0.0, %v3135
    %3137 = vmatmul.bf16.gmra.mxu0 %v3107
    %v3138 = vpop.f32.mrf.mxu0
    %v3139 = vadd.f32 0.0, %v3138
    %v3140 = vpop.f32.mrf.mxu0
    %v3141 = vadd.f32 0.0, %v3140
    %3142 = vmatmul.bf16.gmra.mxu0 %v3110
    %v3143 = vpop.f32.mrf.mxu0
    %v3144 = vadd.f32 0.0, %v3143
    %v3145 = vpop.f32.mrf.mxu0
    %v3146 = vadd.f32 0.0, %v3145
    %3147 = vmatmul.bf16.gmra.mxu0 %v3113
    %v3148 = vpop.f32.mrf.mxu0
    %v3149 = vadd.f32 0.0, %v3148
    %v3150 = vpop.f32.mrf.mxu0
    %v3151 = vadd.f32 0.0, %v3150
    %3152 = vmatmul.bf16.gmra.mxu0 %v3116
    %v3153 = vpop.f32.mrf.mxu0
    %v3154 = vadd.f32 0.0, %v3153
    %v3155 = vpop.f32.mrf.mxu0
    %3156 = vdwg.mxu0
    %3157 = vmatpush.bf16.msra.mxu0 0
    %3158 = vmatpush.bf16.msra.mxu0 0
    %3159 = vmatpush.bf16.msra.mxu0 0
    %3160 = vmatpush.bf16.msra.mxu0 %v3122
    %3161 = vmatpush.bf16.msra.mxu0 %v3076
    %3162 = vmatpush.bf16.msra.mxu0 %v3074
    %3163 = vmatpush.bf16.msra.mxu0 %v3072
    %3164 = vmatpush.bf16.msra.mxu0 %v3070
    %3165 = vmatmul.bf16.gmra.mxu0 %v3104
    %v3166 = vpop.f32.mrf.mxu0
    %v3167 = vadd.f32 0.0, %v3166
    %v3168 = vpop.f32.mrf.mxu0
    %v3169 = vadd.f32 0.0, %v3168
    %3170 = vmatmul.bf16.gmra.mxu0 %v3107
    %v3171 = vpop.f32.mrf.mxu0
    %v3172 = vadd.f32 0.0, %v3171
    %v3173 = vpop.f32.mrf.mxu0
    %v3174 = vadd.f32 0.0, %v3173
    %3175 = vmatmul.bf16.gmra.mxu0 %v3110
    %v3176 = vpop.f32.mrf.mxu0
    %v3177 = vadd.f32 0.0, %v3176
    %v3178 = vpop.f32.mrf.mxu0
    %v3179 = vadd.f32 0.0, %v3178
    %3180 = vmatmul.bf16.gmra.mxu0 %v3113
    %v3181 = vpop.f32.mrf.mxu0
    %v3182 = vadd.f32 0.0, %v3181
    %v3183 = vpop.f32.mrf.mxu0
    %v3184 = vadd.f32 0.0, %v3183
    %3185 = vmatmul.bf16.gmra.mxu0 %v3116
    %v3186 = vpop.f32.mrf.mxu0
    %v3187 = vadd.f32 0.0, %v3186
    %v3188 = vpop.f32.mrf.mxu0
    %3189 = vdwg.mxu0
    %v3190 = vpack.c.bf16 %v3167, %v3134
    %v3191 = vpack.c.bf16 %v3169, %v3136
    %v3192 = vpack.c.bf16 %v3172, %v3139
    %v3193 = vpack.c.bf16 %v3174, %v3141
    %v3194 = vpack.c.bf16 %v3177, %v3144
    %v3195 = vpack.c.bf16 %v3179, %v3146
    %v3196 = vpack.c.bf16 %v3182, %v3149
    %v3197 = vpack.c.bf16 %v3184, %v3151
    %v3198 = vpack.c.bf16 %v3187, %v3154
    %v3208 = vunpack.c.l.b16 %v3190
    %v3209 = vunpack.c.h.b16 %v3190
    %v3210 = vunpack.c.l.b16 %v3191
    %v3211 = vunpack.c.h.b16 %v3191
    %v3212 = vunpack.c.l.b16 %v3192
    %v3213 = vunpack.c.h.b16 %v3192
    %v3214 = vunpack.c.l.b16 %v3193
    %v3215 = vunpack.c.h.b16 %v3193
    %v3216 = vunpack.c.l.b16 %v3194
    %v3217 = vunpack.c.h.b16 %v3194
    %v3218 = vunpack.c.l.b16 %v3195
    %v3219 = vunpack.c.h.b16 %v3195
    %v3220 = vunpack.c.l.b16 %v3196
    %v3221 = vunpack.c.h.b16 %v3196
    %v3222 = vunpack.c.l.b16 %v3197
    %v3223 = vunpack.c.h.b16 %v3197
    %v3224 = vunpack.c.l.b16 %v3198
    %v3225 = vunpack.c.h.b16 %v3198
    %v3226 = vpack.c.b16 %v3210, %v3208
    %v3227 = vpack.c.b16 %v3211, %v3209
    %v3228 = vpack.c.b16 %v3214, %v3212
    %v3229 = vpack.c.b16 %v3215, %v3213
    %v3230 = vpack.c.b16 %v3218, %v3216
    %v3231 = vpack.c.b16 %v3219, %v3217
    %v3232 = vpack.c.b16 %v3222, %v3220
    %v3233 = vpack.c.b16 %v3223, %v3221
    %v3234 = vpack.c.b16 %v3224, %v3224
    %v3235 = vpack.c.b16 %v3225, %v3225
    %v3247 = vshrl.u32 %v3226, 16
    %v3249 = vshll.u32 %v3226, 16
    %v3251 = vrot.slane %v3249, 1
    %v3252 = vor.u32 %v3247, %v3251
    %v3254 = vshll.u32 %v3228, 16
    %v3256 = vrot.slane %v3254, 1
    %v3257 = vsel %vm271, %v3252, %v3256
    %v3259 = vshrl.u32 %v3227, 16
    %v3261 = vshll.u32 %v3227, 16
    %v3263 = vrot.slane %v3261, 1
    %v3264 = vor.u32 %v3259, %v3263
    %v3266 = vshll.u32 %v3229, 16
    %v3268 = vrot.slane %v3266, 1
    %v3269 = vsel %vm271, %v3264, %v3268
    %v3270 = vshrl.u32 %v3228, 16
    %v3272 = vor.u32 %v3270, %v3256
    %v3274 = vshll.u32 %v3230, 16
    %v3276 = vrot.slane %v3274, 1
    %v3277 = vsel %vm271, %v3272, %v3276
    %v3278 = vshrl.u32 %v3229, 16
    %v3280 = vor.u32 %v3278, %v3268
    %v3282 = vshll.u32 %v3231, 16
    %v3284 = vrot.slane %v3282, 1
    %v3285 = vsel %vm271, %v3280, %v3284
    %v3286 = vshrl.u32 %v3230, 16
    %v3288 = vor.u32 %v3286, %v3276
    %v3290 = vshll.u32 %v3232, 16
    %v3292 = vrot.slane %v3290, 1
    %v3293 = vsel %vm271, %v3288, %v3292
    %v3294 = vshrl.u32 %v3231, 16
    %v3296 = vor.u32 %v3294, %v3284
    %v3298 = vshll.u32 %v3233, 16
    %v3300 = vrot.slane %v3298, 1
    %v3301 = vsel %vm271, %v3296, %v3300
    %v3302 = vshrl.u32 %v3232, 16
    %v3304 = vor.u32 %v3302, %v3292
    %v3306 = vshll.u32 %v3234, 16
    %v3308 = vrot.slane %v3306, 1
    %v3309 = vsel %vm271, %v3304, %v3308
    %v3310 = vshrl.u32 %v3233, 16
    %v3312 = vor.u32 %v3310, %v3300
    %v3314 = vshll.u32 %v3235, 16
    %v3316 = vrot.slane %v3314, 1
    %v3317 = vsel %vm271, %v3312, %v3316
    %v3318 = vshrl.u32 %v3234, 16
    %v3320 = vor.u32 %v3318, %v3308
    %v3321 = vshrl.u32 %v3235, 16
    %v3323 = vor.u32 %v3321, %v3316
    %v3334 = vrot.slane %v3226, 1
    %v3335 = vrot.slane %v3228, 1
    %v3336 = vsel %vm399, %v3334, %v3335
    %v3337 = vrot.slane %v3227, 1
    %v3338 = vrot.slane %v3229, 1
    %v3339 = vsel %vm399, %v3337, %v3338
    %v3340 = vrot.slane %v3230, 1
    %v3341 = vsel %vm399, %v3335, %v3340
    %v3342 = vrot.slane %v3231, 1
    %v3343 = vsel %vm399, %v3338, %v3342
    %v3344 = vrot.slane %v3232, 1
    %v3345 = vsel %vm399, %v3340, %v3344
    %v3346 = vrot.slane %v3233, 1
    %v3347 = vsel %vm399, %v3342, %v3346
    %v3348 = vrot.slane %v3234, 1
    %v3349 = vsel %vm399, %v3344, %v3348
    %v3350 = vrot.slane %v3235, 1
    %v3351 = vsel %vm399, %v3346, %v3350
    %v3362 = vld [vmem:[#allocation10] sm:$0xff]
    %v3363 = vld [vmem:[#allocation10 + $0x8] sm:$0xff]
    %v3364 = vld [vmem:[#allocation10 + $0x10] sm:$0xff]
    %v3365 = vld [vmem:[#allocation10 + $0x18] sm:$0xff]
    %v3366 = vld [vmem:[#allocation10 + $0x20] sm:$0xff]
    %v3367 = vld [vmem:[#allocation10 + $0x28] sm:$0xff]
    %v3368 = vld [vmem:[#allocation10 + $0x30] sm:$0xff]
    %v3369 = vld [vmem:[#allocation10 + $0x38] sm:$0xff]
    %v3370 = vld [vmem:[#allocation10 + $0x40] sm:$0xff]
    %v3371 = vld [vmem:[#allocation10 + $0x48] sm:$0xff]
    %v3372 = vld [vmem:[#allocation10 + $0x50] sm:$0xff]
    %v3373 = vld [vmem:[#allocation10 + $0x58] sm:$0xff]
    %v3374 = vld [vmem:[#allocation10 + $0x60] sm:$0xff]
    %v3375 = vld [vmem:[#allocation10 + $0x68] sm:$0xff]
    %v3376 = vld [vmem:[#allocation10 + $0x70] sm:$0xff]
    %v3377 = vld [vmem:[#allocation10 + $0x78] sm:$0xff]
    %v3378 = vld [vmem:[#allocation10 + $0x80] sm:$0xff]
    %v3379 = vld [vmem:[#allocation10 + $0x88] sm:$0xff]
    %v3380 = vld [vmem:[#allocation10 + $0x90] sm:$0xff]
    %v3381 = vld [vmem:[#allocation10 + $0x98] sm:$0xff]
    %v3382 = vld [vmem:[#allocation10 + $0xa0] sm:$0xff]
    %v3383 = vld [vmem:[#allocation10 + $0xa8] sm:$0xff]
    %v3384 = vld [vmem:[#allocation10 + $0xb0] sm:$0xff]
    %v3385 = vld [vmem:[#allocation10 + $0xb8] sm:$0xff]
    %v3386 = vld [vmem:[#allocation10 + $0xc0] sm:$0xff]
    %v3387 = vld [vmem:[#allocation10 + $0xc8] sm:$0xff]
    %v3388 = vld [vmem:[#allocation10 + $0xd0] sm:$0xff]
    %v3389 = vld [vmem:[#allocation10 + $0xd8] sm:$0xff]
    %v3390 = vld [vmem:[#allocation10 + $0xe0] sm:$0xff]
    %v3391 = vld [vmem:[#allocation10 + $0xe8] sm:$0xff]
    %v3392 = vld [vmem:[#allocation10 + $0xf0] sm:$0xff]
    %v3393 = vld [vmem:[#allocation10 + $0xf8] sm:$0xff]
    %v3394 = vld [vmem:[#allocation10 + $0x100] sm:$0xff]
    %v3395 = vld [vmem:[#allocation10 + $0x108] sm:$0xff]
    %v3396 = vld [vmem:[#allocation10 + $0x110] sm:$0xff]
    %v3397 = vld [vmem:[#allocation10 + $0x118] sm:$0xff]
    %v3398 = vld [vmem:[#allocation10 + $0x120] sm:$0xff]
    %v3399 = vld [vmem:[#allocation10 + $0x128] sm:$0xff]
    %v3400 = vld [vmem:[#allocation10 + $0x130] sm:$0xff]
    %v3401 = vld [vmem:[#allocation10 + $0x138] sm:$0xff]
    %v3402 = vld [vmem:[#allocation10 + $0x140] sm:$0xff]
    %v3403 = vld [vmem:[#allocation10 + $0x148] sm:$0xff]
    %v3404 = vld [vmem:[#allocation10 + $0x150] sm:$0xff]
    %v3405 = vld [vmem:[#allocation10 + $0x158] sm:$0xff]
    %v3406 = vld [vmem:[#allocation10 + $0x160] sm:$0xff]
    %v3407 = vld [vmem:[#allocation10 + $0x168] sm:$0xff]
    %v3408 = vld [vmem:[#allocation10 + $0x170] sm:$0xff]
    %v3409 = vld [vmem:[#allocation10 + $0x178] sm:$0xff]
    %v3410 = vld [vmem:[#allocation10 + $0x180] sm:$0xff]
    %v3411 = vld [vmem:[#allocation10 + $0x188] sm:$0xff]
    %v3412 = vld [vmem:[#allocation10 + $0x190] sm:$0xff]
    %v3413 = vld [vmem:[#allocation10 + $0x198] sm:$0xff]
    %v3414 = vld [vmem:[#allocation10 + $0x1a0] sm:$0xff]
    %v3415 = vld [vmem:[#allocation10 + $0x1a8] sm:$0xff]
    %v3416 = vld [vmem:[#allocation10 + $0x1b0] sm:$0xff]
    %v3417 = vld [vmem:[#allocation10 + $0x1b8] sm:$0xff]
    %v3418 = vld [vmem:[#allocation10 + $0x1c0] sm:$0xff]
    %v3419 = vld [vmem:[#allocation10 + $0x1c8] sm:$0xff]
    %v3420 = vld [vmem:[#allocation10 + $0x1d0] sm:$0xff]
    %v3421 = vld [vmem:[#allocation10 + $0x1d8] sm:$0xff]
    %v3422 = vld [vmem:[#allocation10 + $0x1e0] sm:$0xff]
    %v3423 = vld [vmem:[#allocation10 + $0x1e8] sm:$0xff]
    %v3424 = vld [vmem:[#allocation10 + $0x1f0] sm:$0xff]
    %v3425 = vld [vmem:[#allocation10 + $0x1f8] sm:$0xff]
    %v3426 = vld [vmem:[#allocation10 + $0x200] sm:$0xff]
    %v3427 = vld [vmem:[#allocation10 + $0x208] sm:$0xff]
    %v3428 = vld [vmem:[#allocation10 + $0x210] sm:$0xff]
    %v3429 = vld [vmem:[#allocation10 + $0x218] sm:$0xff]
    %v3430 = vld [vmem:[#allocation10 + $0x220] sm:$0xff]
    %v3431 = vld [vmem:[#allocation10 + $0x228] sm:$0xff]
    %v3432 = vld [vmem:[#allocation10 + $0x230] sm:$0xff]
    %v3433 = vld [vmem:[#allocation10 + $0x238] sm:$0xff]
    %v3434 = vld [vmem:[#allocation10 + $0x240] sm:$0xff]
    %v3435 = vld [vmem:[#allocation10 + $0x248] sm:$0xff]
    %v3436 = vld [vmem:[#allocation10 + $0x250] sm:$0xff]
    %v3437 = vld [vmem:[#allocation10 + $0x258] sm:$0xff]
    %v3438 = vld [vmem:[#allocation10 + $0x260] sm:$0xff]
    %v3439 = vld [vmem:[#allocation10 + $0x268] sm:$0xff]
    %v3440 = vld [vmem:[#allocation10 + $0x270] sm:$0xff]
    %v3441 = vld [vmem:[#allocation10 + $0x278] sm:$0xff]
    %v3442 = vld [vmem:[#allocation10 + $0x280] sm:$0xff]
    %v3443 = vld [vmem:[#allocation10 + $0x288] sm:$0xff]
    %v3444 = vld [vmem:[#allocation10 + $0x290] sm:$0xff]
    %v3445 = vld [vmem:[#allocation10 + $0x298] sm:$0xff]
    %v3446 = vld [vmem:[#allocation10 + $0x2a0] sm:$0xff]
    %v3447 = vld [vmem:[#allocation10 + $0x2a8] sm:$0xff]
    %v3448 = vld [vmem:[#allocation10 + $0x2b0] sm:$0xff]
    %v3449 = vld [vmem:[#allocation10 + $0x2b8] sm:$0xff]
    %v3450 = vld [vmem:[#allocation10 + $0x2c0] sm:$0xff]
    %v3451 = vld [vmem:[#allocation10 + $0x2c8] sm:$0xff]
    %v3452 = vld [vmem:[#allocation10 + $0x2d0] sm:$0xff]
    %v3453 = vld [vmem:[#allocation10 + $0x2d8] sm:$0xff]
    %v3454 = vld [vmem:[#allocation10 + $0x2e0] sm:$0xff]
    %v3455 = vld [vmem:[#allocation10 + $0x2e8] sm:$0xff]
    %v3456 = vld [vmem:[#allocation10 + $0x2f0] sm:$0xff]
    %v3457 = vld [vmem:[#allocation10 + $0x2f8] sm:$0xff]
    %v3554 = vunpack.c.l.b16 %v3362
    %v3555 = vunpack.c.h.b16 %v3362
    %v3556 = vunpack.c.l.b16 %v3363
    %v3557 = vunpack.c.h.b16 %v3363
    %v3558 = vunpack.c.l.b16 %v3364
    %v3559 = vunpack.c.h.b16 %v3364
    %v3560 = vunpack.c.l.b16 %v3365
    %v3561 = vunpack.c.h.b16 %v3365
    %v3562 = vunpack.c.l.b16 %v3366
    %v3563 = vunpack.c.h.b16 %v3366
    %v3564 = vunpack.c.l.b16 %v3367
    %v3565 = vunpack.c.h.b16 %v3367
    %v3566 = vunpack.c.l.b16 %v3368
    %v3567 = vunpack.c.h.b16 %v3368
    %v3568 = vunpack.c.l.b16 %v3369
    %v3569 = vunpack.c.h.b16 %v3369
    %v3570 = vunpack.c.l.b16 %v3370
    %v3571 = vunpack.c.h.b16 %v3370
    %v3572 = vunpack.c.l.b16 %v3371
    %v3573 = vunpack.c.h.b16 %v3371
    %v3574 = vunpack.c.l.b16 %v3372
    %v3575 = vunpack.c.h.b16 %v3372
    %v3576 = vunpack.c.l.b16 %v3373
    %v3577 = vunpack.c.h.b16 %v3373
    %v3578 = vunpack.c.l.b16 %v3374
    %v3579 = vunpack.c.h.b16 %v3374
    %v3580 = vunpack.c.l.b16 %v3375
    %v3581 = vunpack.c.h.b16 %v3375
    %v3582 = vunpack.c.l.b16 %v3376
    %v3583 = vunpack.c.h.b16 %v3376
    %v3584 = vunpack.c.l.b16 %v3377
    %v3585 = vunpack.c.h.b16 %v3377
    %v3586 = vunpack.c.l.b16 %v3378
    %v3587 = vunpack.c.h.b16 %v3378
    %v3588 = vunpack.c.l.b16 %v3379
    %v3589 = vunpack.c.h.b16 %v3379
    %v3590 = vunpack.c.l.b16 %v3380
    %v3591 = vunpack.c.h.b16 %v3380
    %v3592 = vunpack.c.l.b16 %v3381
    %v3593 = vunpack.c.h.b16 %v3381
    %v3594 = vunpack.c.l.b16 %v3382
    %v3595 = vunpack.c.h.b16 %v3382
    %v3596 = vunpack.c.l.b16 %v3383
    %v3597 = vunpack.c.h.b16 %v3383
    %v3598 = vunpack.c.l.b16 %v3384
    %v3599 = vunpack.c.h.b16 %v3384
    %v3600 = vunpack.c.l.b16 %v3385
    %v3601 = vunpack.c.h.b16 %v3385
    %v3602 = vunpack.c.l.b16 %v3386
    %v3603 = vunpack.c.h.b16 %v3386
    %v3604 = vunpack.c.l.b16 %v3387
    %v3605 = vunpack.c.h.b16 %v3387
    %v3606 = vunpack.c.l.b16 %v3388
    %v3607 = vunpack.c.h.b16 %v3388
    %v3608 = vunpack.c.l.b16 %v3389
    %v3609 = vunpack.c.h.b16 %v3389
    %v3610 = vunpack.c.l.b16 %v3390
    %v3611 = vunpack.c.h.b16 %v3390
    %v3612 = vunpack.c.l.b16 %v3391
    %v3613 = vunpack.c.h.b16 %v3391
    %v3614 = vunpack.c.l.b16 %v3392
    %v3615 = vunpack.c.h.b16 %v3392
    %v3616 = vunpack.c.l.b16 %v3393
    %v3617 = vunpack.c.h.b16 %v3393
    %v3618 = vunpack.c.l.b16 %v3394
    %v3619 = vunpack.c.h.b16 %v3394
    %v3620 = vunpack.c.l.b16 %v3395
    %v3621 = vunpack.c.h.b16 %v3395
    %v3622 = vunpack.c.l.b16 %v3396
    %v3623 = vunpack.c.h.b16 %v3396
    %v3624 = vunpack.c.l.b16 %v3397
    %v3625 = vunpack.c.h.b16 %v3397
    %v3626 = vunpack.c.l.b16 %v3398
    %v3627 = vunpack.c.h.b16 %v3398
    %v3628 = vunpack.c.l.b16 %v3399
    %v3629 = vunpack.c.h.b16 %v3399
    %v3630 = vunpack.c.l.b16 %v3400
    %v3631 = vunpack.c.h.b16 %v3400
    %v3632 = vunpack.c.l.b16 %v3401
    %v3633 = vunpack.c.h.b16 %v3401
    %v3634 = vunpack.c.l.b16 %v3402
    %v3635 = vunpack.c.h.b16 %v3402
    %v3636 = vunpack.c.l.b16 %v3403
    %v3637 = vunpack.c.h.b16 %v3403
    %v3638 = vunpack.c.l.b16 %v3404
    %v3639 = vunpack.c.h.b16 %v3404
    %v3640 = vunpack.c.l.b16 %v3405
    %v3641 = vunpack.c.h.b16 %v3405
    %v3642 = vunpack.c.l.b16 %v3406
    %v3643 = vunpack.c.h.b16 %v3406
    %v3644 = vunpack.c.l.b16 %v3407
    %v3645 = vunpack.c.h.b16 %v3407
    %v3646 = vunpack.c.l.b16 %v3408
    %v3647 = vunpack.c.h.b16 %v3408
    %v3648 = vunpack.c.l.b16 %v3409
    %v3649 = vunpack.c.h.b16 %v3409
    %v3650 = vunpack.c.l.b16 %v3410
    %v3651 = vunpack.c.h.b16 %v3410
    %v3652 = vunpack.c.l.b16 %v3411
    %v3653 = vunpack.c.h.b16 %v3411
    %v3654 = vunpack.c.l.b16 %v3412
    %v3655 = vunpack.c.h.b16 %v3412
    %v3656 = vunpack.c.l.b16 %v3413
    %v3657 = vunpack.c.h.b16 %v3413
    %v3658 = vunpack.c.l.b16 %v3414
    %v3659 = vunpack.c.h.b16 %v3414
    %v3660 = vunpack.c.l.b16 %v3415
    %v3661 = vunpack.c.h.b16 %v3415
    %v3662 = vunpack.c.l.b16 %v3416
    %v3663 = vunpack.c.h.b16 %v3416
    %v3664 = vunpack.c.l.b16 %v3417
    %v3665 = vunpack.c.h.b16 %v3417
    %v3666 = vunpack.c.l.b16 %v3418
    %v3667 = vunpack.c.h.b16 %v3418
    %v3668 = vunpack.c.l.b16 %v3419
    %v3669 = vunpack.c.h.b16 %v3419
    %v3670 = vunpack.c.l.b16 %v3420
    %v3671 = vunpack.c.h.b16 %v3420
    %v3672 = vunpack.c.l.b16 %v3421
    %v3673 = vunpack.c.h.b16 %v3421
    %v3674 = vunpack.c.l.b16 %v3422
    %v3675 = vunpack.c.h.b16 %v3422
    %v3676 = vunpack.c.l.b16 %v3423
    %v3677 = vunpack.c.h.b16 %v3423
    %v3678 = vunpack.c.l.b16 %v3424
    %v3679 = vunpack.c.h.b16 %v3424
    %v3680 = vunpack.c.l.b16 %v3425
    %v3681 = vunpack.c.h.b16 %v3425
    %v3682 = vunpack.c.l.b16 %v3426
    %v3683 = vunpack.c.h.b16 %v3426
    %v3684 = vunpack.c.l.b16 %v3427
    %v3685 = vunpack.c.h.b16 %v3427
    %v3686 = vunpack.c.l.b16 %v3428
    %v3687 = vunpack.c.h.b16 %v3428
    %v3688 = vunpack.c.l.b16 %v3429
    %v3689 = vunpack.c.h.b16 %v3429
    %v3690 = vunpack.c.l.b16 %v3430
    %v3691 = vunpack.c.h.b16 %v3430
    %v3692 = vunpack.c.l.b16 %v3431
    %v3693 = vunpack.c.h.b16 %v3431
    %v3694 = vunpack.c.l.b16 %v3432
    %v3695 = vunpack.c.h.b16 %v3432
    %v3696 = vunpack.c.l.b16 %v3433
    %v3697 = vunpack.c.h.b16 %v3433
    %v3698 = vunpack.c.l.b16 %v3434
    %v3699 = vunpack.c.h.b16 %v3434
    %v3700 = vunpack.c.l.b16 %v3435
    %v3701 = vunpack.c.h.b16 %v3435
    %v3702 = vunpack.c.l.b16 %v3436
    %v3703 = vunpack.c.h.b16 %v3436
    %v3704 = vunpack.c.l.b16 %v3437
    %v3705 = vunpack.c.h.b16 %v3437
    %v3706 = vunpack.c.l.b16 %v3438
    %v3707 = vunpack.c.h.b16 %v3438
    %v3708 = vunpack.c.l.b16 %v3439
    %v3709 = vunpack.c.h.b16 %v3439
    %v3710 = vunpack.c.l.b16 %v3440
    %v3711 = vunpack.c.h.b16 %v3440
    %v3712 = vunpack.c.l.b16 %v3441
    %v3713 = vunpack.c.h.b16 %v3441
    %v3714 = vunpack.c.l.b16 %v3442
    %v3715 = vunpack.c.h.b16 %v3442
    %v3716 = vunpack.c.l.b16 %v3443
    %v3717 = vunpack.c.h.b16 %v3443
    %v3718 = vunpack.c.l.b16 %v3444
    %v3719 = vunpack.c.h.b16 %v3444
    %v3720 = vunpack.c.l.b16 %v3445
    %v3721 = vunpack.c.h.b16 %v3445
    %v3722 = vunpack.c.l.b16 %v3446
    %v3723 = vunpack.c.h.b16 %v3446
    %v3724 = vunpack.c.l.b16 %v3447
    %v3725 = vunpack.c.h.b16 %v3447
    %v3726 = vunpack.c.l.b16 %v3448
    %v3727 = vunpack.c.h.b16 %v3448
    %v3728 = vunpack.c.l.b16 %v3449
    %v3729 = vunpack.c.h.b16 %v3449
    %v3730 = vunpack.c.l.b16 %v3450
    %v3731 = vunpack.c.h.b16 %v3450
    %v3732 = vunpack.c.l.b16 %v3451
    %v3733 = vunpack.c.h.b16 %v3451
    %v3734 = vunpack.c.l.b16 %v3452
    %v3735 = vunpack.c.h.b16 %v3452
    %v3736 = vunpack.c.l.b16 %v3453
    %v3737 = vunpack.c.h.b16 %v3453
    %v3738 = vunpack.c.l.b16 %v3454
    %v3739 = vunpack.c.h.b16 %v3454
    %v3740 = vunpack.c.l.b16 %v3455
    %v3741 = vunpack.c.h.b16 %v3455
    %v3742 = vunpack.c.l.b16 %v3456
    %v3743 = vunpack.c.h.b16 %v3456
    %v3744 = vunpack.c.l.b16 %v3457
    %v3745 = vunpack.c.h.b16 %v3457
    %v3746 = vpack.c.b16 %v3556, %v3554
    %v3747 = vpack.c.b16 %v3557, %v3555
    %v3748 = vpack.c.b16 %v3560, %v3558
    %v3749 = vpack.c.b16 %v3561, %v3559
    %v3750 = vpack.c.b16 %v3564, %v3562
    %v3751 = vpack.c.b16 %v3565, %v3563
    %v3752 = vpack.c.b16 %v3568, %v3566
    %v3753 = vpack.c.b16 %v3569, %v3567
    %v3754 = vpack.c.b16 %v3572, %v3570
    %v3755 = vpack.c.b16 %v3573, %v3571
    %v3756 = vpack.c.b16 %v3576, %v3574
    %v3757 = vpack.c.b16 %v3577, %v3575
    %v3758 = vpack.c.b16 %v3580, %v3578
    %v3759 = vpack.c.b16 %v3581, %v3579
    %v3760 = vpack.c.b16 %v3584, %v3582
    %v3761 = vpack.c.b16 %v3585, %v3583
    %v3762 = vpack.c.b16 %v3588, %v3586
    %v3763 = vpack.c.b16 %v3589, %v3587
    %v3764 = vpack.c.b16 %v3592, %v3590
    %v3765 = vpack.c.b16 %v3593, %v3591
    %v3766 = vpack.c.b16 %v3596, %v3594
    %v3767 = vpack.c.b16 %v3597, %v3595
    %v3768 = vpack.c.b16 %v3600, %v3598
    %v3769 = vpack.c.b16 %v3601, %v3599
    %v3770 = vpack.c.b16 %v3604, %v3602
    %v3771 = vpack.c.b16 %v3605, %v3603
    %v3772 = vpack.c.b16 %v3608, %v3606
    %v3773 = vpack.c.b16 %v3609, %v3607
    %v3774 = vpack.c.b16 %v3612, %v3610
    %v3775 = vpack.c.b16 %v3613, %v3611
    %v3776 = vpack.c.b16 %v3616, %v3614
    %v3777 = vpack.c.b16 %v3617, %v3615
    %v3778 = vpack.c.b16 %v3620, %v3618
    %v3779 = vpack.c.b16 %v3621, %v3619
    %v3780 = vpack.c.b16 %v3624, %v3622
    %v3781 = vpack.c.b16 %v3625, %v3623
    %v3782 = vpack.c.b16 %v3628, %v3626
    %v3783 = vpack.c.b16 %v3629, %v3627
    %v3784 = vpack.c.b16 %v3632, %v3630
    %v3785 = vpack.c.b16 %v3633, %v3631
    %v3786 = vpack.c.b16 %v3636, %v3634
    %v3787 = vpack.c.b16 %v3637, %v3635
    %v3788 = vpack.c.b16 %v3640, %v3638
    %v3789 = vpack.c.b16 %v3641, %v3639
    %v3790 = vpack.c.b16 %v3644, %v3642
    %v3791 = vpack.c.b16 %v3645, %v3643
    %v3792 = vpack.c.b16 %v3648, %v3646
    %v3793 = vpack.c.b16 %v3649, %v3647
    %v3794 = vpack.c.b16 %v3652, %v3650
    %v3795 = vpack.c.b16 %v3653, %v3651
    %v3796 = vpack.c.b16 %v3656, %v3654
    %v3797 = vpack.c.b16 %v3657, %v3655
    %v3798 = vpack.c.b16 %v3660, %v3658
    %v3799 = vpack.c.b16 %v3661, %v3659
    %v3800 = vpack.c.b16 %v3664, %v3662
    %v3801 = vpack.c.b16 %v3665, %v3663
    %v3802 = vpack.c.b16 %v3668, %v3666
    %v3803 = vpack.c.b16 %v3669, %v3667
    %v3804 = vpack.c.b16 %v3672, %v3670
    %v3805 = vpack.c.b16 %v3673, %v3671
    %v3806 = vpack.c.b16 %v3676, %v3674
    %v3807 = vpack.c.b16 %v3677, %v3675
    %v3808 = vpack.c.b16 %v3680, %v3678
    %v3809 = vpack.c.b16 %v3681, %v3679
    %v3810 = vpack.c.b16 %v3684, %v3682
    %v3811 = vpack.c.b16 %v3685, %v3683
    %v3812 = vpack.c.b16 %v3688, %v3686
    %v3813 = vpack.c.b16 %v3689, %v3687
    %v3814 = vpack.c.b16 %v3692, %v3690
    %v3815 = vpack.c.b16 %v3693, %v3691
    %v3816 = vpack.c.b16 %v3696, %v3694
    %v3817 = vpack.c.b16 %v3697, %v3695
    %v3818 = vpack.c.b16 %v3700, %v3698
    %v3819 = vpack.c.b16 %v3701, %v3699
    %v3820 = vpack.c.b16 %v3704, %v3702
    %v3821 = vpack.c.b16 %v3705, %v3703
    %v3822 = vpack.c.b16 %v3708, %v3706
    %v3823 = vpack.c.b16 %v3709, %v3707
    %v3824 = vpack.c.b16 %v3712, %v3710
    %v3825 = vpack.c.b16 %v3713, %v3711
    %v3826 = vpack.c.b16 %v3716, %v3714
    %v3827 = vpack.c.b16 %v3717, %v3715
    %v3828 = vpack.c.b16 %v3720, %v3718
    %v3829 = vpack.c.b16 %v3721, %v3719
    %v3830 = vpack.c.b16 %v3724, %v3722
    %v3831 = vpack.c.b16 %v3725, %v3723
    %v3832 = vpack.c.b16 %v3728, %v3726
    %v3833 = vpack.c.b16 %v3729, %v3727
    %v3834 = vpack.c.b16 %v3732, %v3730
    %v3835 = vpack.c.b16 %v3733, %v3731
    %v3836 = vpack.c.b16 %v3736, %v3734
    %v3837 = vpack.c.b16 %v3737, %v3735
    %v3838 = vpack.c.b16 %v3740, %v3738
    %v3839 = vpack.c.b16 %v3741, %v3739
    %v3840 = vpack.c.b16 %v3744, %v3742
    %v3841 = vpack.c.b16 %v3745, %v3743
    %3938 = vmatpush.bf16.msra.mxu0 %v3760
    %3939 = vmatpush.bf16.msra.mxu0 %v3758
    %3940 = vmatpush.bf16.msra.mxu0 %v3756
    %3941 = vmatpush.bf16.msra.mxu0 %v3754
    %3942 = vmatpush.bf16.msra.mxu0 %v3752
    %3943 = vmatpush.bf16.msra.mxu0 %v3750
    %3944 = vmatpush.bf16.msra.mxu0 %v3748
    %3945 = vmatpush.bf16.msra.mxu0 %v3746
    %3946 = vmatmul.bf16.gmra.mxu0 %v3226
    %v3947 = vpop.f32.mrf.mxu0
    %v3948 = vadd.f32 0.0, %v3947
    %v3949 = vpop.f32.mrf.mxu0
    %v3950 = vadd.f32 0.0, %v3949
    %3951 = vmatmul.bf16.gmra.mxu0 %v3228
    %v3952 = vpop.f32.mrf.mxu0
    %v3953 = vadd.f32 0.0, %v3952
    %v3954 = vpop.f32.mrf.mxu0
    %v3955 = vadd.f32 0.0, %v3954
    %3956 = vmatmul.bf16.gmra.mxu0 %v3230
    %v3957 = vpop.f32.mrf.mxu0
    %v3958 = vadd.f32 0.0, %v3957
    %v3959 = vpop.f32.mrf.mxu0
    %v3960 = vadd.f32 0.0, %v3959
    %3961 = vmatmul.bf16.gmra.mxu0 %v3232
    %v3962 = vpop.f32.mrf.mxu0
    %v3963 = vadd.f32 0.0, %v3962
    %v3964 = vpop.f32.mrf.mxu0
    %v3965 = vadd.f32 0.0, %v3964
    %3966 = vmatmul.bf16.gmra.mxu0 %v3234
    %v3967 = vpop.f32.mrf.mxu0
    %v3968 = vadd.f32 0.0, %v3967
    %v3969 = vpop.f32.mrf.mxu0
    %3970 = vdwg.mxu0
    %3971 = vmatpush.bf16.msra.mxu0 %v3776
    %3972 = vmatpush.bf16.msra.mxu0 %v3774
    %3973 = vmatpush.bf16.msra.mxu0 %v3772
    %3974 = vmatpush.bf16.msra.mxu0 %v3770
    %3975 = vmatpush.bf16.msra.mxu0 %v3768
    %3976 = vmatpush.bf16.msra.mxu0 %v3766
    %3977 = vmatpush.bf16.msra.mxu0 %v3764
    %3978 = vmatpush.bf16.msra.mxu0 %v3762
    %3979 = vmatmul.bf16.gmra.mxu0 %v3227
    %v3980 = vpop.f32.mrf.mxu0
    %v3981 = vadd.f32 %v3948, %v3980
    %v3982 = vpop.f32.mrf.mxu0
    %v3983 = vadd.f32 %v3950, %v3982
    %3984 = vmatmul.bf16.gmra.mxu0 %v3229
    %v3985 = vpop.f32.mrf.mxu0
    %v3986 = vadd.f32 %v3953, %v3985
    %v3987 = vpop.f32.mrf.mxu0
    %v3988 = vadd.f32 %v3955, %v3987
    %3989 = vmatmul.bf16.gmra.mxu0 %v3231
    %v3990 = vpop.f32.mrf.mxu0
    %v3991 = vadd.f32 %v3958, %v3990
    %v3992 = vpop.f32.mrf.mxu0
    %v3993 = vadd.f32 %v3960, %v3992
    %3994 = vmatmul.bf16.gmra.mxu0 %v3233
    %v3995 = vpop.f32.mrf.mxu0
    %v3996 = vadd.f32 %v3963, %v3995
    %v3997 = vpop.f32.mrf.mxu0
    %v3998 = vadd.f32 %v3965, %v3997
    %3999 = vmatmul.bf16.gmra.mxu0 %v3235
    %v4000 = vpop.f32.mrf.mxu0
    %v4001 = vadd.f32 %v3968, %v4000
    %v4002 = vpop.f32.mrf.mxu0
    %4003 = vdwg.mxu0
    %4004 = vmatpush.bf16.msra.mxu0 %v3792
    %4005 = vmatpush.bf16.msra.mxu0 %v3790
    %4006 = vmatpush.bf16.msra.mxu0 %v3788
    %4007 = vmatpush.bf16.msra.mxu0 %v3786
    %4008 = vmatpush.bf16.msra.mxu0 %v3784
    %4009 = vmatpush.bf16.msra.mxu0 %v3782
    %4010 = vmatpush.bf16.msra.mxu0 %v3780
    %4011 = vmatpush.bf16.msra.mxu0 %v3778
    %4012 = vmatmul.bf16.gmra.mxu0 %v3257
    %v4013 = vpop.f32.mrf.mxu0
    %v4014 = vadd.f32 %v3981, %v4013
    %v4015 = vpop.f32.mrf.mxu0
    %v4016 = vadd.f32 %v3983, %v4015
    %4017 = vmatmul.bf16.gmra.mxu0 %v3277
    %v4018 = vpop.f32.mrf.mxu0
    %v4019 = vadd.f32 %v3986, %v4018
    %v4020 = vpop.f32.mrf.mxu0
    %v4021 = vadd.f32 %v3988, %v4020
    %4022 = vmatmul.bf16.gmra.mxu0 %v3293
    %v4023 = vpop.f32.mrf.mxu0
    %v4024 = vadd.f32 %v3991, %v4023
    %v4025 = vpop.f32.mrf.mxu0
    %v4026 = vadd.f32 %v3993, %v4025
    %4027 = vmatmul.bf16.gmra.mxu0 %v3309
    %v4028 = vpop.f32.mrf.mxu0
    %v4029 = vadd.f32 %v3996, %v4028
    %v4030 = vpop.f32.mrf.mxu0
    %v4031 = vadd.f32 %v3998, %v4030
    %4032 = vmatmul.bf16.gmra.mxu0 %v3320
    %v4033 = vpop.f32.mrf.mxu0
    %v4034 = vadd.f32 %v4001, %v4033
    %v4035 = vpop.f32.mrf.mxu0
    %4036 = vdwg.mxu0
    %4037 = vmatpush.bf16.msra.mxu0 %v3808
    %4038 = vmatpush.bf16.msra.mxu0 %v3806
    %4039 = vmatpush.bf16.msra.mxu0 %v3804
    %4040 = vmatpush.bf16.msra.mxu0 %v3802
    %4041 = vmatpush.bf16.msra.mxu0 %v3800
    %4042 = vmatpush.bf16.msra.mxu0 %v3798
    %4043 = vmatpush.bf16.msra.mxu0 %v3796
    %4044 = vmatpush.bf16.msra.mxu0 %v3794
    %4045 = vmatmul.bf16.gmra.mxu0 %v3269
    %v4046 = vpop.f32.mrf.mxu0
    %v4047 = vadd.f32 %v4014, %v4046
    %v4048 = vpop.f32.mrf.mxu0
    %v4049 = vadd.f32 %v4016, %v4048
    %4050 = vmatmul.bf16.gmra.mxu0 %v3285
    %v4051 = vpop.f32.mrf.mxu0
    %v4052 = vadd.f32 %v4019, %v4051
    %v4053 = vpop.f32.mrf.mxu0
    %v4054 = vadd.f32 %v4021, %v4053
    %4055 = vmatmul.bf16.gmra.mxu0 %v3301
    %v4056 = vpop.f32.mrf.mxu0
    %v4057 = vadd.f32 %v4024, %v4056
    %v4058 = vpop.f32.mrf.mxu0
    %v4059 = vadd.f32 %v4026, %v4058
    %4060 = vmatmul.bf16.gmra.mxu0 %v3317
    %v4061 = vpop.f32.mrf.mxu0
    %v4062 = vadd.f32 %v4029, %v4061
    %v4063 = vpop.f32.mrf.mxu0
    %v4064 = vadd.f32 %v4031, %v4063
    %4065 = vmatmul.bf16.gmra.mxu0 %v3323
    %v4066 = vpop.f32.mrf.mxu0
    %v4067 = vadd.f32 %v4034, %v4066
    %v4068 = vpop.f32.mrf.mxu0
    %4069 = vdwg.mxu0
    %4070 = vmatpush.bf16.msra.mxu0 %v3824
    %4071 = vmatpush.bf16.msra.mxu0 %v3822
    %4072 = vmatpush.bf16.msra.mxu0 %v3820
    %4073 = vmatpush.bf16.msra.mxu0 %v3818
    %4074 = vmatpush.bf16.msra.mxu0 %v3816
    %4075 = vmatpush.bf16.msra.mxu0 %v3814
    %4076 = vmatpush.bf16.msra.mxu0 %v3812
    %4077 = vmatpush.bf16.msra.mxu0 %v3810
    %4078 = vmatmul.bf16.gmra.mxu0 %v3336
    %v4079 = vpop.f32.mrf.mxu0
    %v4080 = vadd.f32 %v4047, %v4079
    %v4081 = vpop.f32.mrf.mxu0
    %v4082 = vadd.f32 %v4049, %v4081
    %4083 = vmatmul.bf16.gmra.mxu0 %v3341
    %v4084 = vpop.f32.mrf.mxu0
    %v4085 = vadd.f32 %v4052, %v4084
    %v4086 = vpop.f32.mrf.mxu0
    %v4087 = vadd.f32 %v4054, %v4086
    %4088 = vmatmul.bf16.gmra.mxu0 %v3345
    %v4089 = vpop.f32.mrf.mxu0
    %v4090 = vadd.f32 %v4057, %v4089
    %v4091 = vpop.f32.mrf.mxu0
    %v4092 = vadd.f32 %v4059, %v4091
    %4093 = vmatmul.bf16.gmra.mxu0 %v3349
    %v4094 = vpop.f32.mrf.mxu0
    %v4095 = vadd.f32 %v4062, %v4094
    %v4096 = vpop.f32.mrf.mxu0
    %v4097 = vadd.f32 %v4064, %v4096
    %4098 = vmatmul.bf16.gmra.mxu0 %v3348
    %v4099 = vpop.f32.mrf.mxu0
    %v4100 = vadd.f32 %v4067, %v4099
    %v4101 = vpop.f32.mrf.mxu0
    %4102 = vdwg.mxu0
    %4103 = vmatpush.bf16.msra.mxu0 %v3840
    %4104 = vmatpush.bf16.msra.mxu0 %v3838
    %4105 = vmatpush.bf16.msra.mxu0 %v3836
    %4106 = vmatpush.bf16.msra.mxu0 %v3834
    %4107 = vmatpush.bf16.msra.mxu0 %v3832
    %4108 = vmatpush.bf16.msra.mxu0 %v3830
    %4109 = vmatpush.bf16.msra.mxu0 %v3828
    %4110 = vmatpush.bf16.msra.mxu0 %v3826
    %4111 = vmatmul.bf16.gmra.mxu0 %v3339
    %v4112 = vpop.f32.mrf.mxu0
    %v4113 = vadd.f32 %v4080, %v4112
    %v4114 = vpop.f32.mrf.mxu0
    %v4115 = vadd.f32 %v4082, %v4114
    %4116 = vmatmul.bf16.gmra.mxu0 %v3343
    %v4117 = vpop.f32.mrf.mxu0
    %v4118 = vadd.f32 %v4085, %v4117
    %v4119 = vpop.f32.mrf.mxu0
    %v4120 = vadd.f32 %v4087, %v4119
    %4121 = vmatmul.bf16.gmra.mxu0 %v3347
    %v4122 = vpop.f32.mrf.mxu0
    %v4123 = vadd.f32 %v4090, %v4122
    %v4124 = vpop.f32.mrf.mxu0
    %v4125 = vadd.f32 %v4092, %v4124
    %4126 = vmatmul.bf16.gmra.mxu0 %v3351
    %v4127 = vpop.f32.mrf.mxu0
    %v4128 = vadd.f32 %v4095, %v4127
    %v4129 = vpop.f32.mrf.mxu0
    %v4130 = vadd.f32 %v4097, %v4129
    %4131 = vmatmul.bf16.gmra.mxu0 %v3350
    %v4132 = vpop.f32.mrf.mxu0
    %v4133 = vadd.f32 %v4100, %v4132
    %v4134 = vpop.f32.mrf.mxu0
    %4135 = vdwg.mxu0
    %4136 = vmatpush.bf16.msra.mxu0 %v3761
    %4137 = vmatpush.bf16.msra.mxu0 %v3759
    %4138 = vmatpush.bf16.msra.mxu0 %v3757
    %4139 = vmatpush.bf16.msra.mxu0 %v3755
    %4140 = vmatpush.bf16.msra.mxu0 %v3753
    %4141 = vmatpush.bf16.msra.mxu0 %v3751
    %4142 = vmatpush.bf16.msra.mxu0 %v3749
    %4143 = vmatpush.bf16.msra.mxu0 %v3747
    %4144 = vmatmul.bf16.gmra.mxu0 %v3226
    %v4145 = vpop.f32.mrf.mxu0
    %v4146 = vadd.f32 0.0, %v4145
    %v4147 = vpop.f32.mrf.mxu0
    %v4148 = vadd.f32 0.0, %v4147
    %4149 = vmatmul.bf16.gmra.mxu0 %v3228
    %v4150 = vpop.f32.mrf.mxu0
    %v4151 = vadd.f32 0.0, %v4150
    %v4152 = vpop.f32.mrf.mxu0
    %v4153 = vadd.f32 0.0, %v4152
    %4154 = vmatmul.bf16.gmra.mxu0 %v3230
    %v4155 = vpop.f32.mrf.mxu0
    %v4156 = vadd.f32 0.0, %v4155
    %v4157 = vpop.f32.mrf.mxu0
    %v4158 = vadd.f32 0.0, %v4157
    %4159 = vmatmul.bf16.gmra.mxu0 %v3232
    %v4160 = vpop.f32.mrf.mxu0
    %v4161 = vadd.f32 0.0, %v4160
    %v4162 = vpop.f32.mrf.mxu0
    %v4163 = vadd.f32 0.0, %v4162
    %4164 = vmatmul.bf16.gmra.mxu0 %v3234
    %v4165 = vpop.f32.mrf.mxu0
    %v4166 = vadd.f32 0.0, %v4165
    %v4167 = vpop.f32.mrf.mxu0
    %4168 = vdwg.mxu0
    %4169 = vmatpush.bf16.msra.mxu0 %v3777
    %4170 = vmatpush.bf16.msra.mxu0 %v3775
    %4171 = vmatpush.bf16.msra.mxu0 %v3773
    %4172 = vmatpush.bf16.msra.mxu0 %v3771
    %4173 = vmatpush.bf16.msra.mxu0 %v3769
    %4174 = vmatpush.bf16.msra.mxu0 %v3767
    %4175 = vmatpush.bf16.msra.mxu0 %v3765
    %4176 = vmatpush.bf16.msra.mxu0 %v3763
    %4177 = vmatmul.bf16.gmra.mxu0 %v3227
    %v4178 = vpop.f32.mrf.mxu0
    %v4179 = vadd.f32 %v4146, %v4178
    %v4180 = vpop.f32.mrf.mxu0
    %v4181 = vadd.f32 %v4148, %v4180
    %4182 = vmatmul.bf16.gmra.mxu0 %v3229
    %v4183 = vpop.f32.mrf.mxu0
    %v4184 = vadd.f32 %v4151, %v4183
    %v4185 = vpop.f32.mrf.mxu0
    %v4186 = vadd.f32 %v4153, %v4185
    %4187 = vmatmul.bf16.gmra.mxu0 %v3231
    %v4188 = vpop.f32.mrf.mxu0
    %v4189 = vadd.f32 %v4156, %v4188
    %v4190 = vpop.f32.mrf.mxu0
    %v4191 = vadd.f32 %v4158, %v4190
    %4192 = vmatmul.bf16.gmra.mxu0 %v3233
    %v4193 = vpop.f32.mrf.mxu0
    %v4194 = vadd.f32 %v4161, %v4193
    %v4195 = vpop.f32.mrf.mxu0
    %v4196 = vadd.f32 %v4163, %v4195
    %4197 = vmatmul.bf16.gmra.mxu0 %v3235
    %v4198 = vpop.f32.mrf.mxu0
    %v4199 = vadd.f32 %v4166, %v4198
    %v4200 = vpop.f32.mrf.mxu0
    %4201 = vdwg.mxu0
    %4202 = vmatpush.bf16.msra.mxu0 %v3793
    %4203 = vmatpush.bf16.msra.mxu0 %v3791
    %4204 = vmatpush.bf16.msra.mxu0 %v3789
    %4205 = vmatpush.bf16.msra.mxu0 %v3787
    %4206 = vmatpush.bf16.msra.mxu0 %v3785
    %4207 = vmatpush.bf16.msra.mxu0 %v3783
    %4208 = vmatpush.bf16.msra.mxu0 %v3781
    %4209 = vmatpush.bf16.msra.mxu0 %v3779
    %4210 = vmatmul.bf16.gmra.mxu0 %v3257
    %v4211 = vpop.f32.mrf.mxu0
    %v4212 = vadd.f32 %v4179, %v4211
    %v4213 = vpop.f32.mrf.mxu0
    %v4214 = vadd.f32 %v4181, %v4213
    %4215 = vmatmul.bf16.gmra.mxu0 %v3277
    %v4216 = vpop.f32.mrf.mxu0
    %v4217 = vadd.f32 %v4184, %v4216
    %v4218 = vpop.f32.mrf.mxu0
    %v4219 = vadd.f32 %v4186, %v4218
    %4220 = vmatmul.bf16.gmra.mxu0 %v3293
    %v4221 = vpop.f32.mrf.mxu0
    %v4222 = vadd.f32 %v4189, %v4221
    %v4223 = vpop.f32.mrf.mxu0
    %v4224 = vadd.f32 %v4191, %v4223
    %4225 = vmatmul.bf16.gmra.mxu0 %v3309
    %v4226 = vpop.f32.mrf.mxu0
    %v4227 = vadd.f32 %v4194, %v4226
    %v4228 = vpop.f32.mrf.mxu0
    %v4229 = vadd.f32 %v4196, %v4228
    %4230 = vmatmul.bf16.gmra.mxu0 %v3320
    %v4231 = vpop.f32.mrf.mxu0
    %v4232 = vadd.f32 %v4199, %v4231
    %v4233 = vpop.f32.mrf.mxu0
    %4234 = vdwg.mxu0
    %4235 = vmatpush.bf16.msra.mxu0 %v3809
    %4236 = vmatpush.bf16.msra.mxu0 %v3807
    %4237 = vmatpush.bf16.msra.mxu0 %v3805
    %4238 = vmatpush.bf16.msra.mxu0 %v3803
    %4239 = vmatpush.bf16.msra.mxu0 %v3801
    %4240 = vmatpush.bf16.msra.mxu0 %v3799
    %4241 = vmatpush.bf16.msra.mxu0 %v3797
    %4242 = vmatpush.bf16.msra.mxu0 %v3795
    %4243 = vmatmul.bf16.gmra.mxu0 %v3269
    %v4244 = vpop.f32.mrf.mxu0
    %v4245 = vadd.f32 %v4212, %v4244
    %v4246 = vpop.f32.mrf.mxu0
    %v4247 = vadd.f32 %v4214, %v4246
    %4248 = vmatmul.bf16.gmra.mxu0 %v3285
    %v4249 = vpop.f32.mrf.mxu0
    %v4250 = vadd.f32 %v4217, %v4249
    %v4251 = vpop.f32.mrf.mxu0
    %v4252 = vadd.f32 %v4219, %v4251
    %4253 = vmatmul.bf16.gmra.mxu0 %v3301
    %v4254 = vpop.f32.mrf.mxu0
    %v4255 = vadd.f32 %v4222, %v4254
    %v4256 = vpop.f32.mrf.mxu0
    %v4257 = vadd.f32 %v4224, %v4256
    %4258 = vmatmul.bf16.gmra.mxu0 %v3317
    %v4259 = vpop.f32.mrf.mxu0
    %v4260 = vadd.f32 %v4227, %v4259
    %v4261 = vpop.f32.mrf.mxu0
    %v4262 = vadd.f32 %v4229, %v4261
    %4263 = vmatmul.bf16.gmra.mxu0 %v3323
    %v4264 = vpop.f32.mrf.mxu0
    %v4265 = vadd.f32 %v4232, %v4264
    %v4266 = vpop.f32.mrf.mxu0
    %4267 = vdwg.mxu0
    %4268 = vmatpush.bf16.msra.mxu0 %v3825
    %4269 = vmatpush.bf16.msra.mxu0 %v3823
    %4270 = vmatpush.bf16.msra.mxu0 %v3821
    %4271 = vmatpush.bf16.msra.mxu0 %v3819
    %4272 = vmatpush.bf16.msra.mxu0 %v3817
    %4273 = vmatpush.bf16.msra.mxu0 %v3815
    %4274 = vmatpush.bf16.msra.mxu0 %v3813
    %4275 = vmatpush.bf16.msra.mxu0 %v3811
    %4276 = vmatmul.bf16.gmra.mxu0 %v3336
    %v4277 = vpop.f32.mrf.mxu0
    %v4278 = vadd.f32 %v4245, %v4277
    %v4279 = vpop.f32.mrf.mxu0
    %v4280 = vadd.f32 %v4247, %v4279
    %4281 = vmatmul.bf16.gmra.mxu0 %v3341
    %v4282 = vpop.f32.mrf.mxu0
    %v4283 = vadd.f32 %v4250, %v4282
    %v4284 = vpop.f32.mrf.mxu0
    %v4285 = vadd.f32 %v4252, %v4284
    %4286 = vmatmul.bf16.gmra.mxu0 %v3345
    %v4287 = vpop.f32.mrf.mxu0
    %v4288 = vadd.f32 %v4255, %v4287
    %v4289 = vpop.f32.mrf.mxu0
    %v4290 = vadd.f32 %v4257, %v4289
    %4291 = vmatmul.bf16.gmra.mxu0 %v3349
    %v4292 = vpop.f32.mrf.mxu0
    %v4293 = vadd.f32 %v4260, %v4292
    %v4294 = vpop.f32.mrf.mxu0
    %v4295 = vadd.f32 %v4262, %v4294
    %4296 = vmatmul.bf16.gmra.mxu0 %v3348
    %v4297 = vpop.f32.mrf.mxu0
    %v4298 = vadd.f32 %v4265, %v4297
    %v4299 = vpop.f32.mrf.mxu0
    %4300 = vdwg.mxu0
    %4301 = vmatpush.bf16.msra.mxu0 %v3841
    %4302 = vmatpush.bf16.msra.mxu0 %v3839
    %4303 = vmatpush.bf16.msra.mxu0 %v3837
    %4304 = vmatpush.bf16.msra.mxu0 %v3835
    %4305 = vmatpush.bf16.msra.mxu0 %v3833
    %4306 = vmatpush.bf16.msra.mxu0 %v3831
    %4307 = vmatpush.bf16.msra.mxu0 %v3829
    %4308 = vmatpush.bf16.msra.mxu0 %v3827
    %4309 = vmatmul.bf16.gmra.mxu0 %v3339
    %v4310 = vpop.f32.mrf.mxu0
    %v4311 = vadd.f32 %v4278, %v4310
    %v4312 = vpop.f32.mrf.mxu0
    %v4313 = vadd.f32 %v4280, %v4312
    %4314 = vmatmul.bf16.gmra.mxu0 %v3343
    %v4315 = vpop.f32.mrf.mxu0
    %v4316 = vadd.f32 %v4283, %v4315
    %v4317 = vpop.f32.mrf.mxu0
    %v4318 = vadd.f32 %v4285, %v4317
    %4319 = vmatmul.bf16.gmra.mxu0 %v3347
    %v4320 = vpop.f32.mrf.mxu0
    %v4321 = vadd.f32 %v4288, %v4320
    %v4322 = vpop.f32.mrf.mxu0
    %v4323 = vadd.f32 %v4290, %v4322
    %4324 = vmatmul.bf16.gmra.mxu0 %v3351
    %v4325 = vpop.f32.mrf.mxu0
    %v4326 = vadd.f32 %v4293, %v4325
    %v4327 = vpop.f32.mrf.mxu0
    %v4328 = vadd.f32 %v4295, %v4327
    %4329 = vmatmul.bf16.gmra.mxu0 %v3350
    %v4330 = vpop.f32.mrf.mxu0
    %v4331 = vadd.f32 %v4298, %v4330
    %v4332 = vpop.f32.mrf.mxu0
    %4333 = vdwg.mxu0
    %v4334 = vmul.f32 %v4113, %v2685
    %v4335 = vmul.f32 %v4311, %v2685
    %v4336 = vmul.f32 %v4115, %v2686
    %v4337 = vmul.f32 %v4313, %v2686
    %v4338 = vmul.f32 %v4118, %v2687
    %v4339 = vmul.f32 %v4316, %v2687
    %v4340 = vmul.f32 %v4120, %v2688
    %v4341 = vmul.f32 %v4318, %v2688
    %v4342 = vmul.f32 %v4123, %v2689
    %v4343 = vmul.f32 %v4321, %v2689
    %v4344 = vmul.f32 %v4125, %v2690
    %v4345 = vmul.f32 %v4323, %v2690
    %v4346 = vmul.f32 %v4128, %v2691
    %v4347 = vmul.f32 %v4326, %v2691
    %v4348 = vmul.f32 %v4130, %v2692
    %v4349 = vmul.f32 %v4328, %v2692
    %v4350 = vmul.f32 %v4133, %v2693
    %v4351 = vmul.f32 %v4331, %v2693
    %v4352 = vadd.f32 %v4334, %v4336
    %v4353 = vadd.f32 %v4352, %v4338
    %v4354 = vadd.f32 %v4353, %v4340
    %v4355 = vadd.f32 %v4354, %v4342
    %v4356 = vadd.f32 %v4355, %v4344
    %v4357 = vadd.f32 %v4356, %v4346
    %v4358 = vadd.f32 %v4357, %v4348
    %v4359 = vsel %vm519, %v4350, 0.0
    %v4360 = vadd.f32 %v4358, %v4359
    %v4361 = vrot.slane %v4360, 4
    %v4362 = vadd.f32 %v4360, %v4361
    %v4363 = vrot.slane %v4362, 2
    %v4364 = vadd.f32 %v4362, %v4363
    %v4365 = vrot.slane %v4364, 1
    %v4366 = vadd.f32 %v4364, %v4365
    %v4367 = vadd.f32 %v4335, %v4337
    %v4368 = vadd.f32 %v4367, %v4339
    %v4369 = vadd.f32 %v4368, %v4341
    %v4370 = vadd.f32 %v4369, %v4343
    %v4371 = vadd.f32 %v4370, %v4345
    %v4372 = vadd.f32 %v4371, %v4347
    %v4373 = vadd.f32 %v4372, %v4349
    %v4374 = vsel %vm519, %v4351, 0.0
    %v4375 = vadd.f32 %v4373, %v4374
    %v4376 = vrot.slane %v4375, 4
    %v4377 = vadd.f32 %v4375, %v4376
    %v4378 = vrot.slane %v4377, 2
    %v4379 = vadd.f32 %v4377, %v4378
    %v4380 = vrot.slane %v4379, 1
    %v4381 = vadd.f32 %v4379, %v4380
    %v4382 = vmul.f32 %v4334, %v4113
    %v4383 = vmul.f32 %v4335, %v4311
    %v4384 = vmul.f32 %v4336, %v4115
    %v4385 = vmul.f32 %v4337, %v4313
    %v4386 = vmul.f32 %v4338, %v4118
    %v4387 = vmul.f32 %v4339, %v4316
    %v4388 = vmul.f32 %v4340, %v4120
    %v4389 = vmul.f32 %v4341, %v4318
    %v4390 = vmul.f32 %v4342, %v4123
    %v4391 = vmul.f32 %v4343, %v4321
    %v4392 = vmul.f32 %v4344, %v4125
    %v4393 = vmul.f32 %v4345, %v4323
    %v4394 = vmul.f32 %v4346, %v4128
    %v4395 = vmul.f32 %v4347, %v4326
    %v4396 = vmul.f32 %v4348, %v4130
    %v4397 = vmul.f32 %v4349, %v4328
    %v4398 = vmul.f32 %v4350, %v4133
    %v4399 = vmul.f32 %v4351, %v4331
    %v4400 = vadd.f32 %v4382, %v4384
    %v4401 = vadd.f32 %v4400, %v4386
    %v4402 = vadd.f32 %v4401, %v4388
    %v4403 = vadd.f32 %v4402, %v4390
    %v4404 = vadd.f32 %v4403, %v4392
    %v4405 = vadd.f32 %v4404, %v4394
    %v4406 = vadd.f32 %v4405, %v4396
    %v4407 = vsel %vm519, %v4398, 0.0
    %v4408 = vadd.f32 %v4406, %v4407
    %v4409 = vrot.slane %v4408, 4
    %v4410 = vadd.f32 %v4408, %v4409
    %v4411 = vrot.slane %v4410, 2
    %v4412 = vadd.f32 %v4410, %v4411
    %v4413 = vrot.slane %v4412, 1
    %v4414 = vadd.f32 %v4412, %v4413
    %v4415 = vadd.f32 %v4383, %v4385
    %v4416 = vadd.f32 %v4415, %v4387
    %v4417 = vadd.f32 %v4416, %v4389
    %v4418 = vadd.f32 %v4417, %v4391
    %v4419 = vadd.f32 %v4418, %v4393
    %v4420 = vadd.f32 %v4419, %v4395
    %v4421 = vadd.f32 %v4420, %v4397
    %v4422 = vsel %vm519, %v4399, 0.0
    %v4423 = vadd.f32 %v4421, %v4422
    %v4424 = vrot.slane %v4423, 4
    %v4425 = vadd.f32 %v4423, %v4424
    %v4426 = vrot.slane %v4425, 2
    %v4427 = vadd.f32 %v4425, %v4426
    %v4428 = vrot.slane %v4427, 1
    %v4429 = vadd.f32 %v4427, %v4428
    %4430 = vmatpush.xpose.msra.mxu0 0.0
    %4431 = vmatpush.xpose.msra.mxu0 0.0
    %4432 = vmatpush.xpose.msra.mxu0 0.0
    %4433 = vmatpush.xpose.msra.mxu0 0.0
    %4434 = vmatpush.xpose.msra.mxu0 0.0
    %4435 = vmatpush.xpose.msra.mxu0 0.0
    %4436 = vmatpush.xpose.msra.mxu0 0.0
    %4437 = vmatpush.xpose.msra.mxu0 0.0
    %4438 = vmatpush.xpose.msra.mxu0 0.0
    %4439 = vmatpush.xpose.msra.mxu0 0.0
    %4440 = vmatpush.xpose.msra.mxu0 0.0
    %4441 = vmatpush.xpose.msra.mxu0 0.0
    %4442 = vmatpush.xpose.msra.mxu0 0.0
    %4443 = vmatpush.xpose.msra.mxu0 0.0
    %4444 = vmatpush.xpose.msra.mxu0 0.0
    %4445 = vmatpush.xpose.msra.mxu0 %v2791
    %4446 = vmatmul.f32.gmra.mxu0 %v4366
    %v4447 = vpop.f32.mrf.mxu0
    %v4448 = vadd.f32 0.0, %v4447
    %4449 = vdwg.mxu0
    %4450 = vmatpush.xpose.msra.mxu0 0.0
    %4451 = vmatpush.xpose.msra.mxu0 0.0
    %4452 = vmatpush.xpose.msra.mxu0 0.0
    %4453 = vmatpush.xpose.msra.mxu0 0.0
    %4454 = vmatpush.xpose.msra.mxu0 0.0
    %4455 = vmatpush.xpose.msra.mxu0 0.0
    %4456 = vmatpush.xpose.msra.mxu0 0.0
    %4457 = vmatpush.xpose.msra.mxu0 0.0
    %4458 = vmatpush.xpose.msra.mxu0 0.0
    %4459 = vmatpush.xpose.msra.mxu0 0.0
    %4460 = vmatpush.xpose.msra.mxu0 0.0
    %4461 = vmatpush.xpose.msra.mxu0 0.0
    %4462 = vmatpush.xpose.msra.mxu0 0.0
    %4463 = vmatpush.xpose.msra.mxu0 0.0
    %4464 = vmatpush.xpose.msra.mxu0 0.0
    %4465 = vmatpush.xpose.msra.mxu0 %v2792
    %4466 = vmatmul.f32.gmra.mxu0 %v4381
    %v4467 = vpop.f32.mrf.mxu0
    %v4468 = vadd.f32 %v4448, %v4467
    %4469 = vdwg.mxu0
    %v4470 = vmul.f32 %v4468, 0.00048828125
    %4471 = vmatpush.xpose.msra.mxu0 0.0
    %4472 = vmatpush.xpose.msra.mxu0 0.0
    %4473 = vmatpush.xpose.msra.mxu0 0.0
    %4474 = vmatpush.xpose.msra.mxu0 0.0
    %4475 = vmatpush.xpose.msra.mxu0 0.0
    %4476 = vmatpush.xpose.msra.mxu0 0.0
    %4477 = vmatpush.xpose.msra.mxu0 0.0
    %4478 = vmatpush.xpose.msra.mxu0 0.0
    %4479 = vmatpush.xpose.msra.mxu0 0.0
    %4480 = vmatpush.xpose.msra.mxu0 0.0
    %4481 = vmatpush.xpose.msra.mxu0 0.0
    %4482 = vmatpush.xpose.msra.mxu0 0.0
    %4483 = vmatpush.xpose.msra.mxu0 0.0
    %4484 = vmatpush.xpose.msra.mxu0 0.0
    %4485 = vmatpush.xpose.msra.mxu0 0.0
    %4486 = vmatpush.xpose.msra.mxu0 %v2791
    %4487 = vmatmul.f32.gmra.mxu0 %v4414
    %v4488 = vpop.f32.mrf.mxu0
    %v4489 = vadd.f32 0.0, %v4488
    %4490 = vdwg.mxu0
    %4491 = vmatpush.xpose.msra.mxu0 0.0
    %4492 = vmatpush.xpose.msra.mxu0 0.0
    %4493 = vmatpush.xpose.msra.mxu0 0.0
    %4494 = vmatpush.xpose.msra.mxu0 0.0
    %4495 = vmatpush.xpose.msra.mxu0 0.0
    %4496 = vmatpush.xpose.msra.mxu0 0.0
    %4497 = vmatpush.xpose.msra.mxu0 0.0
    %4498 = vmatpush.xpose.msra.mxu0 0.0
    %4499 = vmatpush.xpose.msra.mxu0 0.0
    %4500 = vmatpush.xpose.msra.mxu0 0.0
    %4501 = vmatpush.xpose.msra.mxu0 0.0
    %4502 = vmatpush.xpose.msra.mxu0 0.0
    %4503 = vmatpush.xpose.msra.mxu0 0.0
    %4504 = vmatpush.xpose.msra.mxu0 0.0
    %4505 = vmatpush.xpose.msra.mxu0 0.0
    %4506 = vmatpush.xpose.msra.mxu0 %v2792
    %4507 = vmatmul.f32.gmra.mxu0 %v4429
    %v4508 = vpop.f32.mrf.mxu0
    %v4509 = vadd.f32 %v4489, %v4508
    %4510 = vdwg.mxu0
    %v4511 = vmul.f32 %v4509, 0.00048828125
    %v4512 = vmul.f32 %v4470, %v4470
    %v4513 = vsub.f32 %v4511, %v4512
    %v4514 = vmax.f32 %v4513, 0.0
    %s4515 = scalar_lea.vmem [#allocation19], 6
    %v4516 = vld [vmem:[%s4515] sm:$0x3]
    %v4517 = vadd.f32 %v4514, 1e-05
    %v4518 = vrsqrt.pop %v4517
    %v4519 = vmul.f32 %v4518, %v4517
    %v4520 = vmul.f32 %v4519, %v4518
    %v4521 = vmul.f32 0.5, %v4520
    %v4522 = vsub.f32 1.5, %v4521
    %v4523 = vmul.f32 %v4518, %v4522
    %vm4524 = vweird.f32 %v4517
    %vm4525 = vweird.f32 %v4518
    %vm4526 = vmor %vm4524, %vm4525
    %v4527 = vsel %vm4526, %v4518, %v4523
    %v4528 = vmul.f32 %v4516, %v4527
    %v4529 = vmul.f32 %v4470, %v4528
    %v4531 = vrot.slane %v4529, 7
    %v4533 = vsub.f32 %v4516, %v4531
    %v4535 = vsel %vm608, %v4528, 0
    %4537 = vmatpush.msra.mxu0 0.0
    %4538 = vmatpush.msra.mxu0 0.0
    %4539 = vmatpush.msra.mxu0 0.0
    %4540 = vmatpush.msra.mxu0 0.0
    %4541 = vmatpush.msra.mxu0 0.0
    %4542 = vmatpush.msra.mxu0 0.0
    %4543 = vmatpush.msra.mxu0 0.0
    %4544 = vmatpush.msra.mxu0 0.0
    %4545 = vmatpush.msra.mxu0 0.0
    %4546 = vmatpush.msra.mxu0 0.0
    %4547 = vmatpush.msra.mxu0 0.0
    %4548 = vmatpush.msra.mxu0 0.0
    %4549 = vmatpush.msra.mxu0 0.0
    %4550 = vmatpush.msra.mxu0 0.0
    %4551 = vmatpush.msra.mxu0 0.0
    %4552 = vmatpush.msra.mxu0 %v2791
    %4553 = vmatmul.f32.gmra.mxu0 %v4535
    %v4554 = vpop.f32.mrf.mxu0
    %v4555 = vadd.f32 0.0, %v4554
    %4556 = vdwg.mxu0
    %4557 = vmatpush.msra.mxu0 0.0
    %4558 = vmatpush.msra.mxu0 0.0
    %4559 = vmatpush.msra.mxu0 0.0
    %4560 = vmatpush.msra.mxu0 0.0
    %4561 = vmatpush.msra.mxu0 0.0
    %4562 = vmatpush.msra.mxu0 0.0
    %4563 = vmatpush.msra.mxu0 0.0
    %4564 = vmatpush.msra.mxu0 0.0
    %4565 = vmatpush.msra.mxu0 0.0
    %4566 = vmatpush.msra.mxu0 0.0
    %4567 = vmatpush.msra.mxu0 0.0
    %4568 = vmatpush.msra.mxu0 0.0
    %4569 = vmatpush.msra.mxu0 0.0
    %4570 = vmatpush.msra.mxu0 0.0
    %4571 = vmatpush.msra.mxu0 0.0
    %4572 = vmatpush.msra.mxu0 %v2792
    %4573 = vmatmul.f32.gmra.mxu0 %v4535
    %v4574 = vpop.f32.mrf.mxu0
    %v4575 = vadd.f32 0.0, %v4574
    %4576 = vdwg.mxu0
    %v4578 = vrot.slane %v4533, 1
    %v4579 = vsel %vm608, %v4578, 0
    %4581 = vmatpush.msra.mxu0 0.0
    %4582 = vmatpush.msra.mxu0 0.0
    %4583 = vmatpush.msra.mxu0 0.0
    %4584 = vmatpush.msra.mxu0 0.0
    %4585 = vmatpush.msra.mxu0 0.0
    %4586 = vmatpush.msra.mxu0 0.0
    %4587 = vmatpush.msra.mxu0 0.0
    %4588 = vmatpush.msra.mxu0 0.0
    %4589 = vmatpush.msra.mxu0 0.0
    %4590 = vmatpush.msra.mxu0 0.0
    %4591 = vmatpush.msra.mxu0 0.0
    %4592 = vmatpush.msra.mxu0 0.0
    %4593 = vmatpush.msra.mxu0 0.0
    %4594 = vmatpush.msra.mxu0 0.0
    %4595 = vmatpush.msra.mxu0 0.0
    %4596 = vmatpush.msra.mxu0 %v2791
    %4597 = vmatmul.f32.gmra.mxu0 %v4579
    %v4598 = vpop.f32.mrf.mxu0
    %v4599 = vadd.f32 0.0, %v4598
    %4600 = vdwg.mxu0
    %4601 = vmatpush.msra.mxu0 0.0
    %4602 = vmatpush.msra.mxu0 0.0
    %4603 = vmatpush.msra.mxu0 0.0
    %4604 = vmatpush.msra.mxu0 0.0
    %4605 = vmatpush.msra.mxu0 0.0
    %4606 = vmatpush.msra.mxu0 0.0
    %4607 = vmatpush.msra.mxu0 0.0
    %4608 = vmatpush.msra.mxu0 0.0
    %4609 = vmatpush.msra.mxu0 0.0
    %4610 = vmatpush.msra.mxu0 0.0
    %4611 = vmatpush.msra.mxu0 0.0
    %4612 = vmatpush.msra.mxu0 0.0
    %4613 = vmatpush.msra.mxu0 0.0
    %4614 = vmatpush.msra.mxu0 0.0
    %4615 = vmatpush.msra.mxu0 0.0
    %4616 = vmatpush.msra.mxu0 %v2792
    %4617 = vmatmul.f32.gmra.mxu0 %v4579
    %v4618 = vpop.f32.mrf.mxu0
    %v4619 = vadd.f32 0.0, %v4618
    %4620 = vdwg.mxu0
    %v4621 = vperm.slane %v4555, 0
    %v4622 = vperm.slane %v4575, 0
    %v4623 = vmul.f32 %v4113, %v4621
    %v4624 = vmul.f32 %v4311, %v4622
    %v4625 = vmul.f32 %v4115, %v4621
    %v4626 = vmul.f32 %v4313, %v4622
    %v4627 = vmul.f32 %v4118, %v4621
    %v4628 = vmul.f32 %v4316, %v4622
    %v4629 = vmul.f32 %v4120, %v4621
    %v4630 = vmul.f32 %v4318, %v4622
    %v4631 = vmul.f32 %v4123, %v4621
    %v4632 = vmul.f32 %v4321, %v4622
    %v4633 = vmul.f32 %v4125, %v4621
    %v4634 = vmul.f32 %v4323, %v4622
    %v4635 = vmul.f32 %v4128, %v4621
    %v4636 = vmul.f32 %v4326, %v4622
    %v4637 = vmul.f32 %v4130, %v4621
    %v4638 = vmul.f32 %v4328, %v4622
    %v4639 = vmul.f32 %v4133, %v4621
    %v4640 = vmul.f32 %v4331, %v4622
    %v4641 = vperm.slane %v4599, 0
    %v4642 = vperm.slane %v4619, 0
    %v4643 = vadd.f32 %v4623, %v4641
    %v4644 = vadd.f32 %v4624, %v4642
    %v4645 = vadd.f32 %v4625, %v4641
    %v4646 = vadd.f32 %v4626, %v4642
    %v4647 = vadd.f32 %v4627, %v4641
    %v4648 = vadd.f32 %v4628, %v4642
    %v4649 = vadd.f32 %v4629, %v4641
    %v4650 = vadd.f32 %v4630, %v4642
    %v4651 = vadd.f32 %v4631, %v4641
    %v4652 = vadd.f32 %v4632, %v4642
    %v4653 = vadd.f32 %v4633, %v4641
    %v4654 = vadd.f32 %v4634, %v4642
    %v4655 = vadd.f32 %v4635, %v4641
    %v4656 = vadd.f32 %v4636, %v4642
    %v4657 = vadd.f32 %v4637, %v4641
    %v4658 = vadd.f32 %v4638, %v4642
    %v4659 = vadd.f32 %v4639, %v4641
    %v4660 = vadd.f32 %v4640, %v4642
    %v4661 = vmul.f32 %v4643, 0.2
    %v4662 = vmul.f32 %v4644, 0.2
    %v4663 = vmul.f32 %v4645, 0.2
    %v4664 = vmul.f32 %v4646, 0.2
    %v4665 = vmul.f32 %v4647, 0.2
    %v4666 = vmul.f32 %v4648, 0.2
    %v4667 = vmul.f32 %v4649, 0.2
    %v4668 = vmul.f32 %v4650, 0.2
    %v4669 = vmul.f32 %v4651, 0.2
    %v4670 = vmul.f32 %v4652, 0.2
    %v4671 = vmul.f32 %v4653, 0.2
    %v4672 = vmul.f32 %v4654, 0.2
    %v4673 = vmul.f32 %v4655, 0.2
    %v4674 = vmul.f32 %v4656, 0.2
    %v4675 = vmul.f32 %v4657, 0.2
    %v4676 = vmul.f32 %v4658, 0.2
    %v4677 = vmul.f32 %v4659, 0.2
    %v4678 = vmul.f32 %v4660, 0.2
    %v4679 = vmax.f32 %v4643, %v4661
    %v4680 = vmax.f32 %v4644, %v4662
    %v4681 = vmax.f32 %v4645, %v4663
    %v4682 = vmax.f32 %v4646, %v4664
    %v4683 = vmax.f32 %v4647, %v4665
    %v4684 = vmax.f32 %v4648, %v4666
    %v4685 = vmax.f32 %v4649, %v4667
    %v4686 = vmax.f32 %v4650, %v4668
    %v4687 = vmax.f32 %v4651, %v4669
    %v4688 = vmax.f32 %v4652, %v4670
    %v4689 = vmax.f32 %v4653, %v4671
    %v4690 = vmax.f32 %v4654, %v4672
    %v4691 = vmax.f32 %v4655, %v4673
    %v4692 = vmax.f32 %v4656, %v4674
    %v4693 = vmax.f32 %v4657, %v4675
    %v4694 = vmax.f32 %v4658, %v4676
    %v4695 = vmax.f32 %v4659, %v4677
    %v4696 = vmax.f32 %v4660, %v4678
    %v4697 = vld [vmem:[#allocation12] sm:$0xf]
    %v4698 = vld [vmem:[#allocation12 + $0x4] sm:$0xf]
    %v4699 = vld [vmem:[#allocation12 + $0x8] sm:$0xf]
    %v4700 = vld [vmem:[#allocation12 + $0xc] sm:$0xf]
    %v4701 = vld [vmem:[#allocation12 + $0x10] sm:$0xf]
    %v4702 = vld [vmem:[#allocation12 + $0x14] sm:$0xf]
    %v4703 = vld [vmem:[#allocation12 + $0x18] sm:$0xf]
    %v4704 = vld [vmem:[#allocation12 + $0x1c] sm:$0xf]
    %v4705 = vld [vmem:[#allocation12 + $0x20] sm:$0xf]
    %v4706 = vld [vmem:[#allocation12 + $0x24] sm:$0xf]
    %v4707 = vld [vmem:[#allocation12 + $0x28] sm:$0xf]
    %v4708 = vld [vmem:[#allocation12 + $0x2c] sm:$0xf]
    %v4709 = vld [vmem:[#allocation12 + $0x30] sm:$0xf]
    %v4710 = vld [vmem:[#allocation12 + $0x34] sm:$0xf]
    %v4711 = vld [vmem:[#allocation12 + $0x38] sm:$0xf]
    %v4712 = vld [vmem:[#allocation12 + $0x3c] sm:$0xf]
    %v4713 = vld [vmem:[#allocation12 + $0x40] sm:$0x3]
    %v4714 = vld [vmem:[#allocation13] sm:$0xff]
    %v4715 = vld [vmem:[#allocation13 + $0x8] sm:$0xff]
    %v4716 = vld [vmem:[#allocation13 + $0x10] sm:$0xff]
    %v4717 = vld [vmem:[#allocation13 + $0x18] sm:$0xff]
    %v4718 = vld [vmem:[#allocation13 + $0x20] sm:$0xff]
    %v4719 = vld [vmem:[#allocation13 + $0x28] sm:$0xff]
    %v4720 = vld [vmem:[#allocation13 + $0x30] sm:$0xff]
    %v4721 = vld [vmem:[#allocation13 + $0x38] sm:$0xff]
    %v4722 = vld [vmem:[#allocation13 + $0x40] sm:$0xff]
    %v4723 = vld [vmem:[#allocation13 + $0x48] sm:$0xff]
    %v4724 = vld [vmem:[#allocation13 + $0x50] sm:$0xff]
    %v4725 = vld [vmem:[#allocation13 + $0x58] sm:$0xff]
    %v4726 = vld [vmem:[#allocation13 + $0x60] sm:$0xff]
    %v4727 = vld [vmem:[#allocation13 + $0x68] sm:$0xff]
    %v4728 = vld [vmem:[#allocation13 + $0x70] sm:$0xff]
    %v4729 = vld [vmem:[#allocation13 + $0x78] sm:$0xff]
    %v4730 = vld [vmem:[#allocation13 + $0x80] sm:$0xff]
    %v4731 = vld [vmem:[#allocation13 + $0x88] sm:$0xff]
    %v4732 = vld [vmem:[#allocation13 + $0x90] sm:$0xff]
    %v4733 = vld [vmem:[#allocation13 + $0x98] sm:$0xff]
    %v4734 = vld [vmem:[#allocation13 + $0xa0] sm:$0xff]
    %v4735 = vld [vmem:[#allocation13 + $0xa8] sm:$0xff]
    %v4736 = vld [vmem:[#allocation13 + $0xb0] sm:$0xff]
    %v4737 = vld [vmem:[#allocation13 + $0xb8] sm:$0xff]
    %v4738 = vld [vmem:[#allocation13 + $0xc0] sm:$0xff]
    %v4739 = vld [vmem:[#allocation13 + $0xc8] sm:$0xff]
    %v4740 = vld [vmem:[#allocation13 + $0xd0] sm:$0xff]
    %v4741 = vld [vmem:[#allocation13 + $0xd8] sm:$0xff]
    %v4742 = vld [vmem:[#allocation13 + $0xe0] sm:$0xff]
    %v4743 = vld [vmem:[#allocation13 + $0xe8] sm:$0xff]
    %v4744 = vld [vmem:[#allocation13 + $0xf0] sm:$0xff]
    %v4745 = vld [vmem:[#allocation13 + $0xf8] sm:$0xff]
    %v4746 = vld [vmem:[#allocation13 + $0x100] sm:$0xff]
    %v4747 = vld [vmem:[#allocation13 + $0x108] sm:$0xff]
    %v4748 = vld [vmem:[#allocation13 + $0x110] sm:$0xff]
    %v4749 = vld [vmem:[#allocation13 + $0x118] sm:$0xff]
    %v4750 = vld [vmem:[#allocation13 + $0x120] sm:$0xff]
    %v4751 = vld [vmem:[#allocation13 + $0x128] sm:$0xff]
    %v4752 = vld [vmem:[#allocation13 + $0x130] sm:$0xff]
    %v4753 = vld [vmem:[#allocation13 + $0x138] sm:$0xff]
    %v4754 = vld [vmem:[#allocation13 + $0x140] sm:$0xff]
    %v4755 = vld [vmem:[#allocation13 + $0x148] sm:$0xff]
    %v4756 = vld [vmem:[#allocation13 + $0x150] sm:$0xff]
    %v4757 = vld [vmem:[#allocation13 + $0x158] sm:$0xff]
    %v4758 = vld [vmem:[#allocation13 + $0x160] sm:$0xff]
    %v4759 = vld [vmem:[#allocation13 + $0x168] sm:$0xff]
    %v4760 = vld [vmem:[#allocation13 + $0x170] sm:$0xff]
    %v4761 = vld [vmem:[#allocation13 + $0x178] sm:$0xff]
    %v4762 = vld [vmem:[#allocation13 + $0x180] sm:$0xff]
    %v4763 = vld [vmem:[#allocation13 + $0x188] sm:$0xff]
    %v4764 = vld [vmem:[#allocation13 + $0x190] sm:$0xff]
    %v4765 = vld [vmem:[#allocation13 + $0x198] sm:$0xff]
    %v4766 = vld [vmem:[#allocation13 + $0x1a0] sm:$0xff]
    %v4767 = vld [vmem:[#allocation13 + $0x1a8] sm:$0xff]
    %v4768 = vld [vmem:[#allocation13 + $0x1b0] sm:$0xff]
    %v4769 = vld [vmem:[#allocation13 + $0x1b8] sm:$0xff]
    %v4770 = vld [vmem:[#allocation13 + $0x1c0] sm:$0xff]
    %v4771 = vld [vmem:[#allocation13 + $0x1c8] sm:$0xff]
    %v4772 = vld [vmem:[#allocation13 + $0x1d0] sm:$0xff]
    %v4773 = vld [vmem:[#allocation13 + $0x1d8] sm:$0xff]
    %v4774 = vld [vmem:[#allocation13 + $0x1e0] sm:$0xff]
    %v4775 = vld [vmem:[#allocation13 + $0x1e8] sm:$0xff]
    %v4776 = vld [vmem:[#allocation13 + $0x1f0] sm:$0xff]
    %v4777 = vld [vmem:[#allocation13 + $0x1f8] sm:$0xff]
    %v4778 = vpack.c.bf16 %v4681, %v4679
    %v4779 = vpack.c.bf16 %v4682, %v4680
    %v4780 = vpack.c.bf16 %v4685, %v4683
    %v4781 = vpack.c.bf16 %v4686, %v4684
    %v4782 = vpack.c.bf16 %v4689, %v4687
    %v4783 = vpack.c.bf16 %v4690, %v4688
    %v4784 = vpack.c.bf16 %v4693, %v4691
    %v4785 = vpack.c.bf16 %v4694, %v4692
    %v4786 = vpack.c.bf16 %v4695, %v4695
    %v4787 = vpack.c.bf16 %v4696, %v4696
    %v4805 = vunpack.c.l.b16 %v4697
    %v4806 = vunpack.c.l.b16 %v4698
    %v4807 = vunpack.c.l.b16 %v4699
    %v4808 = vunpack.c.l.b16 %v4700
    %v4809 = vunpack.c.l.b16 %v4701
    %v4810 = vunpack.c.l.b16 %v4702
    %v4811 = vunpack.c.l.b16 %v4703
    %v4812 = vunpack.c.l.b16 %v4704
    %v4813 = vunpack.c.l.b16 %v4705
    %v4814 = vunpack.c.l.b16 %v4706
    %v4815 = vunpack.c.l.b16 %v4707
    %v4816 = vunpack.c.l.b16 %v4708
    %v4817 = vunpack.c.l.b16 %v4709
    %v4818 = vunpack.c.l.b16 %v4710
    %v4819 = vunpack.c.l.b16 %v4711
    %v4820 = vunpack.c.l.b16 %v4712
    %v4821 = vunpack.c.l.b16 %v4713
    %v4822 = vpack.c.b16 %v4806, %v4805
    %v4823 = vpack.c.b16 %v4808, %v4807
    %v4824 = vpack.c.b16 %v4810, %v4809
    %v4825 = vpack.c.b16 %v4812, %v4811
    %v4826 = vpack.c.b16 %v4814, %v4813
    %v4827 = vpack.c.b16 %v4816, %v4815
    %v4828 = vpack.c.b16 %v4818, %v4817
    %v4829 = vpack.c.b16 %v4820, %v4819
    %v4830 = vpack.c.b16 %v4821, %v4821
    %v4832 = vsel %vm3102, %v4822, 0
    %v4835 = vsel %vm3102, %v4823, 0
    %v4838 = vsel %vm3102, %v4824, 0
    %v4841 = vsel %vm3102, %v4825, 0
    %v4844 = vsel %vm3102, %v4826, 0
    %v4847 = vsel %vm3102, %v4827, 0
    %v4850 = vsel %vm3102, %v4828, 0
    %v4853 = vsel %vm3102, %v4829, 0
    %v4856 = vsel %vm3102, %v4830, 0
    %v4859 = vsel %vm709, %v4786, 0
    %v4862 = vsel %vm709, %v4787, 0
    %4864 = vmatpush.bf16.msra.mxu0 0
    %4865 = vmatpush.bf16.msra.mxu0 0
    %4866 = vmatpush.bf16.msra.mxu0 0
    %4867 = vmatpush.bf16.msra.mxu0 %v4859
    %4868 = vmatpush.bf16.msra.mxu0 %v4784
    %4869 = vmatpush.bf16.msra.mxu0 %v4782
    %4870 = vmatpush.bf16.msra.mxu0 %v4780
    %4871 = vmatpush.bf16.msra.mxu0 %v4778
    %4872 = vmatmul.bf16.gmra.mxu0 %v4832
    %v4873 = vpop.f32.mrf.mxu0
    %v4874 = vadd.f32 0.0, %v4873
    %v4875 = vpop.f32.mrf.mxu0
    %v4876 = vadd.f32 0.0, %v4875
    %4877 = vmatmul.bf16.gmra.mxu0 %v4835
    %v4878 = vpop.f32.mrf.mxu0
    %v4879 = vadd.f32 0.0, %v4878
    %v4880 = vpop.f32.mrf.mxu0
    %v4881 = vadd.f32 0.0, %v4880
    %4882 = vmatmul.bf16.gmra.mxu0 %v4838
    %v4883 = vpop.f32.mrf.mxu0
    %v4884 = vadd.f32 0.0, %v4883
    %v4885 = vpop.f32.mrf.mxu0
    %v4886 = vadd.f32 0.0, %v4885
    %4887 = vmatmul.bf16.gmra.mxu0 %v4841
    %v4888 = vpop.f32.mrf.mxu0
    %v4889 = vadd.f32 0.0, %v4888
    %v4890 = vpop.f32.mrf.mxu0
    %v4891 = vadd.f32 0.0, %v4890
    %4892 = vmatmul.bf16.gmra.mxu0 %v4844
    %v4893 = vpop.f32.mrf.mxu0
    %v4894 = vadd.f32 0.0, %v4893
    %v4895 = vpop.f32.mrf.mxu0
    %v4896 = vadd.f32 0.0, %v4895
    %4897 = vmatmul.bf16.gmra.mxu0 %v4847
    %v4898 = vpop.f32.mrf.mxu0
    %v4899 = vadd.f32 0.0, %v4898
    %v4900 = vpop.f32.mrf.mxu0
    %v4901 = vadd.f32 0.0, %v4900
    %4902 = vmatmul.bf16.gmra.mxu0 %v4850
    %v4903 = vpop.f32.mrf.mxu0
    %v4904 = vadd.f32 0.0, %v4903
    %v4905 = vpop.f32.mrf.mxu0
    %v4906 = vadd.f32 0.0, %v4905
    %4907 = vmatmul.bf16.gmra.mxu0 %v4853
    %v4908 = vpop.f32.mrf.mxu0
    %v4909 = vadd.f32 0.0, %v4908
    %v4910 = vpop.f32.mrf.mxu0
    %v4911 = vadd.f32 0.0, %v4910
    %4912 = vmatmul.bf16.gmra.mxu0 %v4856
    %v4913 = vpop.f32.mrf.mxu0
    %v4914 = vadd.f32 0.0, %v4913
    %v4915 = vpop.f32.mrf.mxu0
    %4916 = vdwg.mxu0
    %4917 = vmatpush.bf16.msra.mxu0 0
    %4918 = vmatpush.bf16.msra.mxu0 0
    %4919 = vmatpush.bf16.msra.mxu0 0
    %4920 = vmatpush.bf16.msra.mxu0 %v4862
    %4921 = vmatpush.bf16.msra.mxu0 %v4785
    %4922 = vmatpush.bf16.msra.mxu0 %v4783
    %4923 = vmatpush.bf16.msra.mxu0 %v4781
    %4924 = vmatpush.bf16.msra.mxu0 %v4779
    %4925 = vmatmul.bf16.gmra.mxu0 %v4832
    %v4926 = vpop.f32.mrf.mxu0
    %v4927 = vadd.f32 0.0, %v4926
    %v4928 = vpop.f32.mrf.mxu0
    %v4929 = vadd.f32 0.0, %v4928
    %4930 = vmatmul.bf16.gmra.mxu0 %v4835
    %v4931 = vpop.f32.mrf.mxu0
    %v4932 = vadd.f32 0.0, %v4931
    %v4933 = vpop.f32.mrf.mxu0
    %v4934 = vadd.f32 0.0, %v4933
    %4935 = vmatmul.bf16.gmra.mxu0 %v4838
    %v4936 = vpop.f32.mrf.mxu0
    %v4937 = vadd.f32 0.0, %v4936
    %v4938 = vpop.f32.mrf.mxu0
    %v4939 = vadd.f32 0.0, %v4938
    %4940 = vmatmul.bf16.gmra.mxu0 %v4841
    %v4941 = vpop.f32.mrf.mxu0
    %v4942 = vadd.f32 0.0, %v4941
    %v4943 = vpop.f32.mrf.mxu0
    %v4944 = vadd.f32 0.0, %v4943
    %4945 = vmatmul.bf16.gmra.mxu0 %v4844
    %v4946 = vpop.f32.mrf.mxu0
    %v4947 = vadd.f32 0.0, %v4946
    %v4948 = vpop.f32.mrf.mxu0
    %v4949 = vadd.f32 0.0, %v4948
    %4950 = vmatmul.bf16.gmra.mxu0 %v4847
    %v4951 = vpop.f32.mrf.mxu0
    %v4952 = vadd.f32 0.0, %v4951
    %v4953 = vpop.f32.mrf.mxu0
    %v4954 = vadd.f32 0.0, %v4953
    %4955 = vmatmul.bf16.gmra.mxu0 %v4850
    %v4956 = vpop.f32.mrf.mxu0
    %v4957 = vadd.f32 0.0, %v4956
    %v4958 = vpop.f32.mrf.mxu0
    %v4959 = vadd.f32 0.0, %v4958
    %4960 = vmatmul.bf16.gmra.mxu0 %v4853
    %v4961 = vpop.f32.mrf.mxu0
    %v4962 = vadd.f32 0.0, %v4961
    %v4963 = vpop.f32.mrf.mxu0
    %v4964 = vadd.f32 0.0, %v4963
    %4965 = vmatmul.bf16.gmra.mxu0 %v4856
    %v4966 = vpop.f32.mrf.mxu0
    %v4967 = vadd.f32 0.0, %v4966
    %v4968 = vpop.f32.mrf.mxu0
    %4969 = vdwg.mxu0
    %v4970 = vpack.c.bf16 %v4876, %v4874
    %v4971 = vpack.c.bf16 %v4929, %v4927
    %v4972 = vpack.c.bf16 %v4881, %v4879
    %v4973 = vpack.c.bf16 %v4934, %v4932
    %v4974 = vpack.c.bf16 %v4886, %v4884
    %v4975 = vpack.c.bf16 %v4939, %v4937
    %v4976 = vpack.c.bf16 %v4891, %v4889
    %v4977 = vpack.c.bf16 %v4944, %v4942
    %v4978 = vpack.c.bf16 %v4896, %v4894
    %v4979 = vpack.c.bf16 %v4949, %v4947
    %v4980 = vpack.c.bf16 %v4901, %v4899
    %v4981 = vpack.c.bf16 %v4954, %v4952
    %v4982 = vpack.c.bf16 %v4906, %v4904
    %v4983 = vpack.c.bf16 %v4959, %v4957
    %v4984 = vpack.c.bf16 %v4911, %v4909
    %v4985 = vpack.c.bf16 %v4964, %v4962
    %v4986 = vpack.c.bf16 %v4914, %v4914
    %v4987 = vpack.c.bf16 %v4967, %v4967
    %v5052 = vunpack.c.l.b16 %v4714
    %v5053 = vunpack.c.h.b16 %v4714
    %v5054 = vunpack.c.l.b16 %v4715
    %v5055 = vunpack.c.h.b16 %v4715
    %v5056 = vunpack.c.l.b16 %v4716
    %v5057 = vunpack.c.h.b16 %v4716
    %v5058 = vunpack.c.l.b16 %v4717
    %v5059 = vunpack.c.h.b16 %v4717
    %v5060 = vunpack.c.l.b16 %v4718
    %v5061 = vunpack.c.h.b16 %v4718
    %v5062 = vunpack.c.l.b16 %v4719
    %v5063 = vunpack.c.h.b16 %v4719
    %v5064 = vunpack.c.l.b16 %v4720
    %v5065 = vunpack.c.h.b16 %v4720
    %v5066 = vunpack.c.l.b16 %v4721
    %v5067 = vunpack.c.h.b16 %v4721
    %v5068 = vunpack.c.l.b16 %v4722
    %v5069 = vunpack.c.h.b16 %v4722
    %v5070 = vunpack.c.l.b16 %v4723
    %v5071 = vunpack.c.h.b16 %v4723
    %v5072 = vunpack.c.l.b16 %v4724
    %v5073 = vunpack.c.h.b16 %v4724
    %v5074 = vunpack.c.l.b16 %v4725
    %v5075 = vunpack.c.h.b16 %v4725
    %v5076 = vunpack.c.l.b16 %v4726
    %v5077 = vunpack.c.h.b16 %v4726
    %v5078 = vunpack.c.l.b16 %v4727
    %v5079 = vunpack.c.h.b16 %v4727
    %v5080 = vunpack.c.l.b16 %v4728
    %v5081 = vunpack.c.h.b16 %v4728
    %v5082 = vunpack.c.l.b16 %v4729
    %v5083 = vunpack.c.h.b16 %v4729
    %v5084 = vunpack.c.l.b16 %v4730
    %v5085 = vunpack.c.h.b16 %v4730
    %v5086 = vunpack.c.l.b16 %v4731
    %v5087 = vunpack.c.h.b16 %v4731
    %v5088 = vunpack.c.l.b16 %v4732
    %v5089 = vunpack.c.h.b16 %v4732
    %v5090 = vunpack.c.l.b16 %v4733
    %v5091 = vunpack.c.h.b16 %v4733
    %v5092 = vunpack.c.l.b16 %v4734
    %v5093 = vunpack.c.h.b16 %v4734
    %v5094 = vunpack.c.l.b16 %v4735
    %v5095 = vunpack.c.h.b16 %v4735
    %v5096 = vunpack.c.l.b16 %v4736
    %v5097 = vunpack.c.h.b16 %v4736
    %v5098 = vunpack.c.l.b16 %v4737
    %v5099 = vunpack.c.h.b16 %v4737
    %v5100 = vunpack.c.l.b16 %v4738
    %v5101 = vunpack.c.h.b16 %v4738
    %v5102 = vunpack.c.l.b16 %v4739
    %v5103 = vunpack.c.h.b16 %v4739
    %v5104 = vunpack.c.l.b16 %v4740
    %v5105 = vunpack.c.h.b16 %v4740
    %v5106 = vunpack.c.l.b16 %v4741
    %v5107 = vunpack.c.h.b16 %v4741
    %v5108 = vunpack.c.l.b16 %v4742
    %v5109 = vunpack.c.h.b16 %v4742
    %v5110 = vunpack.c.l.b16 %v4743
    %v5111 = vunpack.c.h.b16 %v4743
    %v5112 = vunpack.c.l.b16 %v4744
    %v5113 = vunpack.c.h.b16 %v4744
    %v5114 = vunpack.c.l.b16 %v4745
    %v5115 = vunpack.c.h.b16 %v4745
    %v5116 = vunpack.c.l.b16 %v4746
    %v5117 = vunpack.c.h.b16 %v4746
    %v5118 = vunpack.c.l.b16 %v4747
    %v5119 = vunpack.c.h.b16 %v4747
    %v5120 = vunpack.c.l.b16 %v4748
    %v5121 = vunpack.c.h.b16 %v4748
    %v5122 = vunpack.c.l.b16 %v4749
    %v5123 = vunpack.c.h.b16 %v4749
    %v5124 = vunpack.c.l.b16 %v4750
    %v5125 = vunpack.c.h.b16 %v4750
    %v5126 = vunpack.c.l.b16 %v4751
    %v5127 = vunpack.c.h.b16 %v4751
    %v5128 = vunpack.c.l.b16 %v4752
    %v5129 = vunpack.c.h.b16 %v4752
    %v5130 = vunpack.c.l.b16 %v4753
    %v5131 = vunpack.c.h.b16 %v4753
    %v5132 = vunpack.c.l.b16 %v4754
    %v5133 = vunpack.c.h.b16 %v4754
    %v5134 = vunpack.c.l.b16 %v4755
    %v5135 = vunpack.c.h.b16 %v4755
    %v5136 = vunpack.c.l.b16 %v4756
    %v5137 = vunpack.c.h.b16 %v4756
    %v5138 = vunpack.c.l.b16 %v4757
    %v5139 = vunpack.c.h.b16 %v4757
    %v5140 = vunpack.c.l.b16 %v4758
    %v5141 = vunpack.c.h.b16 %v4758
    %v5142 = vunpack.c.l.b16 %v4759
    %v5143 = vunpack.c.h.b16 %v4759
    %v5144 = vunpack.c.l.b16 %v4760
    %v5145 = vunpack.c.h.b16 %v4760
    %v5146 = vunpack.c.l.b16 %v4761
    %v5147 = vunpack.c.h.b16 %v4761
    %v5148 = vunpack.c.l.b16 %v4762
    %v5149 = vunpack.c.h.b16 %v4762
    %v5150 = vunpack.c.l.b16 %v4763
    %v5151 = vunpack.c.h.b16 %v4763
    %v5152 = vunpack.c.l.b16 %v4764
    %v5153 = vunpack.c.h.b16 %v4764
    %v5154 = vunpack.c.l.b16 %v4765
    %v5155 = vunpack.c.h.b16 %v4765
    %v5156 = vunpack.c.l.b16 %v4766
    %v5157 = vunpack.c.h.b16 %v4766
    %v5158 = vunpack.c.l.b16 %v4767
    %v5159 = vunpack.c.h.b16 %v4767
    %v5160 = vunpack.c.l.b16 %v4768
    %v5161 = vunpack.c.h.b16 %v4768
    %v5162 = vunpack.c.l.b16 %v4769
    %v5163 = vunpack.c.h.b16 %v4769
    %v5164 = vunpack.c.l.b16 %v4770
    %v5165 = vunpack.c.h.b16 %v4770
    %v5166 = vunpack.c.l.b16 %v4771
    %v5167 = vunpack.c.h.b16 %v4771
    %v5168 = vunpack.c.l.b16 %v4772
    %v5169 = vunpack.c.h.b16 %v4772
    %v5170 = vunpack.c.l.b16 %v4773
    %v5171 = vunpack.c.h.b16 %v4773
    %v5172 = vunpack.c.l.b16 %v4774
    %v5173 = vunpack.c.h.b16 %v4774
    %v5174 = vunpack.c.l.b16 %v4775
    %v5175 = vunpack.c.h.b16 %v4775
    %v5176 = vunpack.c.l.b16 %v4776
    %v5177 = vunpack.c.h.b16 %v4776
    %v5178 = vunpack.c.l.b16 %v4777
    %v5179 = vunpack.c.h.b16 %v4777
    %v5180 = vpack.c.b16 %v5056, %v5052
    %v5181 = vpack.c.b16 %v5057, %v5053
    %v5182 = vpack.c.b16 %v5058, %v5054
    %v5183 = vpack.c.b16 %v5059, %v5055
    %v5184 = vpack.c.b16 %v5064, %v5060
    %v5185 = vpack.c.b16 %v5065, %v5061
    %v5186 = vpack.c.b16 %v5066, %v5062
    %v5187 = vpack.c.b16 %v5067, %v5063
    %v5188 = vpack.c.b16 %v5072, %v5068
    %v5189 = vpack.c.b16 %v5073, %v5069
    %v5190 = vpack.c.b16 %v5074, %v5070
    %v5191 = vpack.c.b16 %v5075, %v5071
    %v5192 = vpack.c.b16 %v5080, %v5076
    %v5193 = vpack.c.b16 %v5081, %v5077
    %v5194 = vpack.c.b16 %v5082, %v5078
    %v5195 = vpack.c.b16 %v5083, %v5079
    %v5196 = vpack.c.b16 %v5088, %v5084
    %v5197 = vpack.c.b16 %v5089, %v5085
    %v5198 = vpack.c.b16 %v5090, %v5086
    %v5199 = vpack.c.b16 %v5091, %v5087
    %v5200 = vpack.c.b16 %v5096, %v5092
    %v5201 = vpack.c.b16 %v5097, %v5093
    %v5202 = vpack.c.b16 %v5098, %v5094
    %v5203 = vpack.c.b16 %v5099, %v5095
    %v5204 = vpack.c.b16 %v5104, %v5100
    %v5205 = vpack.c.b16 %v5105, %v5101
    %v5206 = vpack.c.b16 %v5106, %v5102
    %v5207 = vpack.c.b16 %v5107, %v5103
    %v5208 = vpack.c.b16 %v5112, %v5108
    %v5209 = vpack.c.b16 %v5113, %v5109
    %v5210 = vpack.c.b16 %v5114, %v5110
    %v5211 = vpack.c.b16 %v5115, %v5111
    %v5212 = vpack.c.b16 %v5120, %v5116
    %v5213 = vpack.c.b16 %v5121, %v5117
    %v5214 = vpack.c.b16 %v5122, %v5118
    %v5215 = vpack.c.b16 %v5123, %v5119
    %v5216 = vpack.c.b16 %v5128, %v5124
    %v5217 = vpack.c.b16 %v5129, %v5125
    %v5218 = vpack.c.b16 %v5130, %v5126
    %v5219 = vpack.c.b16 %v5131, %v5127
    %v5220 = vpack.c.b16 %v5136, %v5132
    %v5221 = vpack.c.b16 %v5137, %v5133
    %v5222 = vpack.c.b16 %v5138, %v5134
    %v5223 = vpack.c.b16 %v5139, %v5135
    %v5224 = vpack.c.b16 %v5144, %v5140
    %v5225 = vpack.c.b16 %v5145, %v5141
    %v5226 = vpack.c.b16 %v5146, %v5142
    %v5227 = vpack.c.b16 %v5147, %v5143
    %v5228 = vpack.c.b16 %v5152, %v5148
    %v5229 = vpack.c.b16 %v5153, %v5149
    %v5230 = vpack.c.b16 %v5154, %v5150
    %v5231 = vpack.c.b16 %v5155, %v5151
    %v5232 = vpack.c.b16 %v5160, %v5156
    %v5233 = vpack.c.b16 %v5161, %v5157
    %v5234 = vpack.c.b16 %v5162, %v5158
    %v5235 = vpack.c.b16 %v5163, %v5159
    %v5236 = vpack.c.b16 %v5168, %v5164
    %v5237 = vpack.c.b16 %v5169, %v5165
    %v5238 = vpack.c.b16 %v5170, %v5166
    %v5239 = vpack.c.b16 %v5171, %v5167
    %v5240 = vpack.c.b16 %v5176, %v5172
    %v5241 = vpack.c.b16 %v5177, %v5173
    %v5242 = vpack.c.b16 %v5178, %v5174
    %v5243 = vpack.c.b16 %v5179, %v5175
    %5308 = vmatpush.bf16.msra.mxu0 %v5208
    %5309 = vmatpush.bf16.msra.mxu0 %v5204
    %5310 = vmatpush.bf16.msra.mxu0 %v5200
    %5311 = vmatpush.bf16.msra.mxu0 %v5196
    %5312 = vmatpush.bf16.msra.mxu0 %v5192
    %5313 = vmatpush.bf16.msra.mxu0 %v5188
    %5314 = vmatpush.bf16.msra.mxu0 %v5184
    %5315 = vmatpush.bf16.msra.mxu0 %v5180
    %5316 = vmatmul.bf16.gmra.mxu0 %v4970
    %v5317 = vpop.f32.mrf.mxu0
    %v5318 = vadd.f32 0.0, %v5317
    %v5319 = vpop.f32.mrf.mxu0
    %v5320 = vadd.f32 0.0, %v5319
    %5321 = vmatmul.bf16.gmra.mxu0 %v4972
    %v5322 = vpop.f32.mrf.mxu0
    %v5323 = vadd.f32 0.0, %v5322
    %v5324 = vpop.f32.mrf.mxu0
    %v5325 = vadd.f32 0.0, %v5324
    %5326 = vmatmul.bf16.gmra.mxu0 %v4974
    %v5327 = vpop.f32.mrf.mxu0
    %v5328 = vadd.f32 0.0, %v5327
    %v5329 = vpop.f32.mrf.mxu0
    %v5330 = vadd.f32 0.0, %v5329
    %5331 = vmatmul.bf16.gmra.mxu0 %v4976
    %v5332 = vpop.f32.mrf.mxu0
    %v5333 = vadd.f32 0.0, %v5332
    %v5334 = vpop.f32.mrf.mxu0
    %v5335 = vadd.f32 0.0, %v5334
    %5336 = vmatmul.bf16.gmra.mxu0 %v4978
    %v5337 = vpop.f32.mrf.mxu0
    %v5338 = vadd.f32 0.0, %v5337
    %v5339 = vpop.f32.mrf.mxu0
    %v5340 = vadd.f32 0.0, %v5339
    %5341 = vmatmul.bf16.gmra.mxu0 %v4980
    %v5342 = vpop.f32.mrf.mxu0
    %v5343 = vadd.f32 0.0, %v5342
    %v5344 = vpop.f32.mrf.mxu0
    %v5345 = vadd.f32 0.0, %v5344
    %5346 = vmatmul.bf16.gmra.mxu0 %v4982
    %v5347 = vpop.f32.mrf.mxu0
    %v5348 = vadd.f32 0.0, %v5347
    %v5349 = vpop.f32.mrf.mxu0
    %v5350 = vadd.f32 0.0, %v5349
    %5351 = vmatmul.bf16.gmra.mxu0 %v4984
    %v5352 = vpop.f32.mrf.mxu0
    %v5353 = vadd.f32 0.0, %v5352
    %v5354 = vpop.f32.mrf.mxu0
    %v5355 = vadd.f32 0.0, %v5354
    %5356 = vmatmul.bf16.gmra.mxu0 %v4986
    %v5357 = vpop.f32.mrf.mxu0
    %v5358 = vadd.f32 0.0, %v5357
    %v5359 = vpop.f32.mrf.mxu0
    %5360 = vdwg.mxu0
    %5361 = vmatpush.bf16.msra.mxu0 %v5240
    %5362 = vmatpush.bf16.msra.mxu0 %v5236
    %5363 = vmatpush.bf16.msra.mxu0 %v5232
    %5364 = vmatpush.bf16.msra.mxu0 %v5228
    %5365 = vmatpush.bf16.msra.mxu0 %v5224
    %5366 = vmatpush.bf16.msra.mxu0 %v5220
    %5367 = vmatpush.bf16.msra.mxu0 %v5216
    %5368 = vmatpush.bf16.msra.mxu0 %v5212
    %5369 = vmatmul.bf16.gmra.mxu0 %v4971
    %v5370 = vpop.f32.mrf.mxu0
    %v5371 = vadd.f32 %v5318, %v5370
    %v5372 = vpop.f32.mrf.mxu0
    %v5373 = vadd.f32 %v5320, %v5372
    %5374 = vmatmul.bf16.gmra.mxu0 %v4973
    %v5375 = vpop.f32.mrf.mxu0
    %v5376 = vadd.f32 %v5323, %v5375
    %v5377 = vpop.f32.mrf.mxu0
    %v5378 = vadd.f32 %v5325, %v5377
    %5379 = vmatmul.bf16.gmra.mxu0 %v4975
    %v5380 = vpop.f32.mrf.mxu0
    %v5381 = vadd.f32 %v5328, %v5380
    %v5382 = vpop.f32.mrf.mxu0
    %v5383 = vadd.f32 %v5330, %v5382
    %5384 = vmatmul.bf16.gmra.mxu0 %v4977
    %v5385 = vpop.f32.mrf.mxu0
    %v5386 = vadd.f32 %v5333, %v5385
    %v5387 = vpop.f32.mrf.mxu0
    %v5388 = vadd.f32 %v5335, %v5387
    %5389 = vmatmul.bf16.gmra.mxu0 %v4979
    %v5390 = vpop.f32.mrf.mxu0
    %v5391 = vadd.f32 %v5338, %v5390
    %v5392 = vpop.f32.mrf.mxu0
    %v5393 = vadd.f32 %v5340, %v5392
    %5394 = vmatmul.bf16.gmra.mxu0 %v4981
    %v5395 = vpop.f32.mrf.mxu0
    %v5396 = vadd.f32 %v5343, %v5395
    %v5397 = vpop.f32.mrf.mxu0
    %v5398 = vadd.f32 %v5345, %v5397
    %5399 = vmatmul.bf16.gmra.mxu0 %v4983
    %v5400 = vpop.f32.mrf.mxu0
    %v5401 = vadd.f32 %v5348, %v5400
    %v5402 = vpop.f32.mrf.mxu0
    %v5403 = vadd.f32 %v5350, %v5402
    %5404 = vmatmul.bf16.gmra.mxu0 %v4985
    %v5405 = vpop.f32.mrf.mxu0
    %v5406 = vadd.f32 %v5353, %v5405
    %v5407 = vpop.f32.mrf.mxu0
    %v5408 = vadd.f32 %v5355, %v5407
    %5409 = vmatmul.bf16.gmra.mxu0 %v4987
    %v5410 = vpop.f32.mrf.mxu0
    %v5411 = vadd.f32 %v5358, %v5410
    %v5412 = vpop.f32.mrf.mxu0
    %5413 = vdwg.mxu0
    %5414 = vmatpush.bf16.msra.mxu0 %v5209
    %5415 = vmatpush.bf16.msra.mxu0 %v5205
    %5416 = vmatpush.bf16.msra.mxu0 %v5201
    %5417 = vmatpush.bf16.msra.mxu0 %v5197
    %5418 = vmatpush.bf16.msra.mxu0 %v5193
    %5419 = vmatpush.bf16.msra.mxu0 %v5189
    %5420 = vmatpush.bf16.msra.mxu0 %v5185
    %5421 = vmatpush.bf16.msra.mxu0 %v5181
    %5422 = vmatmul.bf16.gmra.mxu0 %v4970
    %v5423 = vpop.f32.mrf.mxu0
    %v5424 = vadd.f32 0.0, %v5423
    %v5425 = vpop.f32.mrf.mxu0
    %v5426 = vadd.f32 0.0, %v5425
    %5427 = vmatmul.bf16.gmra.mxu0 %v4972
    %v5428 = vpop.f32.mrf.mxu0
    %v5429 = vadd.f32 0.0, %v5428
    %v5430 = vpop.f32.mrf.mxu0
    %v5431 = vadd.f32 0.0, %v5430
    %5432 = vmatmul.bf16.gmra.mxu0 %v4974
    %v5433 = vpop.f32.mrf.mxu0
    %v5434 = vadd.f32 0.0, %v5433
    %v5435 = vpop.f32.mrf.mxu0
    %v5436 = vadd.f32 0.0, %v5435
    %5437 = vmatmul.bf16.gmra.mxu0 %v4976
    %v5438 = vpop.f32.mrf.mxu0
    %v5439 = vadd.f32 0.0, %v5438
    %v5440 = vpop.f32.mrf.mxu0
    %v5441 = vadd.f32 0.0, %v5440
    %5442 = vmatmul.bf16.gmra.mxu0 %v4978
    %v5443 = vpop.f32.mrf.mxu0
    %v5444 = vadd.f32 0.0, %v5443
    %v5445 = vpop.f32.mrf.mxu0
    %v5446 = vadd.f32 0.0, %v5445
    %5447 = vmatmul.bf16.gmra.mxu0 %v4980
    %v5448 = vpop.f32.mrf.mxu0
    %v5449 = vadd.f32 0.0, %v5448
    %v5450 = vpop.f32.mrf.mxu0
    %v5451 = vadd.f32 0.0, %v5450
    %5452 = vmatmul.bf16.gmra.mxu0 %v4982
    %v5453 = vpop.f32.mrf.mxu0
    %v5454 = vadd.f32 0.0, %v5453
    %v5455 = vpop.f32.mrf.mxu0
    %v5456 = vadd.f32 0.0, %v5455
    %5457 = vmatmul.bf16.gmra.mxu0 %v4984
    %v5458 = vpop.f32.mrf.mxu0
    %v5459 = vadd.f32 0.0, %v5458
    %v5460 = vpop.f32.mrf.mxu0
    %v5461 = vadd.f32 0.0, %v5460
    %5462 = vmatmul.bf16.gmra.mxu0 %v4986
    %v5463 = vpop.f32.mrf.mxu0
    %v5464 = vadd.f32 0.0, %v5463
    %v5465 = vpop.f32.mrf.mxu0
    %5466 = vdwg.mxu0
    %5467 = vmatpush.bf16.msra.mxu0 %v5241
    %5468 = vmatpush.bf16.msra.mxu0 %v5237
    %5469 = vmatpush.bf16.msra.mxu0 %v5233
    %5470 = vmatpush.bf16.msra.mxu0 %v5229
    %5471 = vmatpush.bf16.msra.mxu0 %v5225
    %5472 = vmatpush.bf16.msra.mxu0 %v5221
    %5473 = vmatpush.bf16.msra.mxu0 %v5217
    %5474 = vmatpush.bf16.msra.mxu0 %v5213
    %5475 = vmatmul.bf16.gmra.mxu0 %v4971
    %v5476 = vpop.f32.mrf.mxu0
    %v5477 = vadd.f32 %v5424, %v5476
    %v5478 = vpop.f32.mrf.mxu0
    %v5479 = vadd.f32 %v5426, %v5478
    %5480 = vmatmul.bf16.gmra.mxu0 %v4973
    %v5481 = vpop.f32.mrf.mxu0
    %v5482 = vadd.f32 %v5429, %v5481
    %v5483 = vpop.f32.mrf.mxu0
    %v5484 = vadd.f32 %v5431, %v5483
    %5485 = vmatmul.bf16.gmra.mxu0 %v4975
    %v5486 = vpop.f32.mrf.mxu0
    %v5487 = vadd.f32 %v5434, %v5486
    %v5488 = vpop.f32.mrf.mxu0
    %v5489 = vadd.f32 %v5436, %v5488
    %5490 = vmatmul.bf16.gmra.mxu0 %v4977
    %v5491 = vpop.f32.mrf.mxu0
    %v5492 = vadd.f32 %v5439, %v5491
    %v5493 = vpop.f32.mrf.mxu0
    %v5494 = vadd.f32 %v5441, %v5493
    %5495 = vmatmul.bf16.gmra.mxu0 %v4979
    %v5496 = vpop.f32.mrf.mxu0
    %v5497 = vadd.f32 %v5444, %v5496
    %v5498 = vpop.f32.mrf.mxu0
    %v5499 = vadd.f32 %v5446, %v5498
    %5500 = vmatmul.bf16.gmra.mxu0 %v4981
    %v5501 = vpop.f32.mrf.mxu0
    %v5502 = vadd.f32 %v5449, %v5501
    %v5503 = vpop.f32.mrf.mxu0
    %v5504 = vadd.f32 %v5451, %v5503
    %5505 = vmatmul.bf16.gmra.mxu0 %v4983
    %v5506 = vpop.f32.mrf.mxu0
    %v5507 = vadd.f32 %v5454, %v5506
    %v5508 = vpop.f32.mrf.mxu0
    %v5509 = vadd.f32 %v5456, %v5508
    %5510 = vmatmul.bf16.gmra.mxu0 %v4985
    %v5511 = vpop.f32.mrf.mxu0
    %v5512 = vadd.f32 %v5459, %v5511
    %v5513 = vpop.f32.mrf.mxu0
    %v5514 = vadd.f32 %v5461, %v5513
    %5515 = vmatmul.bf16.gmra.mxu0 %v4987
    %v5516 = vpop.f32.mrf.mxu0
    %v5517 = vadd.f32 %v5464, %v5516
    %v5518 = vpop.f32.mrf.mxu0
    %5519 = vdwg.mxu0
    %5520 = vmatpush.bf16.msra.mxu0 %v5210
    %5521 = vmatpush.bf16.msra.mxu0 %v5206
    %5522 = vmatpush.bf16.msra.mxu0 %v5202
    %5523 = vmatpush.bf16.msra.mxu0 %v5198
    %5524 = vmatpush.bf16.msra.mxu0 %v5194
    %5525 = vmatpush.bf16.msra.mxu0 %v5190
    %5526 = vmatpush.bf16.msra.mxu0 %v5186
    %5527 = vmatpush.bf16.msra.mxu0 %v5182
    %5528 = vmatmul.bf16.gmra.mxu0 %v4970
    %v5529 = vpop.f32.mrf.mxu0
    %v5530 = vadd.f32 0.0, %v5529
    %v5531 = vpop.f32.mrf.mxu0
    %v5532 = vadd.f32 0.0, %v5531
    %5533 = vmatmul.bf16.gmra.mxu0 %v4972
    %v5534 = vpop.f32.mrf.mxu0
    %v5535 = vadd.f32 0.0, %v5534
    %v5536 = vpop.f32.mrf.mxu0
    %v5537 = vadd.f32 0.0, %v5536
    %5538 = vmatmul.bf16.gmra.mxu0 %v4974
    %v5539 = vpop.f32.mrf.mxu0
    %v5540 = vadd.f32 0.0, %v5539
    %v5541 = vpop.f32.mrf.mxu0
    %v5542 = vadd.f32 0.0, %v5541
    %5543 = vmatmul.bf16.gmra.mxu0 %v4976
    %v5544 = vpop.f32.mrf.mxu0
    %v5545 = vadd.f32 0.0, %v5544
    %v5546 = vpop.f32.mrf.mxu0
    %v5547 = vadd.f32 0.0, %v5546
    %5548 = vmatmul.bf16.gmra.mxu0 %v4978
    %v5549 = vpop.f32.mrf.mxu0
    %v5550 = vadd.f32 0.0, %v5549
    %v5551 = vpop.f32.mrf.mxu0
    %v5552 = vadd.f32 0.0, %v5551
    %5553 = vmatmul.bf16.gmra.mxu0 %v4980
    %v5554 = vpop.f32.mrf.mxu0
    %v5555 = vadd.f32 0.0, %v5554
    %v5556 = vpop.f32.mrf.mxu0
    %v5557 = vadd.f32 0.0, %v5556
    %5558 = vmatmul.bf16.gmra.mxu0 %v4982
    %v5559 = vpop.f32.mrf.mxu0
    %v5560 = vadd.f32 0.0, %v5559
    %v5561 = vpop.f32.mrf.mxu0
    %v5562 = vadd.f32 0.0, %v5561
    %5563 = vmatmul.bf16.gmra.mxu0 %v4984
    %v5564 = vpop.f32.mrf.mxu0
    %v5565 = vadd.f32 0.0, %v5564
    %v5566 = vpop.f32.mrf.mxu0
    %v5567 = vadd.f32 0.0, %v5566
    %5568 = vmatmul.bf16.gmra.mxu0 %v4986
    %v5569 = vpop.f32.mrf.mxu0
    %v5570 = vadd.f32 0.0, %v5569
    %v5571 = vpop.f32.mrf.mxu0
    %5572 = vdwg.mxu0
    %5573 = vmatpush.bf16.msra.mxu0 %v5242
    %5574 = vmatpush.bf16.msra.mxu0 %v5238
    %5575 = vmatpush.bf16.msra.mxu0 %v5234
    %5576 = vmatpush.bf16.msra.mxu0 %v5230
    %5577 = vmatpush.bf16.msra.mxu0 %v5226
    %5578 = vmatpush.bf16.msra.mxu0 %v5222
    %5579 = vmatpush.bf16.msra.mxu0 %v5218
    %5580 = vmatpush.bf16.msra.mxu0 %v5214
    %5581 = vmatmul.bf16.gmra.mxu0 %v4971
    %v5582 = vpop.f32.mrf.mxu0
    %v5583 = vadd.f32 %v5530, %v5582
    %v5584 = vpop.f32.mrf.mxu0
    %v5585 = vadd.f32 %v5532, %v5584
    %5586 = vmatmul.bf16.gmra.mxu0 %v4973
    %v5587 = vpop.f32.mrf.mxu0
    %v5588 = vadd.f32 %v5535, %v5587
    %v5589 = vpop.f32.mrf.mxu0
    %v5590 = vadd.f32 %v5537, %v5589
    %5591 = vmatmul.bf16.gmra.mxu0 %v4975
    %v5592 = vpop.f32.mrf.mxu0
    %v5593 = vadd.f32 %v5540, %v5592
    %v5594 = vpop.f32.mrf.mxu0
    %v5595 = vadd.f32 %v5542, %v5594
    %5596 = vmatmul.bf16.gmra.mxu0 %v4977
    %v5597 = vpop.f32.mrf.mxu0
    %v5598 = vadd.f32 %v5545, %v5597
    %v5599 = vpop.f32.mrf.mxu0
    %v5600 = vadd.f32 %v5547, %v5599
    %5601 = vmatmul.bf16.gmra.mxu0 %v4979
    %v5602 = vpop.f32.mrf.mxu0
    %v5603 = vadd.f32 %v5550, %v5602
    %v5604 = vpop.f32.mrf.mxu0
    %v5605 = vadd.f32 %v5552, %v5604
    %5606 = vmatmul.bf16.gmra.mxu0 %v4981
    %v5607 = vpop.f32.mrf.mxu0
    %v5608 = vadd.f32 %v5555, %v5607
    %v5609 = vpop.f32.mrf.mxu0
    %v5610 = vadd.f32 %v5557, %v5609
    %5611 = vmatmul.bf16.gmra.mxu0 %v4983
    %v5612 = vpop.f32.mrf.mxu0
    %v5613 = vadd.f32 %v5560, %v5612
    %v5614 = vpop.f32.mrf.mxu0
    %v5615 = vadd.f32 %v5562, %v5614
    %5616 = vmatmul.bf16.gmra.mxu0 %v4985
    %v5617 = vpop.f32.mrf.mxu0
    %v5618 = vadd.f32 %v5565, %v5617
    %v5619 = vpop.f32.mrf.mxu0
    %v5620 = vadd.f32 %v5567, %v5619
    %5621 = vmatmul.bf16.gmra.mxu0 %v4987
    %v5622 = vpop.f32.mrf.mxu0
    %v5623 = vadd.f32 %v5570, %v5622
    %v5624 = vpop.f32.mrf.mxu0
    %5625 = vdwg.mxu0
    %5626 = vmatpush.bf16.msra.mxu0 %v5211
    %5627 = vmatpush.bf16.msra.mxu0 %v5207
    %5628 = vmatpush.bf16.msra.mxu0 %v5203
    %5629 = vmatpush.bf16.msra.mxu0 %v5199
    %5630 = vmatpush.bf16.msra.mxu0 %v5195
    %5631 = vmatpush.bf16.msra.mxu0 %v5191
    %5632 = vmatpush.bf16.msra.mxu0 %v5187
    %5633 = vmatpush.bf16.msra.mxu0 %v5183
    %5634 = vmatmul.bf16.gmra.mxu0 %v4970
    %v5635 = vpop.f32.mrf.mxu0
    %v5636 = vadd.f32 0.0, %v5635
    %v5637 = vpop.f32.mrf.mxu0
    %v5638 = vadd.f32 0.0, %v5637
    %5639 = vmatmul.bf16.gmra.mxu0 %v4972
    %v5640 = vpop.f32.mrf.mxu0
    %v5641 = vadd.f32 0.0, %v5640
    %v5642 = vpop.f32.mrf.mxu0
    %v5643 = vadd.f32 0.0, %v5642
    %5644 = vmatmul.bf16.gmra.mxu0 %v4974
    %v5645 = vpop.f32.mrf.mxu0
    %v5646 = vadd.f32 0.0, %v5645
    %v5647 = vpop.f32.mrf.mxu0
    %v5648 = vadd.f32 0.0, %v5647
    %5649 = vmatmul.bf16.gmra.mxu0 %v4976
    %v5650 = vpop.f32.mrf.mxu0
    %v5651 = vadd.f32 0.0, %v5650
    %v5652 = vpop.f32.mrf.mxu0
    %v5653 = vadd.f32 0.0, %v5652
    %5654 = vmatmul.bf16.gmra.mxu0 %v4978
    %v5655 = vpop.f32.mrf.mxu0
    %v5656 = vadd.f32 0.0, %v5655
    %v5657 = vpop.f32.mrf.mxu0
    %v5658 = vadd.f32 0.0, %v5657
    %5659 = vmatmul.bf16.gmra.mxu0 %v4980
    %v5660 = vpop.f32.mrf.mxu0
    %v5661 = vadd.f32 0.0, %v5660
    %v5662 = vpop.f32.mrf.mxu0
    %v5663 = vadd.f32 0.0, %v5662
    %5664 = vmatmul.bf16.gmra.mxu0 %v4982
    %v5665 = vpop.f32.mrf.mxu0
    %v5666 = vadd.f32 0.0, %v5665
    %v5667 = vpop.f32.mrf.mxu0
    %v5668 = vadd.f32 0.0, %v5667
    %5669 = vmatmul.bf16.gmra.mxu0 %v4984
    %v5670 = vpop.f32.mrf.mxu0
    %v5671 = vadd.f32 0.0, %v5670
    %v5672 = vpop.f32.mrf.mxu0
    %v5673 = vadd.f32 0.0, %v5672
    %5674 = vmatmul.bf16.gmra.mxu0 %v4986
    %v5675 = vpop.f32.mrf.mxu0
    %v5676 = vadd.f32 0.0, %v5675
    %v5677 = vpop.f32.mrf.mxu0
    %5678 = vdwg.mxu0
    %5679 = vmatpush.bf16.msra.mxu0 %v5243
    %5680 = vmatpush.bf16.msra.mxu0 %v5239
    %5681 = vmatpush.bf16.msra.mxu0 %v5235
    %5682 = vmatpush.bf16.msra.mxu0 %v5231
    %5683 = vmatpush.bf16.msra.mxu0 %v5227
    %5684 = vmatpush.bf16.msra.mxu0 %v5223
    %5685 = vmatpush.bf16.msra.mxu0 %v5219
    %5686 = vmatpush.bf16.msra.mxu0 %v5215
    %5687 = vmatmul.bf16.gmra.mxu0 %v4971
    %v5688 = vpop.f32.mrf.mxu0
    %v5689 = vadd.f32 %v5636, %v5688
    %v5690 = vpop.f32.mrf.mxu0
    %v5691 = vadd.f32 %v5638, %v5690
    %5692 = vmatmul.bf16.gmra.mxu0 %v4973
    %v5693 = vpop.f32.mrf.mxu0
    %v5694 = vadd.f32 %v5641, %v5693
    %v5695 = vpop.f32.mrf.mxu0
    %v5696 = vadd.f32 %v5643, %v5695
    %5697 = vmatmul.bf16.gmra.mxu0 %v4975
    %v5698 = vpop.f32.mrf.mxu0
    %v5699 = vadd.f32 %v5646, %v5698
    %v5700 = vpop.f32.mrf.mxu0
    %v5701 = vadd.f32 %v5648, %v5700
    %5702 = vmatmul.bf16.gmra.mxu0 %v4977
    %v5703 = vpop.f32.mrf.mxu0
    %v5704 = vadd.f32 %v5651, %v5703
    %v5705 = vpop.f32.mrf.mxu0
    %v5706 = vadd.f32 %v5653, %v5705
    %5707 = vmatmul.bf16.gmra.mxu0 %v4979
    %v5708 = vpop.f32.mrf.mxu0
    %v5709 = vadd.f32 %v5656, %v5708
    %v5710 = vpop.f32.mrf.mxu0
    %v5711 = vadd.f32 %v5658, %v5710
    %5712 = vmatmul.bf16.gmra.mxu0 %v4981
    %v5713 = vpop.f32.mrf.mxu0
    %v5714 = vadd.f32 %v5661, %v5713
    %v5715 = vpop.f32.mrf.mxu0
    %v5716 = vadd.f32 %v5663, %v5715
    %5717 = vmatmul.bf16.gmra.mxu0 %v4983
    %v5718 = vpop.f32.mrf.mxu0
    %v5719 = vadd.f32 %v5666, %v5718
    %v5720 = vpop.f32.mrf.mxu0
    %v5721 = vadd.f32 %v5668, %v5720
    %5722 = vmatmul.bf16.gmra.mxu0 %v4985
    %v5723 = vpop.f32.mrf.mxu0
    %v5724 = vadd.f32 %v5671, %v5723
    %v5725 = vpop.f32.mrf.mxu0
    %v5726 = vadd.f32 %v5673, %v5725
    %5727 = vmatmul.bf16.gmra.mxu0 %v4987
    %v5728 = vpop.f32.mrf.mxu0
    %v5729 = vadd.f32 %v5676, %v5728
    %v5730 = vpop.f32.mrf.mxu0
    %5731 = vdwg.mxu0
    %v5732 = vpack.c.bf16 %v5477, %v5371
    %v5733 = vpack.c.bf16 %v5689, %v5583
    %v5734 = vpack.c.bf16 %v5479, %v5373
    %v5735 = vpack.c.bf16 %v5691, %v5585
    %v5736 = vpack.c.bf16 %v5482, %v5376
    %v5737 = vpack.c.bf16 %v5694, %v5588
    %v5738 = vpack.c.bf16 %v5484, %v5378
    %v5739 = vpack.c.bf16 %v5696, %v5590
    %v5740 = vpack.c.bf16 %v5487, %v5381
    %v5741 = vpack.c.bf16 %v5699, %v5593
    %v5742 = vpack.c.bf16 %v5489, %v5383
    %v5743 = vpack.c.bf16 %v5701, %v5595
    %v5744 = vpack.c.bf16 %v5492, %v5386
    %v5745 = vpack.c.bf16 %v5704, %v5598
    %v5746 = vpack.c.bf16 %v5494, %v5388
    %v5747 = vpack.c.bf16 %v5706, %v5600
    %v5748 = vpack.c.bf16 %v5497, %v5391
    %v5749 = vpack.c.bf16 %v5709, %v5603
    %v5750 = vpack.c.bf16 %v5499, %v5393
    %v5751 = vpack.c.bf16 %v5711, %v5605
    %v5752 = vpack.c.bf16 %v5502, %v5396
    %v5753 = vpack.c.bf16 %v5714, %v5608
    %v5754 = vpack.c.bf16 %v5504, %v5398
    %v5755 = vpack.c.bf16 %v5716, %v5610
    %v5756 = vpack.c.bf16 %v5507, %v5401
    %v5757 = vpack.c.bf16 %v5719, %v5613
    %v5758 = vpack.c.bf16 %v5509, %v5403
    %v5759 = vpack.c.bf16 %v5721, %v5615
    %v5760 = vpack.c.bf16 %v5512, %v5406
    %v5761 = vpack.c.bf16 %v5724, %v5618
    %v5762 = vpack.c.bf16 %v5514, %v5408
    %v5763 = vpack.c.bf16 %v5726, %v5620
    %v5764 = vpack.c.bf16 %v5517, %v5411
    %v5765 = vpack.c.bf16 %v5729, %v5623
    %v5800 = vunpack.c.l.b16 %v5732
    %v5801 = vunpack.c.h.b16 %v5732
    %v5802 = vunpack.c.l.b16 %v5733
    %v5803 = vunpack.c.h.b16 %v5733
    %v5804 = vunpack.c.l.b16 %v5734
    %v5805 = vunpack.c.h.b16 %v5734
    %v5806 = vunpack.c.l.b16 %v5735
    %v5807 = vunpack.c.h.b16 %v5735
    %v5808 = vunpack.c.l.b16 %v5736
    %v5809 = vunpack.c.h.b16 %v5736
    %v5810 = vunpack.c.l.b16 %v5737
    %v5811 = vunpack.c.h.b16 %v5737
    %v5812 = vunpack.c.l.b16 %v5738
    %v5813 = vunpack.c.h.b16 %v5738
    %v5814 = vunpack.c.l.b16 %v5739
    %v5815 = vunpack.c.h.b16 %v5739
    %v5816 = vunpack.c.l.b16 %v5740
    %v5817 = vunpack.c.h.b16 %v5740
    %v5818 = vunpack.c.l.b16 %v5741
    %v5819 = vunpack.c.h.b16 %v5741
    %v5820 = vunpack.c.l.b16 %v5742
    %v5821 = vunpack.c.h.b16 %v5742
    %v5822 = vunpack.c.l.b16 %v5743
    %v5823 = vunpack.c.h.b16 %v5743
    %v5824 = vunpack.c.l.b16 %v5744
    %v5825 = vunpack.c.h.b16 %v5744
    %v5826 = vunpack.c.l.b16 %v5745
    %v5827 = vunpack.c.h.b16 %v5745
    %v5828 = vunpack.c.l.b16 %v5746
    %v5829 = vunpack.c.h.b16 %v5746
    %v5830 = vunpack.c.l.b16 %v5747
    %v5831 = vunpack.c.h.b16 %v5747
    %v5832 = vunpack.c.l.b16 %v5748
    %v5833 = vunpack.c.h.b16 %v5748
    %v5834 = vunpack.c.l.b16 %v5749
    %v5835 = vunpack.c.h.b16 %v5749
    %v5836 = vunpack.c.l.b16 %v5750
    %v5837 = vunpack.c.h.b16 %v5750
    %v5838 = vunpack.c.l.b16 %v5751
    %v5839 = vunpack.c.h.b16 %v5751
    %v5840 = vunpack.c.l.b16 %v5752
    %v5841 = vunpack.c.h.b16 %v5752
    %v5842 = vunpack.c.l.b16 %v5753
    %v5843 = vunpack.c.h.b16 %v5753
    %v5844 = vunpack.c.l.b16 %v5754
    %v5845 = vunpack.c.h.b16 %v5754
    %v5846 = vunpack.c.l.b16 %v5755
    %v5847 = vunpack.c.h.b16 %v5755
    %v5848 = vunpack.c.l.b16 %v5756
    %v5849 = vunpack.c.h.b16 %v5756
    %v5850 = vunpack.c.l.b16 %v5757
    %v5851 = vunpack.c.h.b16 %v5757
    %v5852 = vunpack.c.l.b16 %v5758
    %v5853 = vunpack.c.h.b16 %v5758
    %v5854 = vunpack.c.l.b16 %v5759
    %v5855 = vunpack.c.h.b16 %v5759
    %v5856 = vunpack.c.l.b16 %v5760
    %v5857 = vunpack.c.h.b16 %v5760
    %v5858 = vunpack.c.l.b16 %v5761
    %v5859 = vunpack.c.h.b16 %v5761
    %v5860 = vunpack.c.l.b16 %v5762
    %v5861 = vunpack.c.h.b16 %v5762
    %v5862 = vunpack.c.l.b16 %v5763
    %v5863 = vunpack.c.h.b16 %v5763
    %v5864 = vunpack.c.l.b16 %v5764
    %v5865 = vunpack.c.h.b16 %v5764
    %v5866 = vunpack.c.l.b16 %v5765
    %v5867 = vunpack.c.h.b16 %v5765
    %v5868 = vpack.c.b16 %v5804, %v5800
    %v5869 = vpack.c.b16 %v5805, %v5801
    %v5870 = vpack.c.b16 %v5806, %v5802
    %v5871 = vpack.c.b16 %v5807, %v5803
    %v5872 = vpack.c.b16 %v5812, %v5808
    %v5873 = vpack.c.b16 %v5813, %v5809
    %v5874 = vpack.c.b16 %v5814, %v5810
    %v5875 = vpack.c.b16 %v5815, %v5811
    %v5876 = vpack.c.b16 %v5820, %v5816
    %v5877 = vpack.c.b16 %v5821, %v5817
    %v5878 = vpack.c.b16 %v5822, %v5818
    %v5879 = vpack.c.b16 %v5823, %v5819
    %v5880 = vpack.c.b16 %v5828, %v5824
    %v5881 = vpack.c.b16 %v5829, %v5825
    %v5882 = vpack.c.b16 %v5830, %v5826
    %v5883 = vpack.c.b16 %v5831, %v5827
    %v5884 = vpack.c.b16 %v5836, %v5832
    %v5885 = vpack.c.b16 %v5837, %v5833
    %v5886 = vpack.c.b16 %v5838, %v5834
    %v5887 = vpack.c.b16 %v5839, %v5835
    %v5888 = vpack.c.b16 %v5844, %v5840
    %v5889 = vpack.c.b16 %v5845, %v5841
    %v5890 = vpack.c.b16 %v5846, %v5842
    %v5891 = vpack.c.b16 %v5847, %v5843
    %v5892 = vpack.c.b16 %v5852, %v5848
    %v5893 = vpack.c.b16 %v5853, %v5849
    %v5894 = vpack.c.b16 %v5854, %v5850
    %v5895 = vpack.c.b16 %v5855, %v5851
    %v5896 = vpack.c.b16 %v5860, %v5856
    %v5897 = vpack.c.b16 %v5861, %v5857
    %v5898 = vpack.c.b16 %v5862, %v5858
    %v5899 = vpack.c.b16 %v5863, %v5859
    %v5900 = vpack.c.b16 %v5864, %v5864
    %v5901 = vpack.c.b16 %v5865, %v5865
    %v5902 = vpack.c.b16 %v5866, %v5866
    %v5903 = vpack.c.b16 %v5867, %v5867
    %v5941 = vshrl.u32 %v5868, 16
    %v5943 = vshll.u32 %v5868, 16
    %v5945 = vrot.slane %v5943, 1
    %v5946 = vor.u32 %v5941, %v5945
    %v5948 = vshll.u32 %v5872, 16
    %v5950 = vrot.slane %v5948, 1
    %v5951 = vsel %vm271, %v5946, %v5950
    %v5953 = vshrl.u32 %v5869, 16
    %v5955 = vshll.u32 %v5869, 16
    %v5957 = vrot.slane %v5955, 1
    %v5958 = vor.u32 %v5953, %v5957
    %v5960 = vshll.u32 %v5873, 16
    %v5962 = vrot.slane %v5960, 1
    %v5963 = vsel %vm271, %v5958, %v5962
    %v5965 = vshrl.u32 %v5870, 16
    %v5967 = vshll.u32 %v5870, 16
    %v5969 = vrot.slane %v5967, 1
    %v5970 = vor.u32 %v5965, %v5969
    %v5972 = vshll.u32 %v5874, 16
    %v5974 = vrot.slane %v5972, 1
    %v5975 = vsel %vm271, %v5970, %v5974
    %v5977 = vshrl.u32 %v5871, 16
    %v5979 = vshll.u32 %v5871, 16
    %v5981 = vrot.slane %v5979, 1
    %v5982 = vor.u32 %v5977, %v5981
    %v5984 = vshll.u32 %v5875, 16
    %v5986 = vrot.slane %v5984, 1
    %v5987 = vsel %vm271, %v5982, %v5986
    %v5988 = vshrl.u32 %v5872, 16
    %v5990 = vor.u32 %v5988, %v5950
    %v5992 = vshll.u32 %v5876, 16
    %v5994 = vrot.slane %v5992, 1
    %v5995 = vsel %vm271, %v5990, %v5994
    %v5996 = vshrl.u32 %v5873, 16
    %v5998 = vor.u32 %v5996, %v5962
    %v6000 = vshll.u32 %v5877, 16
    %v6002 = vrot.slane %v6000, 1
    %v6003 = vsel %vm271, %v5998, %v6002
    %v6004 = vshrl.u32 %v5874, 16
    %v6006 = vor.u32 %v6004, %v5974
    %v6008 = vshll.u32 %v5878, 16
    %v6010 = vrot.slane %v6008, 1
    %v6011 = vsel %vm271, %v6006, %v6010
    %v6012 = vshrl.u32 %v5875, 16
    %v6014 = vor.u32 %v6012, %v5986
    %v6016 = vshll.u32 %v5879, 16
    %v6018 = vrot.slane %v6016, 1
    %v6019 = vsel %vm271, %v6014, %v6018
    %v6020 = vshrl.u32 %v5876, 16
    %v6022 = vor.u32 %v6020, %v5994
    %v6024 = vshll.u32 %v5880, 16
    %v6026 = vrot.slane %v6024, 1
    %v6027 = vsel %vm271, %v6022, %v6026
    %v6028 = vshrl.u32 %v5877, 16
    %v6030 = vor.u32 %v6028, %v6002
    %v6032 = vshll.u32 %v5881, 16
    %v6034 = vrot.slane %v6032, 1
    %v6035 = vsel %vm271, %v6030, %v6034
    %v6036 = vshrl.u32 %v5878, 16
    %v6038 = vor.u32 %v6036, %v6010
    %v6040 = vshll.u32 %v5882, 16
    %v6042 = vrot.slane %v6040, 1
    %v6043 = vsel %vm271, %v6038, %v6042
    %v6044 = vshrl.u32 %v5879, 16
    %v6046 = vor.u32 %v6044, %v6018
    %v6048 = vshll.u32 %v5883, 16
    %v6050 = vrot.slane %v6048, 1
    %v6051 = vsel %vm271, %v6046, %v6050
    %v6052 = vshrl.u32 %v5880, 16
    %v6054 = vor.u32 %v6052, %v6026
    %v6056 = vshll.u32 %v5884, 16
    %v6058 = vrot.slane %v6056, 1
    %v6059 = vsel %vm271, %v6054, %v6058
    %v6060 = vshrl.u32 %v5881, 16
    %v6062 = vor.u32 %v6060, %v6034
    %v6064 = vshll.u32 %v5885, 16
    %v6066 = vrot.slane %v6064, 1
    %v6067 = vsel %vm271, %v6062, %v6066
    %v6068 = vshrl.u32 %v5882, 16
    %v6070 = vor.u32 %v6068, %v6042
    %v6072 = vshll.u32 %v5886, 16
    %v6074 = vrot.slane %v6072, 1
    %v6075 = vsel %vm271, %v6070, %v6074
    %v6076 = vshrl.u32 %v5883, 16
    %v6078 = vor.u32 %v6076, %v6050
    %v6080 = vshll.u32 %v5887, 16
    %v6082 = vrot.slane %v6080, 1
    %v6083 = vsel %vm271, %v6078, %v6082
    %v6084 = vshrl.u32 %v5884, 16
    %v6086 = vor.u32 %v6084, %v6058
    %v6088 = vshll.u32 %v5888, 16
    %v6090 = vrot.slane %v6088, 1
    %v6091 = vsel %vm271, %v6086, %v6090
    %v6092 = vshrl.u32 %v5885, 16
    %v6094 = vor.u32 %v6092, %v6066
    %v6096 = vshll.u32 %v5889, 16
    %v6098 = vrot.slane %v6096, 1
    %v6099 = vsel %vm271, %v6094, %v6098
    %v6100 = vshrl.u32 %v5886, 16
    %v6102 = vor.u32 %v6100, %v6074
    %v6104 = vshll.u32 %v5890, 16
    %v6106 = vrot.slane %v6104, 1
    %v6107 = vsel %vm271, %v6102, %v6106
    %v6108 = vshrl.u32 %v5887, 16
    %v6110 = vor.u32 %v6108, %v6082
    %v6112 = vshll.u32 %v5891, 16
    %v6114 = vrot.slane %v6112, 1
    %v6115 = vsel %vm271, %v6110, %v6114
    %v6116 = vshrl.u32 %v5888, 16
    %v6118 = vor.u32 %v6116, %v6090
    %v6120 = vshll.u32 %v5892, 16
    %v6122 = vrot.slane %v6120, 1
    %v6123 = vsel %vm271, %v6118, %v6122
    %v6124 = vshrl.u32 %v5889, 16
    %v6126 = vor.u32 %v6124, %v6098
    %v6128 = vshll.u32 %v5893, 16
    %v6130 = vrot.slane %v6128, 1
    %v6131 = vsel %vm271, %v6126, %v6130
    %v6132 = vshrl.u32 %v5890, 16
    %v6134 = vor.u32 %v6132, %v6106
    %v6136 = vshll.u32 %v5894, 16
    %v6138 = vrot.slane %v6136, 1
    %v6139 = vsel %vm271, %v6134, %v6138
    %v6140 = vshrl.u32 %v5891, 16
    %v6142 = vor.u32 %v6140, %v6114
    %v6144 = vshll.u32 %v5895, 16
    %v6146 = vrot.slane %v6144, 1
    %v6147 = vsel %vm271, %v6142, %v6146
    %v6148 = vshrl.u32 %v5892, 16
    %v6150 = vor.u32 %v6148, %v6122
    %v6152 = vshll.u32 %v5896, 16
    %v6154 = vrot.slane %v6152, 1
    %v6155 = vsel %vm271, %v6150, %v6154
    %v6156 = vshrl.u32 %v5893, 16
    %v6158 = vor.u32 %v6156, %v6130
    %v6160 = vshll.u32 %v5897, 16
    %v6162 = vrot.slane %v6160, 1
    %v6163 = vsel %vm271, %v6158, %v6162
    %v6164 = vshrl.u32 %v5894, 16
    %v6166 = vor.u32 %v6164, %v6138
    %v6168 = vshll.u32 %v5898, 16
    %v6170 = vrot.slane %v6168, 1
    %v6171 = vsel %vm271, %v6166, %v6170
    %v6172 = vshrl.u32 %v5895, 16
    %v6174 = vor.u32 %v6172, %v6146
    %v6176 = vshll.u32 %v5899, 16
    %v6178 = vrot.slane %v6176, 1
    %v6179 = vsel %vm271, %v6174, %v6178
    %v6180 = vshrl.u32 %v5896, 16
    %v6182 = vor.u32 %v6180, %v6154
    %v6184 = vshll.u32 %v5900, 16
    %v6186 = vrot.slane %v6184, 1
    %v6187 = vsel %vm271, %v6182, %v6186
    %v6188 = vshrl.u32 %v5897, 16
    %v6190 = vor.u32 %v6188, %v6162
    %v6192 = vshll.u32 %v5901, 16
    %v6194 = vrot.slane %v6192, 1
    %v6195 = vsel %vm271, %v6190, %v6194
    %v6196 = vshrl.u32 %v5898, 16
    %v6198 = vor.u32 %v6196, %v6170
    %v6200 = vshll.u32 %v5902, 16
    %v6202 = vrot.slane %v6200, 1
    %v6203 = vsel %vm271, %v6198, %v6202
    %v6204 = vshrl.u32 %v5899, 16
    %v6206 = vor.u32 %v6204, %v6178
    %v6208 = vshll.u32 %v5903, 16
    %v6210 = vrot.slane %v6208, 1
    %v6211 = vsel %vm271, %v6206, %v6210
    %v6212 = vshrl.u32 %v5900, 16
    %v6214 = vor.u32 %v6212, %v6186
    %v6215 = vshrl.u32 %v5901, 16
    %v6217 = vor.u32 %v6215, %v6194
    %v6218 = vshrl.u32 %v5902, 16
    %v6220 = vor.u32 %v6218, %v6202
    %v6221 = vshrl.u32 %v5903, 16
    %v6223 = vor.u32 %v6221, %v6210
    %v6260 = vrot.slane %v5868, 1
    %v6261 = vrot.slane %v5872, 1
    %v6262 = vsel %vm399, %v6260, %v6261
    %v6263 = vrot.slane %v5869, 1
    %v6264 = vrot.slane %v5873, 1
    %v6265 = vsel %vm399, %v6263, %v6264
    %v6266 = vrot.slane %v5870, 1
    %v6267 = vrot.slane %v5874, 1
    %v6268 = vsel %vm399, %v6266, %v6267
    %v6269 = vrot.slane %v5871, 1
    %v6270 = vrot.slane %v5875, 1
    %v6271 = vsel %vm399, %v6269, %v6270
    %v6272 = vrot.slane %v5876, 1
    %v6273 = vsel %vm399, %v6261, %v6272
    %v6274 = vrot.slane %v5877, 1
    %v6275 = vsel %vm399, %v6264, %v6274
    %v6276 = vrot.slane %v5878, 1
    %v6277 = vsel %vm399, %v6267, %v6276
    %v6278 = vrot.slane %v5879, 1
    %v6279 = vsel %vm399, %v6270, %v6278
    %v6280 = vrot.slane %v5880, 1
    %v6281 = vsel %vm399, %v6272, %v6280
    %v6282 = vrot.slane %v5881, 1
    %v6283 = vsel %vm399, %v6274, %v6282
    %v6284 = vrot.slane %v5882, 1
    %v6285 = vsel %vm399, %v6276, %v6284
    %v6286 = vrot.slane %v5883, 1
    %v6287 = vsel %vm399, %v6278, %v6286
    %v6288 = vrot.slane %v5884, 1
    %v6289 = vsel %vm399, %v6280, %v6288
    %v6290 = vrot.slane %v5885, 1
    %v6291 = vsel %vm399, %v6282, %v6290
    %v6292 = vrot.slane %v5886, 1
    %v6293 = vsel %vm399, %v6284, %v6292
    %v6294 = vrot.slane %v5887, 1
    %v6295 = vsel %vm399, %v6286, %v6294
    %v6296 = vrot.slane %v5888, 1
    %v6297 = vsel %vm399, %v6288, %v6296
    %v6298 = vrot.slane %v5889, 1
    %v6299 = vsel %vm399, %v6290, %v6298
    %v6300 = vrot.slane %v5890, 1
    %v6301 = vsel %vm399, %v6292, %v6300
    %v6302 = vrot.slane %v5891, 1
    %v6303 = vsel %vm399, %v6294, %v6302
    %v6304 = vrot.slane %v5892, 1
    %v6305 = vsel %vm399, %v6296, %v6304
    %v6306 = vrot.slane %v5893, 1
    %v6307 = vsel %vm399, %v6298, %v6306
    %v6308 = vrot.slane %v5894, 1
    %v6309 = vsel %vm399, %v6300, %v6308
    %v6310 = vrot.slane %v5895, 1
    %v6311 = vsel %vm399, %v6302, %v6310
    %v6312 = vrot.slane %v5896, 1
    %v6313 = vsel %vm399, %v6304, %v6312
    %v6314 = vrot.slane %v5897, 1
    %v6315 = vsel %vm399, %v6306, %v6314
    %v6316 = vrot.slane %v5898, 1
    %v6317 = vsel %vm399, %v6308, %v6316
    %v6318 = vrot.slane %v5899, 1
    %v6319 = vsel %vm399, %v6310, %v6318
    %v6320 = vrot.slane %v5900, 1
    %v6321 = vsel %vm399, %v6312, %v6320
    %v6322 = vrot.slane %v5901, 1
    %v6323 = vsel %vm399, %v6314, %v6322
    %v6324 = vrot.slane %v5902, 1
    %v6325 = vsel %vm399, %v6316, %v6324
    %v6326 = vrot.slane %v5903, 1
    %v6327 = vsel %vm399, %v6318, %v6326
    %v6364 = vld [vmem:[#allocation15] sm:$0xff]
    %v6365 = vld [vmem:[#allocation15 + $0x8] sm:$0xff]
    %v6366 = vld [vmem:[#allocation15 + $0x10] sm:$0xff]
    %v6367 = vld [vmem:[#allocation15 + $0x18] sm:$0xff]
    %v6368 = vld [vmem:[#allocation15 + $0x20] sm:$0xff]
    %v6369 = vld [vmem:[#allocation15 + $0x28] sm:$0xff]
    %v6370 = vld [vmem:[#allocation15 + $0x30] sm:$0xff]
    %v6371 = vld [vmem:[#allocation15 + $0x38] sm:$0xff]
    %v6372 = vld [vmem:[#allocation15 + $0x40] sm:$0xff]
    %v6373 = vld [vmem:[#allocation15 + $0x48] sm:$0xff]
    %v6374 = vld [vmem:[#allocation15 + $0x50] sm:$0xff]
    %v6375 = vld [vmem:[#allocation15 + $0x58] sm:$0xff]
    %v6376 = vld [vmem:[#allocation15 + $0x60] sm:$0xff]
    %v6377 = vld [vmem:[#allocation15 + $0x68] sm:$0xff]
    %v6378 = vld [vmem:[#allocation15 + $0x70] sm:$0xff]
    %v6379 = vld [vmem:[#allocation15 + $0x78] sm:$0xff]
    %v6380 = vld [vmem:[#allocation15 + $0x80] sm:$0xff]
    %v6381 = vld [vmem:[#allocation15 + $0x88] sm:$0xff]
    %v6382 = vld [vmem:[#allocation15 + $0x90] sm:$0xff]
    %v6383 = vld [vmem:[#allocation15 + $0x98] sm:$0xff]
    %v6384 = vld [vmem:[#allocation15 + $0xa0] sm:$0xff]
    %v6385 = vld [vmem:[#allocation15 + $0xa8] sm:$0xff]
    %v6386 = vld [vmem:[#allocation15 + $0xb0] sm:$0xff]
    %v6387 = vld [vmem:[#allocation15 + $0xb8] sm:$0xff]
    %v6388 = vld [vmem:[#allocation15 + $0xc0] sm:$0xff]
    %v6389 = vld [vmem:[#allocation15 + $0xc8] sm:$0xff]
    %v6390 = vld [vmem:[#allocation15 + $0xd0] sm:$0xff]
    %v6391 = vld [vmem:[#allocation15 + $0xd8] sm:$0xff]
    %v6392 = vld [vmem:[#allocation15 + $0xe0] sm:$0xff]
    %v6393 = vld [vmem:[#allocation15 + $0xe8] sm:$0xff]
    %v6394 = vld [vmem:[#allocation15 + $0xf0] sm:$0xff]
    %v6395 = vld [vmem:[#allocation15 + $0xf8] sm:$0xff]
    %v6396 = vld [vmem:[#allocation15 + $0x100] sm:$0xff]
    %v6397 = vld [vmem:[#allocation15 + $0x108] sm:$0xff]
    %v6398 = vld [vmem:[#allocation15 + $0x110] sm:$0xff]
    %v6399 = vld [vmem:[#allocation15 + $0x118] sm:$0xff]
    %v6400 = vld [vmem:[#allocation15 + $0x120] sm:$0xff]
    %v6401 = vld [vmem:[#allocation15 + $0x128] sm:$0xff]
    %v6402 = vld [vmem:[#allocation15 + $0x130] sm:$0xff]
    %v6403 = vld [vmem:[#allocation15 + $0x138] sm:$0xff]
    %v6404 = vld [vmem:[#allocation15 + $0x140] sm:$0xff]
    %v6405 = vld [vmem:[#allocation15 + $0x148] sm:$0xff]
    %v6406 = vld [vmem:[#allocation15 + $0x150] sm:$0xff]
    %v6407 = vld [vmem:[#allocation15 + $0x158] sm:$0xff]
    %v6408 = vld [vmem:[#allocation15 + $0x160] sm:$0xff]
    %v6409 = vld [vmem:[#allocation15 + $0x168] sm:$0xff]
    %v6410 = vld [vmem:[#allocation15 + $0x170] sm:$0xff]
    %v6411 = vld [vmem:[#allocation15 + $0x178] sm:$0xff]
    %v6412 = vld [vmem:[#allocation15 + $0x180] sm:$0xff]
    %v6413 = vld [vmem:[#allocation15 + $0x188] sm:$0xff]
    %v6414 = vld [vmem:[#allocation15 + $0x190] sm:$0xff]
    %v6415 = vld [vmem:[#allocation15 + $0x198] sm:$0xff]
    %v6416 = vld [vmem:[#allocation15 + $0x1a0] sm:$0xff]
    %v6417 = vld [vmem:[#allocation15 + $0x1a8] sm:$0xff]
    %v6418 = vld [vmem:[#allocation15 + $0x1b0] sm:$0xff]
    %v6419 = vld [vmem:[#allocation15 + $0x1b8] sm:$0xff]
    %v6420 = vld [vmem:[#allocation15 + $0x1c0] sm:$0xff]
    %v6421 = vld [vmem:[#allocation15 + $0x1c8] sm:$0xff]
    %v6422 = vld [vmem:[#allocation15 + $0x1d0] sm:$0xff]
    %v6423 = vld [vmem:[#allocation15 + $0x1d8] sm:$0xff]
    %v6424 = vld [vmem:[#allocation15 + $0x1e0] sm:$0xff]
    %v6425 = vld [vmem:[#allocation15 + $0x1e8] sm:$0xff]
    %v6426 = vld [vmem:[#allocation15 + $0x1f0] sm:$0xff]
    %v6427 = vld [vmem:[#allocation15 + $0x1f8] sm:$0xff]
    %v6428 = vld [vmem:[#allocation15 + $0x200] sm:$0xff]
    %v6429 = vld [vmem:[#allocation15 + $0x208] sm:$0xff]
    %v6430 = vld [vmem:[#allocation15 + $0x210] sm:$0xff]
    %v6431 = vld [vmem:[#allocation15 + $0x218] sm:$0xff]
    %v6432 = vld [vmem:[#allocation15 + $0x220] sm:$0xff]
    %v6433 = vld [vmem:[#allocation15 + $0x228] sm:$0xff]
    %v6434 = vld [vmem:[#allocation15 + $0x230] sm:$0xff]
    %v6435 = vld [vmem:[#allocation15 + $0x238] sm:$0xff]
    %v6436 = vld [vmem:[#allocation15 + $0x240] sm:$0xff]
    %v6437 = vld [vmem:[#allocation15 + $0x248] sm:$0xff]
    %v6438 = vld [vmem:[#allocation15 + $0x250] sm:$0xff]
    %v6439 = vld [vmem:[#allocation15 + $0x258] sm:$0xff]
    %v6440 = vld [vmem:[#allocation15 + $0x260] sm:$0xff]
    %v6441 = vld [vmem:[#allocation15 + $0x268] sm:$0xff]
    %v6442 = vld [vmem:[#allocation15 + $0x270] sm:$0xff]
    %v6443 = vld [vmem:[#allocation15 + $0x278] sm:$0xff]
    %v6444 = vld [vmem:[#allocation15 + $0x280] sm:$0xff]
    %v6445 = vld [vmem:[#allocation15 + $0x288] sm:$0xff]
    %v6446 = vld [vmem:[#allocation15 + $0x290] sm:$0xff]
    %v6447 = vld [vmem:[#allocation15 + $0x298] sm:$0xff]
    %v6448 = vld [vmem:[#allocation15 + $0x2a0] sm:$0xff]
    %v6449 = vld [vmem:[#allocation15 + $0x2a8] sm:$0xff]
    %v6450 = vld [vmem:[#allocation15 + $0x2b0] sm:$0xff]
    %v6451 = vld [vmem:[#allocation15 + $0x2b8] sm:$0xff]
    %v6452 = vld [vmem:[#allocation15 + $0x2c0] sm:$0xff]
    %v6453 = vld [vmem:[#allocation15 + $0x2c8] sm:$0xff]
    %v6454 = vld [vmem:[#allocation15 + $0x2d0] sm:$0xff]
    %v6455 = vld [vmem:[#allocation15 + $0x2d8] sm:$0xff]
    %v6456 = vld [vmem:[#allocation15 + $0x2e0] sm:$0xff]
    %v6457 = vld [vmem:[#allocation15 + $0x2e8] sm:$0xff]
    %v6458 = vld [vmem:[#allocation15 + $0x2f0] sm:$0xff]
    %v6459 = vld [vmem:[#allocation15 + $0x2f8] sm:$0xff]
    %v6460 = vld [vmem:[#allocation15 + $0x300] sm:$0xff]
    %v6461 = vld [vmem:[#allocation15 + $0x308] sm:$0xff]
    %v6462 = vld [vmem:[#allocation15 + $0x310] sm:$0xff]
    %v6463 = vld [vmem:[#allocation15 + $0x318] sm:$0xff]
    %v6464 = vld [vmem:[#allocation15 + $0x320] sm:$0xff]
    %v6465 = vld [vmem:[#allocation15 + $0x328] sm:$0xff]
    %v6466 = vld [vmem:[#allocation15 + $0x330] sm:$0xff]
    %v6467 = vld [vmem:[#allocation15 + $0x338] sm:$0xff]
    %v6468 = vld [vmem:[#allocation15 + $0x340] sm:$0xff]
    %v6469 = vld [vmem:[#allocation15 + $0x348] sm:$0xff]
    %v6470 = vld [vmem:[#allocation15 + $0x350] sm:$0xff]
    %v6471 = vld [vmem:[#allocation15 + $0x358] sm:$0xff]
    %v6472 = vld [vmem:[#allocation15 + $0x360] sm:$0xff]
    %v6473 = vld [vmem:[#allocation15 + $0x368] sm:$0xff]
    %v6474 = vld [vmem:[#allocation15 + $0x370] sm:$0xff]
    %v6475 = vld [vmem:[#allocation15 + $0x378] sm:$0xff]
    %v6476 = vld [vmem:[#allocation15 + $0x380] sm:$0xff]
    %v6477 = vld [vmem:[#allocation15 + $0x388] sm:$0xff]
    %v6478 = vld [vmem:[#allocation15 + $0x390] sm:$0xff]
    %v6479 = vld [vmem:[#allocation15 + $0x398] sm:$0xff]
    %v6480 = vld [vmem:[#allocation15 + $0x3a0] sm:$0xff]
    %v6481 = vld [vmem:[#allocation15 + $0x3a8] sm:$0xff]
    %v6482 = vld [vmem:[#allocation15 + $0x3b0] sm:$0xff]
    %v6483 = vld [vmem:[#allocation15 + $0x3b8] sm:$0xff]
    %v6484 = vld [vmem:[#allocation15 + $0x3c0] sm:$0xff]
    %v6485 = vld [vmem:[#allocation15 + $0x3c8] sm:$0xff]
    %v6486 = vld [vmem:[#allocation15 + $0x3d0] sm:$0xff]
    %v6487 = vld [vmem:[#allocation15 + $0x3d8] sm:$0xff]
    %v6488 = vld [vmem:[#allocation15 + $0x3e0] sm:$0xff]
    %v6489 = vld [vmem:[#allocation15 + $0x3e8] sm:$0xff]
    %v6490 = vld [vmem:[#allocation15 + $0x3f0] sm:$0xff]
    %v6491 = vld [vmem:[#allocation15 + $0x3f8] sm:$0xff]
    %v6492 = vld [vmem:[#allocation15 + $0x400] sm:$0xff]
    %v6493 = vld [vmem:[#allocation15 + $0x408] sm:$0xff]
    %v6494 = vld [vmem:[#allocation15 + $0x410] sm:$0xff]
    %v6495 = vld [vmem:[#allocation15 + $0x418] sm:$0xff]
    %v6496 = vld [vmem:[#allocation15 + $0x420] sm:$0xff]
    %v6497 = vld [vmem:[#allocation15 + $0x428] sm:$0xff]
    %v6498 = vld [vmem:[#allocation15 + $0x430] sm:$0xff]
    %v6499 = vld [vmem:[#allocation15 + $0x438] sm:$0xff]
    %v6500 = vld [vmem:[#allocation15 + $0x440] sm:$0xff]
    %v6501 = vld [vmem:[#allocation15 + $0x448] sm:$0xff]
    %v6502 = vld [vmem:[#allocation15 + $0x450] sm:$0xff]
    %v6503 = vld [vmem:[#allocation15 + $0x458] sm:$0xff]
    %v6504 = vld [vmem:[#allocation15 + $0x460] sm:$0xff]
    %v6505 = vld [vmem:[#allocation15 + $0x468] sm:$0xff]
    %v6506 = vld [vmem:[#allocation15 + $0x470] sm:$0xff]
    %v6507 = vld [vmem:[#allocation15 + $0x478] sm:$0xff]
    %v6508 = vld [vmem:[#allocation15 + $0x480] sm:$0xff]
    %v6509 = vld [vmem:[#allocation15 + $0x488] sm:$0xff]
    %v6510 = vld [vmem:[#allocation15 + $0x490] sm:$0xff]
    %v6511 = vld [vmem:[#allocation15 + $0x498] sm:$0xff]
    %v6512 = vld [vmem:[#allocation15 + $0x4a0] sm:$0xff]
    %v6513 = vld [vmem:[#allocation15 + $0x4a8] sm:$0xff]
    %v6514 = vld [vmem:[#allocation15 + $0x4b0] sm:$0xff]
    %v6515 = vld [vmem:[#allocation15 + $0x4b8] sm:$0xff]
    %v6516 = vld [vmem:[#allocation15 + $0x4c0] sm:$0xff]
    %v6517 = vld [vmem:[#allocation15 + $0x4c8] sm:$0xff]
    %v6518 = vld [vmem:[#allocation15 + $0x4d0] sm:$0xff]
    %v6519 = vld [vmem:[#allocation15 + $0x4d8] sm:$0xff]
    %v6520 = vld [vmem:[#allocation15 + $0x4e0] sm:$0xff]
    %v6521 = vld [vmem:[#allocation15 + $0x4e8] sm:$0xff]
    %v6522 = vld [vmem:[#allocation15 + $0x4f0] sm:$0xff]
    %v6523 = vld [vmem:[#allocation15 + $0x4f8] sm:$0xff]
    %v6524 = vld [vmem:[#allocation15 + $0x500] sm:$0xff]
    %v6525 = vld [vmem:[#allocation15 + $0x508] sm:$0xff]
    %v6526 = vld [vmem:[#allocation15 + $0x510] sm:$0xff]
    %v6527 = vld [vmem:[#allocation15 + $0x518] sm:$0xff]
    %v6528 = vld [vmem:[#allocation15 + $0x520] sm:$0xff]
    %v6529 = vld [vmem:[#allocation15 + $0x528] sm:$0xff]
    %v6530 = vld [vmem:[#allocation15 + $0x530] sm:$0xff]
    %v6531 = vld [vmem:[#allocation15 + $0x538] sm:$0xff]
    %v6532 = vld [vmem:[#allocation15 + $0x540] sm:$0xff]
    %v6533 = vld [vmem:[#allocation15 + $0x548] sm:$0xff]
    %v6534 = vld [vmem:[#allocation15 + $0x550] sm:$0xff]
    %v6535 = vld [vmem:[#allocation15 + $0x558] sm:$0xff]
    %v6536 = vld [vmem:[#allocation15 + $0x560] sm:$0xff]
    %v6537 = vld [vmem:[#allocation15 + $0x568] sm:$0xff]
    %v6538 = vld [vmem:[#allocation15 + $0x570] sm:$0xff]
    %v6539 = vld [vmem:[#allocation15 + $0x578] sm:$0xff]
    %v6540 = vld [vmem:[#allocation15 + $0x580] sm:$0xff]
    %v6541 = vld [vmem:[#allocation15 + $0x588] sm:$0xff]
    %v6542 = vld [vmem:[#allocation15 + $0x590] sm:$0xff]
    %v6543 = vld [vmem:[#allocation15 + $0x598] sm:$0xff]
    %v6544 = vld [vmem:[#allocation15 + $0x5a0] sm:$0xff]
    %v6545 = vld [vmem:[#allocation15 + $0x5a8] sm:$0xff]
    %v6546 = vld [vmem:[#allocation15 + $0x5b0] sm:$0xff]
    %v6547 = vld [vmem:[#allocation15 + $0x5b8] sm:$0xff]
    %v6548 = vld [vmem:[#allocation15 + $0x5c0] sm:$0xff]
    %v6549 = vld [vmem:[#allocation15 + $0x5c8] sm:$0xff]
    %v6550 = vld [vmem:[#allocation15 + $0x5d0] sm:$0xff]
    %v6551 = vld [vmem:[#allocation15 + $0x5d8] sm:$0xff]
    %v6552 = vld [vmem:[#allocation15 + $0x5e0] sm:$0xff]
    %v6553 = vld [vmem:[#allocation15 + $0x5e8] sm:$0xff]
    %v6554 = vld [vmem:[#allocation15 + $0x5f0] sm:$0xff]
    %v6555 = vld [vmem:[#allocation15 + $0x5f8] sm:$0xff]
    %v6748 = vunpack.c.l.b16 %v6364
    %v6749 = vunpack.c.h.b16 %v6364
    %v6750 = vunpack.c.l.b16 %v6365
    %v6751 = vunpack.c.h.b16 %v6365
    %v6752 = vunpack.c.l.b16 %v6366
    %v6753 = vunpack.c.h.b16 %v6366
    %v6754 = vunpack.c.l.b16 %v6367
    %v6755 = vunpack.c.h.b16 %v6367
    %v6756 = vunpack.c.l.b16 %v6368
    %v6757 = vunpack.c.h.b16 %v6368
    %v6758 = vunpack.c.l.b16 %v6369
    %v6759 = vunpack.c.h.b16 %v6369
    %v6760 = vunpack.c.l.b16 %v6370
    %v6761 = vunpack.c.h.b16 %v6370
    %v6762 = vunpack.c.l.b16 %v6371
    %v6763 = vunpack.c.h.b16 %v6371
    %v6764 = vunpack.c.l.b16 %v6372
    %v6765 = vunpack.c.h.b16 %v6372
    %v6766 = vunpack.c.l.b16 %v6373
    %v6767 = vunpack.c.h.b16 %v6373
    %v6768 = vunpack.c.l.b16 %v6374
    %v6769 = vunpack.c.h.b16 %v6374
    %v6770 = vunpack.c.l.b16 %v6375
    %v6771 = vunpack.c.h.b16 %v6375
    %v6772 = vunpack.c.l.b16 %v6376
    %v6773 = vunpack.c.h.b16 %v6376
    %v6774 = vunpack.c.l.b16 %v6377
    %v6775 = vunpack.c.h.b16 %v6377
    %v6776 = vunpack.c.l.b16 %v6378
    %v6777 = vunpack.c.h.b16 %v6378
    %v6778 = vunpack.c.l.b16 %v6379
    %v6779 = vunpack.c.h.b16 %v6379
    %v6780 = vunpack.c.l.b16 %v6380
    %v6781 = vunpack.c.h.b16 %v6380
    %v6782 = vunpack.c.l.b16 %v6381
    %v6783 = vunpack.c.h.b16 %v6381
    %v6784 = vunpack.c.l.b16 %v6382
    %v6785 = vunpack.c.h.b16 %v6382
    %v6786 = vunpack.c.l.b16 %v6383
    %v6787 = vunpack.c.h.b16 %v6383
    %v6788 = vunpack.c.l.b16 %v6384
    %v6789 = vunpack.c.h.b16 %v6384
    %v6790 = vunpack.c.l.b16 %v6385
    %v6791 = vunpack.c.h.b16 %v6385
    %v6792 = vunpack.c.l.b16 %v6386
    %v6793 = vunpack.c.h.b16 %v6386
    %v6794 = vunpack.c.l.b16 %v6387
    %v6795 = vunpack.c.h.b16 %v6387
    %v6796 = vunpack.c.l.b16 %v6388
    %v6797 = vunpack.c.h.b16 %v6388
    %v6798 = vunpack.c.l.b16 %v6389
    %v6799 = vunpack.c.h.b16 %v6389
    %v6800 = vunpack.c.l.b16 %v6390
    %v6801 = vunpack.c.h.b16 %v6390
    %v6802 = vunpack.c.l.b16 %v6391
    %v6803 = vunpack.c.h.b16 %v6391
    %v6804 = vunpack.c.l.b16 %v6392
    %v6805 = vunpack.c.h.b16 %v6392
    %v6806 = vunpack.c.l.b16 %v6393
    %v6807 = vunpack.c.h.b16 %v6393
    %v6808 = vunpack.c.l.b16 %v6394
    %v6809 = vunpack.c.h.b16 %v6394
    %v6810 = vunpack.c.l.b16 %v6395
    %v6811 = vunpack.c.h.b16 %v6395
    %v6812 = vunpack.c.l.b16 %v6396
    %v6813 = vunpack.c.h.b16 %v6396
    %v6814 = vunpack.c.l.b16 %v6397
    %v6815 = vunpack.c.h.b16 %v6397
    %v6816 = vunpack.c.l.b16 %v6398
    %v6817 = vunpack.c.h.b16 %v6398
    %v6818 = vunpack.c.l.b16 %v6399
    %v6819 = vunpack.c.h.b16 %v6399
    %v6820 = vunpack.c.l.b16 %v6400
    %v6821 = vunpack.c.h.b16 %v6400
    %v6822 = vunpack.c.l.b16 %v6401
    %v6823 = vunpack.c.h.b16 %v6401
    %v6824 = vunpack.c.l.b16 %v6402
    %v6825 = vunpack.c.h.b16 %v6402
    %v6826 = vunpack.c.l.b16 %v6403
    %v6827 = vunpack.c.h.b16 %v6403
    %v6828 = vunpack.c.l.b16 %v6404
    %v6829 = vunpack.c.h.b16 %v6404
    %v6830 = vunpack.c.l.b16 %v6405
    %v6831 = vunpack.c.h.b16 %v6405
    %v6832 = vunpack.c.l.b16 %v6406
    %v6833 = vunpack.c.h.b16 %v6406
    %v6834 = vunpack.c.l.b16 %v6407
    %v6835 = vunpack.c.h.b16 %v6407
    %v6836 = vunpack.c.l.b16 %v6408
    %v6837 = vunpack.c.h.b16 %v6408
    %v6838 = vunpack.c.l.b16 %v6409
    %v6839 = vunpack.c.h.b16 %v6409
    %v6840 = vunpack.c.l.b16 %v6410
    %v6841 = vunpack.c.h.b16 %v6410
    %v6842 = vunpack.c.l.b16 %v6411
    %v6843 = vunpack.c.h.b16 %v6411
    %v6844 = vunpack.c.l.b16 %v6412
    %v6845 = vunpack.c.h.b16 %v6412
    %v6846 = vunpack.c.l.b16 %v6413
    %v6847 = vunpack.c.h.b16 %v6413
    %v6848 = vunpack.c.l.b16 %v6414
    %v6849 = vunpack.c.h.b16 %v6414
    %v6850 = vunpack.c.l.b16 %v6415
    %v6851 = vunpack.c.h.b16 %v6415
    %v6852 = vunpack.c.l.b16 %v6416
    %v6853 = vunpack.c.h.b16 %v6416
    %v6854 = vunpack.c.l.b16 %v6417
    %v6855 = vunpack.c.h.b16 %v6417
    %v6856 = vunpack.c.l.b16 %v6418
    %v6857 = vunpack.c.h.b16 %v6418
    %v6858 = vunpack.c.l.b16 %v6419
    %v6859 = vunpack.c.h.b16 %v6419
    %v6860 = vunpack.c.l.b16 %v6420
    %v6861 = vunpack.c.h.b16 %v6420
    %v6862 = vunpack.c.l.b16 %v6421
    %v6863 = vunpack.c.h.b16 %v6421
    %v6864 = vunpack.c.l.b16 %v6422
    %v6865 = vunpack.c.h.b16 %v6422
    %v6866 = vunpack.c.l.b16 %v6423
    %v6867 = vunpack.c.h.b16 %v6423
    %v6868 = vunpack.c.l.b16 %v6424
    %v6869 = vunpack.c.h.b16 %v6424
    %v6870 = vunpack.c.l.b16 %v6425
    %v6871 = vunpack.c.h.b16 %v6425
    %v6872 = vunpack.c.l.b16 %v6426
    %v6873 = vunpack.c.h.b16 %v6426
    %v6874 = vunpack.c.l.b16 %v6427
    %v6875 = vunpack.c.h.b16 %v6427
    %v6876 = vunpack.c.l.b16 %v6428
    %v6877 = vunpack.c.h.b16 %v6428
    %v6878 = vunpack.c.l.b16 %v6429
    %v6879 = vunpack.c.h.b16 %v6429
    %v6880 = vunpack.c.l.b16 %v6430
    %v6881 = vunpack.c.h.b16 %v6430
    %v6882 = vunpack.c.l.b16 %v6431
    %v6883 = vunpack.c.h.b16 %v6431
    %v6884 = vunpack.c.l.b16 %v6432
    %v6885 = vunpack.c.h.b16 %v6432
    %v6886 = vunpack.c.l.b16 %v6433
    %v6887 = vunpack.c.h.b16 %v6433
    %v6888 = vunpack.c.l.b16 %v6434
    %v6889 = vunpack.c.h.b16 %v6434
    %v6890 = vunpack.c.l.b16 %v6435
    %v6891 = vunpack.c.h.b16 %v6435
    %v6892 = vunpack.c.l.b16 %v6436
    %v6893 = vunpack.c.h.b16 %v6436
    %v6894 = vunpack.c.l.b16 %v6437
    %v6895 = vunpack.c.h.b16 %v6437
    %v6896 = vunpack.c.l.b16 %v6438
    %v6897 = vunpack.c.h.b16 %v6438
    %v6898 = vunpack.c.l.b16 %v6439
    %v6899 = vunpack.c.h.b16 %v6439
    %v6900 = vunpack.c.l.b16 %v6440
    %v6901 = vunpack.c.h.b16 %v6440
    %v6902 = vunpack.c.l.b16 %v6441
    %v6903 = vunpack.c.h.b16 %v6441
    %v6904 = vunpack.c.l.b16 %v6442
    %v6905 = vunpack.c.h.b16 %v6442
    %v6906 = vunpack.c.l.b16 %v6443
    %v6907 = vunpack.c.h.b16 %v6443
    %v6908 = vunpack.c.l.b16 %v6444
    %v6909 = vunpack.c.h.b16 %v6444
    %v6910 = vunpack.c.l.b16 %v6445
    %v6911 = vunpack.c.h.b16 %v6445
    %v6912 = vunpack.c.l.b16 %v6446
    %v6913 = vunpack.c.h.b16 %v6446
    %v6914 = vunpack.c.l.b16 %v6447
    %v6915 = vunpack.c.h.b16 %v6447
    %v6916 = vunpack.c.l.b16 %v6448
    %v6917 = vunpack.c.h.b16 %v6448
    %v6918 = vunpack.c.l.b16 %v6449
    %v6919 = vunpack.c.h.b16 %v6449
    %v6920 = vunpack.c.l.b16 %v6450
    %v6921 = vunpack.c.h.b16 %v6450
    %v6922 = vunpack.c.l.b16 %v6451
    %v6923 = vunpack.c.h.b16 %v6451
    %v6924 = vunpack.c.l.b16 %v6452
    %v6925 = vunpack.c.h.b16 %v6452
    %v6926 = vunpack.c.l.b16 %v6453
    %v6927 = vunpack.c.h.b16 %v6453
    %v6928 = vunpack.c.l.b16 %v6454
    %v6929 = vunpack.c.h.b16 %v6454
    %v6930 = vunpack.c.l.b16 %v6455
    %v6931 = vunpack.c.h.b16 %v6455
    %v6932 = vunpack.c.l.b16 %v6456
    %v6933 = vunpack.c.h.b16 %v6456
    %v6934 = vunpack.c.l.b16 %v6457
    %v6935 = vunpack.c.h.b16 %v6457
    %v6936 = vunpack.c.l.b16 %v6458
    %v6937 = vunpack.c.h.b16 %v6458
    %v6938 = vunpack.c.l.b16 %v6459
    %v6939 = vunpack.c.h.b16 %v6459
    %v6940 = vunpack.c.l.b16 %v6460
    %v6941 = vunpack.c.h.b16 %v6460
    %v6942 = vunpack.c.l.b16 %v6461
    %v6943 = vunpack.c.h.b16 %v6461
    %v6944 = vunpack.c.l.b16 %v6462
    %v6945 = vunpack.c.h.b16 %v6462
    %v6946 = vunpack.c.l.b16 %v6463
    %v6947 = vunpack.c.h.b16 %v6463
    %v6948 = vunpack.c.l.b16 %v6464
    %v6949 = vunpack.c.h.b16 %v6464
    %v6950 = vunpack.c.l.b16 %v6465
    %v6951 = vunpack.c.h.b16 %v6465
    %v6952 = vunpack.c.l.b16 %v6466
    %v6953 = vunpack.c.h.b16 %v6466
    %v6954 = vunpack.c.l.b16 %v6467
    %v6955 = vunpack.c.h.b16 %v6467
    %v6956 = vunpack.c.l.b16 %v6468
    %v6957 = vunpack.c.h.b16 %v6468
    %v6958 = vunpack.c.l.b16 %v6469
    %v6959 = vunpack.c.h.b16 %v6469
    %v6960 = vunpack.c.l.b16 %v6470
    %v6961 = vunpack.c.h.b16 %v6470
    %v6962 = vunpack.c.l.b16 %v6471
    %v6963 = vunpack.c.h.b16 %v6471
    %v6964 = vunpack.c.l.b16 %v6472
    %v6965 = vunpack.c.h.b16 %v6472
    %v6966 = vunpack.c.l.b16 %v6473
    %v6967 = vunpack.c.h.b16 %v6473
    %v6968 = vunpack.c.l.b16 %v6474
    %v6969 = vunpack.c.h.b16 %v6474
    %v6970 = vunpack.c.l.b16 %v6475
    %v6971 = vunpack.c.h.b16 %v6475
    %v6972 = vunpack.c.l.b16 %v6476
    %v6973 = vunpack.c.h.b16 %v6476
    %v6974 = vunpack.c.l.b16 %v6477
    %v6975 = vunpack.c.h.b16 %v6477
    %v6976 = vunpack.c.l.b16 %v6478
    %v6977 = vunpack.c.h.b16 %v6478
    %v6978 = vunpack.c.l.b16 %v6479
    %v6979 = vunpack.c.h.b16 %v6479
    %v6980 = vunpack.c.l.b16 %v6480
    %v6981 = vunpack.c.h.b16 %v6480
    %v6982 = vunpack.c.l.b16 %v6481
    %v6983 = vunpack.c.h.b16 %v6481
    %v6984 = vunpack.c.l.b16 %v6482
    %v6985 = vunpack.c.h.b16 %v6482
    %v6986 = vunpack.c.l.b16 %v6483
    %v6987 = vunpack.c.h.b16 %v6483
    %v6988 = vunpack.c.l.b16 %v6484
    %v6989 = vunpack.c.h.b16 %v6484
    %v6990 = vunpack.c.l.b16 %v6485
    %v6991 = vunpack.c.h.b16 %v6485
    %v6992 = vunpack.c.l.b16 %v6486
    %v6993 = vunpack.c.h.b16 %v6486
    %v6994 = vunpack.c.l.b16 %v6487
    %v6995 = vunpack.c.h.b16 %v6487
    %v6996 = vunpack.c.l.b16 %v6488
    %v6997 = vunpack.c.h.b16 %v6488
    %v6998 = vunpack.c.l.b16 %v6489
    %v6999 = vunpack.c.h.b16 %v6489
    %v7000 = vunpack.c.l.b16 %v6490
    %v7001 = vunpack.c.h.b16 %v6490
    %v7002 = vunpack.c.l.b16 %v6491
    %v7003 = vunpack.c.h.b16 %v6491
    %v7004 = vunpack.c.l.b16 %v6492
    %v7005 = vunpack.c.h.b16 %v6492
    %v7006 = vunpack.c.l.b16 %v6493
    %v7007 = vunpack.c.h.b16 %v6493
    %v7008 = vunpack.c.l.b16 %v6494
    %v7009 = vunpack.c.h.b16 %v6494
    %v7010 = vunpack.c.l.b16 %v6495
    %v7011 = vunpack.c.h.b16 %v6495
    %v7012 = vunpack.c.l.b16 %v6496
    %v7013 = vunpack.c.h.b16 %v6496
    %v7014 = vunpack.c.l.b16 %v6497
    %v7015 = vunpack.c.h.b16 %v6497
    %v7016 = vunpack.c.l.b16 %v6498
    %v7017 = vunpack.c.h.b16 %v6498
    %v7018 = vunpack.c.l.b16 %v6499
    %v7019 = vunpack.c.h.b16 %v6499
    %v7020 = vunpack.c.l.b16 %v6500
    %v7021 = vunpack.c.h.b16 %v6500
    %v7022 = vunpack.c.l.b16 %v6501
    %v7023 = vunpack.c.h.b16 %v6501
    %v7024 = vunpack.c.l.b16 %v6502
    %v7025 = vunpack.c.h.b16 %v6502
    %v7026 = vunpack.c.l.b16 %v6503
    %v7027 = vunpack.c.h.b16 %v6503
    %v7028 = vunpack.c.l.b16 %v6504
    %v7029 = vunpack.c.h.b16 %v6504
    %v7030 = vunpack.c.l.b16 %v6505
    %v7031 = vunpack.c.h.b16 %v6505
    %v7032 = vunpack.c.l.b16 %v6506
    %v7033 = vunpack.c.h.b16 %v6506
    %v7034 = vunpack.c.l.b16 %v6507
    %v7035 = vunpack.c.h.b16 %v6507
    %v7036 = vunpack.c.l.b16 %v6508
    %v7037 = vunpack.c.h.b16 %v6508
    %v7038 = vunpack.c.l.b16 %v6509
    %v7039 = vunpack.c.h.b16 %v6509
    %v7040 = vunpack.c.l.b16 %v6510
    %v7041 = vunpack.c.h.b16 %v6510
    %v7042 = vunpack.c.l.b16 %v6511
    %v7043 = vunpack.c.h.b16 %v6511
    %v7044 = vunpack.c.l.b16 %v6512
    %v7045 = vunpack.c.h.b16 %v6512
    %v7046 = vunpack.c.l.b16 %v6513
    %v7047 = vunpack.c.h.b16 %v6513
    %v7048 = vunpack.c.l.b16 %v6514
    %v7049 = vunpack.c.h.b16 %v6514
    %v7050 = vunpack.c.l.b16 %v6515
    %v7051 = vunpack.c.h.b16 %v6515
    %v7052 = vunpack.c.l.b16 %v6516
    %v7053 = vunpack.c.h.b16 %v6516
    %v7054 = vunpack.c.l.b16 %v6517
    %v7055 = vunpack.c.h.b16 %v6517
    %v7056 = vunpack.c.l.b16 %v6518
    %v7057 = vunpack.c.h.b16 %v6518
    %v7058 = vunpack.c.l.b16 %v6519
    %v7059 = vunpack.c.h.b16 %v6519
    %v7060 = vunpack.c.l.b16 %v6520
    %v7061 = vunpack.c.h.b16 %v6520
    %v7062 = vunpack.c.l.b16 %v6521
    %v7063 = vunpack.c.h.b16 %v6521
    %v7064 = vunpack.c.l.b16 %v6522
    %v7065 = vunpack.c.h.b16 %v6522
    %v7066 = vunpack.c.l.b16 %v6523
    %v7067 = vunpack.c.h.b16 %v6523
    %v7068 = vunpack.c.l.b16 %v6524
    %v7069 = vunpack.c.h.b16 %v6524
    %v7070 = vunpack.c.l.b16 %v6525
    %v7071 = vunpack.c.h.b16 %v6525
    %v7072 = vunpack.c.l.b16 %v6526
    %v7073 = vunpack.c.h.b16 %v6526
    %v7074 = vunpack.c.l.b16 %v6527
    %v7075 = vunpack.c.h.b16 %v6527
    %v7076 = vunpack.c.l.b16 %v6528
    %v7077 = vunpack.c.h.b16 %v6528
    %v7078 = vunpack.c.l.b16 %v6529
    %v7079 = vunpack.c.h.b16 %v6529
    %v7080 = vunpack.c.l.b16 %v6530
    %v7081 = vunpack.c.h.b16 %v6530
    %v7082 = vunpack.c.l.b16 %v6531
    %v7083 = vunpack.c.h.b16 %v6531
    %v7084 = vunpack.c.l.b16 %v6532
    %v7085 = vunpack.c.h.b16 %v6532
    %v7086 = vunpack.c.l.b16 %v6533
    %v7087 = vunpack.c.h.b16 %v6533
    %v7088 = vunpack.c.l.b16 %v6534
    %v7089 = vunpack.c.h.b16 %v6534
    %v7090 = vunpack.c.l.b16 %v6535
    %v7091 = vunpack.c.h.b16 %v6535
    %v7092 = vunpack.c.l.b16 %v6536
    %v7093 = vunpack.c.h.b16 %v6536
    %v7094 = vunpack.c.l.b16 %v6537
    %v7095 = vunpack.c.h.b16 %v6537
    %v7096 = vunpack.c.l.b16 %v6538
    %v7097 = vunpack.c.h.b16 %v6538
    %v7098 = vunpack.c.l.b16 %v6539
    %v7099 = vunpack.c.h.b16 %v6539
    %v7100 = vunpack.c.l.b16 %v6540
    %v7101 = vunpack.c.h.b16 %v6540
    %v7102 = vunpack.c.l.b16 %v6541
    %v7103 = vunpack.c.h.b16 %v6541
    %v7104 = vunpack.c.l.b16 %v6542
    %v7105 = vunpack.c.h.b16 %v6542
    %v7106 = vunpack.c.l.b16 %v6543
    %v7107 = vunpack.c.h.b16 %v6543
    %v7108 = vunpack.c.l.b16 %v6544
    %v7109 = vunpack.c.h.b16 %v6544
    %v7110 = vunpack.c.l.b16 %v6545
    %v7111 = vunpack.c.h.b16 %v6545
    %v7112 = vunpack.c.l.b16 %v6546
    %v7113 = vunpack.c.h.b16 %v6546
    %v7114 = vunpack.c.l.b16 %v6547
    %v7115 = vunpack.c.h.b16 %v6547
    %v7116 = vunpack.c.l.b16 %v6548
    %v7117 = vunpack.c.h.b16 %v6548
    %v7118 = vunpack.c.l.b16 %v6549
    %v7119 = vunpack.c.h.b16 %v6549
    %v7120 = vunpack.c.l.b16 %v6550
    %v7121 = vunpack.c.h.b16 %v6550
    %v7122 = vunpack.c.l.b16 %v6551
    %v7123 = vunpack.c.h.b16 %v6551
    %v7124 = vunpack.c.l.b16 %v6552
    %v7125 = vunpack.c.h.b16 %v6552
    %v7126 = vunpack.c.l.b16 %v6553
    %v7127 = vunpack.c.h.b16 %v6553
    %v7128 = vunpack.c.l.b16 %v6554
    %v7129 = vunpack.c.h.b16 %v6554
    %v7130 = vunpack.c.l.b16 %v6555
    %v7131 = vunpack.c.h.b16 %v6555
    %v7132 = vpack.c.b16 %v6750, %v6748
    %v7133 = vpack.c.b16 %v6751, %v6749
    %v7134 = vpack.c.b16 %v6754, %v6752
    %v7135 = vpack.c.b16 %v6755, %v6753
    %v7136 = vpack.c.b16 %v6758, %v6756
    %v7137 = vpack.c.b16 %v6759, %v6757
    %v7138 = vpack.c.b16 %v6762, %v6760
    %v7139 = vpack.c.b16 %v6763, %v6761
    %v7140 = vpack.c.b16 %v6766, %v6764
    %v7141 = vpack.c.b16 %v6767, %v6765
    %v7142 = vpack.c.b16 %v6770, %v6768
    %v7143 = vpack.c.b16 %v6771, %v6769
    %v7144 = vpack.c.b16 %v6774, %v6772
    %v7145 = vpack.c.b16 %v6775, %v6773
    %v7146 = vpack.c.b16 %v6778, %v6776
    %v7147 = vpack.c.b16 %v6779, %v6777
    %v7148 = vpack.c.b16 %v6782, %v6780
    %v7149 = vpack.c.b16 %v6783, %v6781
    %v7150 = vpack.c.b16 %v6786, %v6784
    %v7151 = vpack.c.b16 %v6787, %v6785
    %v7152 = vpack.c.b16 %v6790, %v6788
    %v7153 = vpack.c.b16 %v6791, %v6789
    %v7154 = vpack.c.b16 %v6794, %v6792
    %v7155 = vpack.c.b16 %v6795, %v6793
    %v7156 = vpack.c.b16 %v6798, %v6796
    %v7157 = vpack.c.b16 %v6799, %v6797
    %v7158 = vpack.c.b16 %v6802, %v6800
    %v7159 = vpack.c.b16 %v6803, %v6801
    %v7160 = vpack.c.b16 %v6806, %v6804
    %v7161 = vpack.c.b16 %v6807, %v6805
    %v7162 = vpack.c.b16 %v6810, %v6808
    %v7163 = vpack.c.b16 %v6811, %v6809
    %v7164 = vpack.c.b16 %v6814, %v6812
    %v7165 = vpack.c.b16 %v6815, %v6813
    %v7166 = vpack.c.b16 %v6818, %v6816
    %v7167 = vpack.c.b16 %v6819, %v6817
    %v7168 = vpack.c.b16 %v6822, %v6820
    %v7169 = vpack.c.b16 %v6823, %v6821
    %v7170 = vpack.c.b16 %v6826, %v6824
    %v7171 = vpack.c.b16 %v6827, %v6825
    %v7172 = vpack.c.b16 %v6830, %v6828
    %v7173 = vpack.c.b16 %v6831, %v6829
    %v7174 = vpack.c.b16 %v6834, %v6832
    %v7175 = vpack.c.b16 %v6835, %v6833
    %v7176 = vpack.c.b16 %v6838, %v6836
    %v7177 = vpack.c.b16 %v6839, %v6837
    %v7178 = vpack.c.b16 %v6842, %v6840
    %v7179 = vpack.c.b16 %v6843, %v6841
    %v7180 = vpack.c.b16 %v6846, %v6844
    %v7181 = vpack.c.b16 %v6847, %v6845
    %v7182 = vpack.c.b16 %v6850, %v6848
    %v7183 = vpack.c.b16 %v6851, %v6849
    %v7184 = vpack.c.b16 %v6854, %v6852
    %v7185 = vpack.c.b16 %v6855, %v6853
    %v7186 = vpack.c.b16 %v6858, %v6856
    %v7187 = vpack.c.b16 %v6859, %v6857
    %v7188 = vpack.c.b16 %v6862, %v6860
    %v7189 = vpack.c.b16 %v6863, %v6861
    %v7190 = vpack.c.b16 %v6866, %v6864
    %v7191 = vpack.c.b16 %v6867, %v6865
    %v7192 = vpack.c.b16 %v6870, %v6868
    %v7193 = vpack.c.b16 %v6871, %v6869
    %v7194 = vpack.c.b16 %v6874, %v6872
    %v7195 = vpack.c.b16 %v6875, %v6873
    %v7196 = vpack.c.b16 %v6878, %v6876
    %v7197 = vpack.c.b16 %v6879, %v6877
    %v7198 = vpack.c.b16 %v6882, %v6880
    %v7199 = vpack.c.b16 %v6883, %v6881
    %v7200 = vpack.c.b16 %v6886, %v6884
    %v7201 = vpack.c.b16 %v6887, %v6885
    %v7202 = vpack.c.b16 %v6890, %v6888
    %v7203 = vpack.c.b16 %v6891, %v6889
    %v7204 = vpack.c.b16 %v6894, %v6892
    %v7205 = vpack.c.b16 %v6895, %v6893
    %v7206 = vpack.c.b16 %v6898, %v6896
    %v7207 = vpack.c.b16 %v6899, %v6897
    %v7208 = vpack.c.b16 %v6902, %v6900
    %v7209 = vpack.c.b16 %v6903, %v6901
    %v7210 = vpack.c.b16 %v6906, %v6904
    %v7211 = vpack.c.b16 %v6907, %v6905
    %v7212 = vpack.c.b16 %v6910, %v6908
    %v7213 = vpack.c.b16 %v6911, %v6909
    %v7214 = vpack.c.b16 %v6914, %v6912
    %v7215 = vpack.c.b16 %v6915, %v6913
    %v7216 = vpack.c.b16 %v6918, %v6916
    %v7217 = vpack.c.b16 %v6919, %v6917
    %v7218 = vpack.c.b16 %v6922, %v6920
    %v7219 = vpack.c.b16 %v6923, %v6921
    %v7220 = vpack.c.b16 %v6926, %v6924
    %v7221 = vpack.c.b16 %v6927, %v6925
    %v7222 = vpack.c.b16 %v6930, %v6928
    %v7223 = vpack.c.b16 %v6931, %v6929
    %v7224 = vpack.c.b16 %v6934, %v6932
    %v7225 = vpack.c.b16 %v6935, %v6933
    %v7226 = vpack.c.b16 %v6938, %v6936
    %v7227 = vpack.c.b16 %v6939, %v6937
    %v7228 = vpack.c.b16 %v6942, %v6940
    %v7229 = vpack.c.b16 %v6943, %v6941
    %v7230 = vpack.c.b16 %v6946, %v6944
    %v7231 = vpack.c.b16 %v6947, %v6945
    %v7232 = vpack.c.b16 %v6950, %v6948
    %v7233 = vpack.c.b16 %v6951, %v6949
    %v7234 = vpack.c.b16 %v6954, %v6952
    %v7235 = vpack.c.b16 %v6955, %v6953
    %v7236 = vpack.c.b16 %v6958, %v6956
    %v7237 = vpack.c.b16 %v6959, %v6957
    %v7238 = vpack.c.b16 %v6962, %v6960
    %v7239 = vpack.c.b16 %v6963, %v6961
    %v7240 = vpack.c.b16 %v6966, %v6964
    %v7241 = vpack.c.b16 %v6967, %v6965
    %v7242 = vpack.c.b16 %v6970, %v6968
    %v7243 = vpack.c.b16 %v6971, %v6969
    %v7244 = vpack.c.b16 %v6974, %v6972
    %v7245 = vpack.c.b16 %v6975, %v6973
    %v7246 = vpack.c.b16 %v6978, %v6976
    %v7247 = vpack.c.b16 %v6979, %v6977
    %v7248 = vpack.c.b16 %v6982, %v6980
    %v7249 = vpack.c.b16 %v6983, %v6981
    %v7250 = vpack.c.b16 %v6986, %v6984
    %v7251 = vpack.c.b16 %v6987, %v6985
    %v7252 = vpack.c.b16 %v6990, %v6988
    %v7253 = vpack.c.b16 %v6991, %v6989
    %v7254 = vpack.c.b16 %v6994, %v6992
    %v7255 = vpack.c.b16 %v6995, %v6993
    %v7256 = vpack.c.b16 %v6998, %v6996
    %v7257 = vpack.c.b16 %v6999, %v6997
    %v7258 = vpack.c.b16 %v7002, %v7000
    %v7259 = vpack.c.b16 %v7003, %v7001
    %v7260 = vpack.c.b16 %v7006, %v7004
    %v7261 = vpack.c.b16 %v7007, %v7005
    %v7262 = vpack.c.b16 %v7010, %v7008
    %v7263 = vpack.c.b16 %v7011, %v7009
    %v7264 = vpack.c.b16 %v7014, %v7012
    %v7265 = vpack.c.b16 %v7015, %v7013
    %v7266 = vpack.c.b16 %v7018, %v7016
    %v7267 = vpack.c.b16 %v7019, %v7017
    %v7268 = vpack.c.b16 %v7022, %v7020
    %v7269 = vpack.c.b16 %v7023, %v7021
    %v7270 = vpack.c.b16 %v7026, %v7024
    %v7271 = vpack.c.b16 %v7027, %v7025
    %v7272 = vpack.c.b16 %v7030, %v7028
    %v7273 = vpack.c.b16 %v7031, %v7029
    %v7274 = vpack.c.b16 %v7034, %v7032
    %v7275 = vpack.c.b16 %v7035, %v7033
    %v7276 = vpack.c.b16 %v7038, %v7036
    %v7277 = vpack.c.b16 %v7039, %v7037
    %v7278 = vpack.c.b16 %v7042, %v7040
    %v7279 = vpack.c.b16 %v7043, %v7041
    %v7280 = vpack.c.b16 %v7046, %v7044
    %v7281 = vpack.c.b16 %v7047, %v7045
    %v7282 = vpack.c.b16 %v7050, %v7048
    %v7283 = vpack.c.b16 %v7051, %v7049
    %v7284 = vpack.c.b16 %v7054, %v7052
    %v7285 = vpack.c.b16 %v7055, %v7053
    %v7286 = vpack.c.b16 %v7058, %v7056
    %v7287 = vpack.c.b16 %v7059, %v7057
    %v7288 = vpack.c.b16 %v7062, %v7060
    %v7289 = vpack.c.b16 %v7063, %v7061
    %v7290 = vpack.c.b16 %v7066, %v7064
    %v7291 = vpack.c.b16 %v7067, %v7065
    %v7292 = vpack.c.b16 %v7070, %v7068
    %v7293 = vpack.c.b16 %v7071, %v7069
    %v7294 = vpack.c.b16 %v7074, %v7072
    %v7295 = vpack.c.b16 %v7075, %v7073
    %v7296 = vpack.c.b16 %v7078, %v7076
    %v7297 = vpack.c.b16 %v7079, %v7077
    %v7298 = vpack.c.b16 %v7082, %v7080
    %v7299 = vpack.c.b16 %v7083, %v7081
    %v7300 = vpack.c.b16 %v7086, %v7084
    %v7301 = vpack.c.b16 %v7087, %v7085
    %v7302 = vpack.c.b16 %v7090, %v7088
    %v7303 = vpack.c.b16 %v7091, %v7089
    %v7304 = vpack.c.b16 %v7094, %v7092
    %v7305 = vpack.c.b16 %v7095, %v7093
    %v7306 = vpack.c.b16 %v7098, %v7096
    %v7307 = vpack.c.b16 %v7099, %v7097
    %v7308 = vpack.c.b16 %v7102, %v7100
    %v7309 = vpack.c.b16 %v7103, %v7101
    %v7310 = vpack.c.b16 %v7106, %v7104
    %v7311 = vpack.c.b16 %v7107, %v7105
    %v7312 = vpack.c.b16 %v7110, %v7108
    %v7313 = vpack.c.b16 %v7111, %v7109
    %v7314 = vpack.c.b16 %v7114, %v7112
    %v7315 = vpack.c.b16 %v7115, %v7113
    %v7316 = vpack.c.b16 %v7118, %v7116
    %v7317 = vpack.c.b16 %v7119, %v7117
    %v7318 = vpack.c.b16 %v7122, %v7120
    %v7319 = vpack.c.b16 %v7123, %v7121
    %v7320 = vpack.c.b16 %v7126, %v7124
    %v7321 = vpack.c.b16 %v7127, %v7125
    %v7322 = vpack.c.b16 %v7130, %v7128
    %v7323 = vpack.c.b16 %v7131, %v7129
    %7516 = vmatpush.bf16.msra.mxu0 %v7146
    %7517 = vmatpush.bf16.msra.mxu0 %v7144
    %7518 = vmatpush.bf16.msra.mxu0 %v7142
    %7519 = vmatpush.bf16.msra.mxu0 %v7140
    %7520 = vmatpush.bf16.msra.mxu0 %v7138
    %7521 = vmatpush.bf16.msra.mxu0 %v7136
    %7522 = vmatpush.bf16.msra.mxu0 %v7134
    %7523 = vmatpush.bf16.msra.mxu0 %v7132
    %7524 = vmatmul.bf16.gmra.mxu0 %v5868
    %v7525 = vpop.f32.mrf.mxu0
    %v7526 = vadd.f32 0.0, %v7525
    %v7527 = vpop.f32.mrf.mxu0
    %v7528 = vadd.f32 0.0, %v7527
    %7529 = vmatmul.bf16.gmra.mxu0 %v5872
    %v7530 = vpop.f32.mrf.mxu0
    %v7531 = vadd.f32 0.0, %v7530
    %v7532 = vpop.f32.mrf.mxu0
    %v7533 = vadd.f32 0.0, %v7532
    %7534 = vmatmul.bf16.gmra.mxu0 %v5876
    %v7535 = vpop.f32.mrf.mxu0
    %v7536 = vadd.f32 0.0, %v7535
    %v7537 = vpop.f32.mrf.mxu0
    %v7538 = vadd.f32 0.0, %v7537
    %7539 = vmatmul.bf16.gmra.mxu0 %v5880
    %v7540 = vpop.f32.mrf.mxu0
    %v7541 = vadd.f32 0.0, %v7540
    %v7542 = vpop.f32.mrf.mxu0
    %v7543 = vadd.f32 0.0, %v7542
    %7544 = vmatmul.bf16.gmra.mxu0 %v5884
    %v7545 = vpop.f32.mrf.mxu0
    %v7546 = vadd.f32 0.0, %v7545
    %v7547 = vpop.f32.mrf.mxu0
    %v7548 = vadd.f32 0.0, %v7547
    %7549 = vmatmul.bf16.gmra.mxu0 %v5888
    %v7550 = vpop.f32.mrf.mxu0
    %v7551 = vadd.f32 0.0, %v7550
    %v7552 = vpop.f32.mrf.mxu0
    %v7553 = vadd.f32 0.0, %v7552
    %7554 = vmatmul.bf16.gmra.mxu0 %v5892
    %v7555 = vpop.f32.mrf.mxu0
    %v7556 = vadd.f32 0.0, %v7555
    %v7557 = vpop.f32.mrf.mxu0
    %v7558 = vadd.f32 0.0, %v7557
    %7559 = vmatmul.bf16.gmra.mxu0 %v5896
    %v7560 = vpop.f32.mrf.mxu0
    %v7561 = vadd.f32 0.0, %v7560
    %v7562 = vpop.f32.mrf.mxu0
    %v7563 = vadd.f32 0.0, %v7562
    %7564 = vmatmul.bf16.gmra.mxu0 %v5900
    %v7565 = vpop.f32.mrf.mxu0
    %v7566 = vadd.f32 0.0, %v7565
    %v7567 = vpop.f32.mrf.mxu0
    %7568 = vdwg.mxu0
    %7569 = vmatpush.bf16.msra.mxu0 %v7162
    %7570 = vmatpush.bf16.msra.mxu0 %v7160
    %7571 = vmatpush.bf16.msra.mxu0 %v7158
    %7572 = vmatpush.bf16.msra.mxu0 %v7156
    %7573 = vmatpush.bf16.msra.mxu0 %v7154
    %7574 = vmatpush.bf16.msra.mxu0 %v7152
    %7575 = vmatpush.bf16.msra.mxu0 %v7150
    %7576 = vmatpush.bf16.msra.mxu0 %v7148
    %7577 = vmatmul.bf16.gmra.mxu0 %v5869
    %v7578 = vpop.f32.mrf.mxu0
    %v7579 = vadd.f32 %v7526, %v7578
    %v7580 = vpop.f32.mrf.mxu0
    %v7581 = vadd.f32 %v7528, %v7580
    %7582 = vmatmul.bf16.gmra.mxu0 %v5873
    %v7583 = vpop.f32.mrf.mxu0
    %v7584 = vadd.f32 %v7531, %v7583
    %v7585 = vpop.f32.mrf.mxu0
    %v7586 = vadd.f32 %v7533, %v7585
    %7587 = vmatmul.bf16.gmra.mxu0 %v5877
    %v7588 = vpop.f32.mrf.mxu0
    %v7589 = vadd.f32 %v7536, %v7588
    %v7590 = vpop.f32.mrf.mxu0
    %v7591 = vadd.f32 %v7538, %v7590
    %7592 = vmatmul.bf16.gmra.mxu0 %v5881
    %v7593 = vpop.f32.mrf.mxu0
    %v7594 = vadd.f32 %v7541, %v7593
    %v7595 = vpop.f32.mrf.mxu0
    %v7596 = vadd.f32 %v7543, %v7595
    %7597 = vmatmul.bf16.gmra.mxu0 %v5885
    %v7598 = vpop.f32.mrf.mxu0
    %v7599 = vadd.f32 %v7546, %v7598
    %v7600 = vpop.f32.mrf.mxu0
    %v7601 = vadd.f32 %v7548, %v7600
    %7602 = vmatmul.bf16.gmra.mxu0 %v5889
    %v7603 = vpop.f32.mrf.mxu0
    %v7604 = vadd.f32 %v7551, %v7603
    %v7605 = vpop.f32.mrf.mxu0
    %v7606 = vadd.f32 %v7553, %v7605
    %7607 = vmatmul.bf16.gmra.mxu0 %v5893
    %v7608 = vpop.f32.mrf.mxu0
    %v7609 = vadd.f32 %v7556, %v7608
    %v7610 = vpop.f32.mrf.mxu0
    %v7611 = vadd.f32 %v7558, %v7610
    %7612 = vmatmul.bf16.gmra.mxu0 %v5897
    %v7613 = vpop.f32.mrf.mxu0
    %v7614 = vadd.f32 %v7561, %v7613
    %v7615 = vpop.f32.mrf.mxu0
    %v7616 = vadd.f32 %v7563, %v7615
    %7617 = vmatmul.bf16.gmra.mxu0 %v5901
    %v7618 = vpop.f32.mrf.mxu0
    %v7619 = vadd.f32 %v7566, %v7618
    %v7620 = vpop.f32.mrf.mxu0
    %7621 = vdwg.mxu0
    %7622 = vmatpush.bf16.msra.mxu0 %v7178
    %7623 = vmatpush.bf16.msra.mxu0 %v7176
    %7624 = vmatpush.bf16.msra.mxu0 %v7174
    %7625 = vmatpush.bf16.msra.mxu0 %v7172
    %7626 = vmatpush.bf16.msra.mxu0 %v7170
    %7627 = vmatpush.bf16.msra.mxu0 %v7168
    %7628 = vmatpush.bf16.msra.mxu0 %v7166
    %7629 = vmatpush.bf16.msra.mxu0 %v7164
    %7630 = vmatmul.bf16.gmra.mxu0 %v5870
    %v7631 = vpop.f32.mrf.mxu0
    %v7632 = vadd.f32 %v7579, %v7631
    %v7633 = vpop.f32.mrf.mxu0
    %v7634 = vadd.f32 %v7581, %v7633
    %7635 = vmatmul.bf16.gmra.mxu0 %v5874
    %v7636 = vpop.f32.mrf.mxu0
    %v7637 = vadd.f32 %v7584, %v7636
    %v7638 = vpop.f32.mrf.mxu0
    %v7639 = vadd.f32 %v7586, %v7638
    %7640 = vmatmul.bf16.gmra.mxu0 %v5878
    %v7641 = vpop.f32.mrf.mxu0
    %v7642 = vadd.f32 %v7589, %v7641
    %v7643 = vpop.f32.mrf.mxu0
    %v7644 = vadd.f32 %v7591, %v7643
    %7645 = vmatmul.bf16.gmra.mxu0 %v5882
    %v7646 = vpop.f32.mrf.mxu0
    %v7647 = vadd.f32 %v7594, %v7646
    %v7648 = vpop.f32.mrf.mxu0
    %v7649 = vadd.f32 %v7596, %v7648
    %7650 = vmatmul.bf16.gmra.mxu0 %v5886
    %v7651 = vpop.f32.mrf.mxu0
    %v7652 = vadd.f32 %v7599, %v7651
    %v7653 = vpop.f32.mrf.mxu0
    %v7654 = vadd.f32 %v7601, %v7653
    %7655 = vmatmul.bf16.gmra.mxu0 %v5890
    %v7656 = vpop.f32.mrf.mxu0
    %v7657 = vadd.f32 %v7604, %v7656
    %v7658 = vpop.f32.mrf.mxu0
    %v7659 = vadd.f32 %v7606, %v7658
    %7660 = vmatmul.bf16.gmra.mxu0 %v5894
    %v7661 = vpop.f32.mrf.mxu0
    %v7662 = vadd.f32 %v7609, %v7661
    %v7663 = vpop.f32.mrf.mxu0
    %v7664 = vadd.f32 %v7611, %v7663
    %7665 = vmatmul.bf16.gmra.mxu0 %v5898
    %v7666 = vpop.f32.mrf.mxu0
    %v7667 = vadd.f32 %v7614, %v7666
    %v7668 = vpop.f32.mrf.mxu0
    %v7669 = vadd.f32 %v7616, %v7668
    %7670 = vmatmul.bf16.gmra.mxu0 %v5902
    %v7671 = vpop.f32.mrf.mxu0
    %v7672 = vadd.f32 %v7619, %v7671
    %v7673 = vpop.f32.mrf.mxu0
    %7674 = vdwg.mxu0
    %7675 = vmatpush.bf16.msra.mxu0 %v7194
    %7676 = vmatpush.bf16.msra.mxu0 %v7192
    %7677 = vmatpush.bf16.msra.mxu0 %v7190
    %7678 = vmatpush.bf16.msra.mxu0 %v7188
    %7679 = vmatpush.bf16.msra.mxu0 %v7186
    %7680 = vmatpush.bf16.msra.mxu0 %v7184
    %7681 = vmatpush.bf16.msra.mxu0 %v7182
    %7682 = vmatpush.bf16.msra.mxu0 %v7180
    %7683 = vmatmul.bf16.gmra.mxu0 %v5871
    %v7684 = vpop.f32.mrf.mxu0
    %v7685 = vadd.f32 %v7632, %v7684
    %v7686 = vpop.f32.mrf.mxu0
    %v7687 = vadd.f32 %v7634, %v7686
    %7688 = vmatmul.bf16.gmra.mxu0 %v5875
    %v7689 = vpop.f32.mrf.mxu0
    %v7690 = vadd.f32 %v7637, %v7689
    %v7691 = vpop.f32.mrf.mxu0
    %v7692 = vadd.f32 %v7639, %v7691
    %7693 = vmatmul.bf16.gmra.mxu0 %v5879
    %v7694 = vpop.f32.mrf.mxu0
    %v7695 = vadd.f32 %v7642, %v7694
    %v7696 = vpop.f32.mrf.mxu0
    %v7697 = vadd.f32 %v7644, %v7696
    %7698 = vmatmul.bf16.gmra.mxu0 %v5883
    %v7699 = vpop.f32.mrf.mxu0
    %v7700 = vadd.f32 %v7647, %v7699
    %v7701 = vpop.f32.mrf.mxu0
    %v7702 = vadd.f32 %v7649, %v7701
    %7703 = vmatmul.bf16.gmra.mxu0 %v5887
    %v7704 = vpop.f32.mrf.mxu0
    %v7705 = vadd.f32 %v7652, %v7704
    %v7706 = vpop.f32.mrf.mxu0
    %v7707 = vadd.f32 %v7654, %v7706
    %7708 = vmatmul.bf16.gmra.mxu0 %v5891
    %v7709 = vpop.f32.mrf.mxu0
    %v7710 = vadd.f32 %v7657, %v7709
    %v7711 = vpop.f32.mrf.mxu0
    %v7712 = vadd.f32 %v7659, %v7711
    %7713 = vmatmul.bf16.gmra.mxu0 %v5895
    %v7714 = vpop.f32.mrf.mxu0
    %v7715 = vadd.f32 %v7662, %v7714
    %v7716 = vpop.f32.mrf.mxu0
    %v7717 = vadd.f32 %v7664, %v7716
    %7718 = vmatmul.bf16.gmra.mxu0 %v5899
    %v7719 = vpop.f32.mrf.mxu0
    %v7720 = vadd.f32 %v7667, %v7719
    %v7721 = vpop.f32.mrf.mxu0
    %v7722 = vadd.f32 %v7669, %v7721
    %7723 = vmatmul.bf16.gmra.mxu0 %v5903
    %v7724 = vpop.f32.mrf.mxu0
    %v7725 = vadd.f32 %v7672, %v7724
    %v7726 = vpop.f32.mrf.mxu0
    %7727 = vdwg.mxu0
    %7728 = vmatpush.bf16.msra.mxu0 %v7210
    %7729 = vmatpush.bf16.msra.mxu0 %v7208
    %7730 = vmatpush.bf16.msra.mxu0 %v7206
    %7731 = vmatpush.bf16.msra.mxu0 %v7204
    %7732 = vmatpush.bf16.msra.mxu0 %v7202
    %7733 = vmatpush.bf16.msra.mxu0 %v7200
    %7734 = vmatpush.bf16.msra.mxu0 %v7198
    %7735 = vmatpush.bf16.msra.mxu0 %v7196
    %7736 = vmatmul.bf16.gmra.mxu0 %v5951
    %v7737 = vpop.f32.mrf.mxu0
    %v7738 = vadd.f32 %v7685, %v7737
    %v7739 = vpop.f32.mrf.mxu0
    %v7740 = vadd.f32 %v7687, %v7739
    %7741 = vmatmul.bf16.gmra.mxu0 %v5995
    %v7742 = vpop.f32.mrf.mxu0
    %v7743 = vadd.f32 %v7690, %v7742
    %v7744 = vpop.f32.mrf.mxu0
    %v7745 = vadd.f32 %v7692, %v7744
    %7746 = vmatmul.bf16.gmra.mxu0 %v6027
    %v7747 = vpop.f32.mrf.mxu0
    %v7748 = vadd.f32 %v7695, %v7747
    %v7749 = vpop.f32.mrf.mxu0
    %v7750 = vadd.f32 %v7697, %v7749
    %7751 = vmatmul.bf16.gmra.mxu0 %v6059
    %v7752 = vpop.f32.mrf.mxu0
    %v7753 = vadd.f32 %v7700, %v7752
    %v7754 = vpop.f32.mrf.mxu0
    %v7755 = vadd.f32 %v7702, %v7754
    %7756 = vmatmul.bf16.gmra.mxu0 %v6091
    %v7757 = vpop.f32.mrf.mxu0
    %v7758 = vadd.f32 %v7705, %v7757
    %v7759 = vpop.f32.mrf.mxu0
    %v7760 = vadd.f32 %v7707, %v7759
    %7761 = vmatmul.bf16.gmra.mxu0 %v6123
    %v7762 = vpop.f32.mrf.mxu0
    %v7763 = vadd.f32 %v7710, %v7762
    %v7764 = vpop.f32.mrf.mxu0
    %v7765 = vadd.f32 %v7712, %v7764
    %7766 = vmatmul.bf16.gmra.mxu0 %v6155
    %v7767 = vpop.f32.mrf.mxu0
    %v7768 = vadd.f32 %v7715, %v7767
    %v7769 = vpop.f32.mrf.mxu0
    %v7770 = vadd.f32 %v7717, %v7769
    %7771 = vmatmul.bf16.gmra.mxu0 %v6187
    %v7772 = vpop.f32.mrf.mxu0
    %v7773 = vadd.f32 %v7720, %v7772
    %v7774 = vpop.f32.mrf.mxu0
    %v7775 = vadd.f32 %v7722, %v7774
    %7776 = vmatmul.bf16.gmra.mxu0 %v6214
    %v7777 = vpop.f32.mrf.mxu0
    %v7778 = vadd.f32 %v7725, %v7777
    %v7779 = vpop.f32.mrf.mxu0
    %7780 = vdwg.mxu0
    %7781 = vmatpush.bf16.msra.mxu0 %v7226
    %7782 = vmatpush.bf16.msra.mxu0 %v7224
    %7783 = vmatpush.bf16.msra.mxu0 %v7222
    %7784 = vmatpush.bf16.msra.mxu0 %v7220
    %7785 = vmatpush.bf16.msra.mxu0 %v7218
    %7786 = vmatpush.bf16.msra.mxu0 %v7216
    %7787 = vmatpush.bf16.msra.mxu0 %v7214
    %7788 = vmatpush.bf16.msra.mxu0 %v7212
    %7789 = vmatmul.bf16.gmra.mxu0 %v5963
    %v7790 = vpop.f32.mrf.mxu0
    %v7791 = vadd.f32 %v7738, %v7790
    %v7792 = vpop.f32.mrf.mxu0
    %v7793 = vadd.f32 %v7740, %v7792
    %7794 = vmatmul.bf16.gmra.mxu0 %v6003
    %v7795 = vpop.f32.mrf.mxu0
    %v7796 = vadd.f32 %v7743, %v7795
    %v7797 = vpop.f32.mrf.mxu0
    %v7798 = vadd.f32 %v7745, %v7797
    %7799 = vmatmul.bf16.gmra.mxu0 %v6035
    %v7800 = vpop.f32.mrf.mxu0
    %v7801 = vadd.f32 %v7748, %v7800
    %v7802 = vpop.f32.mrf.mxu0
    %v7803 = vadd.f32 %v7750, %v7802
    %7804 = vmatmul.bf16.gmra.mxu0 %v6067
    %v7805 = vpop.f32.mrf.mxu0
    %v7806 = vadd.f32 %v7753, %v7805
    %v7807 = vpop.f32.mrf.mxu0
    %v7808 = vadd.f32 %v7755, %v7807
    %7809 = vmatmul.bf16.gmra.mxu0 %v6099
    %v7810 = vpop.f32.mrf.mxu0
    %v7811 = vadd.f32 %v7758, %v7810
    %v7812 = vpop.f32.mrf.mxu0
    %v7813 = vadd.f32 %v7760, %v7812
    %7814 = vmatmul.bf16.gmra.mxu0 %v6131
    %v7815 = vpop.f32.mrf.mxu0
    %v7816 = vadd.f32 %v7763, %v7815
    %v7817 = vpop.f32.mrf.mxu0
    %v7818 = vadd.f32 %v7765, %v7817
    %7819 = vmatmul.bf16.gmra.mxu0 %v6163
    %v7820 = vpop.f32.mrf.mxu0
    %v7821 = vadd.f32 %v7768, %v7820
    %v7822 = vpop.f32.mrf.mxu0
    %v7823 = vadd.f32 %v7770, %v7822
    %7824 = vmatmul.bf16.gmra.mxu0 %v6195
    %v7825 = vpop.f32.mrf.mxu0
    %v7826 = vadd.f32 %v7773, %v7825
    %v7827 = vpop.f32.mrf.mxu0
    %v7828 = vadd.f32 %v7775, %v7827
    %7829 = vmatmul.bf16.gmra.mxu0 %v6217
    %v7830 = vpop.f32.mrf.mxu0
    %v7831 = vadd.f32 %v7778, %v7830
    %v7832 = vpop.f32.mrf.mxu0
    %7833 = vdwg.mxu0
    %7834 = vmatpush.bf16.msra.mxu0 %v7242
    %7835 = vmatpush.bf16.msra.mxu0 %v7240
    %7836 = vmatpush.bf16.msra.mxu0 %v7238
    %7837 = vmatpush.bf16.msra.mxu0 %v7236
    %7838 = vmatpush.bf16.msra.mxu0 %v7234
    %7839 = vmatpush.bf16.msra.mxu0 %v7232
    %7840 = vmatpush.bf16.msra.mxu0 %v7230
    %7841 = vmatpush.bf16.msra.mxu0 %v7228
    %7842 = vmatmul.bf16.gmra.mxu0 %v5975
    %v7843 = vpop.f32.mrf.mxu0
    %v7844 = vadd.f32 %v7791, %v7843
    %v7845 = vpop.f32.mrf.mxu0
    %v7846 = vadd.f32 %v7793, %v7845
    %7847 = vmatmul.bf16.gmra.mxu0 %v6011
    %v7848 = vpop.f32.mrf.mxu0
    %v7849 = vadd.f32 %v7796, %v7848
    %v7850 = vpop.f32.mrf.mxu0
    %v7851 = vadd.f32 %v7798, %v7850
    %7852 = vmatmul.bf16.gmra.mxu0 %v6043
    %v7853 = vpop.f32.mrf.mxu0
    %v7854 = vadd.f32 %v7801, %v7853
    %v7855 = vpop.f32.mrf.mxu0
    %v7856 = vadd.f32 %v7803, %v7855
    %7857 = vmatmul.bf16.gmra.mxu0 %v6075
    %v7858 = vpop.f32.mrf.mxu0
    %v7859 = vadd.f32 %v7806, %v7858
    %v7860 = vpop.f32.mrf.mxu0
    %v7861 = vadd.f32 %v7808, %v7860
    %7862 = vmatmul.bf16.gmra.mxu0 %v6107
    %v7863 = vpop.f32.mrf.mxu0
    %v7864 = vadd.f32 %v7811, %v7863
    %v7865 = vpop.f32.mrf.mxu0
    %v7866 = vadd.f32 %v7813, %v7865
    %7867 = vmatmul.bf16.gmra.mxu0 %v6139
    %v7868 = vpop.f32.mrf.mxu0
    %v7869 = vadd.f32 %v7816, %v7868
    %v7870 = vpop.f32.mrf.mxu0
    %v7871 = vadd.f32 %v7818, %v7870
    %7872 = vmatmul.bf16.gmra.mxu0 %v6171
    %v7873 = vpop.f32.mrf.mxu0
    %v7874 = vadd.f32 %v7821, %v7873
    %v7875 = vpop.f32.mrf.mxu0
    %v7876 = vadd.f32 %v7823, %v7875
    %7877 = vmatmul.bf16.gmra.mxu0 %v6203
    %v7878 = vpop.f32.mrf.mxu0
    %v7879 = vadd.f32 %v7826, %v7878
    %v7880 = vpop.f32.mrf.mxu0
    %v7881 = vadd.f32 %v7828, %v7880
    %7882 = vmatmul.bf16.gmra.mxu0 %v6220
    %v7883 = vpop.f32.mrf.mxu0
    %v7884 = vadd.f32 %v7831, %v7883
    %v7885 = vpop.f32.mrf.mxu0
    %7886 = vdwg.mxu0
    %7887 = vmatpush.bf16.msra.mxu0 %v7258
    %7888 = vmatpush.bf16.msra.mxu0 %v7256
    %7889 = vmatpush.bf16.msra.mxu0 %v7254
    %7890 = vmatpush.bf16.msra.mxu0 %v7252
    %7891 = vmatpush.bf16.msra.mxu0 %v7250
    %7892 = vmatpush.bf16.msra.mxu0 %v7248
    %7893 = vmatpush.bf16.msra.mxu0 %v7246
    %7894 = vmatpush.bf16.msra.mxu0 %v7244
    %7895 = vmatmul.bf16.gmra.mxu0 %v5987
    %v7896 = vpop.f32.mrf.mxu0
    %v7897 = vadd.f32 %v7844, %v7896
    %v7898 = vpop.f32.mrf.mxu0
    %v7899 = vadd.f32 %v7846, %v7898
    %7900 = vmatmul.bf16.gmra.mxu0 %v6019
    %v7901 = vpop.f32.mrf.mxu0
    %v7902 = vadd.f32 %v7849, %v7901
    %v7903 = vpop.f32.mrf.mxu0
    %v7904 = vadd.f32 %v7851, %v7903
    %7905 = vmatmul.bf16.gmra.mxu0 %v6051
    %v7906 = vpop.f32.mrf.mxu0
    %v7907 = vadd.f32 %v7854, %v7906
    %v7908 = vpop.f32.mrf.mxu0
    %v7909 = vadd.f32 %v7856, %v7908
    %7910 = vmatmul.bf16.gmra.mxu0 %v6083
    %v7911 = vpop.f32.mrf.mxu0
    %v7912 = vadd.f32 %v7859, %v7911
    %v7913 = vpop.f32.mrf.mxu0
    %v7914 = vadd.f32 %v7861, %v7913
    %7915 = vmatmul.bf16.gmra.mxu0 %v6115
    %v7916 = vpop.f32.mrf.mxu0
    %v7917 = vadd.f32 %v7864, %v7916
    %v7918 = vpop.f32.mrf.mxu0
    %v7919 = vadd.f32 %v7866, %v7918
    %7920 = vmatmul.bf16.gmra.mxu0 %v6147
    %v7921 = vpop.f32.mrf.mxu0
    %v7922 = vadd.f32 %v7869, %v7921
    %v7923 = vpop.f32.mrf.mxu0
    %v7924 = vadd.f32 %v7871, %v7923
    %7925 = vmatmul.bf16.gmra.mxu0 %v6179
    %v7926 = vpop.f32.mrf.mxu0
    %v7927 = vadd.f32 %v7874, %v7926
    %v7928 = vpop.f32.mrf.mxu0
    %v7929 = vadd.f32 %v7876, %v7928
    %7930 = vmatmul.bf16.gmra.mxu0 %v6211
    %v7931 = vpop.f32.mrf.mxu0
    %v7932 = vadd.f32 %v7879, %v7931
    %v7933 = vpop.f32.mrf.mxu0
    %v7934 = vadd.f32 %v7881, %v7933
    %7935 = vmatmul.bf16.gmra.mxu0 %v6223
    %v7936 = vpop.f32.mrf.mxu0
    %v7937 = vadd.f32 %v7884, %v7936
    %v7938 = vpop.f32.mrf.mxu0
    %7939 = vdwg.mxu0
    %7940 = vmatpush.bf16.msra.mxu0 %v7274
    %7941 = vmatpush.bf16.msra.mxu0 %v7272
    %7942 = vmatpush.bf16.msra.mxu0 %v7270
    %7943 = vmatpush.bf16.msra.mxu0 %v7268
    %7944 = vmatpush.bf16.msra.mxu0 %v7266
    %7945 = vmatpush.bf16.msra.mxu0 %v7264
    %7946 = vmatpush.bf16.msra.mxu0 %v7262
    %7947 = vmatpush.bf16.msra.mxu0 %v7260
    %7948 = vmatmul.bf16.gmra.mxu0 %v6262
    %v7949 = vpop.f32.mrf.mxu0
    %v7950 = vadd.f32 %v7897, %v7949
    %v7951 = vpop.f32.mrf.mxu0
    %v7952 = vadd.f32 %v7899, %v7951
    %7953 = vmatmul.bf16.gmra.mxu0 %v6273
    %v7954 = vpop.f32.mrf.mxu0
    %v7955 = vadd.f32 %v7902, %v7954
    %v7956 = vpop.f32.mrf.mxu0
    %v7957 = vadd.f32 %v7904, %v7956
    %7958 = vmatmul.bf16.gmra.mxu0 %v6281
    %v7959 = vpop.f32.mrf.mxu0
    %v7960 = vadd.f32 %v7907, %v7959
    %v7961 = vpop.f32.mrf.mxu0
    %v7962 = vadd.f32 %v7909, %v7961
    %7963 = vmatmul.bf16.gmra.mxu0 %v6289
    %v7964 = vpop.f32.mrf.mxu0
    %v7965 = vadd.f32 %v7912, %v7964
    %v7966 = vpop.f32.mrf.mxu0
    %v7967 = vadd.f32 %v7914, %v7966
    %7968 = vmatmul.bf16.gmra.mxu0 %v6297
    %v7969 = vpop.f32.mrf.mxu0
    %v7970 = vadd.f32 %v7917, %v7969
    %v7971 = vpop.f32.mrf.mxu0
    %v7972 = vadd.f32 %v7919, %v7971
    %7973 = vmatmul.bf16.gmra.mxu0 %v6305
    %v7974 = vpop.f32.mrf.mxu0
    %v7975 = vadd.f32 %v7922, %v7974
    %v7976 = vpop.f32.mrf.mxu0
    %v7977 = vadd.f32 %v7924, %v7976
    %7978 = vmatmul.bf16.gmra.mxu0 %v6313
    %v7979 = vpop.f32.mrf.mxu0
    %v7980 = vadd.f32 %v7927, %v7979
    %v7981 = vpop.f32.mrf.mxu0
    %v7982 = vadd.f32 %v7929, %v7981
    %7983 = vmatmul.bf16.gmra.mxu0 %v6321
    %v7984 = vpop.f32.mrf.mxu0
    %v7985 = vadd.f32 %v7932, %v7984
    %v7986 = vpop.f32.mrf.mxu0
    %v7987 = vadd.f32 %v7934, %v7986
    %7988 = vmatmul.bf16.gmra.mxu0 %v6320
    %v7989 = vpop.f32.mrf.mxu0
    %v7990 = vadd.f32 %v7937, %v7989
    %v7991 = vpop.f32.mrf.mxu0
    %7992 = vdwg.mxu0
    %7993 = vmatpush.bf16.msra.mxu0 %v7290
    %7994 = vmatpush.bf16.msra.mxu0 %v7288
    %7995 = vmatpush.bf16.msra.mxu0 %v7286
    %7996 = vmatpush.bf16.msra.mxu0 %v7284
    %7997 = vmatpush.bf16.msra.mxu0 %v7282
    %7998 = vmatpush.bf16.msra.mxu0 %v7280
    %7999 = vmatpush.bf16.msra.mxu0 %v7278
    %8000 = vmatpush.bf16.msra.mxu0 %v7276
    %8001 = vmatmul.bf16.gmra.mxu0 %v6265
    %v8002 = vpop.f32.mrf.mxu0
    %v8003 = vadd.f32 %v7950, %v8002
    %v8004 = vpop.f32.mrf.mxu0
    %v8005 = vadd.f32 %v7952, %v8004
    %8006 = vmatmul.bf16.gmra.mxu0 %v6275
    %v8007 = vpop.f32.mrf.mxu0
    %v8008 = vadd.f32 %v7955, %v8007
    %v8009 = vpop.f32.mrf.mxu0
    %v8010 = vadd.f32 %v7957, %v8009
    %8011 = vmatmul.bf16.gmra.mxu0 %v6283
    %v8012 = vpop.f32.mrf.mxu0
    %v8013 = vadd.f32 %v7960, %v8012
    %v8014 = vpop.f32.mrf.mxu0
    %v8015 = vadd.f32 %v7962, %v8014
    %8016 = vmatmul.bf16.gmra.mxu0 %v6291
    %v8017 = vpop.f32.mrf.mxu0
    %v8018 = vadd.f32 %v7965, %v8017
    %v8019 = vpop.f32.mrf.mxu0
    %v8020 = vadd.f32 %v7967, %v8019
    %8021 = vmatmul.bf16.gmra.mxu0 %v6299
    %v8022 = vpop.f32.mrf.mxu0
    %v8023 = vadd.f32 %v7970, %v8022
    %v8024 = vpop.f32.mrf.mxu0
    %v8025 = vadd.f32 %v7972, %v8024
    %8026 = vmatmul.bf16.gmra.mxu0 %v6307
    %v8027 = vpop.f32.mrf.mxu0
    %v8028 = vadd.f32 %v7975, %v8027
    %v8029 = vpop.f32.mrf.mxu0
    %v8030 = vadd.f32 %v7977, %v8029
    %8031 = vmatmul.bf16.gmra.mxu0 %v6315
    %v8032 = vpop.f32.mrf.mxu0
    %v8033 = vadd.f32 %v7980, %v8032
    %v8034 = vpop.f32.mrf.mxu0
    %v8035 = vadd.f32 %v7982, %v8034
    %8036 = vmatmul.bf16.gmra.mxu0 %v6323
    %v8037 = vpop.f32.mrf.mxu0
    %v8038 = vadd.f32 %v7985, %v8037
    %v8039 = vpop.f32.mrf.mxu0
    %v8040 = vadd.f32 %v7987, %v8039
    %8041 = vmatmul.bf16.gmra.mxu0 %v6322
    %v8042 = vpop.f32.mrf.mxu0
    %v8043 = vadd.f32 %v7990, %v8042
    %v8044 = vpop.f32.mrf.mxu0
    %8045 = vdwg.mxu0
    %8046 = vmatpush.bf16.msra.mxu0 %v7306
    %8047 = vmatpush.bf16.msra.mxu0 %v7304
    %8048 = vmatpush.bf16.msra.mxu0 %v7302
    %8049 = vmatpush.bf16.msra.mxu0 %v7300
    %8050 = vmatpush.bf16.msra.mxu0 %v7298
    %8051 = vmatpush.bf16.msra.mxu0 %v7296
    %8052 = vmatpush.bf16.msra.mxu0 %v7294
    %8053 = vmatpush.bf16.msra.mxu0 %v7292
    %8054 = vmatmul.bf16.gmra.mxu0 %v6268
    %v8055 = vpop.f32.mrf.mxu0
    %v8056 = vadd.f32 %v8003, %v8055
    %v8057 = vpop.f32.mrf.mxu0
    %v8058 = vadd.f32 %v8005, %v8057
    %8059 = vmatmul.bf16.gmra.mxu0 %v6277
    %v8060 = vpop.f32.mrf.mxu0
    %v8061 = vadd.f32 %v8008, %v8060
    %v8062 = vpop.f32.mrf.mxu0
    %v8063 = vadd.f32 %v8010, %v8062
    %8064 = vmatmul.bf16.gmra.mxu0 %v6285
    %v8065 = vpop.f32.mrf.mxu0
    %v8066 = vadd.f32 %v8013, %v8065
    %v8067 = vpop.f32.mrf.mxu0
    %v8068 = vadd.f32 %v8015, %v8067
    %8069 = vmatmul.bf16.gmra.mxu0 %v6293
    %v8070 = vpop.f32.mrf.mxu0
    %v8071 = vadd.f32 %v8018, %v8070
    %v8072 = vpop.f32.mrf.mxu0
    %v8073 = vadd.f32 %v8020, %v8072
    %8074 = vmatmul.bf16.gmra.mxu0 %v6301
    %v8075 = vpop.f32.mrf.mxu0
    %v8076 = vadd.f32 %v8023, %v8075
    %v8077 = vpop.f32.mrf.mxu0
    %v8078 = vadd.f32 %v8025, %v8077
    %8079 = vmatmul.bf16.gmra.mxu0 %v6309
    %v8080 = vpop.f32.mrf.mxu0
    %v8081 = vadd.f32 %v8028, %v8080
    %v8082 = vpop.f32.mrf.mxu0
    %v8083 = vadd.f32 %v8030, %v8082
    %8084 = vmatmul.bf16.gmra.mxu0 %v6317
    %v8085 = vpop.f32.mrf.mxu0
    %v8086 = vadd.f32 %v8033, %v8085
    %v8087 = vpop.f32.mrf.mxu0
    %v8088 = vadd.f32 %v8035, %v8087
    %8089 = vmatmul.bf16.gmra.mxu0 %v6325
    %v8090 = vpop.f32.mrf.mxu0
    %v8091 = vadd.f32 %v8038, %v8090
    %v8092 = vpop.f32.mrf.mxu0
    %v8093 = vadd.f32 %v8040, %v8092
    %8094 = vmatmul.bf16.gmra.mxu0 %v6324
    %v8095 = vpop.f32.mrf.mxu0
    %v8096 = vadd.f32 %v8043, %v8095
    %v8097 = vpop.f32.mrf.mxu0
    %8098 = vdwg.mxu0
    %8099 = vmatpush.bf16.msra.mxu0 %v7322
    %8100 = vmatpush.bf16.msra.mxu0 %v7320
    %8101 = vmatpush.bf16.msra.mxu0 %v7318
    %8102 = vmatpush.bf16.msra.mxu0 %v7316
    %8103 = vmatpush.bf16.msra.mxu0 %v7314
    %8104 = vmatpush.bf16.msra.mxu0 %v7312
    %8105 = vmatpush.bf16.msra.mxu0 %v7310
    %8106 = vmatpush.bf16.msra.mxu0 %v7308
    %8107 = vmatmul.bf16.gmra.mxu0 %v6271
    %v8108 = vpop.f32.mrf.mxu0
    %v8109 = vadd.f32 %v8056, %v8108
    %v8110 = vpop.f32.mrf.mxu0
    %v8111 = vadd.f32 %v8058, %v8110
    %8112 = vmatmul.bf16.gmra.mxu0 %v6279
    %v8113 = vpop.f32.mrf.mxu0
    %v8114 = vadd.f32 %v8061, %v8113
    %v8115 = vpop.f32.mrf.mxu0
    %v8116 = vadd.f32 %v8063, %v8115
    %8117 = vmatmul.bf16.gmra.mxu0 %v6287
    %v8118 = vpop.f32.mrf.mxu0
    %v8119 = vadd.f32 %v8066, %v8118
    %v8120 = vpop.f32.mrf.mxu0
    %v8121 = vadd.f32 %v8068, %v8120
    %8122 = vmatmul.bf16.gmra.mxu0 %v6295
    %v8123 = vpop.f32.mrf.mxu0
    %v8124 = vadd.f32 %v8071, %v8123
    %v8125 = vpop.f32.mrf.mxu0
    %v8126 = vadd.f32 %v8073, %v8125
    %8127 = vmatmul.bf16.gmra.mxu0 %v6303
    %v8128 = vpop.f32.mrf.mxu0
    %v8129 = vadd.f32 %v8076, %v8128
    %v8130 = vpop.f32.mrf.mxu0
    %v8131 = vadd.f32 %v8078, %v8130
    %8132 = vmatmul.bf16.gmra.mxu0 %v6311
    %v8133 = vpop.f32.mrf.mxu0
    %v8134 = vadd.f32 %v8081, %v8133
    %v8135 = vpop.f32.mrf.mxu0
    %v8136 = vadd.f32 %v8083, %v8135
    %8137 = vmatmul.bf16.gmra.mxu0 %v6319
    %v8138 = vpop.f32.mrf.mxu0
    %v8139 = vadd.f32 %v8086, %v8138
    %v8140 = vpop.f32.mrf.mxu0
    %v8141 = vadd.f32 %v8088, %v8140
    %8142 = vmatmul.bf16.gmra.mxu0 %v6327
    %v8143 = vpop.f32.mrf.mxu0
    %v8144 = vadd.f32 %v8091, %v8143
    %v8145 = vpop.f32.mrf.mxu0
    %v8146 = vadd.f32 %v8093, %v8145
    %8147 = vmatmul.bf16.gmra.mxu0 %v6326
    %v8148 = vpop.f32.mrf.mxu0
    %v8149 = vadd.f32 %v8096, %v8148
    %v8150 = vpop.f32.mrf.mxu0
    %8151 = vdwg.mxu0
    %8152 = vmatpush.bf16.msra.mxu0 %v7147
    %8153 = vmatpush.bf16.msra.mxu0 %v7145
    %8154 = vmatpush.bf16.msra.mxu0 %v7143
    %8155 = vmatpush.bf16.msra.mxu0 %v7141
    %8156 = vmatpush.bf16.msra.mxu0 %v7139
    %8157 = vmatpush.bf16.msra.mxu0 %v7137
    %8158 = vmatpush.bf16.msra.mxu0 %v7135
    %8159 = vmatpush.bf16.msra.mxu0 %v7133
    %8160 = vmatmul.bf16.gmra.mxu0 %v5868
    %v8161 = vpop.f32.mrf.mxu0
    %v8162 = vadd.f32 0.0, %v8161
    %v8163 = vpop.f32.mrf.mxu0
    %v8164 = vadd.f32 0.0, %v8163
    %8165 = vmatmul.bf16.gmra.mxu0 %v5872
    %v8166 = vpop.f32.mrf.mxu0
    %v8167 = vadd.f32 0.0, %v8166
    %v8168 = vpop.f32.mrf.mxu0
    %v8169 = vadd.f32 0.0, %v8168
    %8170 = vmatmul.bf16.gmra.mxu0 %v5876
    %v8171 = vpop.f32.mrf.mxu0
    %v8172 = vadd.f32 0.0, %v8171
    %v8173 = vpop.f32.mrf.mxu0
    %v8174 = vadd.f32 0.0, %v8173
    %8175 = vmatmul.bf16.gmra.mxu0 %v5880
    %v8176 = vpop.f32.mrf.mxu0
    %v8177 = vadd.f32 0.0, %v8176
    %v8178 = vpop.f32.mrf.mxu0
    %v8179 = vadd.f32 0.0, %v8178
    %8180 = vmatmul.bf16.gmra.mxu0 %v5884
    %v8181 = vpop.f32.mrf.mxu0
    %v8182 = vadd.f32 0.0, %v8181
    %v8183 = vpop.f32.mrf.mxu0
    %v8184 = vadd.f32 0.0, %v8183
    %8185 = vmatmul.bf16.gmra.mxu0 %v5888
    %v8186 = vpop.f32.mrf.mxu0
    %v8187 = vadd.f32 0.0, %v8186
    %v8188 = vpop.f32.mrf.mxu0
    %v8189 = vadd.f32 0.0, %v8188
    %8190 = vmatmul.bf16.gmra.mxu0 %v5892
    %v8191 = vpop.f32.mrf.mxu0
    %v8192 = vadd.f32 0.0, %v8191
    %v8193 = vpop.f32.mrf.mxu0
    %v8194 = vadd.f32 0.0, %v8193
    %8195 = vmatmul.bf16.gmra.mxu0 %v5896
    %v8196 = vpop.f32.mrf.mxu0
    %v8197 = vadd.f32 0.0, %v8196
    %v8198 = vpop.f32.mrf.mxu0
    %v8199 = vadd.f32 0.0, %v8198
    %8200 = vmatmul.bf16.gmra.mxu0 %v5900
    %v8201 = vpop.f32.mrf.mxu0
    %v8202 = vadd.f32 0.0, %v8201
    %v8203 = vpop.f32.mrf.mxu0
    %8204 = vdwg.mxu0
    %8205 = vmatpush.bf16.msra.mxu0 %v7163
    %8206 = vmatpush.bf16.msra.mxu0 %v7161
    %8207 = vmatpush.bf16.msra.mxu0 %v7159
    %8208 = vmatpush.bf16.msra.mxu0 %v7157
    %8209 = vmatpush.bf16.msra.mxu0 %v7155
    %8210 = vmatpush.bf16.msra.mxu0 %v7153
    %8211 = vmatpush.bf16.msra.mxu0 %v7151
    %8212 = vmatpush.bf16.msra.mxu0 %v7149
    %8213 = vmatmul.bf16.gmra.mxu0 %v5869
    %v8214 = vpop.f32.mrf.mxu0
    %v8215 = vadd.f32 %v8162, %v8214
    %v8216 = vpop.f32.mrf.mxu0
    %v8217 = vadd.f32 %v8164, %v8216
    %8218 = vmatmul.bf16.gmra.mxu0 %v5873
    %v8219 = vpop.f32.mrf.mxu0
    %v8220 = vadd.f32 %v8167, %v8219
    %v8221 = vpop.f32.mrf.mxu0
    %v8222 = vadd.f32 %v8169, %v8221
    %8223 = vmatmul.bf16.gmra.mxu0 %v5877
    %v8224 = vpop.f32.mrf.mxu0
    %v8225 = vadd.f32 %v8172, %v8224
    %v8226 = vpop.f32.mrf.mxu0
    %v8227 = vadd.f32 %v8174, %v8226
    %8228 = vmatmul.bf16.gmra.mxu0 %v5881
    %v8229 = vpop.f32.mrf.mxu0
    %v8230 = vadd.f32 %v8177, %v8229
    %v8231 = vpop.f32.mrf.mxu0
    %v8232 = vadd.f32 %v8179, %v8231
    %8233 = vmatmul.bf16.gmra.mxu0 %v5885
    %v8234 = vpop.f32.mrf.mxu0
    %v8235 = vadd.f32 %v8182, %v8234
    %v8236 = vpop.f32.mrf.mxu0
    %v8237 = vadd.f32 %v8184, %v8236
    %8238 = vmatmul.bf16.gmra.mxu0 %v5889
    %v8239 = vpop.f32.mrf.mxu0
    %v8240 = vadd.f32 %v8187, %v8239
    %v8241 = vpop.f32.mrf.mxu0
    %v8242 = vadd.f32 %v8189, %v8241
    %8243 = vmatmul.bf16.gmra.mxu0 %v5893
    %v8244 = vpop.f32.mrf.mxu0
    %v8245 = vadd.f32 %v8192, %v8244
    %v8246 = vpop.f32.mrf.mxu0
    %v8247 = vadd.f32 %v8194, %v8246
    %8248 = vmatmul.bf16.gmra.mxu0 %v5897
    %v8249 = vpop.f32.mrf.mxu0
    %v8250 = vadd.f32 %v8197, %v8249
    %v8251 = vpop.f32.mrf.mxu0
    %v8252 = vadd.f32 %v8199, %v8251
    %8253 = vmatmul.bf16.gmra.mxu0 %v5901
    %v8254 = vpop.f32.mrf.mxu0
    %v8255 = vadd.f32 %v8202, %v8254
    %v8256 = vpop.f32.mrf.mxu0
    %8257 = vdwg.mxu0
    %8258 = vmatpush.bf16.msra.mxu0 %v7179
    %8259 = vmatpush.bf16.msra.mxu0 %v7177
    %8260 = vmatpush.bf16.msra.mxu0 %v7175
    %8261 = vmatpush.bf16.msra.mxu0 %v7173
    %8262 = vmatpush.bf16.msra.mxu0 %v7171
    %8263 = vmatpush.bf16.msra.mxu0 %v7169
    %8264 = vmatpush.bf16.msra.mxu0 %v7167
    %8265 = vmatpush.bf16.msra.mxu0 %v7165
    %8266 = vmatmul.bf16.gmra.mxu0 %v5870
    %v8267 = vpop.f32.mrf.mxu0
    %v8268 = vadd.f32 %v8215, %v8267
    %v8269 = vpop.f32.mrf.mxu0
    %v8270 = vadd.f32 %v8217, %v8269
    %8271 = vmatmul.bf16.gmra.mxu0 %v5874
    %v8272 = vpop.f32.mrf.mxu0
    %v8273 = vadd.f32 %v8220, %v8272
    %v8274 = vpop.f32.mrf.mxu0
    %v8275 = vadd.f32 %v8222, %v8274
    %8276 = vmatmul.bf16.gmra.mxu0 %v5878
    %v8277 = vpop.f32.mrf.mxu0
    %v8278 = vadd.f32 %v8225, %v8277
    %v8279 = vpop.f32.mrf.mxu0
    %v8280 = vadd.f32 %v8227, %v8279
    %8281 = vmatmul.bf16.gmra.mxu0 %v5882
    %v8282 = vpop.f32.mrf.mxu0
    %v8283 = vadd.f32 %v8230, %v8282
    %v8284 = vpop.f32.mrf.mxu0
    %v8285 = vadd.f32 %v8232, %v8284
    %8286 = vmatmul.bf16.gmra.mxu0 %v5886
    %v8287 = vpop.f32.mrf.mxu0
    %v8288 = vadd.f32 %v8235, %v8287
    %v8289 = vpop.f32.mrf.mxu0
    %v8290 = vadd.f32 %v8237, %v8289
    %8291 = vmatmul.bf16.gmra.mxu0 %v5890
    %v8292 = vpop.f32.mrf.mxu0
    %v8293 = vadd.f32 %v8240, %v8292
    %v8294 = vpop.f32.mrf.mxu0
    %v8295 = vadd.f32 %v8242, %v8294
    %8296 = vmatmul.bf16.gmra.mxu0 %v5894
    %v8297 = vpop.f32.mrf.mxu0
    %v8298 = vadd.f32 %v8245, %v8297
    %v8299 = vpop.f32.mrf.mxu0
    %v8300 = vadd.f32 %v8247, %v8299
    %8301 = vmatmul.bf16.gmra.mxu0 %v5898
    %v8302 = vpop.f32.mrf.mxu0
    %v8303 = vadd.f32 %v8250, %v8302
    %v8304 = vpop.f32.mrf.mxu0
    %v8305 = vadd.f32 %v8252, %v8304
    %8306 = vmatmul.bf16.gmra.mxu0 %v5902
    %v8307 = vpop.f32.mrf.mxu0
    %v8308 = vadd.f32 %v8255, %v8307
    %v8309 = vpop.f32.mrf.mxu0
    %8310 = vdwg.mxu0
    %8311 = vmatpush.bf16.msra.mxu0 %v7195
    %8312 = vmatpush.bf16.msra.mxu0 %v7193
    %8313 = vmatpush.bf16.msra.mxu0 %v7191
    %8314 = vmatpush.bf16.msra.mxu0 %v7189
    %8315 = vmatpush.bf16.msra.mxu0 %v7187
    %8316 = vmatpush.bf16.msra.mxu0 %v7185
    %8317 = vmatpush.bf16.msra.mxu0 %v7183
    %8318 = vmatpush.bf16.msra.mxu0 %v7181
    %8319 = vmatmul.bf16.gmra.mxu0 %v5871
    %v8320 = vpop.f32.mrf.mxu0
    %v8321 = vadd.f32 %v8268, %v8320
    %v8322 = vpop.f32.mrf.mxu0
    %v8323 = vadd.f32 %v8270, %v8322
    %8324 = vmatmul.bf16.gmra.mxu0 %v5875
    %v8325 = vpop.f32.mrf.mxu0
    %v8326 = vadd.f32 %v8273, %v8325
    %v8327 = vpop.f32.mrf.mxu0
    %v8328 = vadd.f32 %v8275, %v8327
    %8329 = vmatmul.bf16.gmra.mxu0 %v5879
    %v8330 = vpop.f32.mrf.mxu0
    %v8331 = vadd.f32 %v8278, %v8330
    %v8332 = vpop.f32.mrf.mxu0
    %v8333 = vadd.f32 %v8280, %v8332
    %8334 = vmatmul.bf16.gmra.mxu0 %v5883
    %v8335 = vpop.f32.mrf.mxu0
    %v8336 = vadd.f32 %v8283, %v8335
    %v8337 = vpop.f32.mrf.mxu0
    %v8338 = vadd.f32 %v8285, %v8337
    %8339 = vmatmul.bf16.gmra.mxu0 %v5887
    %v8340 = vpop.f32.mrf.mxu0
    %v8341 = vadd.f32 %v8288, %v8340
    %v8342 = vpop.f32.mrf.mxu0
    %v8343 = vadd.f32 %v8290, %v8342
    %8344 = vmatmul.bf16.gmra.mxu0 %v5891
    %v8345 = vpop.f32.mrf.mxu0
    %v8346 = vadd.f32 %v8293, %v8345
    %v8347 = vpop.f32.mrf.mxu0
    %v8348 = vadd.f32 %v8295, %v8347
    %8349 = vmatmul.bf16.gmra.mxu0 %v5895
    %v8350 = vpop.f32.mrf.mxu0
    %v8351 = vadd.f32 %v8298, %v8350
    %v8352 = vpop.f32.mrf.mxu0
    %v8353 = vadd.f32 %v8300, %v8352
    %8354 = vmatmul.bf16.gmra.mxu0 %v5899
    %v8355 = vpop.f32.mrf.mxu0
    %v8356 = vadd.f32 %v8303, %v8355
    %v8357 = vpop.f32.mrf.mxu0
    %v8358 = vadd.f32 %v8305, %v8357
    %8359 = vmatmul.bf16.gmra.mxu0 %v5903
    %v8360 = vpop.f32.mrf.mxu0
    %v8361 = vadd.f32 %v8308, %v8360
    %v8362 = vpop.f32.mrf.mxu0
    %8363 = vdwg.mxu0
    %8364 = vmatpush.bf16.msra.mxu0 %v7211
    %8365 = vmatpush.bf16.msra.mxu0 %v7209
    %8366 = vmatpush.bf16.msra.mxu0 %v7207
    %8367 = vmatpush.bf16.msra.mxu0 %v7205
    %8368 = vmatpush.bf16.msra.mxu0 %v7203
    %8369 = vmatpush.bf16.msra.mxu0 %v7201
    %8370 = vmatpush.bf16.msra.mxu0 %v7199
    %8371 = vmatpush.bf16.msra.mxu0 %v7197
    %8372 = vmatmul.bf16.gmra.mxu0 %v5951
    %v8373 = vpop.f32.mrf.mxu0
    %v8374 = vadd.f32 %v8321, %v8373
    %v8375 = vpop.f32.mrf.mxu0
    %v8376 = vadd.f32 %v8323, %v8375
    %8377 = vmatmul.bf16.gmra.mxu0 %v5995
    %v8378 = vpop.f32.mrf.mxu0
    %v8379 = vadd.f32 %v8326, %v8378
    %v8380 = vpop.f32.mrf.mxu0
    %v8381 = vadd.f32 %v8328, %v8380
    %8382 = vmatmul.bf16.gmra.mxu0 %v6027
    %v8383 = vpop.f32.mrf.mxu0
    %v8384 = vadd.f32 %v8331, %v8383
    %v8385 = vpop.f32.mrf.mxu0
    %v8386 = vadd.f32 %v8333, %v8385
    %8387 = vmatmul.bf16.gmra.mxu0 %v6059
    %v8388 = vpop.f32.mrf.mxu0
    %v8389 = vadd.f32 %v8336, %v8388
    %v8390 = vpop.f32.mrf.mxu0
    %v8391 = vadd.f32 %v8338, %v8390
    %8392 = vmatmul.bf16.gmra.mxu0 %v6091
    %v8393 = vpop.f32.mrf.mxu0
    %v8394 = vadd.f32 %v8341, %v8393
    %v8395 = vpop.f32.mrf.mxu0
    %v8396 = vadd.f32 %v8343, %v8395
    %8397 = vmatmul.bf16.gmra.mxu0 %v6123
    %v8398 = vpop.f32.mrf.mxu0
    %v8399 = vadd.f32 %v8346, %v8398
    %v8400 = vpop.f32.mrf.mxu0
    %v8401 = vadd.f32 %v8348, %v8400
    %8402 = vmatmul.bf16.gmra.mxu0 %v6155
    %v8403 = vpop.f32.mrf.mxu0
    %v8404 = vadd.f32 %v8351, %v8403
    %v8405 = vpop.f32.mrf.mxu0
    %v8406 = vadd.f32 %v8353, %v8405
    %8407 = vmatmul.bf16.gmra.mxu0 %v6187
    %v8408 = vpop.f32.mrf.mxu0
    %v8409 = vadd.f32 %v8356, %v8408
    %v8410 = vpop.f32.mrf.mxu0
    %v8411 = vadd.f32 %v8358, %v8410
    %8412 = vmatmul.bf16.gmra.mxu0 %v6214
    %v8413 = vpop.f32.mrf.mxu0
    %v8414 = vadd.f32 %v8361, %v8413
    %v8415 = vpop.f32.mrf.mxu0
    %8416 = vdwg.mxu0
    %8417 = vmatpush.bf16.msra.mxu0 %v7227
    %8418 = vmatpush.bf16.msra.mxu0 %v7225
    %8419 = vmatpush.bf16.msra.mxu0 %v7223
    %8420 = vmatpush.bf16.msra.mxu0 %v7221
    %8421 = vmatpush.bf16.msra.mxu0 %v7219
    %8422 = vmatpush.bf16.msra.mxu0 %v7217
    %8423 = vmatpush.bf16.msra.mxu0 %v7215
    %8424 = vmatpush.bf16.msra.mxu0 %v7213
    %8425 = vmatmul.bf16.gmra.mxu0 %v5963
    %v8426 = vpop.f32.mrf.mxu0
    %v8427 = vadd.f32 %v8374, %v8426
    %v8428 = vpop.f32.mrf.mxu0
    %v8429 = vadd.f32 %v8376, %v8428
    %8430 = vmatmul.bf16.gmra.mxu0 %v6003
    %v8431 = vpop.f32.mrf.mxu0
    %v8432 = vadd.f32 %v8379, %v8431
    %v8433 = vpop.f32.mrf.mxu0
    %v8434 = vadd.f32 %v8381, %v8433
    %8435 = vmatmul.bf16.gmra.mxu0 %v6035
    %v8436 = vpop.f32.mrf.mxu0
    %v8437 = vadd.f32 %v8384, %v8436
    %v8438 = vpop.f32.mrf.mxu0
    %v8439 = vadd.f32 %v8386, %v8438
    %8440 = vmatmul.bf16.gmra.mxu0 %v6067
    %v8441 = vpop.f32.mrf.mxu0
    %v8442 = vadd.f32 %v8389, %v8441
    %v8443 = vpop.f32.mrf.mxu0
    %v8444 = vadd.f32 %v8391, %v8443
    %8445 = vmatmul.bf16.gmra.mxu0 %v6099
    %v8446 = vpop.f32.mrf.mxu0
    %v8447 = vadd.f32 %v8394, %v8446
    %v8448 = vpop.f32.mrf.mxu0
    %v8449 = vadd.f32 %v8396, %v8448
    %8450 = vmatmul.bf16.gmra.mxu0 %v6131
    %v8451 = vpop.f32.mrf.mxu0
    %v8452 = vadd.f32 %v8399, %v8451
    %v8453 = vpop.f32.mrf.mxu0
    %v8454 = vadd.f32 %v8401, %v8453
    %8455 = vmatmul.bf16.gmra.mxu0 %v6163
    %v8456 = vpop.f32.mrf.mxu0
    %v8457 = vadd.f32 %v8404, %v8456
    %v8458 = vpop.f32.mrf.mxu0
    %v8459 = vadd.f32 %v8406, %v8458
    %8460 = vmatmul.bf16.gmra.mxu0 %v6195
    %v8461 = vpop.f32.mrf.mxu0
    %v8462 = vadd.f32 %v8409, %v8461
    %v8463 = vpop.f32.mrf.mxu0
    %v8464 = vadd.f32 %v8411, %v8463
    %8465 = vmatmul.bf16.gmra.mxu0 %v6217
    %v8466 = vpop.f32.mrf.mxu0
    %v8467 = vadd.f32 %v8414, %v8466
    %v8468 = vpop.f32.mrf.mxu0
    %8469 = vdwg.mxu0
    %8470 = vmatpush.bf16.msra.mxu0 %v7243
    %8471 = vmatpush.bf16.msra.mxu0 %v7241
    %8472 = vmatpush.bf16.msra.mxu0 %v7239
    %8473 = vmatpush.bf16.msra.mxu0 %v7237
    %8474 = vmatpush.bf16.msra.mxu0 %v7235
    %8475 = vmatpush.bf16.msra.mxu0 %v7233
    %8476 = vmatpush.bf16.msra.mxu0 %v7231
    %8477 = vmatpush.bf16.msra.mxu0 %v7229
    %8478 = vmatmul.bf16.gmra.mxu0 %v5975
    %v8479 = vpop.f32.mrf.mxu0
    %v8480 = vadd.f32 %v8427, %v8479
    %v8481 = vpop.f32.mrf.mxu0
    %v8482 = vadd.f32 %v8429, %v8481
    %8483 = vmatmul.bf16.gmra.mxu0 %v6011
    %v8484 = vpop.f32.mrf.mxu0
    %v8485 = vadd.f32 %v8432, %v8484
    %v8486 = vpop.f32.mrf.mxu0
    %v8487 = vadd.f32 %v8434, %v8486
    %8488 = vmatmul.bf16.gmra.mxu0 %v6043
    %v8489 = vpop.f32.mrf.mxu0
    %v8490 = vadd.f32 %v8437, %v8489
    %v8491 = vpop.f32.mrf.mxu0
    %v8492 = vadd.f32 %v8439, %v8491
    %8493 = vmatmul.bf16.gmra.mxu0 %v6075
    %v8494 = vpop.f32.mrf.mxu0
    %v8495 = vadd.f32 %v8442, %v8494
    %v8496 = vpop.f32.mrf.mxu0
    %v8497 = vadd.f32 %v8444, %v8496
    %8498 = vmatmul.bf16.gmra.mxu0 %v6107
    %v8499 = vpop.f32.mrf.mxu0
    %v8500 = vadd.f32 %v8447, %v8499
    %v8501 = vpop.f32.mrf.mxu0
    %v8502 = vadd.f32 %v8449, %v8501
    %8503 = vmatmul.bf16.gmra.mxu0 %v6139
    %v8504 = vpop.f32.mrf.mxu0
    %v8505 = vadd.f32 %v8452, %v8504
    %v8506 = vpop.f32.mrf.mxu0
    %v8507 = vadd.f32 %v8454, %v8506
    %8508 = vmatmul.bf16.gmra.mxu0 %v6171
    %v8509 = vpop.f32.mrf.mxu0
    %v8510 = vadd.f32 %v8457, %v8509
    %v8511 = vpop.f32.mrf.mxu0
    %v8512 = vadd.f32 %v8459, %v8511
    %8513 = vmatmul.bf16.gmra.mxu0 %v6203
    %v8514 = vpop.f32.mrf.mxu0
    %v8515 = vadd.f32 %v8462, %v8514
    %v8516 = vpop.f32.mrf.mxu0
    %v8517 = vadd.f32 %v8464, %v8516
    %8518 = vmatmul.bf16.gmra.mxu0 %v6220
    %v8519 = vpop.f32.mrf.mxu0
    %v8520 = vadd.f32 %v8467, %v8519
    %v8521 = vpop.f32.mrf.mxu0
    %8522 = vdwg.mxu0
    %8523 = vmatpush.bf16.msra.mxu0 %v7259
    %8524 = vmatpush.bf16.msra.mxu0 %v7257
    %8525 = vmatpush.bf16.msra.mxu0 %v7255
    %8526 = vmatpush.bf16.msra.mxu0 %v7253
    %8527 = vmatpush.bf16.msra.mxu0 %v7251
    %8528 = vmatpush.bf16.msra.mxu0 %v7249
    %8529 = vmatpush.bf16.msra.mxu0 %v7247
    %8530 = vmatpush.bf16.msra.mxu0 %v7245
    %8531 = vmatmul.bf16.gmra.mxu0 %v5987
    %v8532 = vpop.f32.mrf.mxu0
    %v8533 = vadd.f32 %v8480, %v8532
    %v8534 = vpop.f32.mrf.mxu0
    %v8535 = vadd.f32 %v8482, %v8534
    %8536 = vmatmul.bf16.gmra.mxu0 %v6019
    %v8537 = vpop.f32.mrf.mxu0
    %v8538 = vadd.f32 %v8485, %v8537
    %v8539 = vpop.f32.mrf.mxu0
    %v8540 = vadd.f32 %v8487, %v8539
    %8541 = vmatmul.bf16.gmra.mxu0 %v6051
    %v8542 = vpop.f32.mrf.mxu0
    %v8543 = vadd.f32 %v8490, %v8542
    %v8544 = vpop.f32.mrf.mxu0
    %v8545 = vadd.f32 %v8492, %v8544
    %8546 = vmatmul.bf16.gmra.mxu0 %v6083
    %v8547 = vpop.f32.mrf.mxu0
    %v8548 = vadd.f32 %v8495, %v8547
    %v8549 = vpop.f32.mrf.mxu0
    %v8550 = vadd.f32 %v8497, %v8549
    %8551 = vmatmul.bf16.gmra.mxu0 %v6115
    %v8552 = vpop.f32.mrf.mxu0
    %v8553 = vadd.f32 %v8500, %v8552
    %v8554 = vpop.f32.mrf.mxu0
    %v8555 = vadd.f32 %v8502, %v8554
    %8556 = vmatmul.bf16.gmra.mxu0 %v6147
    %v8557 = vpop.f32.mrf.mxu0
    %v8558 = vadd.f32 %v8505, %v8557
    %v8559 = vpop.f32.mrf.mxu0
    %v8560 = vadd.f32 %v8507, %v8559
    %8561 = vmatmul.bf16.gmra.mxu0 %v6179
    %v8562 = vpop.f32.mrf.mxu0
    %v8563 = vadd.f32 %v8510, %v8562
    %v8564 = vpop.f32.mrf.mxu0
    %v8565 = vadd.f32 %v8512, %v8564
    %8566 = vmatmul.bf16.gmra.mxu0 %v6211
    %v8567 = vpop.f32.mrf.mxu0
    %v8568 = vadd.f32 %v8515, %v8567
    %v8569 = vpop.f32.mrf.mxu0
    %v8570 = vadd.f32 %v8517, %v8569
    %8571 = vmatmul.bf16.gmra.mxu0 %v6223
    %v8572 = vpop.f32.mrf.mxu0
    %v8573 = vadd.f32 %v8520, %v8572
    %v8574 = vpop.f32.mrf.mxu0
    %8575 = vdwg.mxu0
    %8576 = vmatpush.bf16.msra.mxu0 %v7275
    %8577 = vmatpush.bf16.msra.mxu0 %v7273
    %8578 = vmatpush.bf16.msra.mxu0 %v7271
    %8579 = vmatpush.bf16.msra.mxu0 %v7269
    %8580 = vmatpush.bf16.msra.mxu0 %v7267
    %8581 = vmatpush.bf16.msra.mxu0 %v7265
    %8582 = vmatpush.bf16.msra.mxu0 %v7263
    %8583 = vmatpush.bf16.msra.mxu0 %v7261
    %8584 = vmatmul.bf16.gmra.mxu0 %v6262
    %v8585 = vpop.f32.mrf.mxu0
    %v8586 = vadd.f32 %v8533, %v8585
    %v8587 = vpop.f32.mrf.mxu0
    %v8588 = vadd.f32 %v8535, %v8587
    %8589 = vmatmul.bf16.gmra.mxu0 %v6273
    %v8590 = vpop.f32.mrf.mxu0
    %v8591 = vadd.f32 %v8538, %v8590
    %v8592 = vpop.f32.mrf.mxu0
    %v8593 = vadd.f32 %v8540, %v8592
    %8594 = vmatmul.bf16.gmra.mxu0 %v6281
    %v8595 = vpop.f32.mrf.mxu0
    %v8596 = vadd.f32 %v8543, %v8595
    %v8597 = vpop.f32.mrf.mxu0
    %v8598 = vadd.f32 %v8545, %v8597
    %8599 = vmatmul.bf16.gmra.mxu0 %v6289
    %v8600 = vpop.f32.mrf.mxu0
    %v8601 = vadd.f32 %v8548, %v8600
    %v8602 = vpop.f32.mrf.mxu0
    %v8603 = vadd.f32 %v8550, %v8602
    %8604 = vmatmul.bf16.gmra.mxu0 %v6297
    %v8605 = vpop.f32.mrf.mxu0
    %v8606 = vadd.f32 %v8553, %v8605
    %v8607 = vpop.f32.mrf.mxu0
    %v8608 = vadd.f32 %v8555, %v8607
    %8609 = vmatmul.bf16.gmra.mxu0 %v6305
    %v8610 = vpop.f32.mrf.mxu0
    %v8611 = vadd.f32 %v8558, %v8610
    %v8612 = vpop.f32.mrf.mxu0
    %v8613 = vadd.f32 %v8560, %v8612
    %8614 = vmatmul.bf16.gmra.mxu0 %v6313
    %v8615 = vpop.f32.mrf.mxu0
    %v8616 = vadd.f32 %v8563, %v8615
    %v8617 = vpop.f32.mrf.mxu0
    %v8618 = vadd.f32 %v8565, %v8617
    %8619 = vmatmul.bf16.gmra.mxu0 %v6321
    %v8620 = vpop.f32.mrf.mxu0
    %v8621 = vadd.f32 %v8568, %v8620
    %v8622 = vpop.f32.mrf.mxu0
    %v8623 = vadd.f32 %v8570, %v8622
    %8624 = vmatmul.bf16.gmra.mxu0 %v6320
    %v8625 = vpop.f32.mrf.mxu0
    %v8626 = vadd.f32 %v8573, %v8625
    %v8627 = vpop.f32.mrf.mxu0
    %8628 = vdwg.mxu0
    %8629 = vmatpush.bf16.msra.mxu0 %v7291
    %8630 = vmatpush.bf16.msra.mxu0 %v7289
    %8631 = vmatpush.bf16.msra.mxu0 %v7287
    %8632 = vmatpush.bf16.msra.mxu0 %v7285
    %8633 = vmatpush.bf16.msra.mxu0 %v7283
    %8634 = vmatpush.bf16.msra.mxu0 %v7281
    %8635 = vmatpush.bf16.msra.mxu0 %v7279
    %8636 = vmatpush.bf16.msra.mxu0 %v7277
    %8637 = vmatmul.bf16.gmra.mxu0 %v6265
    %v8638 = vpop.f32.mrf.mxu0
    %v8639 = vadd.f32 %v8586, %v8638
    %v8640 = vpop.f32.mrf.mxu0
    %v8641 = vadd.f32 %v8588, %v8640
    %8642 = vmatmul.bf16.gmra.mxu0 %v6275
    %v8643 = vpop.f32.mrf.mxu0
    %v8644 = vadd.f32 %v8591, %v8643
    %v8645 = vpop.f32.mrf.mxu0
    %v8646 = vadd.f32 %v8593, %v8645
    %8647 = vmatmul.bf16.gmra.mxu0 %v6283
    %v8648 = vpop.f32.mrf.mxu0
    %v8649 = vadd.f32 %v8596, %v8648
    %v8650 = vpop.f32.mrf.mxu0
    %v8651 = vadd.f32 %v8598, %v8650
    %8652 = vmatmul.bf16.gmra.mxu0 %v6291
    %v8653 = vpop.f32.mrf.mxu0
    %v8654 = vadd.f32 %v8601, %v8653
    %v8655 = vpop.f32.mrf.mxu0
    %v8656 = vadd.f32 %v8603, %v8655
    %8657 = vmatmul.bf16.gmra.mxu0 %v6299
    %v8658 = vpop.f32.mrf.mxu0
    %v8659 = vadd.f32 %v8606, %v8658
    %v8660 = vpop.f32.mrf.mxu0
    %v8661 = vadd.f32 %v8608, %v8660
    %8662 = vmatmul.bf16.gmra.mxu0 %v6307
    %v8663 = vpop.f32.mrf.mxu0
    %v8664 = vadd.f32 %v8611, %v8663
    %v8665 = vpop.f32.mrf.mxu0
    %v8666 = vadd.f32 %v8613, %v8665
    %8667 = vmatmul.bf16.gmra.mxu0 %v6315
    %v8668 = vpop.f32.mrf.mxu0
    %v8669 = vadd.f32 %v8616, %v8668
    %v8670 = vpop.f32.mrf.mxu0
    %v8671 = vadd.f32 %v8618, %v8670
    %8672 = vmatmul.bf16.gmra.mxu0 %v6323
    %v8673 = vpop.f32.mrf.mxu0
    %v8674 = vadd.f32 %v8621, %v8673
    %v8675 = vpop.f32.mrf.mxu0
    %v8676 = vadd.f32 %v8623, %v8675
    %8677 = vmatmul.bf16.gmra.mxu0 %v6322
    %v8678 = vpop.f32.mrf.mxu0
    %v8679 = vadd.f32 %v8626, %v8678
    %v8680 = vpop.f32.mrf.mxu0
    %8681 = vdwg.mxu0
    %8682 = vmatpush.bf16.msra.mxu0 %v7307
    %8683 = vmatpush.bf16.msra.mxu0 %v7305
    %8684 = vmatpush.bf16.msra.mxu0 %v7303
    %8685 = vmatpush.bf16.msra.mxu0 %v7301
    %8686 = vmatpush.bf16.msra.mxu0 %v7299
    %8687 = vmatpush.bf16.msra.mxu0 %v7297
    %8688 = vmatpush.bf16.msra.mxu0 %v7295
    %8689 = vmatpush.bf16.msra.mxu0 %v7293
    %8690 = vmatmul.bf16.gmra.mxu0 %v6268
    %v8691 = vpop.f32.mrf.mxu0
    %v8692 = vadd.f32 %v8639, %v8691
    %v8693 = vpop.f32.mrf.mxu0
    %v8694 = vadd.f32 %v8641, %v8693
    %8695 = vmatmul.bf16.gmra.mxu0 %v6277
    %v8696 = vpop.f32.mrf.mxu0
    %v8697 = vadd.f32 %v8644, %v8696
    %v8698 = vpop.f32.mrf.mxu0
    %v8699 = vadd.f32 %v8646, %v8698
    %8700 = vmatmul.bf16.gmra.mxu0 %v6285
    %v8701 = vpop.f32.mrf.mxu0
    %v8702 = vadd.f32 %v8649, %v8701
    %v8703 = vpop.f32.mrf.mxu0
    %v8704 = vadd.f32 %v8651, %v8703
    %8705 = vmatmul.bf16.gmra.mxu0 %v6293
    %v8706 = vpop.f32.mrf.mxu0
    %v8707 = vadd.f32 %v8654, %v8706
    %v8708 = vpop.f32.mrf.mxu0
    %v8709 = vadd.f32 %v8656, %v8708
    %8710 = vmatmul.bf16.gmra.mxu0 %v6301
    %v8711 = vpop.f32.mrf.mxu0
    %v8712 = vadd.f32 %v8659, %v8711
    %v8713 = vpop.f32.mrf.mxu0
    %v8714 = vadd.f32 %v8661, %v8713
    %8715 = vmatmul.bf16.gmra.mxu0 %v6309
    %v8716 = vpop.f32.mrf.mxu0
    %v8717 = vadd.f32 %v8664, %v8716
    %v8718 = vpop.f32.mrf.mxu0
    %v8719 = vadd.f32 %v8666, %v8718
    %8720 = vmatmul.bf16.gmra.mxu0 %v6317
    %v8721 = vpop.f32.mrf.mxu0
    %v8722 = vadd.f32 %v8669, %v8721
    %v8723 = vpop.f32.mrf.mxu0
    %v8724 = vadd.f32 %v8671, %v8723
    %8725 = vmatmul.bf16.gmra.mxu0 %v6325
    %v8726 = vpop.f32.mrf.mxu0
    %v8727 = vadd.f32 %v8674, %v8726
    %v8728 = vpop.f32.mrf.mxu0
    %v8729 = vadd.f32 %v8676, %v8728
    %8730 = vmatmul.bf16.gmra.mxu0 %v6324
    %v8731 = vpop.f32.mrf.mxu0
    %v8732 = vadd.f32 %v8679, %v8731
    %v8733 = vpop.f32.mrf.mxu0
    %8734 = vdwg.mxu0
    %8735 = vmatpush.bf16.msra.mxu0 %v7323
    %8736 = vmatpush.bf16.msra.mxu0 %v7321
    %8737 = vmatpush.bf16.msra.mxu0 %v7319
    %8738 = vmatpush.bf16.msra.mxu0 %v7317
    %8739 = vmatpush.bf16.msra.mxu0 %v7315
    %8740 = vmatpush.bf16.msra.mxu0 %v7313
    %8741 = vmatpush.bf16.msra.mxu0 %v7311
    %8742 = vmatpush.bf16.msra.mxu0 %v7309
    %8743 = vmatmul.bf16.gmra.mxu0 %v6271
    %v8744 = vpop.f32.mrf.mxu0
    %v8745 = vadd.f32 %v8692, %v8744
    %v8746 = vpop.f32.mrf.mxu0
    %v8747 = vadd.f32 %v8694, %v8746
    %8748 = vmatmul.bf16.gmra.mxu0 %v6279
    %v8749 = vpop.f32.mrf.mxu0
    %v8750 = vadd.f32 %v8697, %v8749
    %v8751 = vpop.f32.mrf.mxu0
    %v8752 = vadd.f32 %v8699, %v8751
    %8753 = vmatmul.bf16.gmra.mxu0 %v6287
    %v8754 = vpop.f32.mrf.mxu0
    %v8755 = vadd.f32 %v8702, %v8754
    %v8756 = vpop.f32.mrf.mxu0
    %v8757 = vadd.f32 %v8704, %v8756
    %8758 = vmatmul.bf16.gmra.mxu0 %v6295
    %v8759 = vpop.f32.mrf.mxu0
    %v8760 = vadd.f32 %v8707, %v8759
    %v8761 = vpop.f32.mrf.mxu0
    %v8762 = vadd.f32 %v8709, %v8761
    %8763 = vmatmul.bf16.gmra.mxu0 %v6303
    %v8764 = vpop.f32.mrf.mxu0
    %v8765 = vadd.f32 %v8712, %v8764
    %v8766 = vpop.f32.mrf.mxu0
    %v8767 = vadd.f32 %v8714, %v8766
    %8768 = vmatmul.bf16.gmra.mxu0 %v6311
    %v8769 = vpop.f32.mrf.mxu0
    %v8770 = vadd.f32 %v8717, %v8769
    %v8771 = vpop.f32.mrf.mxu0
    %v8772 = vadd.f32 %v8719, %v8771
    %8773 = vmatmul.bf16.gmra.mxu0 %v6319
    %v8774 = vpop.f32.mrf.mxu0
    %v8775 = vadd.f32 %v8722, %v8774
    %v8776 = vpop.f32.mrf.mxu0
    %v8777 = vadd.f32 %v8724, %v8776
    %8778 = vmatmul.bf16.gmra.mxu0 %v6327
    %v8779 = vpop.f32.mrf.mxu0
    %v8780 = vadd.f32 %v8727, %v8779
    %v8781 = vpop.f32.mrf.mxu0
    %v8782 = vadd.f32 %v8729, %v8781
    %8783 = vmatmul.bf16.gmra.mxu0 %v6326
    %v8784 = vpop.f32.mrf.mxu0
    %v8785 = vadd.f32 %v8732, %v8784
    %v8786 = vpop.f32.mrf.mxu0
    %8787 = vdwg.mxu0
    %v8788 = vadd.s32 %v461, 72
    %v8789 = vadd.s32 %v461, 80
    %v8790 = vadd.s32 %v461, 88
    %v8791 = vadd.s32 %v461, 96
    %v8792 = vadd.s32 %v461, 104
    %v8793 = vadd.s32 %v461, 112
    %v8794 = vadd.s32 %v461, 120
    %v8795 = vadd.s32 %v461, 128
    %vm8796 = vcmp.ge.s32.totalorder %v8788, 0
    %vm8797 = vcmp.ge.s32.totalorder %v8789, 0
    %vm8798 = vcmp.ge.s32.totalorder %v8790, 0
    %vm8799 = vcmp.ge.s32.totalorder %v8791, 0
    %vm8800 = vcmp.ge.s32.totalorder %v8792, 0
    %vm8801 = vcmp.ge.s32.totalorder %v8793, 0
    %vm8802 = vcmp.ge.s32.totalorder %v8794, 0
    %vm8803 = vcmp.ge.s32.totalorder %v8795, 0
    %vm8804 = vcmp.lt.s32.totalorder %v461, 64
    %vm8805 = vcmp.lt.s32.totalorder %v462, 64
    %vm8806 = vcmp.lt.s32.totalorder %v463, 64
    %vm8807 = vcmp.lt.s32.totalorder %v464, 64
    %vm8808 = vcmp.lt.s32.totalorder %v465, 64
    %vm8809 = vcmp.lt.s32.totalorder %v2614, 64
    %vm8810 = vcmp.lt.s32.totalorder %v2615, 64
    %vm8811 = vcmp.lt.s32.totalorder %v2616, 64
    %vm8812 = vcmp.lt.s32.totalorder %v2617, 64
    %vm8813 = vcmp.lt.s32.totalorder %v8788, 64
    %vm8814 = vcmp.lt.s32.totalorder %v8789, 64
    %vm8815 = vcmp.lt.s32.totalorder %v8790, 64
    %vm8816 = vcmp.lt.s32.totalorder %v8791, 64
    %vm8817 = vcmp.lt.s32.totalorder %v8792, 64
    %vm8818 = vcmp.lt.s32.totalorder %v8793, 64
    %vm8819 = vcmp.lt.s32.totalorder %v8794, 64
    %vm8820 = vcmp.lt.s32.totalorder %v8795, 64
    %vm8821 = vmand %vm466, %vm8804
    %vm8822 = vmand %vm467, %vm8805
    %vm8823 = vmand %vm468, %vm8806
    %vm8824 = vmand %vm469, %vm8807
    %vm8825 = vmand %vm470, %vm8808
    %vm8826 = vmand %vm2618, %vm8809
    %vm8827 = vmand %vm2619, %vm8810
    %vm8828 = vmand %vm2620, %vm8811
    %vm8829 = vmand %vm2621, %vm8812
    %vm8830 = vmand %vm8796, %vm8813
    %vm8831 = vmand %vm8797, %vm8814
    %vm8832 = vmand %vm8798, %vm8815
    %vm8833 = vmand %vm8799, %vm8816
    %vm8834 = vmand %vm8800, %vm8817
    %vm8835 = vmand %vm8801, %vm8818
    %vm8836 = vmand %vm8802, %vm8819
    %vm8837 = vmand %vm8803, %vm8820
    %vm8838 = vcmp.ge.s32.totalorder %v461, 66
    %vm8839 = vcmp.ge.s32.totalorder %v462, 66
    %vm8840 = vcmp.ge.s32.totalorder %v463, 66
    %vm8841 = vcmp.ge.s32.totalorder %v464, 66
    %vm8842 = vcmp.ge.s32.totalorder %v465, 66
    %vm8843 = vcmp.ge.s32.totalorder %v2614, 66
    %vm8844 = vcmp.ge.s32.totalorder %v2615, 66
    %vm8845 = vcmp.ge.s32.totalorder %v2616, 66
    %vm8846 = vcmp.ge.s32.totalorder %v2617, 66
    %vm8847 = vcmp.ge.s32.totalorder %v8788, 66
    %vm8848 = vcmp.ge.s32.totalorder %v8789, 66
    %vm8849 = vcmp.ge.s32.totalorder %v8790, 66
    %vm8850 = vcmp.ge.s32.totalorder %v8791, 66
    %vm8851 = vcmp.ge.s32.totalorder %v8792, 66
    %vm8852 = vcmp.ge.s32.totalorder %v8793, 66
    %vm8853 = vcmp.ge.s32.totalorder %v8794, 66
    %vm8854 = vcmp.ge.s32.totalorder %v8795, 66
    %vm8855 = vcmp.lt.s32.totalorder %v461, 130
    %vm8856 = vcmp.lt.s32.totalorder %v462, 130
    %vm8857 = vcmp.lt.s32.totalorder %v463, 130
    %vm8858 = vcmp.lt.s32.totalorder %v464, 130
    %vm8859 = vcmp.lt.s32.totalorder %v465, 130
    %vm8860 = vcmp.lt.s32.totalorder %v2614, 130
    %vm8861 = vcmp.lt.s32.totalorder %v2615, 130
    %vm8862 = vcmp.lt.s32.totalorder %v2616, 130
    %vm8863 = vcmp.lt.s32.totalorder %v2617, 130
    %vm8864 = vcmp.lt.s32.totalorder %v8788, 130
    %vm8865 = vcmp.lt.s32.totalorder %v8789, 130
    %vm8866 = vcmp.lt.s32.totalorder %v8790, 130
    %vm8867 = vcmp.lt.s32.totalorder %v8791, 130
    %vm8868 = vcmp.lt.s32.totalorder %v8792, 130
    %vm8869 = vcmp.lt.s32.totalorder %v8793, 130
    %vm8870 = vcmp.lt.s32.totalorder %v8794, 130
    %vm8871 = vcmp.lt.s32.totalorder %v8795, 130
    %vm8872 = vmand %vm8838, %vm8855
    %vm8873 = vmand %vm8839, %vm8856
    %vm8874 = vmand %vm8840, %vm8857
    %vm8875 = vmand %vm8841, %vm8858
    %vm8876 = vmand %vm8842, %vm8859
    %vm8877 = vmand %vm8843, %vm8860
    %vm8878 = vmand %vm8844, %vm8861
    %vm8879 = vmand %vm8845, %vm8862
    %vm8880 = vmand %vm8846, %vm8863
    %vm8881 = vmand %vm8847, %vm8864
    %vm8882 = vmand %vm8848, %vm8865
    %vm8883 = vmand %vm8849, %vm8866
    %vm8884 = vmand %vm8850, %vm8867
    %vm8885 = vmand %vm8851, %vm8868
    %vm8886 = vmand %vm8852, %vm8869
    %vm8887 = vmand %vm8853, %vm8870
    %vm8888 = vmand %vm8854, %vm8871
    %vm8889 = vmor %vm8821, %vm8872
    %vm8890 = vmor %vm8822, %vm8873
    %vm8891 = vmor %vm8823, %vm8874
    %vm8892 = vmor %vm8824, %vm8875
    %vm8893 = vmor %vm8825, %vm8876
    %vm8894 = vmor %vm8826, %vm8877
    %vm8895 = vmor %vm8827, %vm8878
    %vm8896 = vmor %vm8828, %vm8879
    %vm8897 = vmor %vm8829, %vm8880
    %vm8898 = vmor %vm8830, %vm8881
    %vm8899 = vmor %vm8831, %vm8882
    %vm8900 = vmor %vm8832, %vm8883
    %vm8901 = vmor %vm8833, %vm8884
    %vm8902 = vmor %vm8834, %vm8885
    %vm8903 = vmor %vm8835, %vm8886
    %vm8904 = vmor %vm8836, %vm8887
    %vm8905 = vmor %vm8837, %vm8888
    %v8906 = vsel %vm8889, 1, 0
    %v8907 = vsel %vm8890, 1, 0
    %v8908 = vsel %vm8891, 1, 0
    %v8909 = vsel %vm8892, 1, 0
    %v8910 = vsel %vm8893, 1, 0
    %v8911 = vsel %vm8894, 1, 0
    %v8912 = vsel %vm8895, 1, 0
    %v8913 = vsel %vm8896, 1, 0
    %v8914 = vsel %vm8897, 1, 0
    %v8915 = vsel %vm8898, 1, 0
    %v8916 = vsel %vm8899, 1, 0
    %v8917 = vsel %vm8900, 1, 0
    %v8918 = vsel %vm8901, 1, 0
    %v8919 = vsel %vm8902, 1, 0
    %v8920 = vsel %vm8903, 1, 0
    %v8921 = vsel %vm8904, 1, 0
    %v8922 = vsel %vm8905, 1, 0
    %v8923 = vcvt.s32.f32 %v8906
    %v8924 = vcvt.s32.f32 %v8907
    %v8925 = vcvt.s32.f32 %v8908
    %v8926 = vcvt.s32.f32 %v8909
    %v8927 = vcvt.s32.f32 %v8910
    %v8928 = vcvt.s32.f32 %v8911
    %v8929 = vcvt.s32.f32 %v8912
    %v8930 = vcvt.s32.f32 %v8913
    %v8931 = vcvt.s32.f32 %v8914
    %v8932 = vcvt.s32.f32 %v8915
    %v8933 = vcvt.s32.f32 %v8916
    %v8934 = vcvt.s32.f32 %v8917
    %v8935 = vcvt.s32.f32 %v8918
    %v8936 = vcvt.s32.f32 %v8919
    %v8937 = vcvt.s32.f32 %v8920
    %v8938 = vcvt.s32.f32 %v8921
    %v8939 = vcvt.s32.f32 %v8922
    %v8940 = vmul.f32 %v8109, %v8923
    %v8941 = vmul.f32 %v8745, %v8923
    %v8942 = vmul.f32 %v8111, %v8924
    %v8943 = vmul.f32 %v8747, %v8924
    %v8944 = vmul.f32 %v8114, %v8925
    %v8945 = vmul.f32 %v8750, %v8925
    %v8946 = vmul.f32 %v8116, %v8926
    %v8947 = vmul.f32 %v8752, %v8926
    %v8948 = vmul.f32 %v8119, %v8927
    %v8949 = vmul.f32 %v8755, %v8927
    %v8950 = vmul.f32 %v8121, %v8928
    %v8951 = vmul.f32 %v8757, %v8928
    %v8952 = vmul.f32 %v8124, %v8929
    %v8953 = vmul.f32 %v8760, %v8929
    %v8954 = vmul.f32 %v8126, %v8930
    %v8955 = vmul.f32 %v8762, %v8930
    %v8956 = vmul.f32 %v8129, %v8931
    %v8957 = vmul.f32 %v8765, %v8931
    %v8958 = vmul.f32 %v8131, %v8932
    %v8959 = vmul.f32 %v8767, %v8932
    %v8960 = vmul.f32 %v8134, %v8933
    %v8961 = vmul.f32 %v8770, %v8933
    %v8962 = vmul.f32 %v8136, %v8934
    %v8963 = vmul.f32 %v8772, %v8934
    %v8964 = vmul.f32 %v8139, %v8935
    %v8965 = vmul.f32 %v8775, %v8935
    %v8966 = vmul.f32 %v8141, %v8936
    %v8967 = vmul.f32 %v8777, %v8936
    %v8968 = vmul.f32 %v8144, %v8937
    %v8969 = vmul.f32 %v8780, %v8937
    %v8970 = vmul.f32 %v8146, %v8938
    %v8971 = vmul.f32 %v8782, %v8938
    %v8972 = vmul.f32 %v8149, %v8939
    %v8973 = vmul.f32 %v8785, %v8939
    %v8974 = vadd.f32 %v8940, %v8942
    %v8975 = vadd.f32 %v8974, %v8944
    %v8976 = vadd.f32 %v8975, %v8946
    %v8977 = vadd.f32 %v8976, %v8948
    %v8978 = vadd.f32 %v8977, %v8950
    %v8979 = vadd.f32 %v8978, %v8952
    %v8980 = vadd.f32 %v8979, %v8954
    %v8981 = vadd.f32 %v8980, %v8956
    %v8982 = vadd.f32 %v8981, %v8958
    %v8983 = vadd.f32 %v8982, %v8960
    %v8984 = vadd.f32 %v8983, %v8962
    %v8985 = vadd.f32 %v8984, %v8964
    %v8986 = vadd.f32 %v8985, %v8966
    %v8987 = vadd.f32 %v8986, %v8968
    %v8988 = vadd.f32 %v8987, %v8970
    %v8989 = vsel %vm519, %v8972, 0.0
    %v8990 = vadd.f32 %v8988, %v8989
    %v8991 = vrot.slane %v8990, 4
    %v8992 = vadd.f32 %v8990, %v8991
    %v8993 = vrot.slane %v8992, 2
    %v8994 = vadd.f32 %v8992, %v8993
    %v8995 = vrot.slane %v8994, 1
    %v8996 = vadd.f32 %v8994, %v8995
    %vm8997 = vcmask 523264
    %v8998 = vsel %vm8997, %v8941, 0.0
    %v8999 = vsel %vm8997, %v8943, 0.0
    %v9000 = vadd.f32 %v8998, %v8999
    %v9001 = vsel %vm8997, %v8945, 0.0
    %v9002 = vadd.f32 %v9000, %v9001
    %v9003 = vsel %vm8997, %v8947, 0.0
    %v9004 = vadd.f32 %v9002, %v9003
    %v9005 = vsel %vm8997, %v8949, 0.0
    %v9006 = vadd.f32 %v9004, %v9005
    %v9007 = vsel %vm8997, %v8951, 0.0
    %v9008 = vadd.f32 %v9006, %v9007
    %v9009 = vsel %vm8997, %v8953, 0.0
    %v9010 = vadd.f32 %v9008, %v9009
    %v9011 = vsel %vm8997, %v8955, 0.0
    %v9012 = vadd.f32 %v9010, %v9011
    %v9013 = vsel %vm8997, %v8957, 0.0
    %v9014 = vadd.f32 %v9012, %v9013
    %v9015 = vsel %vm8997, %v8959, 0.0
    %v9016 = vadd.f32 %v9014, %v9015
    %v9017 = vsel %vm8997, %v8961, 0.0
    %v9018 = vadd.f32 %v9016, %v9017
    %v9019 = vsel %vm8997, %v8963, 0.0
    %v9020 = vadd.f32 %v9018, %v9019
    %v9021 = vsel %vm8997, %v8965, 0.0
    %v9022 = vadd.f32 %v9020, %v9021
    %v9023 = vsel %vm8997, %v8967, 0.0
    %v9024 = vadd.f32 %v9022, %v9023
    %v9025 = vsel %vm8997, %v8969, 0.0
    %v9026 = vadd.f32 %v9024, %v9025
    %v9027 = vsel %vm8997, %v8971, 0.0
    %v9028 = vadd.f32 %v9026, %v9027
    %vm9029 = vcmask 517120
    %v9030 = vsel %vm9029, %v8973, 0.0
    %v9031 = vadd.f32 %v9028, %v9030
    %v9032 = vrot.slane %v9031, 4
    %v9033 = vadd.f32 %v9031, %v9032
    %v9034 = vrot.slane %v9033, 2
    %v9035 = vadd.f32 %v9033, %v9034
    %v9036 = vrot.slane %v9035, 1
    %v9037 = vadd.f32 %v9035, %v9036
    %v9038 = vmul.f32 %v8940, %v8109
    %v9039 = vmul.f32 %v8941, %v8745
    %v9040 = vmul.f32 %v8942, %v8111
    %v9041 = vmul.f32 %v8943, %v8747
    %v9042 = vmul.f32 %v8944, %v8114
    %v9043 = vmul.f32 %v8945, %v8750
    %v9044 = vmul.f32 %v8946, %v8116
    %v9045 = vmul.f32 %v8947, %v8752
    %v9046 = vmul.f32 %v8948, %v8119
    %v9047 = vmul.f32 %v8949, %v8755
    %v9048 = vmul.f32 %v8950, %v8121
    %v9049 = vmul.f32 %v8951, %v8757
    %v9050 = vmul.f32 %v8952, %v8124
    %v9051 = vmul.f32 %v8953, %v8760
    %v9052 = vmul.f32 %v8954, %v8126
    %v9053 = vmul.f32 %v8955, %v8762
    %v9054 = vmul.f32 %v8956, %v8129
    %v9055 = vmul.f32 %v8957, %v8765
    %v9056 = vmul.f32 %v8958, %v8131
    %v9057 = vmul.f32 %v8959, %v8767
    %v9058 = vmul.f32 %v8960, %v8134
    %v9059 = vmul.f32 %v8961, %v8770
    %v9060 = vmul.f32 %v8962, %v8136
    %v9061 = vmul.f32 %v8963, %v8772
    %v9062 = vmul.f32 %v8964, %v8139
    %v9063 = vmul.f32 %v8965, %v8775
    %v9064 = vmul.f32 %v8966, %v8141
    %v9065 = vmul.f32 %v8967, %v8777
    %v9066 = vmul.f32 %v8968, %v8144
    %v9067 = vmul.f32 %v8969, %v8780
    %v9068 = vmul.f32 %v8970, %v8146
    %v9069 = vmul.f32 %v8971, %v8782
    %v9070 = vmul.f32 %v8972, %v8149
    %v9071 = vmul.f32 %v8973, %v8785
    %v9072 = vadd.f32 %v9038, %v9040
    %v9073 = vadd.f32 %v9072, %v9042
    %v9074 = vadd.f32 %v9073, %v9044
    %v9075 = vadd.f32 %v9074, %v9046
    %v9076 = vadd.f32 %v9075, %v9048
    %v9077 = vadd.f32 %v9076, %v9050
    %v9078 = vadd.f32 %v9077, %v9052
    %v9079 = vadd.f32 %v9078, %v9054
    %v9080 = vadd.f32 %v9079, %v9056
    %v9081 = vadd.f32 %v9080, %v9058
    %v9082 = vadd.f32 %v9081, %v9060
    %v9083 = vadd.f32 %v9082, %v9062
    %v9084 = vadd.f32 %v9083, %v9064
    %v9085 = vadd.f32 %v9084, %v9066
    %v9086 = vadd.f32 %v9085, %v9068
    %v9087 = vsel %vm519, %v9070, 0.0
    %v9088 = vadd.f32 %v9086, %v9087
    %v9089 = vrot.slane %v9088, 4
    %v9090 = vadd.f32 %v9088, %v9089
    %v9091 = vrot.slane %v9090, 2
    %v9092 = vadd.f32 %v9090, %v9091
    %v9093 = vrot.slane %v9092, 1
    %v9094 = vadd.f32 %v9092, %v9093
    %v9095 = vsel %vm8997, %v9039, 0.0
    %v9096 = vsel %vm8997, %v9041, 0.0
    %v9097 = vadd.f32 %v9095, %v9096
    %v9098 = vsel %vm8997, %v9043, 0.0
    %v9099 = vadd.f32 %v9097, %v9098
    %v9100 = vsel %vm8997, %v9045, 0.0
    %v9101 = vadd.f32 %v9099, %v9100
    %v9102 = vsel %vm8997, %v9047, 0.0
    %v9103 = vadd.f32 %v9101, %v9102
    %v9104 = vsel %vm8997, %v9049, 0.0
    %v9105 = vadd.f32 %v9103, %v9104
    %v9106 = vsel %vm8997, %v9051, 0.0
    %v9107 = vadd.f32 %v9105, %v9106
    %v9108 = vsel %vm8997, %v9053, 0.0
    %v9109 = vadd.f32 %v9107, %v9108
    %v9110 = vsel %vm8997, %v9055, 0.0
    %v9111 = vadd.f32 %v9109, %v9110
    %v9112 = vsel %vm8997, %v9057, 0.0
    %v9113 = vadd.f32 %v9111, %v9112
    %v9114 = vsel %vm8997, %v9059, 0.0
    %v9115 = vadd.f32 %v9113, %v9114
    %v9116 = vsel %vm8997, %v9061, 0.0
    %v9117 = vadd.f32 %v9115, %v9116
    %v9118 = vsel %vm8997, %v9063, 0.0
    %v9119 = vadd.f32 %v9117, %v9118
    %v9120 = vsel %vm8997, %v9065, 0.0
    %v9121 = vadd.f32 %v9119, %v9120
    %v9122 = vsel %vm8997, %v9067, 0.0
    %v9123 = vadd.f32 %v9121, %v9122
    %v9124 = vsel %vm8997, %v9069, 0.0
    %v9125 = vadd.f32 %v9123, %v9124
    %v9126 = vsel %vm9029, %v9071, 0.0
    %v9127 = vadd.f32 %v9125, %v9126
    %v9128 = vrot.slane %v9127, 4
    %v9129 = vadd.f32 %v9127, %v9128
    %v9130 = vrot.slane %v9129, 2
    %v9131 = vadd.f32 %v9129, %v9130
    %v9132 = vrot.slane %v9131, 1
    %v9133 = vadd.f32 %v9131, %v9132
    %s9134 = scalar_lea.vmem [#allocation18], 32
    %v9135 = vld [vmem:[%s9134] sm:$0xff]
    %v9136 = vld [vmem:[%s9134 + $0x8] sm:$0xff]
    %v9138 = vsel %vm8997, %v9037, 0
    %v9141 = vsel %vm8997, %v9136, 0
    %9143 = vmatpush.xpose.msra.mxu0 0.0
    %9144 = vmatpush.xpose.msra.mxu0 0.0
    %9145 = vmatpush.xpose.msra.mxu0 0.0
    %9146 = vmatpush.xpose.msra.mxu0 0.0
    %9147 = vmatpush.xpose.msra.mxu0 0.0
    %9148 = vmatpush.xpose.msra.mxu0 0.0
    %9149 = vmatpush.xpose.msra.mxu0 0.0
    %9150 = vmatpush.xpose.msra.mxu0 0.0
    %9151 = vmatpush.xpose.msra.mxu0 0.0
    %9152 = vmatpush.xpose.msra.mxu0 0.0
    %9153 = vmatpush.xpose.msra.mxu0 0.0
    %9154 = vmatpush.xpose.msra.mxu0 0.0
    %9155 = vmatpush.xpose.msra.mxu0 0.0
    %9156 = vmatpush.xpose.msra.mxu0 0.0
    %9157 = vmatpush.xpose.msra.mxu0 0.0
    %9158 = vmatpush.xpose.msra.mxu0 %v9135
    %9159 = vmatmul.f32.gmra.mxu0 %v8996
    %v9160 = vpop.f32.mrf.mxu0
    %v9161 = vadd.f32 0.0, %v9160
    %9162 = vdwg.mxu0
    %9163 = vmatpush.xpose.msra.mxu0 0.0
    %9164 = vmatpush.xpose.msra.mxu0 0.0
    %9165 = vmatpush.xpose.msra.mxu0 0.0
    %9166 = vmatpush.xpose.msra.mxu0 0.0
    %9167 = vmatpush.xpose.msra.mxu0 0.0
    %9168 = vmatpush.xpose.msra.mxu0 0.0
    %9169 = vmatpush.xpose.msra.mxu0 0.0
    %9170 = vmatpush.xpose.msra.mxu0 0.0
    %9171 = vmatpush.xpose.msra.mxu0 0.0
    %9172 = vmatpush.xpose.msra.mxu0 0.0
    %9173 = vmatpush.xpose.msra.mxu0 0.0
    %9174 = vmatpush.xpose.msra.mxu0 0.0
    %9175 = vmatpush.xpose.msra.mxu0 0.0
    %9176 = vmatpush.xpose.msra.mxu0 0.0
    %9177 = vmatpush.xpose.msra.mxu0 0.0
    %9178 = vmatpush.xpose.msra.mxu0 %v9141
    %9179 = vmatmul.f32.gmra.mxu0 %v9138
    %v9180 = vpop.f32.mrf.mxu0
    %v9181 = vadd.f32 %v9161, %v9180
    %9182 = vdwg.mxu0
    %v9183 = vmul.f32 %v9181, 0.00012207031
    %v9185 = vsel %vm8997, %v9133, 0
    %9187 = vmatpush.xpose.msra.mxu0 0.0
    %9188 = vmatpush.xpose.msra.mxu0 0.0
    %9189 = vmatpush.xpose.msra.mxu0 0.0
    %9190 = vmatpush.xpose.msra.mxu0 0.0
    %9191 = vmatpush.xpose.msra.mxu0 0.0
    %9192 = vmatpush.xpose.msra.mxu0 0.0
    %9193 = vmatpush.xpose.msra.mxu0 0.0
    %9194 = vmatpush.xpose.msra.mxu0 0.0
    %9195 = vmatpush.xpose.msra.mxu0 0.0
    %9196 = vmatpush.xpose.msra.mxu0 0.0
    %9197 = vmatpush.xpose.msra.mxu0 0.0
    %9198 = vmatpush.xpose.msra.mxu0 0.0
    %9199 = vmatpush.xpose.msra.mxu0 0.0
    %9200 = vmatpush.xpose.msra.mxu0 0.0
    %9201 = vmatpush.xpose.msra.mxu0 0.0
    %9202 = vmatpush.xpose.msra.mxu0 %v9135
    %9203 = vmatmul.f32.gmra.mxu0 %v9094
    %v9204 = vpop.f32.mrf.mxu0
    %v9205 = vadd.f32 0.0, %v9204
    %9206 = vdwg.mxu0
    %9207 = vmatpush.xpose.msra.mxu0 0.0
    %9208 = vmatpush.xpose.msra.mxu0 0.0
    %9209 = vmatpush.xpose.msra.mxu0 0.0
    %9210 = vmatpush.xpose.msra.mxu0 0.0
    %9211 = vmatpush.xpose.msra.mxu0 0.0
    %9212 = vmatpush.xpose.msra.mxu0 0.0
    %9213 = vmatpush.xpose.msra.mxu0 0.0
    %9214 = vmatpush.xpose.msra.mxu0 0.0
    %9215 = vmatpush.xpose.msra.mxu0 0.0
    %9216 = vmatpush.xpose.msra.mxu0 0.0
    %9217 = vmatpush.xpose.msra.mxu0 0.0
    %9218 = vmatpush.xpose.msra.mxu0 0.0
    %9219 = vmatpush.xpose.msra.mxu0 0.0
    %9220 = vmatpush.xpose.msra.mxu0 0.0
    %9221 = vmatpush.xpose.msra.mxu0 0.0
    %9222 = vmatpush.xpose.msra.mxu0 %v9141
    %9223 = vmatmul.f32.gmra.mxu0 %v9185
    %v9224 = vpop.f32.mrf.mxu0
    %v9225 = vadd.f32 %v9205, %v9224
    %9226 = vdwg.mxu0
    %v9227 = vmul.f32 %v9225, 0.00012207031
    %v9228 = vmul.f32 %v9183, %v9183
    %v9229 = vsub.f32 %v9227, %v9228
    %v9230 = vmax.f32 %v9229, 0.0
    %s9231 = scalar_lea.vmem [#allocation19], 8
    %v9232 = vld [vmem:[%s9231] sm:$0x3]
    %v9233 = vadd.f32 %v9230, 1e-05
    %v9234 = vrsqrt.pop %v9233
    %v9235 = vmul.f32 %v9234, %v9233
    %v9236 = vmul.f32 %v9235, %v9234
    %v9237 = vmul.f32 0.5, %v9236
    %v9238 = vsub.f32 1.5, %v9237
    %v9239 = vmul.f32 %v9234, %v9238
    %vm9240 = vweird.f32 %v9233
    %vm9241 = vweird.f32 %v9234
    %vm9242 = vmor %vm9240, %vm9241
    %v9243 = vsel %vm9242, %v9234, %v9239
    %v9244 = vmul.f32 %v9232, %v9243
    %v9245 = vmul.f32 %v9183, %v9244
    %v9247 = vrot.slane %v9245, 7
    %v9249 = vsub.f32 %v9232, %v9247
    %v9251 = vsel %vm608, %v9244, 0
    %9253 = vmatpush.msra.mxu0 0.0
    %9254 = vmatpush.msra.mxu0 0.0
    %9255 = vmatpush.msra.mxu0 0.0
    %9256 = vmatpush.msra.mxu0 0.0
    %9257 = vmatpush.msra.mxu0 0.0
    %9258 = vmatpush.msra.mxu0 0.0
    %9259 = vmatpush.msra.mxu0 0.0
    %9260 = vmatpush.msra.mxu0 0.0
    %9261 = vmatpush.msra.mxu0 0.0
    %9262 = vmatpush.msra.mxu0 0.0
    %9263 = vmatpush.msra.mxu0 0.0
    %9264 = vmatpush.msra.mxu0 0.0
    %9265 = vmatpush.msra.mxu0 0.0
    %9266 = vmatpush.msra.mxu0 0.0
    %9267 = vmatpush.msra.mxu0 0.0
    %9268 = vmatpush.msra.mxu0 %v9135
    %9269 = vmatmul.f32.gmra.mxu0 %v9251
    %v9270 = vpop.f32.mrf.mxu0
    %v9271 = vadd.f32 0.0, %v9270
    %9272 = vdwg.mxu0
    %9273 = vmatpush.msra.mxu0 0.0
    %9274 = vmatpush.msra.mxu0 0.0
    %9275 = vmatpush.msra.mxu0 0.0
    %9276 = vmatpush.msra.mxu0 0.0
    %9277 = vmatpush.msra.mxu0 0.0
    %9278 = vmatpush.msra.mxu0 0.0
    %9279 = vmatpush.msra.mxu0 0.0
    %9280 = vmatpush.msra.mxu0 0.0
    %9281 = vmatpush.msra.mxu0 0.0
    %9282 = vmatpush.msra.mxu0 0.0
    %9283 = vmatpush.msra.mxu0 0.0
    %9284 = vmatpush.msra.mxu0 0.0
    %9285 = vmatpush.msra.mxu0 0.0
    %9286 = vmatpush.msra.mxu0 0.0
    %9287 = vmatpush.msra.mxu0 0.0
    %9288 = vmatpush.msra.mxu0 %v9136
    %9289 = vmatmul.f32.gmra.mxu0 %v9251
    %v9290 = vpop.f32.mrf.mxu0
    %v9291 = vadd.f32 0.0, %v9290
    %9292 = vdwg.mxu0
    %v9294 = vrot.slane %v9249, 1
    %v9295 = vsel %vm608, %v9294, 0
    %9297 = vmatpush.msra.mxu0 0.0
    %9298 = vmatpush.msra.mxu0 0.0
    %9299 = vmatpush.msra.mxu0 0.0
    %9300 = vmatpush.msra.mxu0 0.0
    %9301 = vmatpush.msra.mxu0 0.0
    %9302 = vmatpush.msra.mxu0 0.0
    %9303 = vmatpush.msra.mxu0 0.0
    %9304 = vmatpush.msra.mxu0 0.0
    %9305 = vmatpush.msra.mxu0 0.0
    %9306 = vmatpush.msra.mxu0 0.0
    %9307 = vmatpush.msra.mxu0 0.0
    %9308 = vmatpush.msra.mxu0 0.0
    %9309 = vmatpush.msra.mxu0 0.0
    %9310 = vmatpush.msra.mxu0 0.0
    %9311 = vmatpush.msra.mxu0 0.0
    %9312 = vmatpush.msra.mxu0 %v9135
    %9313 = vmatmul.f32.gmra.mxu0 %v9295
    %v9314 = vpop.f32.mrf.mxu0
    %v9315 = vadd.f32 0.0, %v9314
    %9316 = vdwg.mxu0
    %9317 = vmatpush.msra.mxu0 0.0
    %9318 = vmatpush.msra.mxu0 0.0
    %9319 = vmatpush.msra.mxu0 0.0
    %9320 = vmatpush.msra.mxu0 0.0
    %9321 = vmatpush.msra.mxu0 0.0
    %9322 = vmatpush.msra.mxu0 0.0
    %9323 = vmatpush.msra.mxu0 0.0
    %9324 = vmatpush.msra.mxu0 0.0
    %9325 = vmatpush.msra.mxu0 0.0
    %9326 = vmatpush.msra.mxu0 0.0
    %9327 = vmatpush.msra.mxu0 0.0
    %9328 = vmatpush.msra.mxu0 0.0
    %9329 = vmatpush.msra.mxu0 0.0
    %9330 = vmatpush.msra.mxu0 0.0
    %9331 = vmatpush.msra.mxu0 0.0
    %9332 = vmatpush.msra.mxu0 %v9136
    %9333 = vmatmul.f32.gmra.mxu0 %v9295
    %v9334 = vpop.f32.mrf.mxu0
    %v9335 = vadd.f32 0.0, %v9334
    %9336 = vdwg.mxu0
    %v9337 = vperm.slane %v9271, 0
    %v9338 = vperm.slane %v9291, 0
    %v9339 = vmul.f32 %v8109, %v9337
    %v9340 = vmul.f32 %v8745, %v9338
    %v9341 = vmul.f32 %v8111, %v9337
    %v9342 = vmul.f32 %v8747, %v9338
    %v9343 = vmul.f32 %v8114, %v9337
    %v9344 = vmul.f32 %v8750, %v9338
    %v9345 = vmul.f32 %v8116, %v9337
    %v9346 = vmul.f32 %v8752, %v9338
    %v9347 = vmul.f32 %v8119, %v9337
    %v9348 = vmul.f32 %v8755, %v9338
    %v9349 = vmul.f32 %v8121, %v9337
    %v9350 = vmul.f32 %v8757, %v9338
    %v9351 = vmul.f32 %v8124, %v9337
    %v9352 = vmul.f32 %v8760, %v9338
    %v9353 = vmul.f32 %v8126, %v9337
    %v9354 = vmul.f32 %v8762, %v9338
    %v9355 = vmul.f32 %v8129, %v9337
    %v9356 = vmul.f32 %v8765, %v9338
    %v9357 = vmul.f32 %v8131, %v9337
    %v9358 = vmul.f32 %v8767, %v9338
    %v9359 = vmul.f32 %v8134, %v9337
    %v9360 = vmul.f32 %v8770, %v9338
    %v9361 = vmul.f32 %v8136, %v9337
    %v9362 = vmul.f32 %v8772, %v9338
    %v9363 = vmul.f32 %v8139, %v9337
    %v9364 = vmul.f32 %v8775, %v9338
    %v9365 = vmul.f32 %v8141, %v9337
    %v9366 = vmul.f32 %v8777, %v9338
    %v9367 = vmul.f32 %v8144, %v9337
    %v9368 = vmul.f32 %v8780, %v9338
    %v9369 = vmul.f32 %v8146, %v9337
    %v9370 = vmul.f32 %v8782, %v9338
    %v9371 = vmul.f32 %v8149, %v9337
    %v9372 = vmul.f32 %v8785, %v9338
    %v9373 = vperm.slane %v9315, 0
    %v9374 = vperm.slane %v9335, 0
    %v9375 = vadd.f32 %v9339, %v9373
    %v9376 = vadd.f32 %v9340, %v9374
    %v9377 = vadd.f32 %v9341, %v9373
    %v9378 = vadd.f32 %v9342, %v9374
    %v9379 = vadd.f32 %v9343, %v9373
    %v9380 = vadd.f32 %v9344, %v9374
    %v9381 = vadd.f32 %v9345, %v9373
    %v9382 = vadd.f32 %v9346, %v9374
    %v9383 = vadd.f32 %v9347, %v9373
    %v9384 = vadd.f32 %v9348, %v9374
    %v9385 = vadd.f32 %v9349, %v9373
    %v9386 = vadd.f32 %v9350, %v9374
    %v9387 = vadd.f32 %v9351, %v9373
    %v9388 = vadd.f32 %v9352, %v9374
    %v9389 = vadd.f32 %v9353, %v9373
    %v9390 = vadd.f32 %v9354, %v9374
    %v9391 = vadd.f32 %v9355, %v9373
    %v9392 = vadd.f32 %v9356, %v9374
    %v9393 = vadd.f32 %v9357, %v9373
    %v9394 = vadd.f32 %v9358, %v9374
    %v9395 = vadd.f32 %v9359, %v9373
    %v9396 = vadd.f32 %v9360, %v9374
    %v9397 = vadd.f32 %v9361, %v9373
    %v9398 = vadd.f32 %v9362, %v9374
    %v9399 = vadd.f32 %v9363, %v9373
    %v9400 = vadd.f32 %v9364, %v9374
    %v9401 = vadd.f32 %v9365, %v9373
    %v9402 = vadd.f32 %v9366, %v9374
    %v9403 = vadd.f32 %v9367, %v9373
    %v9404 = vadd.f32 %v9368, %v9374
    %v9405 = vadd.f32 %v9369, %v9373
    %v9406 = vadd.f32 %v9370, %v9374
    %v9407 = vadd.f32 %v9371, %v9373
    %v9408 = vadd.f32 %v9372, %v9374
    %v9409 = vmul.f32 %v9375, 0.2
    %v9410 = vmul.f32 %v9376, 0.2
    %v9411 = vmul.f32 %v9377, 0.2
    %v9412 = vmul.f32 %v9378, 0.2
    %v9413 = vmul.f32 %v9379, 0.2
    %v9414 = vmul.f32 %v9380, 0.2
    %v9415 = vmul.f32 %v9381, 0.2
    %v9416 = vmul.f32 %v9382, 0.2
    %v9417 = vmul.f32 %v9383, 0.2
    %v9418 = vmul.f32 %v9384, 0.2
    %v9419 = vmul.f32 %v9385, 0.2
    %v9420 = vmul.f32 %v9386, 0.2
    %v9421 = vmul.f32 %v9387, 0.2
    %v9422 = vmul.f32 %v9388, 0.2
    %v9423 = vmul.f32 %v9389, 0.2
    %v9424 = vmul.f32 %v9390, 0.2
    %v9425 = vmul.f32 %v9391, 0.2
    %v9426 = vmul.f32 %v9392, 0.2
    %v9427 = vmul.f32 %v9393, 0.2
    %v9428 = vmul.f32 %v9394, 0.2
    %v9429 = vmul.f32 %v9395, 0.2
    %v9430 = vmul.f32 %v9396, 0.2
    %v9431 = vmul.f32 %v9397, 0.2
    %v9432 = vmul.f32 %v9398, 0.2
    %v9433 = vmul.f32 %v9399, 0.2
    %v9434 = vmul.f32 %v9400, 0.2
    %v9435 = vmul.f32 %v9401, 0.2
    %v9436 = vmul.f32 %v9402, 0.2
    %v9437 = vmul.f32 %v9403, 0.2
    %v9438 = vmul.f32 %v9404, 0.2
    %v9439 = vmul.f32 %v9405, 0.2
    %v9440 = vmul.f32 %v9406, 0.2
    %v9441 = vmul.f32 %v9407, 0.2
    %v9442 = vmul.f32 %v9408, 0.2
    %v9443 = vmax.f32 %v9375, %v9409
    %v9444 = vmax.f32 %v9376, %v9410
    %v9445 = vmax.f32 %v9377, %v9411
    %v9446 = vmax.f32 %v9378, %v9412
    %v9447 = vmax.f32 %v9379, %v9413
    %v9448 = vmax.f32 %v9380, %v9414
    %v9449 = vmax.f32 %v9381, %v9415
    %v9450 = vmax.f32 %v9382, %v9416
    %v9451 = vmax.f32 %v9383, %v9417
    %v9452 = vmax.f32 %v9384, %v9418
    %v9453 = vmax.f32 %v9385, %v9419
    %v9454 = vmax.f32 %v9386, %v9420
    %v9455 = vmax.f32 %v9387, %v9421
    %v9456 = vmax.f32 %v9388, %v9422
    %v9457 = vmax.f32 %v9389, %v9423
    %v9458 = vmax.f32 %v9390, %v9424
    %v9459 = vmax.f32 %v9391, %v9425
    %v9460 = vmax.f32 %v9392, %v9426
    %v9461 = vmax.f32 %v9393, %v9427
    %v9462 = vmax.f32 %v9394, %v9428
    %v9463 = vmax.f32 %v9395, %v9429
    %v9464 = vmax.f32 %v9396, %v9430
    %v9465 = vmax.f32 %v9397, %v9431
    %v9466 = vmax.f32 %v9398, %v9432
    %v9467 = vmax.f32 %v9399, %v9433
    %v9468 = vmax.f32 %v9400, %v9434
    %v9469 = vmax.f32 %v9401, %v9435
    %v9470 = vmax.f32 %v9402, %v9436
    %v9471 = vmax.f32 %v9403, %v9437
    %v9472 = vmax.f32 %v9404, %v9438
    %v9473 = vmax.f32 %v9405, %v9439
    %v9474 = vmax.f32 %v9406, %v9440
    %v9475 = vmax.f32 %v9407, %v9441
    %v9476 = vmax.f32 %v9408, %v9442
    %v9477 = vld [vmem:[%s12] sm:$0xff]
    %v9478 = vld [vmem:[%s12 + $0x8] sm:$0xff]
    %v9479 = vld [vmem:[%s12 + $0x10] sm:$0xff]
    %v9480 = vld [vmem:[%s12 + $0x18] sm:$0xff]
    %v9481 = vld [vmem:[%s12 + $0x20] sm:$0xff]
    %v9482 = vld [vmem:[%s12 + $0x28] sm:$0xff]
    %v9483 = vld [vmem:[%s12 + $0x30] sm:$0xff]
    %v9484 = vld [vmem:[%s12 + $0x38] sm:$0xff]
    %v9485 = vld [vmem:[%s12 + $0x40] sm:$0xff]
    %v9486 = vld [vmem:[%s12 + $0x48] sm:$0xff]
    %v9487 = vld [vmem:[%s12 + $0x50] sm:$0xff]
    %v9488 = vld [vmem:[%s12 + $0x58] sm:$0xff]
    %v9489 = vld [vmem:[%s12 + $0x60] sm:$0xff]
    %v9490 = vld [vmem:[%s12 + $0x68] sm:$0xff]
    %v9491 = vld [vmem:[%s12 + $0x70] sm:$0xff]
    %v9492 = vld [vmem:[%s12 + $0x78] sm:$0xff]
    %v9493 = vld [vmem:[%s12 + $0x80] sm:$0x33]
    %v9494 = vpack.c.bf16 %v9445, %v9443
    %v9495 = vpack.c.bf16 %v9446, %v9444
    %v9496 = vpack.c.bf16 %v9449, %v9447
    %v9497 = vpack.c.bf16 %v9450, %v9448
    %v9498 = vpack.c.bf16 %v9453, %v9451
    %v9499 = vpack.c.bf16 %v9454, %v9452
    %v9500 = vpack.c.bf16 %v9457, %v9455
    %v9501 = vpack.c.bf16 %v9458, %v9456
    %v9502 = vpack.c.bf16 %v9461, %v9459
    %v9503 = vpack.c.bf16 %v9462, %v9460
    %v9504 = vpack.c.bf16 %v9465, %v9463
    %v9505 = vpack.c.bf16 %v9466, %v9464
    %v9506 = vpack.c.bf16 %v9469, %v9467
    %v9507 = vpack.c.bf16 %v9470, %v9468
    %v9508 = vpack.c.bf16 %v9473, %v9471
    %v9509 = vpack.c.bf16 %v9474, %v9472
    %v9510 = vpack.c.bf16 %v9475, %v9475
    %v9511 = vpack.c.bf16 %v9476, %v9476
    %v9529 = vunpack.c.l.b16 %v9477
    %v9530 = vunpack.c.h.b16 %v9477
    %v9531 = vunpack.c.l.b16 %v9478
    %v9532 = vunpack.c.h.b16 %v9478
    %v9533 = vunpack.c.l.b16 %v9479
    %v9534 = vunpack.c.h.b16 %v9479
    %v9535 = vunpack.c.l.b16 %v9480
    %v9536 = vunpack.c.h.b16 %v9480
    %v9537 = vunpack.c.l.b16 %v9481
    %v9538 = vunpack.c.h.b16 %v9481
    %v9539 = vunpack.c.l.b16 %v9482
    %v9540 = vunpack.c.h.b16 %v9482
    %v9541 = vunpack.c.l.b16 %v9483
    %v9542 = vunpack.c.h.b16 %v9483
    %v9543 = vunpack.c.l.b16 %v9484
    %v9544 = vunpack.c.h.b16 %v9484
    %v9545 = vunpack.c.l.b16 %v9485
    %v9546 = vunpack.c.h.b16 %v9485
    %v9547 = vunpack.c.l.b16 %v9486
    %v9548 = vunpack.c.h.b16 %v9486
    %v9549 = vunpack.c.l.b16 %v9487
    %v9550 = vunpack.c.h.b16 %v9487
    %v9551 = vunpack.c.l.b16 %v9488
    %v9552 = vunpack.c.h.b16 %v9488
    %v9553 = vunpack.c.l.b16 %v9489
    %v9554 = vunpack.c.h.b16 %v9489
    %v9555 = vunpack.c.l.b16 %v9490
    %v9556 = vunpack.c.h.b16 %v9490
    %v9557 = vunpack.c.l.b16 %v9491
    %v9558 = vunpack.c.h.b16 %v9491
    %v9559 = vunpack.c.l.b16 %v9492
    %v9560 = vunpack.c.h.b16 %v9492
    %v9561 = vunpack.c.l.b16 %v9493
    %v9562 = vunpack.c.h.b16 %v9493
    %v9563 = vpack.c.b16 %v9531, %v9529
    %v9564 = vpack.c.b16 %v9532, %v9530
    %v9565 = vpack.c.b16 %v9535, %v9533
    %v9566 = vpack.c.b16 %v9536, %v9534
    %v9567 = vpack.c.b16 %v9539, %v9537
    %v9568 = vpack.c.b16 %v9540, %v9538
    %v9569 = vpack.c.b16 %v9543, %v9541
    %v9570 = vpack.c.b16 %v9544, %v9542
    %v9571 = vpack.c.b16 %v9547, %v9545
    %v9572 = vpack.c.b16 %v9548, %v9546
    %v9573 = vpack.c.b16 %v9551, %v9549
    %v9574 = vpack.c.b16 %v9552, %v9550
    %v9575 = vpack.c.b16 %v9555, %v9553
    %v9576 = vpack.c.b16 %v9556, %v9554
    %v9577 = vpack.c.b16 %v9559, %v9557
    %v9578 = vpack.c.b16 %v9560, %v9558
    %v9579 = vpack.c.b16 %v9561, %v9561
    %v9580 = vpack.c.b16 %v9562, %v9562
    %vm9590 = vcmask 15360
    %v9592 = vsel %vm9590, %v9564, 0
    %v9595 = vsel %vm9590, %v9566, 0
    %v9598 = vsel %vm9590, %v9568, 0
    %v9601 = vsel %vm9590, %v9570, 0
    %v9604 = vsel %vm9590, %v9572, 0
    %v9607 = vsel %vm9590, %v9574, 0
    %v9610 = vsel %vm9590, %v9576, 0
    %v9613 = vsel %vm9590, %v9578, 0
    %v9616 = vsel %vm9590, %v9580, 0
    %v9619 = vsel %vm709, %v9510, 0
    %v9622 = vsel %vm709, %v9511, 0
    %9624 = vmatpush.bf16.msra.mxu0 %v9508
    %9625 = vmatpush.bf16.msra.mxu0 %v9506
    %9626 = vmatpush.bf16.msra.mxu0 %v9504
    %9627 = vmatpush.bf16.msra.mxu0 %v9502
    %9628 = vmatpush.bf16.msra.mxu0 %v9500
    %9629 = vmatpush.bf16.msra.mxu0 %v9498
    %9630 = vmatpush.bf16.msra.mxu0 %v9496
    %9631 = vmatpush.bf16.msra.mxu0 %v9494
    %9632 = vmatmul.bf16.gmra.mxu0 %v9563
    %v9633 = vpop.f32.mrf.mxu0
    %v9634 = vadd.f32 0.0, %v9633
    %v9635 = vpop.f32.mrf.mxu0
    %v9636 = vadd.f32 0.0, %v9635
    %9637 = vmatmul.bf16.gmra.mxu0 %v9565
    %v9638 = vpop.f32.mrf.mxu0
    %v9639 = vadd.f32 0.0, %v9638
    %v9640 = vpop.f32.mrf.mxu0
    %v9641 = vadd.f32 0.0, %v9640
    %9642 = vmatmul.bf16.gmra.mxu0 %v9567
    %v9643 = vpop.f32.mrf.mxu0
    %v9644 = vadd.f32 0.0, %v9643
    %v9645 = vpop.f32.mrf.mxu0
    %v9646 = vadd.f32 0.0, %v9645
    %9647 = vmatmul.bf16.gmra.mxu0 %v9569
    %v9648 = vpop.f32.mrf.mxu0
    %v9649 = vadd.f32 0.0, %v9648
    %v9650 = vpop.f32.mrf.mxu0
    %v9651 = vadd.f32 0.0, %v9650
    %9652 = vmatmul.bf16.gmra.mxu0 %v9571
    %v9653 = vpop.f32.mrf.mxu0
    %v9654 = vadd.f32 0.0, %v9653
    %v9655 = vpop.f32.mrf.mxu0
    %v9656 = vadd.f32 0.0, %v9655
    %9657 = vmatmul.bf16.gmra.mxu0 %v9573
    %v9658 = vpop.f32.mrf.mxu0
    %v9659 = vadd.f32 0.0, %v9658
    %v9660 = vpop.f32.mrf.mxu0
    %v9661 = vadd.f32 0.0, %v9660
    %9662 = vmatmul.bf16.gmra.mxu0 %v9575
    %v9663 = vpop.f32.mrf.mxu0
    %v9664 = vadd.f32 0.0, %v9663
    %v9665 = vpop.f32.mrf.mxu0
    %v9666 = vadd.f32 0.0, %v9665
    %9667 = vmatmul.bf16.gmra.mxu0 %v9577
    %v9668 = vpop.f32.mrf.mxu0
    %v9669 = vadd.f32 0.0, %v9668
    %v9670 = vpop.f32.mrf.mxu0
    %v9671 = vadd.f32 0.0, %v9670
    %9672 = vmatmul.bf16.gmra.mxu0 %v9579
    %v9673 = vpop.f32.mrf.mxu0
    %v9674 = vadd.f32 0.0, %v9673
    %v9675 = vpop.f32.mrf.mxu0
    %9676 = vdwg.mxu0
    %9677 = vmatpush.bf16.msra.mxu0 0
    %9678 = vmatpush.bf16.msra.mxu0 0
    %9679 = vmatpush.bf16.msra.mxu0 0
    %9680 = vmatpush.bf16.msra.mxu0 0
    %9681 = vmatpush.bf16.msra.mxu0 0
    %9682 = vmatpush.bf16.msra.mxu0 0
    %9683 = vmatpush.bf16.msra.mxu0 0
    %9684 = vmatpush.bf16.msra.mxu0 %v9619
    %9685 = vmatmul.bf16.gmra.mxu0 %v9592
    %v9686 = vpop.f32.mrf.mxu0
    %v9687 = vadd.f32 %v9634, %v9686
    %v9688 = vpop.f32.mrf.mxu0
    %v9689 = vadd.f32 %v9636, %v9688
    %9690 = vmatmul.bf16.gmra.mxu0 %v9595
    %v9691 = vpop.f32.mrf.mxu0
    %v9692 = vadd.f32 %v9639, %v9691
    %v9693 = vpop.f32.mrf.mxu0
    %v9694 = vadd.f32 %v9641, %v9693
    %9695 = vmatmul.bf16.gmra.mxu0 %v9598
    %v9696 = vpop.f32.mrf.mxu0
    %v9697 = vadd.f32 %v9644, %v9696
    %v9698 = vpop.f32.mrf.mxu0
    %v9699 = vadd.f32 %v9646, %v9698
    %9700 = vmatmul.bf16.gmra.mxu0 %v9601
    %v9701 = vpop.f32.mrf.mxu0
    %v9702 = vadd.f32 %v9649, %v9701
    %v9703 = vpop.f32.mrf.mxu0
    %v9704 = vadd.f32 %v9651, %v9703
    %9705 = vmatmul.bf16.gmra.mxu0 %v9604
    %v9706 = vpop.f32.mrf.mxu0
    %v9707 = vadd.f32 %v9654, %v9706
    %v9708 = vpop.f32.mrf.mxu0
    %v9709 = vadd.f32 %v9656, %v9708
    %9710 = vmatmul.bf16.gmra.mxu0 %v9607
    %v9711 = vpop.f32.mrf.mxu0
    %v9712 = vadd.f32 %v9659, %v9711
    %v9713 = vpop.f32.mrf.mxu0
    %v9714 = vadd.f32 %v9661, %v9713
    %9715 = vmatmul.bf16.gmra.mxu0 %v9610
    %v9716 = vpop.f32.mrf.mxu0
    %v9717 = vadd.f32 %v9664, %v9716
    %v9718 = vpop.f32.mrf.mxu0
    %v9719 = vadd.f32 %v9666, %v9718
    %9720 = vmatmul.bf16.gmra.mxu0 %v9613
    %v9721 = vpop.f32.mrf.mxu0
    %v9722 = vadd.f32 %v9669, %v9721
    %v9723 = vpop.f32.mrf.mxu0
    %v9724 = vadd.f32 %v9671, %v9723
    %9725 = vmatmul.bf16.gmra.mxu0 %v9616
    %v9726 = vpop.f32.mrf.mxu0
    %v9727 = vadd.f32 %v9674, %v9726
    %v9728 = vpop.f32.mrf.mxu0
    %9729 = vdwg.mxu0
    %9730 = vmatpush.bf16.msra.mxu0 %v9509
    %9731 = vmatpush.bf16.msra.mxu0 %v9507
    %9732 = vmatpush.bf16.msra.mxu0 %v9505
    %9733 = vmatpush.bf16.msra.mxu0 %v9503
    %9734 = vmatpush.bf16.msra.mxu0 %v9501
    %9735 = vmatpush.bf16.msra.mxu0 %v9499
    %9736 = vmatpush.bf16.msra.mxu0 %v9497
    %9737 = vmatpush.bf16.msra.mxu0 %v9495
    %9738 = vmatmul.bf16.gmra.mxu0 %v9563
    %v9739 = vpop.f32.mrf.mxu0
    %v9740 = vadd.f32 0.0, %v9739
    %v9741 = vpop.f32.mrf.mxu0
    %v9742 = vadd.f32 0.0, %v9741
    %9743 = vmatmul.bf16.gmra.mxu0 %v9565
    %v9744 = vpop.f32.mrf.mxu0
    %v9745 = vadd.f32 0.0, %v9744
    %v9746 = vpop.f32.mrf.mxu0
    %v9747 = vadd.f32 0.0, %v9746
    %9748 = vmatmul.bf16.gmra.mxu0 %v9567
    %v9749 = vpop.f32.mrf.mxu0
    %v9750 = vadd.f32 0.0, %v9749
    %v9751 = vpop.f32.mrf.mxu0
    %v9752 = vadd.f32 0.0, %v9751
    %9753 = vmatmul.bf16.gmra.mxu0 %v9569
    %v9754 = vpop.f32.mrf.mxu0
    %v9755 = vadd.f32 0.0, %v9754
    %v9756 = vpop.f32.mrf.mxu0
    %v9757 = vadd.f32 0.0, %v9756
    %9758 = vmatmul.bf16.gmra.mxu0 %v9571
    %v9759 = vpop.f32.mrf.mxu0
    %v9760 = vadd.f32 0.0, %v9759
    %v9761 = vpop.f32.mrf.mxu0
    %v9762 = vadd.f32 0.0, %v9761
    %9763 = vmatmul.bf16.gmra.mxu0 %v9573
    %v9764 = vpop.f32.mrf.mxu0
    %v9765 = vadd.f32 0.0, %v9764
    %v9766 = vpop.f32.mrf.mxu0
    %v9767 = vadd.f32 0.0, %v9766
    %9768 = vmatmul.bf16.gmra.mxu0 %v9575
    %v9769 = vpop.f32.mrf.mxu0
    %v9770 = vadd.f32 0.0, %v9769
    %v9771 = vpop.f32.mrf.mxu0
    %v9772 = vadd.f32 0.0, %v9771
    %9773 = vmatmul.bf16.gmra.mxu0 %v9577
    %v9774 = vpop.f32.mrf.mxu0
    %v9775 = vadd.f32 0.0, %v9774
    %v9776 = vpop.f32.mrf.mxu0
    %v9777 = vadd.f32 0.0, %v9776
    %9778 = vmatmul.bf16.gmra.mxu0 %v9579
    %v9779 = vpop.f32.mrf.mxu0
    %v9780 = vadd.f32 0.0, %v9779
    %v9781 = vpop.f32.mrf.mxu0
    %9782 = vdwg.mxu0
    %9783 = vmatpush.bf16.msra.mxu0 0
    %9784 = vmatpush.bf16.msra.mxu0 0
    %9785 = vmatpush.bf16.msra.mxu0 0
    %9786 = vmatpush.bf16.msra.mxu0 0
    %9787 = vmatpush.bf16.msra.mxu0 0
    %9788 = vmatpush.bf16.msra.mxu0 0
    %9789 = vmatpush.bf16.msra.mxu0 0
    %9790 = vmatpush.bf16.msra.mxu0 %v9622
    %9791 = vmatmul.bf16.gmra.mxu0 %v9592
    %v9792 = vpop.f32.mrf.mxu0
    %v9793 = vadd.f32 %v9740, %v9792
    %v9794 = vpop.f32.mrf.mxu0
    %v9795 = vadd.f32 %v9742, %v9794
    %9796 = vmatmul.bf16.gmra.mxu0 %v9595
    %v9797 = vpop.f32.mrf.mxu0
    %v9798 = vadd.f32 %v9745, %v9797
    %v9799 = vpop.f32.mrf.mxu0
    %v9800 = vadd.f32 %v9747, %v9799
    %9801 = vmatmul.bf16.gmra.mxu0 %v9598
    %v9802 = vpop.f32.mrf.mxu0
    %v9803 = vadd.f32 %v9750, %v9802
    %v9804 = vpop.f32.mrf.mxu0
    %v9805 = vadd.f32 %v9752, %v9804
    %9806 = vmatmul.bf16.gmra.mxu0 %v9601
    %v9807 = vpop.f32.mrf.mxu0
    %v9808 = vadd.f32 %v9755, %v9807
    %v9809 = vpop.f32.mrf.mxu0
    %v9810 = vadd.f32 %v9757, %v9809
    %9811 = vmatmul.bf16.gmra.mxu0 %v9604
    %v9812 = vpop.f32.mrf.mxu0
    %v9813 = vadd.f32 %v9760, %v9812
    %v9814 = vpop.f32.mrf.mxu0
    %v9815 = vadd.f32 %v9762, %v9814
    %9816 = vmatmul.bf16.gmra.mxu0 %v9607
    %v9817 = vpop.f32.mrf.mxu0
    %v9818 = vadd.f32 %v9765, %v9817
    %v9819 = vpop.f32.mrf.mxu0
    %v9820 = vadd.f32 %v9767, %v9819
    %9821 = vmatmul.bf16.gmra.mxu0 %v9610
    %v9822 = vpop.f32.mrf.mxu0
    %v9823 = vadd.f32 %v9770, %v9822
    %v9824 = vpop.f32.mrf.mxu0
    %v9825 = vadd.f32 %v9772, %v9824
    %9826 = vmatmul.bf16.gmra.mxu0 %v9613
    %v9827 = vpop.f32.mrf.mxu0
    %v9828 = vadd.f32 %v9775, %v9827
    %v9829 = vpop.f32.mrf.mxu0
    %v9830 = vadd.f32 %v9777, %v9829
    %9831 = vmatmul.bf16.gmra.mxu0 %v9616
    %v9832 = vpop.f32.mrf.mxu0
    %v9833 = vadd.f32 %v9780, %v9832
    %v9834 = vpop.f32.mrf.mxu0
    %9835 = vdwg.mxu0
    %v9836 = vpack.c.bf16 %v9793, %v9687
    %v9837 = vpack.c.bf16 %v9795, %v9689
    %v9838 = vpack.c.bf16 %v9798, %v9692
    %v9839 = vpack.c.bf16 %v9800, %v9694
    %v9840 = vpack.c.bf16 %v9803, %v9697
    %v9841 = vpack.c.bf16 %v9805, %v9699
    %v9842 = vpack.c.bf16 %v9808, %v9702
    %v9843 = vpack.c.bf16 %v9810, %v9704
    %v9844 = vpack.c.bf16 %v9813, %v9707
    %v9845 = vpack.c.bf16 %v9815, %v9709
    %v9846 = vpack.c.bf16 %v9818, %v9712
    %v9847 = vpack.c.bf16 %v9820, %v9714
    %v9848 = vpack.c.bf16 %v9823, %v9717
    %v9849 = vpack.c.bf16 %v9825, %v9719
    %v9850 = vpack.c.bf16 %v9828, %v9722
    %v9851 = vpack.c.bf16 %v9830, %v9724
    %v9852 = vpack.c.bf16 %v9833, %v9727
    %v9853 = vld [vmem:[#allocation16] sm:$0xff]
    %v9854 = vld [vmem:[#allocation16 + $0x8] sm:$0xff]
    %v9855 = vld [vmem:[#allocation16 + $0x10] sm:$0xff]
    %v9856 = vld [vmem:[#allocation16 + $0x18] sm:$0xff]
    %v9857 = vld [vmem:[#allocation16 + $0x20] sm:$0xff]
    %v9858 = vld [vmem:[#allocation16 + $0x28] sm:$0xff]
    %v9859 = vld [vmem:[#allocation16 + $0x30] sm:$0xff]
    %v9860 = vld [vmem:[#allocation16 + $0x38] sm:$0xff]
    %v9861 = vld [vmem:[#allocation16 + $0x40] sm:$0xff]
    %v9862 = vld [vmem:[#allocation16 + $0x48] sm:$0xff]
    %v9863 = vld [vmem:[#allocation16 + $0x50] sm:$0xff]
    %v9864 = vld [vmem:[#allocation16 + $0x58] sm:$0xff]
    %v9865 = vld [vmem:[#allocation16 + $0x60] sm:$0xff]
    %v9866 = vld [vmem:[#allocation16 + $0x68] sm:$0xff]
    %v9867 = vld [vmem:[#allocation16 + $0x70] sm:$0xff]
    %v9868 = vld [vmem:[#allocation16 + $0x78] sm:$0xff]
    %v9869 = vld [vmem:[#allocation16 + $0x80] sm:$0xff]
    %v9870 = vld [vmem:[#allocation16 + $0x88] sm:$0xff]
    %v9871 = vld [vmem:[#allocation16 + $0x90] sm:$0xff]
    %v9872 = vld [vmem:[#allocation16 + $0x98] sm:$0xff]
    %v9873 = vld [vmem:[#allocation16 + $0xa0] sm:$0xff]
    %v9874 = vld [vmem:[#allocation16 + $0xa8] sm:$0xff]
    %v9875 = vld [vmem:[#allocation16 + $0xb0] sm:$0xff]
    %v9876 = vld [vmem:[#allocation16 + $0xb8] sm:$0xff]
    %v9877 = vld [vmem:[#allocation16 + $0xc0] sm:$0xff]
    %v9878 = vld [vmem:[#allocation16 + $0xc8] sm:$0xff]
    %v9879 = vld [vmem:[#allocation16 + $0xd0] sm:$0xff]
    %v9880 = vld [vmem:[#allocation16 + $0xd8] sm:$0xff]
    %v9881 = vld [vmem:[#allocation16 + $0xe0] sm:$0xff]
    %v9882 = vld [vmem:[#allocation16 + $0xe8] sm:$0xff]
    %v9883 = vld [vmem:[#allocation16 + $0xf0] sm:$0xff]
    %v9884 = vld [vmem:[#allocation16 + $0xf8] sm:$0xff]
    %v9885 = vld [vmem:[#allocation16 + $0x100] sm:$0xff]
    %v9886 = vld [vmem:[#allocation16 + $0x108] sm:$0xff]
    %v9887 = vld [vmem:[#allocation16 + $0x110] sm:$0xff]
    %v9888 = vld [vmem:[#allocation16 + $0x118] sm:$0xff]
    %v9889 = vld [vmem:[#allocation16 + $0x120] sm:$0xff]
    %v9890 = vld [vmem:[#allocation16 + $0x128] sm:$0xff]
    %v9891 = vld [vmem:[#allocation16 + $0x130] sm:$0xff]
    %v9892 = vld [vmem:[#allocation16 + $0x138] sm:$0xff]
    %v9893 = vld [vmem:[#allocation16 + $0x140] sm:$0xff]
    %v9894 = vld [vmem:[#allocation16 + $0x148] sm:$0xff]
    %v9895 = vld [vmem:[#allocation16 + $0x150] sm:$0xff]
    %v9896 = vld [vmem:[#allocation16 + $0x158] sm:$0xff]
    %v9897 = vld [vmem:[#allocation16 + $0x160] sm:$0xff]
    %v9898 = vld [vmem:[#allocation16 + $0x168] sm:$0xff]
    %v9899 = vld [vmem:[#allocation16 + $0x170] sm:$0xff]
    %v9900 = vld [vmem:[#allocation16 + $0x178] sm:$0xff]
    %v9918 = vunpack.c.l.b16 %v9836
    %v9919 = vunpack.c.h.b16 %v9836
    %v9920 = vunpack.c.l.b16 %v9837
    %v9921 = vunpack.c.h.b16 %v9837
    %v9922 = vunpack.c.l.b16 %v9838
    %v9923 = vunpack.c.h.b16 %v9838
    %v9924 = vunpack.c.l.b16 %v9839
    %v9925 = vunpack.c.h.b16 %v9839
    %v9926 = vunpack.c.l.b16 %v9840
    %v9927 = vunpack.c.h.b16 %v9840
    %v9928 = vunpack.c.l.b16 %v9841
    %v9929 = vunpack.c.h.b16 %v9841
    %v9930 = vunpack.c.l.b16 %v9842
    %v9931 = vunpack.c.h.b16 %v9842
    %v9932 = vunpack.c.l.b16 %v9843
    %v9933 = vunpack.c.h.b16 %v9843
    %v9934 = vunpack.c.l.b16 %v9844
    %v9935 = vunpack.c.h.b16 %v9844
    %v9936 = vunpack.c.l.b16 %v9845
    %v9937 = vunpack.c.h.b16 %v9845
    %v9938 = vunpack.c.l.b16 %v9846
    %v9939 = vunpack.c.h.b16 %v9846
    %v9940 = vunpack.c.l.b16 %v9847
    %v9941 = vunpack.c.h.b16 %v9847
    %v9942 = vunpack.c.l.b16 %v9848
    %v9943 = vunpack.c.h.b16 %v9848
    %v9944 = vunpack.c.l.b16 %v9849
    %v9945 = vunpack.c.h.b16 %v9849
    %v9946 = vunpack.c.l.b16 %v9850
    %v9947 = vunpack.c.h.b16 %v9850
    %v9948 = vunpack.c.l.b16 %v9851
    %v9949 = vunpack.c.h.b16 %v9851
    %v9950 = vunpack.c.l.b16 %v9852
    %v9951 = vunpack.c.h.b16 %v9852
    %v9952 = vpack.c.b16 %v9920, %v9918
    %v9953 = vpack.c.b16 %v9921, %v9919
    %v9954 = vpack.c.b16 %v9924, %v9922
    %v9955 = vpack.c.b16 %v9925, %v9923
    %v9956 = vpack.c.b16 %v9928, %v9926
    %v9957 = vpack.c.b16 %v9929, %v9927
    %v9958 = vpack.c.b16 %v9932, %v9930
    %v9959 = vpack.c.b16 %v9933, %v9931
    %v9960 = vpack.c.b16 %v9936, %v9934
    %v9961 = vpack.c.b16 %v9937, %v9935
    %v9962 = vpack.c.b16 %v9940, %v9938
    %v9963 = vpack.c.b16 %v9941, %v9939
    %v9964 = vpack.c.b16 %v9944, %v9942
    %v9965 = vpack.c.b16 %v9945, %v9943
    %v9966 = vpack.c.b16 %v9948, %v9946
    %v9967 = vpack.c.b16 %v9949, %v9947
    %v9968 = vpack.c.b16 %v9950, %v9950
    %v9969 = vpack.c.b16 %v9951, %v9951
    %v9971 = vshrl.u32 %v9952, 16
    %v9973 = vshll.u32 %v9952, 16
    %v9975 = vrot.slane %v9973, 1
    %v9976 = vor.u32 %v9971, %v9975
    %v9978 = vshll.u32 %v9954, 16
    %v9980 = vrot.slane %v9978, 1
    %v9981 = vsel %vm271, %v9976, %v9980
    %v9983 = vshrl.u32 %v9953, 16
    %v9985 = vshll.u32 %v9953, 16
    %v9987 = vrot.slane %v9985, 1
    %v9988 = vor.u32 %v9983, %v9987
    %v9990 = vshll.u32 %v9955, 16
    %v9992 = vrot.slane %v9990, 1
    %v9993 = vsel %vm271, %v9988, %v9992
    %v9994 = vshrl.u32 %v9954, 16
    %v9996 = vor.u32 %v9994, %v9980
    %v9998 = vshll.u32 %v9956, 16
    %v10000 = vrot.slane %v9998, 1
    %v10001 = vsel %vm271, %v9996, %v10000
    %v10002 = vshrl.u32 %v9955, 16
    %v10004 = vor.u32 %v10002, %v9992
    %v10006 = vshll.u32 %v9957, 16
    %v10008 = vrot.slane %v10006, 1
    %v10009 = vsel %vm271, %v10004, %v10008
    %v10010 = vshrl.u32 %v9956, 16
    %v10012 = vor.u32 %v10010, %v10000
    %v10014 = vshll.u32 %v9958, 16
    %v10016 = vrot.slane %v10014, 1
    %v10017 = vsel %vm271, %v10012, %v10016
    %v10018 = vshrl.u32 %v9957, 16
    %v10020 = vor.u32 %v10018, %v10008
    %v10022 = vshll.u32 %v9959, 16
    %v10024 = vrot.slane %v10022, 1
    %v10025 = vsel %vm271, %v10020, %v10024
    %v10026 = vshrl.u32 %v9958, 16
    %v10028 = vor.u32 %v10026, %v10016
    %v10030 = vshll.u32 %v9960, 16
    %v10032 = vrot.slane %v10030, 1
    %v10033 = vsel %vm271, %v10028, %v10032
    %v10034 = vshrl.u32 %v9959, 16
    %v10036 = vor.u32 %v10034, %v10024
    %v10038 = vshll.u32 %v9961, 16
    %v10040 = vrot.slane %v10038, 1
    %v10041 = vsel %vm271, %v10036, %v10040
    %v10042 = vshrl.u32 %v9960, 16
    %v10044 = vor.u32 %v10042, %v10032
    %v10046 = vshll.u32 %v9962, 16
    %v10048 = vrot.slane %v10046, 1
    %v10049 = vsel %vm271, %v10044, %v10048
    %v10050 = vshrl.u32 %v9961, 16
    %v10052 = vor.u32 %v10050, %v10040
    %v10054 = vshll.u32 %v9963, 16
    %v10056 = vrot.slane %v10054, 1
    %v10057 = vsel %vm271, %v10052, %v10056
    %v10058 = vshrl.u32 %v9962, 16
    %v10060 = vor.u32 %v10058, %v10048
    %v10062 = vshll.u32 %v9964, 16
    %v10064 = vrot.slane %v10062, 1
    %v10065 = vsel %vm271, %v10060, %v10064
    %v10066 = vshrl.u32 %v9963, 16
    %v10068 = vor.u32 %v10066, %v10056
    %v10070 = vshll.u32 %v9965, 16
    %v10072 = vrot.slane %v10070, 1
    %v10073 = vsel %vm271, %v10068, %v10072
    %v10074 = vshrl.u32 %v9964, 16
    %v10076 = vor.u32 %v10074, %v10064
    %v10078 = vshll.u32 %v9966, 16
    %v10080 = vrot.slane %v10078, 1
    %v10081 = vsel %vm271, %v10076, %v10080
    %v10082 = vshrl.u32 %v9965, 16
    %v10084 = vor.u32 %v10082, %v10072
    %v10086 = vshll.u32 %v9967, 16
    %v10088 = vrot.slane %v10086, 1
    %v10089 = vsel %vm271, %v10084, %v10088
    %v10090 = vshrl.u32 %v9966, 16
    %v10092 = vor.u32 %v10090, %v10080
    %v10094 = vshll.u32 %v9968, 16
    %v10096 = vrot.slane %v10094, 1
    %v10097 = vsel %vm271, %v10092, %v10096
    %v10098 = vshrl.u32 %v9967, 16
    %v10100 = vor.u32 %v10098, %v10088
    %v10102 = vshll.u32 %v9969, 16
    %v10104 = vrot.slane %v10102, 1
    %v10105 = vsel %vm271, %v10100, %v10104
    %v10106 = vshrl.u32 %v9968, 16
    %v10108 = vor.u32 %v10106, %v10096
    %v10109 = vshrl.u32 %v9969, 16
    %v10111 = vor.u32 %v10109, %v10104
    %v10145 = vunpack.c.l.b16 %v9877
    %v10146 = vunpack.c.h.b16 %v9877
    %v10147 = vunpack.c.l.b16 %v9878
    %v10148 = vunpack.c.h.b16 %v9878
    %v10149 = vunpack.c.l.b16 %v9879
    %v10150 = vunpack.c.h.b16 %v9879
    %v10151 = vunpack.c.l.b16 %v9880
    %v10152 = vunpack.c.h.b16 %v9880
    %v10153 = vunpack.c.l.b16 %v9881
    %v10154 = vunpack.c.h.b16 %v9881
    %v10155 = vunpack.c.l.b16 %v9882
    %v10156 = vunpack.c.h.b16 %v9882
    %v10157 = vunpack.c.l.b16 %v9883
    %v10158 = vunpack.c.h.b16 %v9883
    %v10159 = vunpack.c.l.b16 %v9884
    %v10160 = vunpack.c.h.b16 %v9884
    %v10161 = vunpack.c.l.b16 %v9885
    %v10162 = vunpack.c.h.b16 %v9885
    %v10163 = vunpack.c.l.b16 %v9886
    %v10164 = vunpack.c.h.b16 %v9886
    %v10165 = vunpack.c.l.b16 %v9887
    %v10166 = vunpack.c.h.b16 %v9887
    %v10167 = vunpack.c.l.b16 %v9888
    %v10168 = vunpack.c.h.b16 %v9888
    %v10169 = vunpack.c.l.b16 %v9889
    %v10170 = vunpack.c.h.b16 %v9889
    %v10171 = vunpack.c.l.b16 %v9890
    %v10172 = vunpack.c.h.b16 %v9890
    %v10173 = vunpack.c.l.b16 %v9891
    %v10174 = vunpack.c.h.b16 %v9891
    %v10175 = vunpack.c.l.b16 %v9892
    %v10176 = vunpack.c.h.b16 %v9892
    %v10177 = vunpack.c.l.b16 %v9893
    %v10178 = vunpack.c.h.b16 %v9893
    %v10179 = vunpack.c.l.b16 %v9894
    %v10180 = vunpack.c.h.b16 %v9894
    %v10181 = vunpack.c.l.b16 %v9895
    %v10182 = vunpack.c.h.b16 %v9895
    %v10183 = vunpack.c.l.b16 %v9896
    %v10184 = vunpack.c.h.b16 %v9896
    %v10185 = vunpack.c.l.b16 %v9897
    %v10186 = vunpack.c.h.b16 %v9897
    %v10187 = vunpack.c.l.b16 %v9898
    %v10188 = vunpack.c.h.b16 %v9898
    %v10189 = vunpack.c.l.b16 %v9899
    %v10190 = vunpack.c.h.b16 %v9899
    %v10191 = vunpack.c.l.b16 %v9900
    %v10192 = vunpack.c.h.b16 %v9900
    %v10193 = vpack.c.b16 %v10147, %v10145
    %v10194 = vpack.c.b16 %v10148, %v10146
    %v10195 = vpack.c.b16 %v10151, %v10149
    %v10196 = vpack.c.b16 %v10152, %v10150
    %v10197 = vpack.c.b16 %v10155, %v10153
    %v10198 = vpack.c.b16 %v10156, %v10154
    %v10199 = vpack.c.b16 %v10159, %v10157
    %v10200 = vpack.c.b16 %v10160, %v10158
    %v10201 = vpack.c.b16 %v10163, %v10161
    %v10202 = vpack.c.b16 %v10164, %v10162
    %v10203 = vpack.c.b16 %v10167, %v10165
    %v10204 = vpack.c.b16 %v10168, %v10166
    %v10205 = vpack.c.b16 %v10171, %v10169
    %v10206 = vpack.c.b16 %v10172, %v10170
    %v10207 = vpack.c.b16 %v10175, %v10173
    %v10208 = vpack.c.b16 %v10176, %v10174
    %v10209 = vpack.c.b16 %v10179, %v10177
    %v10210 = vpack.c.b16 %v10180, %v10178
    %v10211 = vpack.c.b16 %v10183, %v10181
    %v10212 = vpack.c.b16 %v10184, %v10182
    %v10213 = vpack.c.b16 %v10187, %v10185
    %v10214 = vpack.c.b16 %v10188, %v10186
    %v10215 = vpack.c.b16 %v10191, %v10189
    %v10216 = vpack.c.b16 %v10192, %v10190
    %v10242 = vsel %vm8997, %v9993, 0
    %v10245 = vsel %vm8997, %v10009, 0
    %v10248 = vsel %vm8997, %v10025, 0
    %v10251 = vsel %vm8997, %v10041, 0
    %v10254 = vsel %vm8997, %v10057, 0
    %v10257 = vsel %vm8997, %v10073, 0
    %v10260 = vsel %vm8997, %v10089, 0
    %v10263 = vsel %vm8997, %v10105, 0
    %v10266 = vsel %vm8997, %v10111, 0
    %10268 = vmatpush.bf16.msra.mxu0 %v10207
    %10269 = vmatpush.bf16.msra.mxu0 %v10205
    %10270 = vmatpush.bf16.msra.mxu0 %v10203
    %10271 = vmatpush.bf16.msra.mxu0 %v10201
    %10272 = vmatpush.bf16.msra.mxu0 %v10199
    %10273 = vmatpush.bf16.msra.mxu0 %v10197
    %10274 = vmatpush.bf16.msra.mxu0 %v10195
    %10275 = vmatpush.bf16.msra.mxu0 %v10193
    %10276 = vmatmul.bf16.gmra.mxu0 %v9981
    %v10277 = vpop.f32.mrf.mxu0
    %v10278 = vadd.f32 0.0, %v10277
    %v10279 = vpop.f32.mrf.mxu0
    %v10280 = vadd.f32 0.0, %v10279
    %10281 = vmatmul.bf16.gmra.mxu0 %v10001
    %v10282 = vpop.f32.mrf.mxu0
    %v10283 = vadd.f32 0.0, %v10282
    %v10284 = vpop.f32.mrf.mxu0
    %v10285 = vadd.f32 0.0, %v10284
    %10286 = vmatmul.bf16.gmra.mxu0 %v10017
    %v10287 = vpop.f32.mrf.mxu0
    %v10288 = vadd.f32 0.0, %v10287
    %v10289 = vpop.f32.mrf.mxu0
    %v10290 = vadd.f32 0.0, %v10289
    %10291 = vmatmul.bf16.gmra.mxu0 %v10033
    %v10292 = vpop.f32.mrf.mxu0
    %v10293 = vadd.f32 0.0, %v10292
    %v10294 = vpop.f32.mrf.mxu0
    %v10295 = vadd.f32 0.0, %v10294
    %10296 = vmatmul.bf16.gmra.mxu0 %v10049
    %v10297 = vpop.f32.mrf.mxu0
    %v10298 = vadd.f32 0.0, %v10297
    %v10299 = vpop.f32.mrf.mxu0
    %v10300 = vadd.f32 0.0, %v10299
    %10301 = vmatmul.bf16.gmra.mxu0 %v10065
    %v10302 = vpop.f32.mrf.mxu0
    %v10303 = vadd.f32 0.0, %v10302
    %v10304 = vpop.f32.mrf.mxu0
    %v10305 = vadd.f32 0.0, %v10304
    %10306 = vmatmul.bf16.gmra.mxu0 %v10081
    %v10307 = vpop.f32.mrf.mxu0
    %v10308 = vadd.f32 0.0, %v10307
    %v10309 = vpop.f32.mrf.mxu0
    %v10310 = vadd.f32 0.0, %v10309
    %10311 = vmatmul.bf16.gmra.mxu0 %v10097
    %v10312 = vpop.f32.mrf.mxu0
    %v10313 = vadd.f32 0.0, %v10312
    %v10314 = vpop.f32.mrf.mxu0
    %v10315 = vadd.f32 0.0, %v10314
    %10316 = vmatmul.bf16.gmra.mxu0 %v10108
    %v10317 = vpop.f32.mrf.mxu0
    %v10318 = vadd.f32 0.0, %v10317
    %v10319 = vpop.f32.mrf.mxu0
    %10320 = vdwg.mxu0
    %10321 = vmatpush.bf16.msra.mxu0 0
    %10322 = vmatpush.bf16.msra.mxu0 0
    %10323 = vmatpush.bf16.msra.mxu0 0
    %10324 = vmatpush.bf16.msra.mxu0 0
    %10325 = vmatpush.bf16.msra.mxu0 %v10215
    %10326 = vmatpush.bf16.msra.mxu0 %v10213
    %10327 = vmatpush.bf16.msra.mxu0 %v10211
    %10328 = vmatpush.bf16.msra.mxu0 %v10209
    %10329 = vmatmul.bf16.gmra.mxu0 %v10242
    %v10330 = vpop.f32.mrf.mxu0
    %v10331 = vadd.f32 %v10278, %v10330
    %v10332 = vpop.f32.mrf.mxu0
    %v10333 = vadd.f32 %v10280, %v10332
    %10334 = vmatmul.bf16.gmra.mxu0 %v10245
    %v10335 = vpop.f32.mrf.mxu0
    %v10336 = vadd.f32 %v10283, %v10335
    %v10337 = vpop.f32.mrf.mxu0
    %v10338 = vadd.f32 %v10285, %v10337
    %10339 = vmatmul.bf16.gmra.mxu0 %v10248
    %v10340 = vpop.f32.mrf.mxu0
    %v10341 = vadd.f32 %v10288, %v10340
    %v10342 = vpop.f32.mrf.mxu0
    %v10343 = vadd.f32 %v10290, %v10342
    %10344 = vmatmul.bf16.gmra.mxu0 %v10251
    %v10345 = vpop.f32.mrf.mxu0
    %v10346 = vadd.f32 %v10293, %v10345
    %v10347 = vpop.f32.mrf.mxu0
    %v10348 = vadd.f32 %v10295, %v10347
    %10349 = vmatmul.bf16.gmra.mxu0 %v10254
    %v10350 = vpop.f32.mrf.mxu0
    %v10351 = vadd.f32 %v10298, %v10350
    %v10352 = vpop.f32.mrf.mxu0
    %v10353 = vadd.f32 %v10300, %v10352
    %10354 = vmatmul.bf16.gmra.mxu0 %v10257
    %v10355 = vpop.f32.mrf.mxu0
    %v10356 = vadd.f32 %v10303, %v10355
    %v10357 = vpop.f32.mrf.mxu0
    %v10358 = vadd.f32 %v10305, %v10357
    %10359 = vmatmul.bf16.gmra.mxu0 %v10260
    %v10360 = vpop.f32.mrf.mxu0
    %v10361 = vadd.f32 %v10308, %v10360
    %v10362 = vpop.f32.mrf.mxu0
    %v10363 = vadd.f32 %v10310, %v10362
    %10364 = vmatmul.bf16.gmra.mxu0 %v10263
    %v10365 = vpop.f32.mrf.mxu0
    %v10366 = vadd.f32 %v10313, %v10365
    %v10367 = vpop.f32.mrf.mxu0
    %v10368 = vadd.f32 %v10315, %v10367
    %10369 = vmatmul.bf16.gmra.mxu0 %v10266
    %v10370 = vpop.f32.mrf.mxu0
    %v10371 = vadd.f32 %v10318, %v10370
    %v10372 = vpop.f32.mrf.mxu0
    %10373 = vdwg.mxu0
    %10374 = vmatpush.bf16.msra.mxu0 %v10208
    %10375 = vmatpush.bf16.msra.mxu0 %v10206
    %10376 = vmatpush.bf16.msra.mxu0 %v10204
    %10377 = vmatpush.bf16.msra.mxu0 %v10202
    %10378 = vmatpush.bf16.msra.mxu0 %v10200
    %10379 = vmatpush.bf16.msra.mxu0 %v10198
    %10380 = vmatpush.bf16.msra.mxu0 %v10196
    %10381 = vmatpush.bf16.msra.mxu0 %v10194
    %10382 = vmatmul.bf16.gmra.mxu0 %v9981
    %v10383 = vpop.f32.mrf.mxu0
    %v10384 = vadd.f32 0.0, %v10383
    %v10385 = vpop.f32.mrf.mxu0
    %v10386 = vadd.f32 0.0, %v10385
    %10387 = vmatmul.bf16.gmra.mxu0 %v10001
    %v10388 = vpop.f32.mrf.mxu0
    %v10389 = vadd.f32 0.0, %v10388
    %v10390 = vpop.f32.mrf.mxu0
    %v10391 = vadd.f32 0.0, %v10390
    %10392 = vmatmul.bf16.gmra.mxu0 %v10017
    %v10393 = vpop.f32.mrf.mxu0
    %v10394 = vadd.f32 0.0, %v10393
    %v10395 = vpop.f32.mrf.mxu0
    %v10396 = vadd.f32 0.0, %v10395
    %10397 = vmatmul.bf16.gmra.mxu0 %v10033
    %v10398 = vpop.f32.mrf.mxu0
    %v10399 = vadd.f32 0.0, %v10398
    %v10400 = vpop.f32.mrf.mxu0
    %v10401 = vadd.f32 0.0, %v10400
    %10402 = vmatmul.bf16.gmra.mxu0 %v10049
    %v10403 = vpop.f32.mrf.mxu0
    %v10404 = vadd.f32 0.0, %v10403
    %v10405 = vpop.f32.mrf.mxu0
    %v10406 = vadd.f32 0.0, %v10405
    %10407 = vmatmul.bf16.gmra.mxu0 %v10065
    %v10408 = vpop.f32.mrf.mxu0
    %v10409 = vadd.f32 0.0, %v10408
    %v10410 = vpop.f32.mrf.mxu0
    %v10411 = vadd.f32 0.0, %v10410
    %10412 = vmatmul.bf16.gmra.mxu0 %v10081
    %v10413 = vpop.f32.mrf.mxu0
    %v10414 = vadd.f32 0.0, %v10413
    %v10415 = vpop.f32.mrf.mxu0
    %v10416 = vadd.f32 0.0, %v10415
    %10417 = vmatmul.bf16.gmra.mxu0 %v10097
    %v10418 = vpop.f32.mrf.mxu0
    %v10419 = vadd.f32 0.0, %v10418
    %v10420 = vpop.f32.mrf.mxu0
    %v10421 = vadd.f32 0.0, %v10420
    %10422 = vmatmul.bf16.gmra.mxu0 %v10108
    %v10423 = vpop.f32.mrf.mxu0
    %v10424 = vadd.f32 0.0, %v10423
    %v10425 = vpop.f32.mrf.mxu0
    %10426 = vdwg.mxu0
    %10427 = vmatpush.bf16.msra.mxu0 0
    %10428 = vmatpush.bf16.msra.mxu0 0
    %10429 = vmatpush.bf16.msra.mxu0 0
    %10430 = vmatpush.bf16.msra.mxu0 0
    %10431 = vmatpush.bf16.msra.mxu0 %v10216
    %10432 = vmatpush.bf16.msra.mxu0 %v10214
    %10433 = vmatpush.bf16.msra.mxu0 %v10212
    %10434 = vmatpush.bf16.msra.mxu0 %v10210
    %10435 = vmatmul.bf16.gmra.mxu0 %v10242
    %v10436 = vpop.f32.mrf.mxu0
    %v10437 = vadd.f32 %v10384, %v10436
    %v10438 = vpop.f32.mrf.mxu0
    %v10439 = vadd.f32 %v10386, %v10438
    %10440 = vmatmul.bf16.gmra.mxu0 %v10245
    %v10441 = vpop.f32.mrf.mxu0
    %v10442 = vadd.f32 %v10389, %v10441
    %v10443 = vpop.f32.mrf.mxu0
    %v10444 = vadd.f32 %v10391, %v10443
    %10445 = vmatmul.bf16.gmra.mxu0 %v10248
    %v10446 = vpop.f32.mrf.mxu0
    %v10447 = vadd.f32 %v10394, %v10446
    %v10448 = vpop.f32.mrf.mxu0
    %v10449 = vadd.f32 %v10396, %v10448
    %10450 = vmatmul.bf16.gmra.mxu0 %v10251
    %v10451 = vpop.f32.mrf.mxu0
    %v10452 = vadd.f32 %v10399, %v10451
    %v10453 = vpop.f32.mrf.mxu0
    %v10454 = vadd.f32 %v10401, %v10453
    %10455 = vmatmul.bf16.gmra.mxu0 %v10254
    %v10456 = vpop.f32.mrf.mxu0
    %v10457 = vadd.f32 %v10404, %v10456
    %v10458 = vpop.f32.mrf.mxu0
    %v10459 = vadd.f32 %v10406, %v10458
    %10460 = vmatmul.bf16.gmra.mxu0 %v10257
    %v10461 = vpop.f32.mrf.mxu0
    %v10462 = vadd.f32 %v10409, %v10461
    %v10463 = vpop.f32.mrf.mxu0
    %v10464 = vadd.f32 %v10411, %v10463
    %10465 = vmatmul.bf16.gmra.mxu0 %v10260
    %v10466 = vpop.f32.mrf.mxu0
    %v10467 = vadd.f32 %v10414, %v10466
    %v10468 = vpop.f32.mrf.mxu0
    %v10469 = vadd.f32 %v10416, %v10468
    %10470 = vmatmul.bf16.gmra.mxu0 %v10263
    %v10471 = vpop.f32.mrf.mxu0
    %v10472 = vadd.f32 %v10419, %v10471
    %v10473 = vpop.f32.mrf.mxu0
    %v10474 = vadd.f32 %v10421, %v10473
    %10475 = vmatmul.bf16.gmra.mxu0 %v10266
    %v10476 = vpop.f32.mrf.mxu0
    %v10477 = vadd.f32 %v10424, %v10476
    %v10478 = vpop.f32.mrf.mxu0
    %10479 = vdwg.mxu0
    %v10513 = vunpack.c.l.b16 %v9853
    %v10514 = vunpack.c.h.b16 %v9853
    %v10515 = vunpack.c.l.b16 %v9854
    %v10516 = vunpack.c.h.b16 %v9854
    %v10517 = vunpack.c.l.b16 %v9855
    %v10518 = vunpack.c.h.b16 %v9855
    %v10519 = vunpack.c.l.b16 %v9856
    %v10520 = vunpack.c.h.b16 %v9856
    %v10521 = vunpack.c.l.b16 %v9857
    %v10522 = vunpack.c.h.b16 %v9857
    %v10523 = vunpack.c.l.b16 %v9858
    %v10524 = vunpack.c.h.b16 %v9858
    %v10525 = vunpack.c.l.b16 %v9859
    %v10526 = vunpack.c.h.b16 %v9859
    %v10527 = vunpack.c.l.b16 %v9860
    %v10528 = vunpack.c.h.b16 %v9860
    %v10529 = vunpack.c.l.b16 %v9861
    %v10530 = vunpack.c.h.b16 %v9861
    %v10531 = vunpack.c.l.b16 %v9862
    %v10532 = vunpack.c.h.b16 %v9862
    %v10533 = vunpack.c.l.b16 %v9863
    %v10534 = vunpack.c.h.b16 %v9863
    %v10535 = vunpack.c.l.b16 %v9864
    %v10536 = vunpack.c.h.b16 %v9864
    %v10537 = vunpack.c.l.b16 %v9865
    %v10538 = vunpack.c.h.b16 %v9865
    %v10539 = vunpack.c.l.b16 %v9866
    %v10540 = vunpack.c.h.b16 %v9866
    %v10541 = vunpack.c.l.b16 %v9867
    %v10542 = vunpack.c.h.b16 %v9867
    %v10543 = vunpack.c.l.b16 %v9868
    %v10544 = vunpack.c.h.b16 %v9868
    %v10545 = vunpack.c.l.b16 %v9869
    %v10546 = vunpack.c.h.b16 %v9869
    %v10547 = vunpack.c.l.b16 %v9870
    %v10548 = vunpack.c.h.b16 %v9870
    %v10549 = vunpack.c.l.b16 %v9871
    %v10550 = vunpack.c.h.b16 %v9871
    %v10551 = vunpack.c.l.b16 %v9872
    %v10552 = vunpack.c.h.b16 %v9872
    %v10553 = vunpack.c.l.b16 %v9873
    %v10554 = vunpack.c.h.b16 %v9873
    %v10555 = vunpack.c.l.b16 %v9874
    %v10556 = vunpack.c.h.b16 %v9874
    %v10557 = vunpack.c.l.b16 %v9875
    %v10558 = vunpack.c.h.b16 %v9875
    %v10559 = vunpack.c.l.b16 %v9876
    %v10560 = vunpack.c.h.b16 %v9876
    %v10561 = vpack.c.b16 %v10515, %v10513
    %v10562 = vpack.c.b16 %v10516, %v10514
    %v10563 = vpack.c.b16 %v10519, %v10517
    %v10564 = vpack.c.b16 %v10520, %v10518
    %v10565 = vpack.c.b16 %v10523, %v10521
    %v10566 = vpack.c.b16 %v10524, %v10522
    %v10567 = vpack.c.b16 %v10527, %v10525
    %v10568 = vpack.c.b16 %v10528, %v10526
    %v10569 = vpack.c.b16 %v10531, %v10529
    %v10570 = vpack.c.b16 %v10532, %v10530
    %v10571 = vpack.c.b16 %v10535, %v10533
    %v10572 = vpack.c.b16 %v10536, %v10534
    %v10573 = vpack.c.b16 %v10539, %v10537
    %v10574 = vpack.c.b16 %v10540, %v10538
    %v10575 = vpack.c.b16 %v10543, %v10541
    %v10576 = vpack.c.b16 %v10544, %v10542
    %v10577 = vpack.c.b16 %v10547, %v10545
    %v10578 = vpack.c.b16 %v10548, %v10546
    %v10579 = vpack.c.b16 %v10551, %v10549
    %v10580 = vpack.c.b16 %v10552, %v10550
    %v10581 = vpack.c.b16 %v10555, %v10553
    %v10582 = vpack.c.b16 %v10556, %v10554
    %v10583 = vpack.c.b16 %v10559, %v10557
    %v10584 = vpack.c.b16 %v10560, %v10558
    %v10609 = vsel %vm8997, %v9953, 0
    %v10611 = vsel %vm8997, %v9955, 0
    %v10613 = vsel %vm8997, %v9957, 0
    %v10615 = vsel %vm8997, %v9959, 0
    %v10617 = vsel %vm8997, %v9961, 0
    %v10619 = vsel %vm8997, %v9963, 0
    %v10621 = vsel %vm8997, %v9965, 0
    %v10623 = vsel %vm8997, %v9967, 0
    %v10625 = vsel %vm8997, %v9969, 0
    %10627 = vmatpush.bf16.msra.mxu0 %v10575
    %10628 = vmatpush.bf16.msra.mxu0 %v10573
    %10629 = vmatpush.bf16.msra.mxu0 %v10571
    %10630 = vmatpush.bf16.msra.mxu0 %v10569
    %10631 = vmatpush.bf16.msra.mxu0 %v10567
    %10632 = vmatpush.bf16.msra.mxu0 %v10565
    %10633 = vmatpush.bf16.msra.mxu0 %v10563
    %10634 = vmatpush.bf16.msra.mxu0 %v10561
    %10635 = vmatmul.bf16.gmra.mxu0 %v9952
    %v10636 = vpop.f32.mrf.mxu0
    %v10637 = vadd.f32 %v10331, %v10636
    %v10638 = vpop.f32.mrf.mxu0
    %v10639 = vadd.f32 %v10333, %v10638
    %10640 = vmatmul.bf16.gmra.mxu0 %v9954
    %v10641 = vpop.f32.mrf.mxu0
    %v10642 = vadd.f32 %v10336, %v10641
    %v10643 = vpop.f32.mrf.mxu0
    %v10644 = vadd.f32 %v10338, %v10643
    %10645 = vmatmul.bf16.gmra.mxu0 %v9956
    %v10646 = vpop.f32.mrf.mxu0
    %v10647 = vadd.f32 %v10341, %v10646
    %v10648 = vpop.f32.mrf.mxu0
    %v10649 = vadd.f32 %v10343, %v10648
    %10650 = vmatmul.bf16.gmra.mxu0 %v9958
    %v10651 = vpop.f32.mrf.mxu0
    %v10652 = vadd.f32 %v10346, %v10651
    %v10653 = vpop.f32.mrf.mxu0
    %v10654 = vadd.f32 %v10348, %v10653
    %10655 = vmatmul.bf16.gmra.mxu0 %v9960
    %v10656 = vpop.f32.mrf.mxu0
    %v10657 = vadd.f32 %v10351, %v10656
    %v10658 = vpop.f32.mrf.mxu0
    %v10659 = vadd.f32 %v10353, %v10658
    %10660 = vmatmul.bf16.gmra.mxu0 %v9962
    %v10661 = vpop.f32.mrf.mxu0
    %v10662 = vadd.f32 %v10356, %v10661
    %v10663 = vpop.f32.mrf.mxu0
    %v10664 = vadd.f32 %v10358, %v10663
    %10665 = vmatmul.bf16.gmra.mxu0 %v9964
    %v10666 = vpop.f32.mrf.mxu0
    %v10667 = vadd.f32 %v10361, %v10666
    %v10668 = vpop.f32.mrf.mxu0
    %v10669 = vadd.f32 %v10363, %v10668
    %10670 = vmatmul.bf16.gmra.mxu0 %v9966
    %v10671 = vpop.f32.mrf.mxu0
    %v10672 = vadd.f32 %v10366, %v10671
    %v10673 = vpop.f32.mrf.mxu0
    %v10674 = vadd.f32 %v10368, %v10673
    %10675 = vmatmul.bf16.gmra.mxu0 %v9968
    %v10676 = vpop.f32.mrf.mxu0
    %v10677 = vadd.f32 %v10371, %v10676
    %v10678 = vpop.f32.mrf.mxu0
    %10679 = vdwg.mxu0
    %10680 = vmatpush.bf16.msra.mxu0 0
    %10681 = vmatpush.bf16.msra.mxu0 0
    %10682 = vmatpush.bf16.msra.mxu0 0
    %10683 = vmatpush.bf16.msra.mxu0 0
    %10684 = vmatpush.bf16.msra.mxu0 %v10583
    %10685 = vmatpush.bf16.msra.mxu0 %v10581
    %10686 = vmatpush.bf16.msra.mxu0 %v10579
    %10687 = vmatpush.bf16.msra.mxu0 %v10577
    %10688 = vmatmul.bf16.gmra.mxu0 %v10609
    %v10689 = vpop.f32.mrf.mxu0
    %v10690 = vadd.f32 %v10637, %v10689
    %v10691 = vpop.f32.mrf.mxu0
    %v10692 = vadd.f32 %v10639, %v10691
    %10693 = vmatmul.bf16.gmra.mxu0 %v10611
    %v10694 = vpop.f32.mrf.mxu0
    %v10695 = vadd.f32 %v10642, %v10694
    %v10696 = vpop.f32.mrf.mxu0
    %v10697 = vadd.f32 %v10644, %v10696
    %10698 = vmatmul.bf16.gmra.mxu0 %v10613
    %v10699 = vpop.f32.mrf.mxu0
    %v10700 = vadd.f32 %v10647, %v10699
    %v10701 = vpop.f32.mrf.mxu0
    %v10702 = vadd.f32 %v10649, %v10701
    %10703 = vmatmul.bf16.gmra.mxu0 %v10615
    %v10704 = vpop.f32.mrf.mxu0
    %v10705 = vadd.f32 %v10652, %v10704
    %v10706 = vpop.f32.mrf.mxu0
    %v10707 = vadd.f32 %v10654, %v10706
    %10708 = vmatmul.bf16.gmra.mxu0 %v10617
    %v10709 = vpop.f32.mrf.mxu0
    %v10710 = vadd.f32 %v10657, %v10709
    %v10711 = vpop.f32.mrf.mxu0
    %v10712 = vadd.f32 %v10659, %v10711
    %10713 = vmatmul.bf16.gmra.mxu0 %v10619
    %v10714 = vpop.f32.mrf.mxu0
    %v10715 = vadd.f32 %v10662, %v10714
    %v10716 = vpop.f32.mrf.mxu0
    %v10717 = vadd.f32 %v10664, %v10716
    %10718 = vmatmul.bf16.gmra.mxu0 %v10621
    %v10719 = vpop.f32.mrf.mxu0
    %v10720 = vadd.f32 %v10667, %v10719
    %v10721 = vpop.f32.mrf.mxu0
    %v10722 = vadd.f32 %v10669, %v10721
    %10723 = vmatmul.bf16.gmra.mxu0 %v10623
    %v10724 = vpop.f32.mrf.mxu0
    %v10725 = vadd.f32 %v10672, %v10724
    %v10726 = vpop.f32.mrf.mxu0
    %v10727 = vadd.f32 %v10674, %v10726
    %10728 = vmatmul.bf16.gmra.mxu0 %v10625
    %v10729 = vpop.f32.mrf.mxu0
    %v10730 = vadd.f32 %v10677, %v10729
    %v10731 = vpop.f32.mrf.mxu0
    %10732 = vdwg.mxu0
    %10733 = vmatpush.bf16.msra.mxu0 %v10576
    %10734 = vmatpush.bf16.msra.mxu0 %v10574
    %10735 = vmatpush.bf16.msra.mxu0 %v10572
    %10736 = vmatpush.bf16.msra.mxu0 %v10570
    %10737 = vmatpush.bf16.msra.mxu0 %v10568
    %10738 = vmatpush.bf16.msra.mxu0 %v10566
    %10739 = vmatpush.bf16.msra.mxu0 %v10564
    %10740 = vmatpush.bf16.msra.mxu0 %v10562
    %10741 = vmatmul.bf16.gmra.mxu0 %v9952
    %v10742 = vpop.f32.mrf.mxu0
    %v10743 = vadd.f32 %v10437, %v10742
    %v10744 = vpop.f32.mrf.mxu0
    %v10745 = vadd.f32 %v10439, %v10744
    %10746 = vmatmul.bf16.gmra.mxu0 %v9954
    %v10747 = vpop.f32.mrf.mxu0
    %v10748 = vadd.f32 %v10442, %v10747
    %v10749 = vpop.f32.mrf.mxu0
    %v10750 = vadd.f32 %v10444, %v10749
    %10751 = vmatmul.bf16.gmra.mxu0 %v9956
    %v10752 = vpop.f32.mrf.mxu0
    %v10753 = vadd.f32 %v10447, %v10752
    %v10754 = vpop.f32.mrf.mxu0
    %v10755 = vadd.f32 %v10449, %v10754
    %10756 = vmatmul.bf16.gmra.mxu0 %v9958
    %v10757 = vpop.f32.mrf.mxu0
    %v10758 = vadd.f32 %v10452, %v10757
    %v10759 = vpop.f32.mrf.mxu0
    %v10760 = vadd.f32 %v10454, %v10759
    %10761 = vmatmul.bf16.gmra.mxu0 %v9960
    %v10762 = vpop.f32.mrf.mxu0
    %v10763 = vadd.f32 %v10457, %v10762
    %v10764 = vpop.f32.mrf.mxu0
    %v10765 = vadd.f32 %v10459, %v10764
    %10766 = vmatmul.bf16.gmra.mxu0 %v9962
    %v10767 = vpop.f32.mrf.mxu0
    %v10768 = vadd.f32 %v10462, %v10767
    %v10769 = vpop.f32.mrf.mxu0
    %v10770 = vadd.f32 %v10464, %v10769
    %10771 = vmatmul.bf16.gmra.mxu0 %v9964
    %v10772 = vpop.f32.mrf.mxu0
    %v10773 = vadd.f32 %v10467, %v10772
    %v10774 = vpop.f32.mrf.mxu0
    %v10775 = vadd.f32 %v10469, %v10774
    %10776 = vmatmul.bf16.gmra.mxu0 %v9966
    %v10777 = vpop.f32.mrf.mxu0
    %v10778 = vadd.f32 %v10472, %v10777
    %v10779 = vpop.f32.mrf.mxu0
    %v10780 = vadd.f32 %v10474, %v10779
    %10781 = vmatmul.bf16.gmra.mxu0 %v9968
    %v10782 = vpop.f32.mrf.mxu0
    %v10783 = vadd.f32 %v10477, %v10782
    %v10784 = vpop.f32.mrf.mxu0
    %10785 = vdwg.mxu0
    %10786 = vmatpush.bf16.msra.mxu0 0
    %10787 = vmatpush.bf16.msra.mxu0 0
    %10788 = vmatpush.bf16.msra.mxu0 0
    %10789 = vmatpush.bf16.msra.mxu0 0
    %10790 = vmatpush.bf16.msra.mxu0 %v10584
    %10791 = vmatpush.bf16.msra.mxu0 %v10582
    %10792 = vmatpush.bf16.msra.mxu0 %v10580
    %10793 = vmatpush.bf16.msra.mxu0 %v10578
    %10794 = vmatmul.bf16.gmra.mxu0 %v10609
    %v10795 = vpop.f32.mrf.mxu0
    %v10796 = vadd.f32 %v10743, %v10795
    %v10797 = vpop.f32.mrf.mxu0
    %v10798 = vadd.f32 %v10745, %v10797
    %10799 = vmatmul.bf16.gmra.mxu0 %v10611
    %v10800 = vpop.f32.mrf.mxu0
    %v10801 = vadd.f32 %v10748, %v10800
    %v10802 = vpop.f32.mrf.mxu0
    %v10803 = vadd.f32 %v10750, %v10802
    %10804 = vmatmul.bf16.gmra.mxu0 %v10613
    %v10805 = vpop.f32.mrf.mxu0
    %v10806 = vadd.f32 %v10753, %v10805
    %v10807 = vpop.f32.mrf.mxu0
    %v10808 = vadd.f32 %v10755, %v10807
    %10809 = vmatmul.bf16.gmra.mxu0 %v10615
    %v10810 = vpop.f32.mrf.mxu0
    %v10811 = vadd.f32 %v10758, %v10810
    %v10812 = vpop.f32.mrf.mxu0
    %v10813 = vadd.f32 %v10760, %v10812
    %10814 = vmatmul.bf16.gmra.mxu0 %v10617
    %v10815 = vpop.f32.mrf.mxu0
    %v10816 = vadd.f32 %v10763, %v10815
    %v10817 = vpop.f32.mrf.mxu0
    %v10818 = vadd.f32 %v10765, %v10817
    %10819 = vmatmul.bf16.gmra.mxu0 %v10619
    %v10820 = vpop.f32.mrf.mxu0
    %v10821 = vadd.f32 %v10768, %v10820
    %v10822 = vpop.f32.mrf.mxu0
    %v10823 = vadd.f32 %v10770, %v10822
    %10824 = vmatmul.bf16.gmra.mxu0 %v10621
    %v10825 = vpop.f32.mrf.mxu0
    %v10826 = vadd.f32 %v10773, %v10825
    %v10827 = vpop.f32.mrf.mxu0
    %v10828 = vadd.f32 %v10775, %v10827
    %10829 = vmatmul.bf16.gmra.mxu0 %v10623
    %v10830 = vpop.f32.mrf.mxu0
    %v10831 = vadd.f32 %v10778, %v10830
    %v10832 = vpop.f32.mrf.mxu0
    %v10833 = vadd.f32 %v10780, %v10832
    %10834 = vmatmul.bf16.gmra.mxu0 %v10625
    %v10835 = vpop.f32.mrf.mxu0
    %v10836 = vadd.f32 %v10783, %v10835
    %v10837 = vpop.f32.mrf.mxu0
    %10838 = vdwg.mxu0
    %v10839 = vld [vmem:[#allocation16 + $0x180] sm:$0xff]
    %v10840 = vld [vmem:[#allocation16 + $0x188] sm:$0xff]
    %v10841 = vld [vmem:[#allocation16 + $0x190] sm:$0xff]
    %v10842 = vld [vmem:[#allocation16 + $0x198] sm:$0xff]
    %v10843 = vld [vmem:[#allocation16 + $0x1a0] sm:$0xff]
    %v10844 = vld [vmem:[#allocation16 + $0x1a8] sm:$0xff]
    %v10845 = vld [vmem:[#allocation16 + $0x1b0] sm:$0xff]
    %v10846 = vld [vmem:[#allocation16 + $0x1b8] sm:$0xff]
    %v10847 = vld [vmem:[#allocation16 + $0x1c0] sm:$0xff]
    %v10848 = vld [vmem:[#allocation16 + $0x1c8] sm:$0xff]
    %v10849 = vld [vmem:[#allocation16 + $0x1d0] sm:$0xff]
    %v10850 = vld [vmem:[#allocation16 + $0x1d8] sm:$0xff]
    %v10851 = vld [vmem:[#allocation16 + $0x1e0] sm:$0xff]
    %v10852 = vld [vmem:[#allocation16 + $0x1e8] sm:$0xff]
    %v10853 = vld [vmem:[#allocation16 + $0x1f0] sm:$0xff]
    %v10854 = vld [vmem:[#allocation16 + $0x1f8] sm:$0xff]
    %v10855 = vld [vmem:[#allocation16 + $0x200] sm:$0xff]
    %v10856 = vld [vmem:[#allocation16 + $0x208] sm:$0xff]
    %v10857 = vld [vmem:[#allocation16 + $0x210] sm:$0xff]
    %v10858 = vld [vmem:[#allocation16 + $0x218] sm:$0xff]
    %v10859 = vld [vmem:[#allocation16 + $0x220] sm:$0xff]
    %v10860 = vld [vmem:[#allocation16 + $0x228] sm:$0xff]
    %v10861 = vld [vmem:[#allocation16 + $0x230] sm:$0xff]
    %v10862 = vld [vmem:[#allocation16 + $0x238] sm:$0xff]
    %v10863 = vrot.slane %v9952, 1
    %v10864 = vrot.slane %v9954, 1
    %v10865 = vsel %vm399, %v10863, %v10864
    %v10866 = vrot.slane %v9953, 1
    %v10867 = vrot.slane %v9955, 1
    %v10868 = vsel %vm399, %v10866, %v10867
    %v10869 = vrot.slane %v9956, 1
    %v10870 = vsel %vm399, %v10864, %v10869
    %v10871 = vrot.slane %v9957, 1
    %v10872 = vsel %vm399, %v10867, %v10871
    %v10873 = vrot.slane %v9958, 1
    %v10874 = vsel %vm399, %v10869, %v10873
    %v10875 = vrot.slane %v9959, 1
    %v10876 = vsel %vm399, %v10871, %v10875
    %v10877 = vrot.slane %v9960, 1
    %v10878 = vsel %vm399, %v10873, %v10877
    %v10879 = vrot.slane %v9961, 1
    %v10880 = vsel %vm399, %v10875, %v10879
    %v10881 = vrot.slane %v9962, 1
    %v10882 = vsel %vm399, %v10877, %v10881
    %v10883 = vrot.slane %v9963, 1
    %v10884 = vsel %vm399, %v10879, %v10883
    %v10885 = vrot.slane %v9964, 1
    %v10886 = vsel %vm399, %v10881, %v10885
    %v10887 = vrot.slane %v9965, 1
    %v10888 = vsel %vm399, %v10883, %v10887
    %v10889 = vrot.slane %v9966, 1
    %v10890 = vsel %vm399, %v10885, %v10889
    %v10891 = vrot.slane %v9967, 1
    %v10892 = vsel %vm399, %v10887, %v10891
    %v10893 = vrot.slane %v9968, 1
    %v10894 = vsel %vm399, %v10889, %v10893
    %v10895 = vrot.slane %v9969, 1
    %v10896 = vsel %vm399, %v10891, %v10895
    %v10930 = vunpack.c.l.b16 %v10839
    %v10931 = vunpack.c.h.b16 %v10839
    %v10932 = vunpack.c.l.b16 %v10840
    %v10933 = vunpack.c.h.b16 %v10840
    %v10934 = vunpack.c.l.b16 %v10841
    %v10935 = vunpack.c.h.b16 %v10841
    %v10936 = vunpack.c.l.b16 %v10842
    %v10937 = vunpack.c.h.b16 %v10842
    %v10938 = vunpack.c.l.b16 %v10843
    %v10939 = vunpack.c.h.b16 %v10843
    %v10940 = vunpack.c.l.b16 %v10844
    %v10941 = vunpack.c.h.b16 %v10844
    %v10942 = vunpack.c.l.b16 %v10845
    %v10943 = vunpack.c.h.b16 %v10845
    %v10944 = vunpack.c.l.b16 %v10846
    %v10945 = vunpack.c.h.b16 %v10846
    %v10946 = vunpack.c.l.b16 %v10847
    %v10947 = vunpack.c.h.b16 %v10847
    %v10948 = vunpack.c.l.b16 %v10848
    %v10949 = vunpack.c.h.b16 %v10848
    %v10950 = vunpack.c.l.b16 %v10849
    %v10951 = vunpack.c.h.b16 %v10849
    %v10952 = vunpack.c.l.b16 %v10850
    %v10953 = vunpack.c.h.b16 %v10850
    %v10954 = vunpack.c.l.b16 %v10851
    %v10955 = vunpack.c.h.b16 %v10851
    %v10956 = vunpack.c.l.b16 %v10852
    %v10957 = vunpack.c.h.b16 %v10852
    %v10958 = vunpack.c.l.b16 %v10853
    %v10959 = vunpack.c.h.b16 %v10853
    %v10960 = vunpack.c.l.b16 %v10854
    %v10961 = vunpack.c.h.b16 %v10854
    %v10962 = vunpack.c.l.b16 %v10855
    %v10963 = vunpack.c.h.b16 %v10855
    %v10964 = vunpack.c.l.b16 %v10856
    %v10965 = vunpack.c.h.b16 %v10856
    %v10966 = vunpack.c.l.b16 %v10857
    %v10967 = vunpack.c.h.b16 %v10857
    %v10968 = vunpack.c.l.b16 %v10858
    %v10969 = vunpack.c.h.b16 %v10858
    %v10970 = vunpack.c.l.b16 %v10859
    %v10971 = vunpack.c.h.b16 %v10859
    %v10972 = vunpack.c.l.b16 %v10860
    %v10973 = vunpack.c.h.b16 %v10860
    %v10974 = vunpack.c.l.b16 %v10861
    %v10975 = vunpack.c.h.b16 %v10861
    %v10976 = vunpack.c.l.b16 %v10862
    %v10977 = vunpack.c.h.b16 %v10862
    %v10978 = vpack.c.b16 %v10932, %v10930
    %v10979 = vpack.c.b16 %v10933, %v10931
    %v10980 = vpack.c.b16 %v10936, %v10934
    %v10981 = vpack.c.b16 %v10937, %v10935
    %v10982 = vpack.c.b16 %v10940, %v10938
    %v10983 = vpack.c.b16 %v10941, %v10939
    %v10984 = vpack.c.b16 %v10944, %v10942
    %v10985 = vpack.c.b16 %v10945, %v10943
    %v10986 = vpack.c.b16 %v10948, %v10946
    %v10987 = vpack.c.b16 %v10949, %v10947
    %v10988 = vpack.c.b16 %v10952, %v10950
    %v10989 = vpack.c.b16 %v10953, %v10951
    %v10990 = vpack.c.b16 %v10956, %v10954
    %v10991 = vpack.c.b16 %v10957, %v10955
    %v10992 = vpack.c.b16 %v10960, %v10958
    %v10993 = vpack.c.b16 %v10961, %v10959
    %v10994 = vpack.c.b16 %v10964, %v10962
    %v10995 = vpack.c.b16 %v10965, %v10963
    %v10996 = vpack.c.b16 %v10968, %v10966
    %v10997 = vpack.c.b16 %v10969, %v10967
    %v10998 = vpack.c.b16 %v10972, %v10970
    %v10999 = vpack.c.b16 %v10973, %v10971
    %v11000 = vpack.c.b16 %v10976, %v10974
    %v11001 = vpack.c.b16 %v10977, %v10975
    %v11027 = vsel %vm8997, %v10868, 0
    %v11030 = vsel %vm8997, %v10872, 0
    %v11033 = vsel %vm8997, %v10876, 0
    %v11036 = vsel %vm8997, %v10880, 0
    %v11039 = vsel %vm8997, %v10884, 0
    %v11042 = vsel %vm8997, %v10888, 0
    %v11045 = vsel %vm8997, %v10892, 0
    %v11048 = vsel %vm8997, %v10896, 0
    %v11051 = vsel %vm8997, %v10895, 0
    %11053 = vmatpush.bf16.msra.mxu0 %v10992
    %11054 = vmatpush.bf16.msra.mxu0 %v10990
    %11055 = vmatpush.bf16.msra.mxu0 %v10988
    %11056 = vmatpush.bf16.msra.mxu0 %v10986
    %11057 = vmatpush.bf16.msra.mxu0 %v10984
    %11058 = vmatpush.bf16.msra.mxu0 %v10982
    %11059 = vmatpush.bf16.msra.mxu0 %v10980
    %11060 = vmatpush.bf16.msra.mxu0 %v10978
    %11061 = vmatmul.bf16.gmra.mxu0 %v10865
    %v11062 = vpop.f32.mrf.mxu0
    %v11063 = vadd.f32 0.0, %v11062
    %v11064 = vpop.f32.mrf.mxu0
    %v11065 = vadd.f32 0.0, %v11064
    %11066 = vmatmul.bf16.gmra.mxu0 %v10870
    %v11067 = vpop.f32.mrf.mxu0
    %v11068 = vadd.f32 0.0, %v11067
    %v11069 = vpop.f32.mrf.mxu0
    %v11070 = vadd.f32 0.0, %v11069
    %11071 = vmatmul.bf16.gmra.mxu0 %v10874
    %v11072 = vpop.f32.mrf.mxu0
    %v11073 = vadd.f32 0.0, %v11072
    %v11074 = vpop.f32.mrf.mxu0
    %v11075 = vadd.f32 0.0, %v11074
    %11076 = vmatmul.bf16.gmra.mxu0 %v10878
    %v11077 = vpop.f32.mrf.mxu0
    %v11078 = vadd.f32 0.0, %v11077
    %v11079 = vpop.f32.mrf.mxu0
    %v11080 = vadd.f32 0.0, %v11079
    %11081 = vmatmul.bf16.gmra.mxu0 %v10882
    %v11082 = vpop.f32.mrf.mxu0
    %v11083 = vadd.f32 0.0, %v11082
    %v11084 = vpop.f32.mrf.mxu0
    %v11085 = vadd.f32 0.0, %v11084
    %11086 = vmatmul.bf16.gmra.mxu0 %v10886
    %v11087 = vpop.f32.mrf.mxu0
    %v11088 = vadd.f32 0.0, %v11087
    %v11089 = vpop.f32.mrf.mxu0
    %v11090 = vadd.f32 0.0, %v11089
    %11091 = vmatmul.bf16.gmra.mxu0 %v10890
    %v11092 = vpop.f32.mrf.mxu0
    %v11093 = vadd.f32 0.0, %v11092
    %v11094 = vpop.f32.mrf.mxu0
    %v11095 = vadd.f32 0.0, %v11094
    %11096 = vmatmul.bf16.gmra.mxu0 %v10894
    %v11097 = vpop.f32.mrf.mxu0
    %v11098 = vadd.f32 0.0, %v11097
    %v11099 = vpop.f32.mrf.mxu0
    %v11100 = vadd.f32 0.0, %v11099
    %11101 = vmatmul.bf16.gmra.mxu0 %v10893
    %v11102 = vpop.f32.mrf.mxu0
    %v11103 = vadd.f32 0.0, %v11102
    %v11104 = vpop.f32.mrf.mxu0
    %11105 = vdwg.mxu0
    %11106 = vmatpush.bf16.msra.mxu0 0
    %11107 = vmatpush.bf16.msra.mxu0 0
    %11108 = vmatpush.bf16.msra.mxu0 0
    %11109 = vmatpush.bf16.msra.mxu0 0
    %11110 = vmatpush.bf16.msra.mxu0 %v11000
    %11111 = vmatpush.bf16.msra.mxu0 %v10998
    %11112 = vmatpush.bf16.msra.mxu0 %v10996
    %11113 = vmatpush.bf16.msra.mxu0 %v10994
    %11114 = vmatmul.bf16.gmra.mxu0 %v11027
    %v11115 = vpop.f32.mrf.mxu0
    %v11116 = vadd.f32 %v11063, %v11115
    %v11117 = vpop.f32.mrf.mxu0
    %v11118 = vadd.f32 %v11065, %v11117
    %11119 = vmatmul.bf16.gmra.mxu0 %v11030
    %v11120 = vpop.f32.mrf.mxu0
    %v11121 = vadd.f32 %v11068, %v11120
    %v11122 = vpop.f32.mrf.mxu0
    %v11123 = vadd.f32 %v11070, %v11122
    %11124 = vmatmul.bf16.gmra.mxu0 %v11033
    %v11125 = vpop.f32.mrf.mxu0
    %v11126 = vadd.f32 %v11073, %v11125
    %v11127 = vpop.f32.mrf.mxu0
    %v11128 = vadd.f32 %v11075, %v11127
    %11129 = vmatmul.bf16.gmra.mxu0 %v11036
    %v11130 = vpop.f32.mrf.mxu0
    %v11131 = vadd.f32 %v11078, %v11130
    %v11132 = vpop.f32.mrf.mxu0
    %v11133 = vadd.f32 %v11080, %v11132
    %11134 = vmatmul.bf16.gmra.mxu0 %v11039
    %v11135 = vpop.f32.mrf.mxu0
    %v11136 = vadd.f32 %v11083, %v11135
    %v11137 = vpop.f32.mrf.mxu0
    %v11138 = vadd.f32 %v11085, %v11137
    %11139 = vmatmul.bf16.gmra.mxu0 %v11042
    %v11140 = vpop.f32.mrf.mxu0
    %v11141 = vadd.f32 %v11088, %v11140
    %v11142 = vpop.f32.mrf.mxu0
    %v11143 = vadd.f32 %v11090, %v11142
    %11144 = vmatmul.bf16.gmra.mxu0 %v11045
    %v11145 = vpop.f32.mrf.mxu0
    %v11146 = vadd.f32 %v11093, %v11145
    %v11147 = vpop.f32.mrf.mxu0
    %v11148 = vadd.f32 %v11095, %v11147
    %11149 = vmatmul.bf16.gmra.mxu0 %v11048
    %v11150 = vpop.f32.mrf.mxu0
    %v11151 = vadd.f32 %v11098, %v11150
    %v11152 = vpop.f32.mrf.mxu0
    %v11153 = vadd.f32 %v11100, %v11152
    %11154 = vmatmul.bf16.gmra.mxu0 %v11051
    %v11155 = vpop.f32.mrf.mxu0
    %v11156 = vadd.f32 %v11103, %v11155
    %v11157 = vpop.f32.mrf.mxu0
    %11158 = vdwg.mxu0
    %11159 = vmatpush.bf16.msra.mxu0 %v10993
    %11160 = vmatpush.bf16.msra.mxu0 %v10991
    %11161 = vmatpush.bf16.msra.mxu0 %v10989
    %11162 = vmatpush.bf16.msra.mxu0 %v10987
    %11163 = vmatpush.bf16.msra.mxu0 %v10985
    %11164 = vmatpush.bf16.msra.mxu0 %v10983
    %11165 = vmatpush.bf16.msra.mxu0 %v10981
    %11166 = vmatpush.bf16.msra.mxu0 %v10979
    %11167 = vmatmul.bf16.gmra.mxu0 %v10865
    %v11168 = vpop.f32.mrf.mxu0
    %v11169 = vadd.f32 0.0, %v11168
    %v11170 = vpop.f32.mrf.mxu0
    %v11171 = vadd.f32 0.0, %v11170
    %11172 = vmatmul.bf16.gmra.mxu0 %v10870
    %v11173 = vpop.f32.mrf.mxu0
    %v11174 = vadd.f32 0.0, %v11173
    %v11175 = vpop.f32.mrf.mxu0
    %v11176 = vadd.f32 0.0, %v11175
    %11177 = vmatmul.bf16.gmra.mxu0 %v10874
    %v11178 = vpop.f32.mrf.mxu0
    %v11179 = vadd.f32 0.0, %v11178
    %v11180 = vpop.f32.mrf.mxu0
    %v11181 = vadd.f32 0.0, %v11180
    %11182 = vmatmul.bf16.gmra.mxu0 %v10878
    %v11183 = vpop.f32.mrf.mxu0
    %v11184 = vadd.f32 0.0, %v11183
    %v11185 = vpop.f32.mrf.mxu0
    %v11186 = vadd.f32 0.0, %v11185
    %11187 = vmatmul.bf16.gmra.mxu0 %v10882
    %v11188 = vpop.f32.mrf.mxu0
    %v11189 = vadd.f32 0.0, %v11188
    %v11190 = vpop.f32.mrf.mxu0
    %v11191 = vadd.f32 0.0, %v11190
    %11192 = vmatmul.bf16.gmra.mxu0 %v10886
    %v11193 = vpop.f32.mrf.mxu0
    %v11194 = vadd.f32 0.0, %v11193
    %v11195 = vpop.f32.mrf.mxu0
    %v11196 = vadd.f32 0.0, %v11195
    %11197 = vmatmul.bf16.gmra.mxu0 %v10890
    %v11198 = vpop.f32.mrf.mxu0
    %v11199 = vadd.f32 0.0, %v11198
    %v11200 = vpop.f32.mrf.mxu0
    %v11201 = vadd.f32 0.0, %v11200
    %11202 = vmatmul.bf16.gmra.mxu0 %v10894
    %v11203 = vpop.f32.mrf.mxu0
    %v11204 = vadd.f32 0.0, %v11203
    %v11205 = vpop.f32.mrf.mxu0
    %v11206 = vadd.f32 0.0, %v11205
    %11207 = vmatmul.bf16.gmra.mxu0 %v10893
    %v11208 = vpop.f32.mrf.mxu0
    %v11209 = vadd.f32 0.0, %v11208
    %v11210 = vpop.f32.mrf.mxu0
    %11211 = vdwg.mxu0
    %11212 = vmatpush.bf16.msra.mxu0 0
    %11213 = vmatpush.bf16.msra.mxu0 0
    %11214 = vmatpush.bf16.msra.mxu0 0
    %11215 = vmatpush.bf16.msra.mxu0 0
    %11216 = vmatpush.bf16.msra.mxu0 %v11001
    %11217 = vmatpush.bf16.msra.mxu0 %v10999
    %11218 = vmatpush.bf16.msra.mxu0 %v10997
    %11219 = vmatpush.bf16.msra.mxu0 %v10995
    %11220 = vmatmul.bf16.gmra.mxu0 %v11027
    %v11221 = vpop.f32.mrf.mxu0
    %v11222 = vadd.f32 %v11169, %v11221
    %v11223 = vpop.f32.mrf.mxu0
    %v11224 = vadd.f32 %v11171, %v11223
    %11225 = vmatmul.bf16.gmra.mxu0 %v11030
    %v11226 = vpop.f32.mrf.mxu0
    %v11227 = vadd.f32 %v11174, %v11226
    %v11228 = vpop.f32.mrf.mxu0
    %v11229 = vadd.f32 %v11176, %v11228
    %11230 = vmatmul.bf16.gmra.mxu0 %v11033
    %v11231 = vpop.f32.mrf.mxu0
    %v11232 = vadd.f32 %v11179, %v11231
    %v11233 = vpop.f32.mrf.mxu0
    %v11234 = vadd.f32 %v11181, %v11233
    %11235 = vmatmul.bf16.gmra.mxu0 %v11036
    %v11236 = vpop.f32.mrf.mxu0
    %v11237 = vadd.f32 %v11184, %v11236
    %v11238 = vpop.f32.mrf.mxu0
    %v11239 = vadd.f32 %v11186, %v11238
    %11240 = vmatmul.bf16.gmra.mxu0 %v11039
    %v11241 = vpop.f32.mrf.mxu0
    %v11242 = vadd.f32 %v11189, %v11241
    %v11243 = vpop.f32.mrf.mxu0
    %v11244 = vadd.f32 %v11191, %v11243
    %11245 = vmatmul.bf16.gmra.mxu0 %v11042
    %v11246 = vpop.f32.mrf.mxu0
    %v11247 = vadd.f32 %v11194, %v11246
    %v11248 = vpop.f32.mrf.mxu0
    %v11249 = vadd.f32 %v11196, %v11248
    %11250 = vmatmul.bf16.gmra.mxu0 %v11045
    %v11251 = vpop.f32.mrf.mxu0
    %v11252 = vadd.f32 %v11199, %v11251
    %v11253 = vpop.f32.mrf.mxu0
    %v11254 = vadd.f32 %v11201, %v11253
    %11255 = vmatmul.bf16.gmra.mxu0 %v11048
    %v11256 = vpop.f32.mrf.mxu0
    %v11257 = vadd.f32 %v11204, %v11256
    %v11258 = vpop.f32.mrf.mxu0
    %v11259 = vadd.f32 %v11206, %v11258
    %11260 = vmatmul.bf16.gmra.mxu0 %v11051
    %v11261 = vpop.f32.mrf.mxu0
    %v11262 = vadd.f32 %v11209, %v11261
    %v11263 = vpop.f32.mrf.mxu0
    %11264 = vdwg.mxu0
    %v11265 = vadd.f32 %v10690, %v11116
    %v11266 = vadd.f32 %v10796, %v11222
    %v11267 = vadd.f32 %v10692, %v11118
    %v11268 = vadd.f32 %v10798, %v11224
    %v11269 = vadd.f32 %v10695, %v11121
    %v11270 = vadd.f32 %v10801, %v11227
    %v11271 = vadd.f32 %v10697, %v11123
    %v11272 = vadd.f32 %v10803, %v11229
    %v11273 = vadd.f32 %v10700, %v11126
    %v11274 = vadd.f32 %v10806, %v11232
    %v11275 = vadd.f32 %v10702, %v11128
    %v11276 = vadd.f32 %v10808, %v11234
    %v11277 = vadd.f32 %v10705, %v11131
    %v11278 = vadd.f32 %v10811, %v11237
    %v11279 = vadd.f32 %v10707, %v11133
    %v11280 = vadd.f32 %v10813, %v11239
    %v11281 = vadd.f32 %v10710, %v11136
    %v11282 = vadd.f32 %v10816, %v11242
    %v11283 = vadd.f32 %v10712, %v11138
    %v11284 = vadd.f32 %v10818, %v11244
    %v11285 = vadd.f32 %v10715, %v11141
    %v11286 = vadd.f32 %v10821, %v11247
    %v11287 = vadd.f32 %v10717, %v11143
    %v11288 = vadd.f32 %v10823, %v11249
    %v11289 = vadd.f32 %v10720, %v11146
    %v11290 = vadd.f32 %v10826, %v11252
    %v11291 = vadd.f32 %v10722, %v11148
    %v11292 = vadd.f32 %v10828, %v11254
    %v11293 = vadd.f32 %v10725, %v11151
    %v11294 = vadd.f32 %v10831, %v11257
    %v11295 = vadd.f32 %v10727, %v11153
    %v11296 = vadd.f32 %v10833, %v11259
    %v11297 = vadd.f32 %v10730, %v11156
    %v11298 = vadd.f32 %v10836, %v11262
    %v11299 = vmul.f32 %v11265, %v8923
    %v11300 = vmul.f32 %v11266, %v8923
    %v11301 = vmul.f32 %v11267, %v8924
    %v11302 = vmul.f32 %v11268, %v8924
    %v11303 = vmul.f32 %v11269, %v8925
    %v11304 = vmul.f32 %v11270, %v8925
    %v11305 = vmul.f32 %v11271, %v8926
    %v11306 = vmul.f32 %v11272, %v8926
    %v11307 = vmul.f32 %v11273, %v8927
    %v11308 = vmul.f32 %v11274, %v8927
    %v11309 = vmul.f32 %v11275, %v8928
    %v11310 = vmul.f32 %v11276, %v8928
    %v11311 = vmul.f32 %v11277, %v8929
    %v11312 = vmul.f32 %v11278, %v8929
    %v11313 = vmul.f32 %v11279, %v8930
    %v11314 = vmul.f32 %v11280, %v8930
    %v11315 = vmul.f32 %v11281, %v8931
    %v11316 = vmul.f32 %v11282, %v8931
    %v11317 = vmul.f32 %v11283, %v8932
    %v11318 = vmul.f32 %v11284, %v8932
    %v11319 = vmul.f32 %v11285, %v8933
    %v11320 = vmul.f32 %v11286, %v8933
    %v11321 = vmul.f32 %v11287, %v8934
    %v11322 = vmul.f32 %v11288, %v8934
    %v11323 = vmul.f32 %v11289, %v8935
    %v11324 = vmul.f32 %v11290, %v8935
    %v11325 = vmul.f32 %v11291, %v8936
    %v11326 = vmul.f32 %v11292, %v8936
    %v11327 = vmul.f32 %v11293, %v8937
    %v11328 = vmul.f32 %v11294, %v8937
    %v11329 = vmul.f32 %v11295, %v8938
    %v11330 = vmul.f32 %v11296, %v8938
    %v11331 = vmul.f32 %v11297, %v8939
    %v11332 = vmul.f32 %v11298, %v8939
    %v11333 = vadd.f32 %v11299, %v11301
    %v11334 = vadd.f32 %v11333, %v11303
    %v11335 = vadd.f32 %v11334, %v11305
    %v11336 = vadd.f32 %v11335, %v11307
    %v11337 = vadd.f32 %v11336, %v11309
    %v11338 = vadd.f32 %v11337, %v11311
    %v11339 = vadd.f32 %v11338, %v11313
    %v11340 = vadd.f32 %v11339, %v11315
    %v11341 = vadd.f32 %v11340, %v11317
    %v11342 = vadd.f32 %v11341, %v11319
    %v11343 = vadd.f32 %v11342, %v11321
    %v11344 = vadd.f32 %v11343, %v11323
    %v11345 = vadd.f32 %v11344, %v11325
    %v11346 = vadd.f32 %v11345, %v11327
    %v11347 = vadd.f32 %v11346, %v11329
    %v11348 = vsel %vm519, %v11331, 0.0
    %v11349 = vadd.f32 %v11347, %v11348
    %v11350 = vrot.slane %v11349, 4
    %v11351 = vadd.f32 %v11349, %v11350
    %v11352 = vrot.slane %v11351, 2
    %v11353 = vadd.f32 %v11351, %v11352
    %v11354 = vrot.slane %v11353, 1
    %v11355 = vadd.f32 %v11353, %v11354
    %v11356 = vsel %vm8997, %v11300, 0.0
    %v11357 = vsel %vm8997, %v11302, 0.0
    %v11358 = vadd.f32 %v11356, %v11357
    %v11359 = vsel %vm8997, %v11304, 0.0
    %v11360 = vadd.f32 %v11358, %v11359
    %v11361 = vsel %vm8997, %v11306, 0.0
    %v11362 = vadd.f32 %v11360, %v11361
    %v11363 = vsel %vm8997, %v11308, 0.0
    %v11364 = vadd.f32 %v11362, %v11363
    %v11365 = vsel %vm8997, %v11310, 0.0
    %v11366 = vadd.f32 %v11364, %v11365
    %v11367 = vsel %vm8997, %v11312, 0.0
    %v11368 = vadd.f32 %v11366, %v11367
    %v11369 = vsel %vm8997, %v11314, 0.0
    %v11370 = vadd.f32 %v11368, %v11369
    %v11371 = vsel %vm8997, %v11316, 0.0
    %v11372 = vadd.f32 %v11370, %v11371
    %v11373 = vsel %vm8997, %v11318, 0.0
    %v11374 = vadd.f32 %v11372, %v11373
    %v11375 = vsel %vm8997, %v11320, 0.0
    %v11376 = vadd.f32 %v11374, %v11375
    %v11377 = vsel %vm8997, %v11322, 0.0
    %v11378 = vadd.f32 %v11376, %v11377
    %v11379 = vsel %vm8997, %v11324, 0.0
    %v11380 = vadd.f32 %v11378, %v11379
    %v11381 = vsel %vm8997, %v11326, 0.0
    %v11382 = vadd.f32 %v11380, %v11381
    %v11383 = vsel %vm8997, %v11328, 0.0
    %v11384 = vadd.f32 %v11382, %v11383
    %v11385 = vsel %vm8997, %v11330, 0.0
    %v11386 = vadd.f32 %v11384, %v11385
    %v11387 = vsel %vm9029, %v11332, 0.0
    %v11388 = vadd.f32 %v11386, %v11387
    %v11389 = vrot.slane %v11388, 4
    %v11390 = vadd.f32 %v11388, %v11389
    %v11391 = vrot.slane %v11390, 2
    %v11392 = vadd.f32 %v11390, %v11391
    %v11393 = vrot.slane %v11392, 1
    %v11394 = vadd.f32 %v11392, %v11393
    %v11395 = vmul.f32 %v11299, %v11265
    %v11396 = vmul.f32 %v11300, %v11266
    %v11397 = vmul.f32 %v11301, %v11267
    %v11398 = vmul.f32 %v11302, %v11268
    %v11399 = vmul.f32 %v11303, %v11269
    %v11400 = vmul.f32 %v11304, %v11270
    %v11401 = vmul.f32 %v11305, %v11271
    %v11402 = vmul.f32 %v11306, %v11272
    %v11403 = vmul.f32 %v11307, %v11273
    %v11404 = vmul.f32 %v11308, %v11274
    %v11405 = vmul.f32 %v11309, %v11275
    %v11406 = vmul.f32 %v11310, %v11276
    %v11407 = vmul.f32 %v11311, %v11277
    %v11408 = vmul.f32 %v11312, %v11278
    %v11409 = vmul.f32 %v11313, %v11279
    %v11410 = vmul.f32 %v11314, %v11280
    %v11411 = vmul.f32 %v11315, %v11281
    %v11412 = vmul.f32 %v11316, %v11282
    %v11413 = vmul.f32 %v11317, %v11283
    %v11414 = vmul.f32 %v11318, %v11284
    %v11415 = vmul.f32 %v11319, %v11285
    %v11416 = vmul.f32 %v11320, %v11286
    %v11417 = vmul.f32 %v11321, %v11287
    %v11418 = vmul.f32 %v11322, %v11288
    %v11419 = vmul.f32 %v11323, %v11289
    %v11420 = vmul.f32 %v11324, %v11290
    %v11421 = vmul.f32 %v11325, %v11291
    %v11422 = vmul.f32 %v11326, %v11292
    %v11423 = vmul.f32 %v11327, %v11293
    %v11424 = vmul.f32 %v11328, %v11294
    %v11425 = vmul.f32 %v11329, %v11295
    %v11426 = vmul.f32 %v11330, %v11296
    %v11427 = vmul.f32 %v11331, %v11297
    %v11428 = vmul.f32 %v11332, %v11298
    %v11429 = vadd.f32 %v11395, %v11397
    %v11430 = vadd.f32 %v11429, %v11399
    %v11431 = vadd.f32 %v11430, %v11401
    %v11432 = vadd.f32 %v11431, %v11403
    %v11433 = vadd.f32 %v11432, %v11405
    %v11434 = vadd.f32 %v11433, %v11407
    %v11435 = vadd.f32 %v11434, %v11409
    %v11436 = vadd.f32 %v11435, %v11411
    %v11437 = vadd.f32 %v11436, %v11413
    %v11438 = vadd.f32 %v11437, %v11415
    %v11439 = vadd.f32 %v11438, %v11417
    %v11440 = vadd.f32 %v11439, %v11419
    %v11441 = vadd.f32 %v11440, %v11421
    %v11442 = vadd.f32 %v11441, %v11423
    %v11443 = vadd.f32 %v11442, %v11425
    %v11444 = vsel %vm519, %v11427, 0.0
    %v11445 = vadd.f32 %v11443, %v11444
    %v11446 = vrot.slane %v11445, 4
    %v11447 = vadd.f32 %v11445, %v11446
    %v11448 = vrot.slane %v11447, 2
    %v11449 = vadd.f32 %v11447, %v11448
    %v11450 = vrot.slane %v11449, 1
    %v11451 = vadd.f32 %v11449, %v11450
    %v11452 = vsel %vm8997, %v11396, 0.0
    %v11453 = vsel %vm8997, %v11398, 0.0
    %v11454 = vadd.f32 %v11452, %v11453
    %v11455 = vsel %vm8997, %v11400, 0.0
    %v11456 = vadd.f32 %v11454, %v11455
    %v11457 = vsel %vm8997, %v11402, 0.0
    %v11458 = vadd.f32 %v11456, %v11457
    %v11459 = vsel %vm8997, %v11404, 0.0
    %v11460 = vadd.f32 %v11458, %v11459
    %v11461 = vsel %vm8997, %v11406, 0.0
    %v11462 = vadd.f32 %v11460, %v11461
    %v11463 = vsel %vm8997, %v11408, 0.0
    %v11464 = vadd.f32 %v11462, %v11463
    %v11465 = vsel %vm8997, %v11410, 0.0
    %v11466 = vadd.f32 %v11464, %v11465
    %v11467 = vsel %vm8997, %v11412, 0.0
    %v11468 = vadd.f32 %v11466, %v11467
    %v11469 = vsel %vm8997, %v11414, 0.0
    %v11470 = vadd.f32 %v11468, %v11469
    %v11471 = vsel %vm8997, %v11416, 0.0
    %v11472 = vadd.f32 %v11470, %v11471
    %v11473 = vsel %vm8997, %v11418, 0.0
    %v11474 = vadd.f32 %v11472, %v11473
    %v11475 = vsel %vm8997, %v11420, 0.0
    %v11476 = vadd.f32 %v11474, %v11475
    %v11477 = vsel %vm8997, %v11422, 0.0
    %v11478 = vadd.f32 %v11476, %v11477
    %v11479 = vsel %vm8997, %v11424, 0.0
    %v11480 = vadd.f32 %v11478, %v11479
    %v11481 = vsel %vm8997, %v11426, 0.0
    %v11482 = vadd.f32 %v11480, %v11481
    %v11483 = vsel %vm9029, %v11428, 0.0
    %v11484 = vadd.f32 %v11482, %v11483
    %v11485 = vrot.slane %v11484, 4
    %v11486 = vadd.f32 %v11484, %v11485
    %v11487 = vrot.slane %v11486, 2
    %v11488 = vadd.f32 %v11486, %v11487
    %v11489 = vrot.slane %v11488, 1
    %v11490 = vadd.f32 %v11488, %v11489
    %s11491 = scalar_lea.vmem [#allocation18], 48
    %v11492 = vld [vmem:[%s11491] sm:$0xff]
    %v11493 = vld [vmem:[%s11491 + $0x8] sm:$0xff]
    %v11495 = vsel %vm8997, %v11394, 0
    %v11498 = vsel %vm8997, %v11493, 0
    %11500 = vmatpush.xpose.msra.mxu0 0.0
    %11501 = vmatpush.xpose.msra.mxu0 0.0
    %11502 = vmatpush.xpose.msra.mxu0 0.0
    %11503 = vmatpush.xpose.msra.mxu0 0.0
    %11504 = vmatpush.xpose.msra.mxu0 0.0
    %11505 = vmatpush.xpose.msra.mxu0 0.0
    %11506 = vmatpush.xpose.msra.mxu0 0.0
    %11507 = vmatpush.xpose.msra.mxu0 0.0
    %11508 = vmatpush.xpose.msra.mxu0 0.0
    %11509 = vmatpush.xpose.msra.mxu0 0.0
    %11510 = vmatpush.xpose.msra.mxu0 0.0
    %11511 = vmatpush.xpose.msra.mxu0 0.0
    %11512 = vmatpush.xpose.msra.mxu0 0.0
    %11513 = vmatpush.xpose.msra.mxu0 0.0
    %11514 = vmatpush.xpose.msra.mxu0 0.0
    %11515 = vmatpush.xpose.msra.mxu0 %v11492
    %11516 = vmatmul.f32.gmra.mxu0 %v11355
    %v11517 = vpop.f32.mrf.mxu0
    %v11518 = vadd.f32 0.0, %v11517
    %11519 = vdwg.mxu0
    %11520 = vmatpush.xpose.msra.mxu0 0.0
    %11521 = vmatpush.xpose.msra.mxu0 0.0
    %11522 = vmatpush.xpose.msra.mxu0 0.0
    %11523 = vmatpush.xpose.msra.mxu0 0.0
    %11524 = vmatpush.xpose.msra.mxu0 0.0
    %11525 = vmatpush.xpose.msra.mxu0 0.0
    %11526 = vmatpush.xpose.msra.mxu0 0.0
    %11527 = vmatpush.xpose.msra.mxu0 0.0
    %11528 = vmatpush.xpose.msra.mxu0 0.0
    %11529 = vmatpush.xpose.msra.mxu0 0.0
    %11530 = vmatpush.xpose.msra.mxu0 0.0
    %11531 = vmatpush.xpose.msra.mxu0 0.0
    %11532 = vmatpush.xpose.msra.mxu0 0.0
    %11533 = vmatpush.xpose.msra.mxu0 0.0
    %11534 = vmatpush.xpose.msra.mxu0 0.0
    %11535 = vmatpush.xpose.msra.mxu0 %v11498
    %11536 = vmatmul.f32.gmra.mxu0 %v11495
    %v11537 = vpop.f32.mrf.mxu0
    %v11538 = vadd.f32 %v11518, %v11537
    %11539 = vdwg.mxu0
    %v11540 = vmul.f32 %v11538, 0.00012207031
    %v11542 = vsel %vm8997, %v11490, 0
    %11544 = vmatpush.xpose.msra.mxu0 0.0
    %11545 = vmatpush.xpose.msra.mxu0 0.0
    %11546 = vmatpush.xpose.msra.mxu0 0.0
    %11547 = vmatpush.xpose.msra.mxu0 0.0
    %11548 = vmatpush.xpose.msra.mxu0 0.0
    %11549 = vmatpush.xpose.msra.mxu0 0.0
    %11550 = vmatpush.xpose.msra.mxu0 0.0
    %11551 = vmatpush.xpose.msra.mxu0 0.0
    %11552 = vmatpush.xpose.msra.mxu0 0.0
    %11553 = vmatpush.xpose.msra.mxu0 0.0
    %11554 = vmatpush.xpose.msra.mxu0 0.0
    %11555 = vmatpush.xpose.msra.mxu0 0.0
    %11556 = vmatpush.xpose.msra.mxu0 0.0
    %11557 = vmatpush.xpose.msra.mxu0 0.0
    %11558 = vmatpush.xpose.msra.mxu0 0.0
    %11559 = vmatpush.xpose.msra.mxu0 %v11492
    %11560 = vmatmul.f32.gmra.mxu0 %v11451
    %v11561 = vpop.f32.mrf.mxu0
    %v11562 = vadd.f32 0.0, %v11561
    %11563 = vdwg.mxu0
    %11564 = vmatpush.xpose.msra.mxu0 0.0
    %11565 = vmatpush.xpose.msra.mxu0 0.0
    %11566 = vmatpush.xpose.msra.mxu0 0.0
    %11567 = vmatpush.xpose.msra.mxu0 0.0
    %11568 = vmatpush.xpose.msra.mxu0 0.0
    %11569 = vmatpush.xpose.msra.mxu0 0.0
    %11570 = vmatpush.xpose.msra.mxu0 0.0
    %11571 = vmatpush.xpose.msra.mxu0 0.0
    %11572 = vmatpush.xpose.msra.mxu0 0.0
    %11573 = vmatpush.xpose.msra.mxu0 0.0
    %11574 = vmatpush.xpose.msra.mxu0 0.0
    %11575 = vmatpush.xpose.msra.mxu0 0.0
    %11576 = vmatpush.xpose.msra.mxu0 0.0
    %11577 = vmatpush.xpose.msra.mxu0 0.0
    %11578 = vmatpush.xpose.msra.mxu0 0.0
    %11579 = vmatpush.xpose.msra.mxu0 %v11498
    %11580 = vmatmul.f32.gmra.mxu0 %v11542
    %v11581 = vpop.f32.mrf.mxu0
    %v11582 = vadd.f32 %v11562, %v11581
    %11583 = vdwg.mxu0
    %v11584 = vmul.f32 %v11582, 0.00012207031
    %v11585 = vmul.f32 %v11540, %v11540
    %v11586 = vsub.f32 %v11584, %v11585
    %v11587 = vmax.f32 %v11586, 0.0
    %s11588 = scalar_lea.vmem [#allocation19], 10
    %v11589 = vld [vmem:[%s11588] sm:$0x3]
    %v11590 = vadd.f32 %v11587, 1e-05
    %v11591 = vrsqrt.pop %v11590
    %v11592 = vmul.f32 %v11591, %v11590
    %v11593 = vmul.f32 %v11592, %v11591
    %v11594 = vmul.f32 0.5, %v11593
    %v11595 = vsub.f32 1.5, %v11594
    %v11596 = vmul.f32 %v11591, %v11595
    %vm11597 = vweird.f32 %v11590
    %vm11598 = vweird.f32 %v11591
    %vm11599 = vmor %vm11597, %vm11598
    %v11600 = vsel %vm11599, %v11591, %v11596
    %v11601 = vmul.f32 %v11589, %v11600
    %v11602 = vmul.f32 %v11540, %v11601
    %v11604 = vrot.slane %v11602, 7
    %v11606 = vsub.f32 %v11589, %v11604
    %v11608 = vsel %vm608, %v11601, 0
    %11610 = vmatpush.msra.mxu0 0.0
    %11611 = vmatpush.msra.mxu0 0.0
    %11612 = vmatpush.msra.mxu0 0.0
    %11613 = vmatpush.msra.mxu0 0.0
    %11614 = vmatpush.msra.mxu0 0.0
    %11615 = vmatpush.msra.mxu0 0.0
    %11616 = vmatpush.msra.mxu0 0.0
    %11617 = vmatpush.msra.mxu0 0.0
    %11618 = vmatpush.msra.mxu0 0.0
    %11619 = vmatpush.msra.mxu0 0.0
    %11620 = vmatpush.msra.mxu0 0.0
    %11621 = vmatpush.msra.mxu0 0.0
    %11622 = vmatpush.msra.mxu0 0.0
    %11623 = vmatpush.msra.mxu0 0.0
    %11624 = vmatpush.msra.mxu0 0.0
    %11625 = vmatpush.msra.mxu0 %v11492
    %11626 = vmatmul.f32.gmra.mxu0 %v11608
    %v11627 = vpop.f32.mrf.mxu0
    %v11628 = vadd.f32 0.0, %v11627
    %11629 = vdwg.mxu0
    %11630 = vmatpush.msra.mxu0 0.0
    %11631 = vmatpush.msra.mxu0 0.0
    %11632 = vmatpush.msra.mxu0 0.0
    %11633 = vmatpush.msra.mxu0 0.0
    %11634 = vmatpush.msra.mxu0 0.0
    %11635 = vmatpush.msra.mxu0 0.0
    %11636 = vmatpush.msra.mxu0 0.0
    %11637 = vmatpush.msra.mxu0 0.0
    %11638 = vmatpush.msra.mxu0 0.0
    %11639 = vmatpush.msra.mxu0 0.0
    %11640 = vmatpush.msra.mxu0 0.0
    %11641 = vmatpush.msra.mxu0 0.0
    %11642 = vmatpush.msra.mxu0 0.0
    %11643 = vmatpush.msra.mxu0 0.0
    %11644 = vmatpush.msra.mxu0 0.0
    %11645 = vmatpush.msra.mxu0 %v11493
    %11646 = vmatmul.f32.gmra.mxu0 %v11608
    %v11647 = vpop.f32.mrf.mxu0
    %v11648 = vadd.f32 0.0, %v11647
    %11649 = vdwg.mxu0
    %v11651 = vrot.slane %v11606, 1
    %v11652 = vsel %vm608, %v11651, 0
    %11654 = vmatpush.msra.mxu0 0.0
    %11655 = vmatpush.msra.mxu0 0.0
    %11656 = vmatpush.msra.mxu0 0.0
    %11657 = vmatpush.msra.mxu0 0.0
    %11658 = vmatpush.msra.mxu0 0.0
    %11659 = vmatpush.msra.mxu0 0.0
    %11660 = vmatpush.msra.mxu0 0.0
    %11661 = vmatpush.msra.mxu0 0.0
    %11662 = vmatpush.msra.mxu0 0.0
    %11663 = vmatpush.msra.mxu0 0.0
    %11664 = vmatpush.msra.mxu0 0.0
    %11665 = vmatpush.msra.mxu0 0.0
    %11666 = vmatpush.msra.mxu0 0.0
    %11667 = vmatpush.msra.mxu0 0.0
    %11668 = vmatpush.msra.mxu0 0.0
    %11669 = vmatpush.msra.mxu0 %v11492
    %11670 = vmatmul.f32.gmra.mxu0 %v11652
    %v11671 = vpop.f32.mrf.mxu0
    %v11672 = vadd.f32 0.0, %v11671
    %11673 = vdwg.mxu0
    %11674 = vmatpush.msra.mxu0 0.0
    %11675 = vmatpush.msra.mxu0 0.0
    %11676 = vmatpush.msra.mxu0 0.0
    %11677 = vmatpush.msra.mxu0 0.0
    %11678 = vmatpush.msra.mxu0 0.0
    %11679 = vmatpush.msra.mxu0 0.0
    %11680 = vmatpush.msra.mxu0 0.0
    %11681 = vmatpush.msra.mxu0 0.0
    %11682 = vmatpush.msra.mxu0 0.0
    %11683 = vmatpush.msra.mxu0 0.0
    %11684 = vmatpush.msra.mxu0 0.0
    %11685 = vmatpush.msra.mxu0 0.0
    %11686 = vmatpush.msra.mxu0 0.0
    %11687 = vmatpush.msra.mxu0 0.0
    %11688 = vmatpush.msra.mxu0 0.0
    %11689 = vmatpush.msra.mxu0 %v11493
    %11690 = vmatmul.f32.gmra.mxu0 %v11652
    %v11691 = vpop.f32.mrf.mxu0
    %v11692 = vadd.f32 0.0, %v11691
    %11693 = vdwg.mxu0
    %v11694 = vperm.slane %v11628, 0
    %v11695 = vperm.slane %v11648, 0
    %v11696 = vmul.f32 %v11265, %v11694
    %v11697 = vmul.f32 %v11266, %v11695
    %v11698 = vmul.f32 %v11267, %v11694
    %v11699 = vmul.f32 %v11268, %v11695
    %v11700 = vmul.f32 %v11269, %v11694
    %v11701 = vmul.f32 %v11270, %v11695
    %v11702 = vmul.f32 %v11271, %v11694
    %v11703 = vmul.f32 %v11272, %v11695
    %v11704 = vmul.f32 %v11273, %v11694
    %v11705 = vmul.f32 %v11274, %v11695
    %v11706 = vmul.f32 %v11275, %v11694
    %v11707 = vmul.f32 %v11276, %v11695
    %v11708 = vmul.f32 %v11277, %v11694
    %v11709 = vmul.f32 %v11278, %v11695
    %v11710 = vmul.f32 %v11279, %v11694
    %v11711 = vmul.f32 %v11280, %v11695
    %v11712 = vmul.f32 %v11281, %v11694
    %v11713 = vmul.f32 %v11282, %v11695
    %v11714 = vmul.f32 %v11283, %v11694
    %v11715 = vmul.f32 %v11284, %v11695
    %v11716 = vmul.f32 %v11285, %v11694
    %v11717 = vmul.f32 %v11286, %v11695
    %v11718 = vmul.f32 %v11287, %v11694
    %v11719 = vmul.f32 %v11288, %v11695
    %v11720 = vmul.f32 %v11289, %v11694
    %v11721 = vmul.f32 %v11290, %v11695
    %v11722 = vmul.f32 %v11291, %v11694
    %v11723 = vmul.f32 %v11292, %v11695
    %v11724 = vmul.f32 %v11293, %v11694
    %v11725 = vmul.f32 %v11294, %v11695
    %v11726 = vmul.f32 %v11295, %v11694
    %v11727 = vmul.f32 %v11296, %v11695
    %v11728 = vmul.f32 %v11297, %v11694
    %v11729 = vmul.f32 %v11298, %v11695
    %v11730 = vperm.slane %v11672, 0
    %v11731 = vperm.slane %v11692, 0
    %v11732 = vadd.f32 %v11696, %v11730
    %v11733 = vadd.f32 %v11697, %v11731
    %v11734 = vadd.f32 %v11698, %v11730
    %v11735 = vadd.f32 %v11699, %v11731
    %v11736 = vadd.f32 %v11700, %v11730
    %v11737 = vadd.f32 %v11701, %v11731
    %v11738 = vadd.f32 %v11702, %v11730
    %v11739 = vadd.f32 %v11703, %v11731
    %v11740 = vadd.f32 %v11704, %v11730
    %v11741 = vadd.f32 %v11705, %v11731
    %v11742 = vadd.f32 %v11706, %v11730
    %v11743 = vadd.f32 %v11707, %v11731
    %v11744 = vadd.f32 %v11708, %v11730
    %v11745 = vadd.f32 %v11709, %v11731
    %v11746 = vadd.f32 %v11710, %v11730
    %v11747 = vadd.f32 %v11711, %v11731
    %v11748 = vadd.f32 %v11712, %v11730
    %v11749 = vadd.f32 %v11713, %v11731
    %v11750 = vadd.f32 %v11714, %v11730
    %v11751 = vadd.f32 %v11715, %v11731
    %v11752 = vadd.f32 %v11716, %v11730
    %v11753 = vadd.f32 %v11717, %v11731
    %v11754 = vadd.f32 %v11718, %v11730
    %v11755 = vadd.f32 %v11719, %v11731
    %v11756 = vadd.f32 %v11720, %v11730
    %v11757 = vadd.f32 %v11721, %v11731
    %v11758 = vadd.f32 %v11722, %v11730
    %v11759 = vadd.f32 %v11723, %v11731
    %v11760 = vadd.f32 %v11724, %v11730
    %v11761 = vadd.f32 %v11725, %v11731
    %v11762 = vadd.f32 %v11726, %v11730
    %v11763 = vadd.f32 %v11727, %v11731
    %v11764 = vadd.f32 %v11728, %v11730
    %v11765 = vadd.f32 %v11729, %v11731
    %v11766 = vmul.f32 %v11732, 0.5
    %v11767 = vmul.f32 %v11733, 0.5
    %v11768 = vmul.f32 %v11734, 0.5
    %v11769 = vmul.f32 %v11735, 0.5
    %v11770 = vmul.f32 %v11736, 0.5
    %v11771 = vmul.f32 %v11737, 0.5
    %v11772 = vmul.f32 %v11738, 0.5
    %v11773 = vmul.f32 %v11739, 0.5
    %v11774 = vmul.f32 %v11740, 0.5
    %v11775 = vmul.f32 %v11741, 0.5
    %v11776 = vmul.f32 %v11742, 0.5
    %v11777 = vmul.f32 %v11743, 0.5
    %v11778 = vmul.f32 %v11744, 0.5
    %v11779 = vmul.f32 %v11745, 0.5
    %v11780 = vmul.f32 %v11746, 0.5
    %v11781 = vmul.f32 %v11747, 0.5
    %v11782 = vmul.f32 %v11748, 0.5
    %v11783 = vmul.f32 %v11749, 0.5
    %v11784 = vmul.f32 %v11750, 0.5
    %v11785 = vmul.f32 %v11751, 0.5
    %v11786 = vmul.f32 %v11752, 0.5
    %v11787 = vmul.f32 %v11753, 0.5
    %v11788 = vmul.f32 %v11754, 0.5
    %v11789 = vmul.f32 %v11755, 0.5
    %v11790 = vmul.f32 %v11756, 0.5
    %v11791 = vmul.f32 %v11757, 0.5
    %v11792 = vmul.f32 %v11758, 0.5
    %v11793 = vmul.f32 %v11759, 0.5
    %v11794 = vmul.f32 %v11760, 0.5
    %v11795 = vmul.f32 %v11761, 0.5
    %v11796 = vmul.f32 %v11762, 0.5
    %v11797 = vmul.f32 %v11763, 0.5
    %v11798 = vmul.f32 %v11764, 0.5
    %v11799 = vmul.f32 %v11765, 0.5
    %v11800 = vtanh.pop %v11766
    %v11801 = vtanh.pop %v11767
    %v11802 = vtanh.pop %v11768
    %v11803 = vtanh.pop %v11769
    %v11804 = vtanh.pop %v11770
    %v11805 = vtanh.pop %v11771
    %v11806 = vtanh.pop %v11772
    %v11807 = vtanh.pop %v11773
    %v11808 = vtanh.pop %v11774
    %v11809 = vtanh.pop %v11775
    %v11810 = vtanh.pop %v11776
    %v11811 = vtanh.pop %v11777
    %v11812 = vtanh.pop %v11778
    %v11813 = vtanh.pop %v11779
    %v11814 = vtanh.pop %v11780
    %v11815 = vtanh.pop %v11781
    %v11816 = vtanh.pop %v11782
    %v11817 = vtanh.pop %v11783
    %v11818 = vtanh.pop %v11784
    %v11819 = vtanh.pop %v11785
    %v11820 = vtanh.pop %v11786
    %v11821 = vtanh.pop %v11787
    %v11822 = vtanh.pop %v11788
    %v11823 = vtanh.pop %v11789
    %v11824 = vtanh.pop %v11790
    %v11825 = vtanh.pop %v11791
    %v11826 = vtanh.pop %v11792
    %v11827 = vtanh.pop %v11793
    %v11828 = vtanh.pop %v11794
    %v11829 = vtanh.pop %v11795
    %v11830 = vtanh.pop %v11796
    %v11831 = vtanh.pop %v11797
    %v11832 = vtanh.pop %v11798
    %v11833 = vtanh.pop %v11799
    %v11834 = vadd.f32 %v11800, 1.0
    %v11835 = vadd.f32 %v11801, 1.0
    %v11836 = vadd.f32 %v11802, 1.0
    %v11837 = vadd.f32 %v11803, 1.0
    %v11838 = vadd.f32 %v11804, 1.0
    %v11839 = vadd.f32 %v11805, 1.0
    %v11840 = vadd.f32 %v11806, 1.0
    %v11841 = vadd.f32 %v11807, 1.0
    %v11842 = vadd.f32 %v11808, 1.0
    %v11843 = vadd.f32 %v11809, 1.0
    %v11844 = vadd.f32 %v11810, 1.0
    %v11845 = vadd.f32 %v11811, 1.0
    %v11846 = vadd.f32 %v11812, 1.0
    %v11847 = vadd.f32 %v11813, 1.0
    %v11848 = vadd.f32 %v11814, 1.0
    %v11849 = vadd.f32 %v11815, 1.0
    %v11850 = vadd.f32 %v11816, 1.0
    %v11851 = vadd.f32 %v11817, 1.0
    %v11852 = vadd.f32 %v11818, 1.0
    %v11853 = vadd.f32 %v11819, 1.0
    %v11854 = vadd.f32 %v11820, 1.0
    %v11855 = vadd.f32 %v11821, 1.0
    %v11856 = vadd.f32 %v11822, 1.0
    %v11857 = vadd.f32 %v11823, 1.0
    %v11858 = vadd.f32 %v11824, 1.0
    %v11859 = vadd.f32 %v11825, 1.0
    %v11860 = vadd.f32 %v11826, 1.0
    %v11861 = vadd.f32 %v11827, 1.0
    %v11862 = vadd.f32 %v11828, 1.0
    %v11863 = vadd.f32 %v11829, 1.0
    %v11864 = vadd.f32 %v11830, 1.0
    %v11865 = vadd.f32 %v11831, 1.0
    %v11866 = vadd.f32 %v11832, 1.0
    %v11867 = vadd.f32 %v11833, 1.0
    %v11868 = vmul.f32 %v11834, 0.5
    %v11869 = vmul.f32 %v11835, 0.5
    %v11870 = vmul.f32 %v11836, 0.5
    %v11871 = vmul.f32 %v11837, 0.5
    %v11872 = vmul.f32 %v11838, 0.5
    %v11873 = vmul.f32 %v11839, 0.5
    %v11874 = vmul.f32 %v11840, 0.5
    %v11875 = vmul.f32 %v11841, 0.5
    %v11876 = vmul.f32 %v11842, 0.5
    %v11877 = vmul.f32 %v11843, 0.5
    %v11878 = vmul.f32 %v11844, 0.5
    %v11879 = vmul.f32 %v11845, 0.5
    %v11880 = vmul.f32 %v11846, 0.5
    %v11881 = vmul.f32 %v11847, 0.5
    %v11882 = vmul.f32 %v11848, 0.5
    %v11883 = vmul.f32 %v11849, 0.5
    %v11884 = vmul.f32 %v11850, 0.5
    %v11885 = vmul.f32 %v11851, 0.5
    %v11886 = vmul.f32 %v11852, 0.5
    %v11887 = vmul.f32 %v11853, 0.5
    %v11888 = vmul.f32 %v11854, 0.5
    %v11889 = vmul.f32 %v11855, 0.5
    %v11890 = vmul.f32 %v11856, 0.5
    %v11891 = vmul.f32 %v11857, 0.5
    %v11892 = vmul.f32 %v11858, 0.5
    %v11893 = vmul.f32 %v11859, 0.5
    %v11894 = vmul.f32 %v11860, 0.5
    %v11895 = vmul.f32 %v11861, 0.5
    %v11896 = vmul.f32 %v11862, 0.5
    %v11897 = vmul.f32 %v11863, 0.5
    %v11898 = vmul.f32 %v11864, 0.5
    %v11899 = vmul.f32 %v11865, 0.5
    %v11900 = vmul.f32 %v11866, 0.5
    %v11901 = vmul.f32 %v11867, 0.5
    %11902 = vst [vmem:[%s16] sm:$0xff] %v11868
    %11903 = vst.msk [vmem:[%s16 + $0x8] sm:$0xff] %vm8997, %v11869
    %11904 = vst [vmem:[%s16 + $0x10] sm:$0xff] %v11870
    %11905 = vst.msk [vmem:[%s16 + $0x18] sm:$0xff] %vm8997, %v11871
    %11906 = vst [vmem:[%s16 + $0x20] sm:$0xff] %v11872
    %11907 = vst.msk [vmem:[%s16 + $0x28] sm:$0xff] %vm8997, %v11873
    %11908 = vst [vmem:[%s16 + $0x30] sm:$0xff] %v11874
    %11909 = vst.msk [vmem:[%s16 + $0x38] sm:$0xff] %vm8997, %v11875
    %11910 = vst [vmem:[%s16 + $0x40] sm:$0xff] %v11876
    %11911 = vst.msk [vmem:[%s16 + $0x48] sm:$0xff] %vm8997, %v11877
    %11912 = vst [vmem:[%s16 + $0x50] sm:$0xff] %v11878
    %11913 = vst.msk [vmem:[%s16 + $0x58] sm:$0xff] %vm8997, %v11879
    %11914 = vst [vmem:[%s16 + $0x60] sm:$0xff] %v11880
    %11915 = vst.msk [vmem:[%s16 + $0x68] sm:$0xff] %vm8997, %v11881
    %11916 = vst [vmem:[%s16 + $0x70] sm:$0xff] %v11882
    %11917 = vst.msk [vmem:[%s16 + $0x78] sm:$0xff] %vm8997, %v11883
    %11918 = vst [vmem:[%s16 + $0x80] sm:$0xff] %v11884
    %11919 = vst.msk [vmem:[%s16 + $0x88] sm:$0xff] %vm8997, %v11885
    %11920 = vst [vmem:[%s16 + $0x90] sm:$0xff] %v11886
    %11921 = vst.msk [vmem:[%s16 + $0x98] sm:$0xff] %vm8997, %v11887
    %11922 = vst [vmem:[%s16 + $0xa0] sm:$0xff] %v11888
    %11923 = vst.msk [vmem:[%s16 + $0xa8] sm:$0xff] %vm8997, %v11889
    %11924 = vst [vmem:[%s16 + $0xb0] sm:$0xff] %v11890
    %11925 = vst.msk [vmem:[%s16 + $0xb8] sm:$0xff] %vm8997, %v11891
    %11926 = vst [vmem:[%s16 + $0xc0] sm:$0xff] %v11892
    %11927 = vst.msk [vmem:[%s16 + $0xc8] sm:$0xff] %vm8997, %v11893
    %11928 = vst [vmem:[%s16 + $0xd0] sm:$0xff] %v11894
    %11929 = vst.msk [vmem:[%s16 + $0xd8] sm:$0xff] %vm8997, %v11895
    %11930 = vst [vmem:[%s16 + $0xe0] sm:$0xff] %v11896
    %11931 = vst.msk [vmem:[%s16 + $0xe8] sm:$0xff] %vm8997, %v11897
    %11932 = vst [vmem:[%s16 + $0xf0] sm:$0xff] %v11898
    %11933 = vst.msk [vmem:[%s16 + $0xf8] sm:$0xff] %vm8997, %v11899
    %11934 = vst [vmem:[%s16 + $0x100] sm:$0x3] %v11900
    %11935 = vst.msk [vmem:[%s16 + $0x108] sm:$0x3] %vm9029, %v11901
    // Predicated region
    $region114: #{forward.1} parent=1 // pred_check
      _
    $region115: #{forward.1} parent=1 // pred_check_branch
      %11937 = sbr.rel (0) target = $region117
    $region116: #{forward.1} parent=1 // pred_region
      _
    $region117: #{forward.1} parent=1 // pred_fallthru
      _
    // Predicated region
    $region118: #{forward.1} parent=1 // pred_check
      _
    $region119: #{forward.1} parent=1 // pred_check_branch
      %11939 = sbr.rel (0) target = $region121
    $region120: #{forward.1} parent=1 // pred_region
      _
    $region121: #{forward.1} parent=1 // pred_fallthru
      _
    %11940 = vsyncpa [#allocation3], 1
    %11941 = vsyncpa [#allocation5], 1
    %11942 = vsyncpa [#allocation8], 1
    %11943 = vsyncpa [#allocation11], 1
    %11944 = vsyncpa [#allocation14], 1
    %11945 = vsyncpa [#allocation17], 1
    %11946 = vsyncpa [#allocation20], 1

</llo_original>
